<compile_context>
chip_gen: v5e
topology: v5e:2x2
jax: 0.10.0
libtpu: 0.0.40
codegen_flags: <defaults>
</compile_context>

<pallas_src>
import jax
import jax.numpy as jnp
import numpy as np
from jax.experimental import pallas as pl
from jax.experimental.pallas import tpu as pltpu

BN_EPS = 1e-5


# ----------------------------- fused Pallas kernel -----------------------------

def _stack_booster_kernel(S_ref, Q_ref, U_ref, tgt_ref, ext_ref,
                          w1_ref, s1_ref, t1_ref,
                          w2_ref, s2_ref, t2_ref,
                          w3_ref, s3_ref, t3_ref,
                          w4_ref, b4_ref,
                          out_ref, comb_ref):
    f32 = jnp.float32
    n_stack = w1_ref.shape[0]
    n_taps = S_ref.shape[0]
    c1 = w1_ref.shape[2]          # 128 conv1 output channels
    p1 = S_ref.shape[2]           # conv1 output positions (8*8)
    ct = tgt_ref.shape[1]         # target channels
    ce = ext_ref.shape[1]         # extra channels

    target = tgt_ref[0]                      # (Ct, H*W) — channel-major, lane-dense
    comb_ref[ct:ct + ce, :] = ext_ref[0]     # extra channels fixed across all boosters

    for si in range(n_stack):
        # combine = cat([target, extra], channel axis) assembled in VMEM scratch
        comb_ref[0:ct, :] = target
        comb = comb_ref[...]                                                   # (Cin, H*W)

        # ---- conv1 3x3 s2 p3 d3 (+ folded BN + ReLU): 9 selection/weight matmuls ----
        h1 = jnp.zeros((c1, p1), f32)
        for t in range(n_taps):
            tap = jnp.dot(comb, S_ref[t], preferred_element_type=f32)          # (Cin, P1)
            h1 = h1 + jnp.dot(w1_ref[si, t], tap, preferred_element_type=f32)  # (128, P1)
        h1 = jnp.maximum(h1 * s1_ref[si] + t1_ref[si], 0.0)

        # ---- MaxPool 3x3 s2 p1: max of 9 selection matmuls (h1 >= 0 post-ReLU) ----
        pooled = jnp.dot(h1, Q_ref[0], preferred_element_type=f32)             # (128, P2)
        for t in range(1, n_taps):
            pooled = jnp.maximum(
                pooled, jnp.dot(h1, Q_ref[t], preferred_element_type=f32))

        # ---- 1x1 convs (+BN+ReLU) at pooled resolution, channel-major ----
        h2 = jnp.maximum(jnp.dot(w2_ref[si], pooled, preferred_element_type=f32)
                         * s2_ref[si] + t2_ref[si], 0.0)                       # (64, P2)
        h3 = jnp.maximum(jnp.dot(w3_ref[si], h2, preferred_element_type=f32)
                         * s3_ref[si] + t3_ref[si], 0.0)                       # (32, P2)
        h4 = jnp.maximum(jnp.dot(w4_ref[si], h3, preferred_element_type=f32)
                         + b4_ref[si], 0.0)                                    # (Ct, P2)

        # ---- Softmax2d == softmax over the channel (sublane) axis ----
        m = jnp.max(h4, axis=0, keepdims=True)
        e = jnp.exp(h4 - m)
        den = jnp.sum(e, axis=0, keepdims=True)
        sm = e * pl.reciprocal(den, approx=True)                               # (Ct, P2)

        # ---- nearest 4x upsample (two Upsample(2) commuted past pointwise tail) ----
        extra_info = jnp.dot(sm, U_ref[...], preferred_element_type=f32)       # (Ct, H*W)

        # ---- meta refinement ----
        tmax = jnp.max(target, axis=1, keepdims=True)                          # (Ct, 1)
        # clamp before sqrt guards NaN for negative inputs (heatmaps are >= 0)
        alpha = jnp.clip(jnp.sqrt(jnp.maximum(tmax, 0.0)), 0.0, 1.0)
        target = target * alpha + extra_info * (1.0 - alpha)

    out_ref[0] = target                                                        # lane-dense store


# ----------------------------- pallas_call wrapper -----------------------------

def _const_spec(a):
    nd = a.ndim
    return pl.BlockSpec(a.shape, lambda b: (0,) * nd)


@jax.jit
def stack_metabooster_forward(S, Q, U, params, target, extra):
    """target: (B, Ct, H, W), extra: (B, Ce, H, W) — PyTorch NCHW layout."""
    B, Ct, H, W = target.shape
    Ce = extra.shape[1]
    HW = H * W

    tgt = target.reshape(B, Ct, HW)
    ext = extra.reshape(B, Ce, HW)

    weights = (params["w1"], params["s1"], params["t1"],
               params["w2"], params["s2"], params["t2"],
               params["w3"], params["s3"], params["t3"],
               params["w4"], params["b4"])

    def batch_spec(c):
        return pl.BlockSpec((1, c, HW), lambda b: (b, 0, 0))

    out = pl.pallas_call(
        _stack_booster_kernel,
        out_shape=jax.ShapeDtypeStruct((B, Ct, HW), jnp.float32),
        grid=(B,),
        in_specs=[_const_spec(S), _const_spec(Q), _const_spec(U),
                  batch_spec(Ct), batch_spec(Ce)]
                 + [_const_spec(w) for w in weights],
        out_specs=pl.BlockSpec((1, Ct, HW), lambda b: (b, 0, 0)),
        scratch_shapes=[pltpu.VMEM((Ct + Ce, HW), jnp.float32)],
        compiler_params=pltpu.CompilerParams(
            dimension_semantics=("parallel",)),       # shards batch over v7x's 2 TCs
    )(S, Q, U, tgt, ext, *weights)

    return out.reshape(B, Ct, H, W)


# ----------------------------- constant 0/1 selection matrices -----------------------------

def build_selection_constants(H, W):
    """Tap-selection matrices for conv1 / maxpool and the nearest-4x upsample matrix."""
    oh1 = (H + 2 * 3 - 3 * (3 - 1) - 1) // 2 + 1     # conv: k=3, s=2, p=3, d=3
    ow1 = (W + 2 * 3 - 3 * (3 - 1) - 1) // 2 + 1
    oh2 = (oh1 + 2 * 1 - 3) // 2 + 1                 # pool: k=3, s=2, p=1
    ow2 = (ow1 + 2 * 1 - 3) // 2 + 1
    assert oh2 * 4 == H and ow2 * 4 == W, "spatial sizes must survive the 4x upsample"

    S = np.zeros((9, H * W, oh1 * ow1), np.float32)
    Q = np.zeros((9, oh1 * ow1, oh2 * ow2), np.float32)
    for ky in range(3):
        for kx in range(3):
            t = ky * 3 + kx
            for oy in range(oh1):
                for ox in range(ow1):
                    y = 2 * oy + 3 * ky - 3
                    x = 2 * ox + 3 * kx - 3
                    if 0 <= y < H and 0 <= x < W:
                        S[t, y * W + x, oy * ow1 + ox] = 1.0     # zero col == zero pad
            for oy in range(oh2):
                for ox in range(ow2):
                    y = 2 * oy + ky - 1
                    x = 2 * ox + kx - 1
                    if 0 <= y < oh1 and 0 <= x < ow1:
                        Q[t, y * ow1 + x, oy * ow2 + ox] = 1.0   # zero col OK (post-ReLU)

    U = np.zeros((oh2 * ow2, H * W), np.float32)                 # nearest 4x upsample
    for y in range(H):
        for x in range(W):
            U[(y // 4) * ow2 + (x // 4), y * W + x] = 1.0

    return jnp.asarray(S), jnp.asarray(Q), jnp.asarray(U)


# ----------------------------- parameters (eval-mode BN folded) -----------------------------

def _fold_bn(gamma, beta, mean, var, bias):
    s = gamma / jnp.sqrt(var + BN_EPS)
    t = beta + (bias - mean) * s
    return s.reshape(-1, 1), t.reshape(-1, 1)       # per-channel columns (C, 1)


def init_params(key, target_dim, extra_dim, stack_nums):
    cin = target_dim + extra_dim

    def one(k):
        ks = iter(jax.random.split(k, 24))

        def nrm(shape, scale=0.1):
            return scale * jax.random.normal(next(ks), shape, dtype=jnp.float32)

        def bn(c):
            g = 1.0 + 0.1 * jax.random.normal(next(ks), (c,), dtype=jnp.float32)
            b = 0.05 * jax.random.normal(next(ks), (c,), dtype=jnp.float32)
            m = 0.05 * jax.random.normal(next(ks), (c,), dtype=jnp.float32)
            v = 0.5 + jax.random.uniform(next(ks), (c,), dtype=jnp.float32)
            return g, b, m, v

        w1 = nrm((9, 128, cin))                      # per-tap (out=128, in=cin)
        b1 = nrm((128,), 0.05)
        s1, t1 = _fold_bn(*bn(128), b1)
        w2 = nrm((64, 128)); b2 = nrm((64,), 0.05); s2, t2 = _fold_bn(*bn(64), b2)
        w3 = nrm((32, 64));  b3 = nrm((32,), 0.05); s3, t3 = _fold_bn(*bn(32), b3)
        w4 = nrm((target_dim, 32))
        b4 = nrm((target_dim,), 0.05).reshape(target_dim, 1)
        return dict(w1=w1, s1=s1, t1=t1, w2=w2, s2=s2, t2=t2,
                    w3=w3, s3=s3, t3=t3, w4=w4, b4=b4)

    plist = [one(k) for k in jax.random.split(key, stack_nums)]
    return {k: jnp.stack([p[k] for p in plist]) for k in plist[0]}


# ----------------------------- main -----------------------------

if __name__ == "__main__":
    B, target_dim, extra_dim, H, W = 2, 4, 4, 16, 16
    stack_nums = 2

    key = jax.random.PRNGKey(0)
    k_t, k_e, k_p = jax.random.split(key, 3)

    # PyTorch-style NCHW inputs (heatmaps: non-negative)
    target = jax.random.uniform(k_t, (B, target_dim, H, W), dtype=jnp.float32)
    extra = jax.random.uniform(k_e, (B, extra_dim, H, W), dtype=jnp.float32)

    S, Q, U = build_selection_constants(H, W)
    params = init_params(k_p, target_dim, extra_dim, stack_nums)

    out = stack_metabooster_forward(S, Q, U, params, target, extra)
    jax.block_until_ready(out)

    assert out.shape == (B, target_dim, H, W)
    assert bool(jnp.all(jnp.isfinite(out)))
    print("KERNEL_OK")
</pallas_src>

<mosaic_0001>
module attributes {stable_mosaic.version = 11 : i64} {
  func.func @_stack_booster_kernel(%arg0: i32, %arg1: memref<9x256x64xf32, #tpu.memory_space<vmem>>, %arg2: memref<9x64x16xf32, #tpu.memory_space<vmem>>, %arg3: memref<16x256xf32, #tpu.memory_space<vmem>>, %arg4: memref<1x4x256xf32, #tpu.memory_space<vmem>>, %arg5: memref<1x4x256xf32, #tpu.memory_space<vmem>>, %arg6: memref<2x9x128x8xf32, #tpu.memory_space<vmem>>, %arg7: memref<2x128x1xf32, #tpu.memory_space<vmem>>, %arg8: memref<2x128x1xf32, #tpu.memory_space<vmem>>, %arg9: memref<2x64x128xf32, #tpu.memory_space<vmem>>, %arg10: memref<2x64x1xf32, #tpu.memory_space<vmem>>, %arg11: memref<2x64x1xf32, #tpu.memory_space<vmem>>, %arg12: memref<2x32x64xf32, #tpu.memory_space<vmem>>, %arg13: memref<2x32x1xf32, #tpu.memory_space<vmem>>, %arg14: memref<2x32x1xf32, #tpu.memory_space<vmem>>, %arg15: memref<2x4x32xf32, #tpu.memory_space<vmem>>, %arg16: memref<2x4x1xf32, #tpu.memory_space<vmem>>, %arg17: memref<1x4x256xf32, #tpu.memory_space<vmem>>, %arg18: memref<8x256xf32, #tpu.memory_space<vmem>>) attributes {dimension_semantics = [#tpu.dimension_semantics<parallel>], iteration_bounds = array<i64: 2>, scalar_prefetch = 0 : i64, scratch_operands = 1 : i64, tpu.core_type = #tpu.core_type<tc>, window_params = [{pipeline_mode = #tpu.pipeline_mode<synchronous>, transform_indices = @transform_0, window_bounds = array<i64: 9, 256, 64>}, {pipeline_mode = #tpu.pipeline_mode<synchronous>, transform_indices = @transform_1, window_bounds = array<i64: 9, 64, 16>}, {pipeline_mode = #tpu.pipeline_mode<synchronous>, transform_indices = @transform_2, window_bounds = array<i64: 16, 256>}, {transform_indices = @transform_3, window_bounds = array<i64: 1, 4, 256>}, {transform_indices = @transform_4, window_bounds = array<i64: 1, 4, 256>}, {pipeline_mode = #tpu.pipeline_mode<synchronous>, transform_indices = @transform_5, window_bounds = array<i64: 2, 9, 128, 8>}, {pipeline_mode = #tpu.pipeline_mode<synchronous>, transform_indices = @transform_6, window_bounds = array<i64: 2, 128, 1>}, {pipeline_mode = #tpu.pipeline_mode<synchronous>, transform_indices = @transform_7, window_bounds = array<i64: 2, 128, 1>}, {pipeline_mode = #tpu.pipeline_mode<synchronous>, transform_indices = @transform_8, window_bounds = array<i64: 2, 64, 128>}, {pipeline_mode = #tpu.pipeline_mode<synchronous>, transform_indices = @transform_9, window_bounds = array<i64: 2, 64, 1>}, {pipeline_mode = #tpu.pipeline_mode<synchronous>, transform_indices = @transform_10, window_bounds = array<i64: 2, 64, 1>}, {pipeline_mode = #tpu.pipeline_mode<synchronous>, transform_indices = @transform_11, window_bounds = array<i64: 2, 32, 64>}, {pipeline_mode = #tpu.pipeline_mode<synchronous>, transform_indices = @transform_12, window_bounds = array<i64: 2, 32, 1>}, {pipeline_mode = #tpu.pipeline_mode<synchronous>, transform_indices = @transform_13, window_bounds = array<i64: 2, 32, 1>}, {pipeline_mode = #tpu.pipeline_mode<synchronous>, transform_indices = @transform_14, window_bounds = array<i64: 2, 4, 32>}, {pipeline_mode = #tpu.pipeline_mode<synchronous>, transform_indices = @transform_15, window_bounds = array<i64: 2, 4, 1>}, {transform_indices = @transform_16, window_bounds = array<i64: 1, 4, 256>}]} {
    %c0 = arith.constant 0 : index
    %c0_0 = arith.constant 0 : index
    %c0_1 = arith.constant 0 : index
    %0 = vector.load %arg4[%c0, %c0_0, %c0_1] : memref<1x4x256xf32, #tpu.memory_space<vmem>>, vector<1x4x256xf32>
    %1 = vector.shape_cast %0 : vector<1x4x256xf32> to vector<4x256xf32>
    %c0_2 = arith.constant 0 : index
    %c0_3 = arith.constant 0 : index
    %c0_4 = arith.constant 0 : index
    %2 = vector.load %arg5[%c0_2, %c0_3, %c0_4] : memref<1x4x256xf32, #tpu.memory_space<vmem>>, vector<1x4x256xf32>
    %3 = vector.shape_cast %2 : vector<1x4x256xf32> to vector<4x256xf32>
    %c4 = arith.constant 4 : index
    %c0_5 = arith.constant 0 : index
    %4 = vector.load %arg18[%c4, %c0_5] : memref<8x256xf32, #tpu.memory_space<vmem>>, vector<4x256xf32>
    tpu.vector_store %arg18[%c4, %c0_5], %3 {strides = array<i32>} : memref<8x256xf32, #tpu.memory_space<vmem>>, vector<4x256xf32>,
    %c0_6 = arith.constant 0 : index
    %c0_7 = arith.constant 0 : index
    %5 = vector.load %arg18[%c0_6, %c0_7] : memref<8x256xf32, #tpu.memory_space<vmem>>, vector<4x256xf32>
    tpu.vector_store %arg18[%c0_6, %c0_7], %1 {strides = array<i32>} : memref<8x256xf32, #tpu.memory_space<vmem>>, vector<4x256xf32>,
    %c0_8 = arith.constant 0 : index
    %c0_9 = arith.constant 0 : index
    %6 = vector.load %arg18[%c0_8, %c0_9] : memref<8x256xf32, #tpu.memory_space<vmem>>, vector<8x256xf32>
    %cst = arith.constant 0.000000e+00 : f32
    %7 = vector.broadcast %cst : f32 to vector<128x64xf32>
    %c0_10 = arith.constant 0 : index
    %c0_11 = arith.constant 0 : index
    %c0_12 = arith.constant 0 : index
    %8 = vector.load %arg1[%c0_10, %c0_11, %c0_12] : memref<9x256x64xf32, #tpu.memory_space<vmem>>, vector<1x256x64xf32>
    %9 = vector.shape_cast %8 : vector<1x256x64xf32> to vector<256x64xf32>
    %cst_13 = arith.constant dense<0.000000e+00> : vector<8x64xf32>
    %10 = tpu.matmul %6, %9, %cst_13 {dimension_numbers = #tpu.dot_dimension_numbers<[1], [0], [0], [1], [0, 0, 1, 1], [], []>} : vector<8x256xf32>, vector<256x64xf32>, vector<8x64xf32> -> vector<8x64xf32>
    %c0_14 = arith.constant 0 : index
    %c0_15 = arith.constant 0 : index
    %c0_16 = arith.constant 0 : index
    %c0_17 = arith.constant 0 : index
    %11 = vector.load %arg6[%c0_14, %c0_15, %c0_16, %c0_17] : memref<2x9x128x8xf32, #tpu.memory_space<vmem>>, vector<1x1x128x8xf32>
    %12 = vector.shape_cast %11 : vector<1x1x128x8xf32> to vector<128x8xf32>
    %cst_18 = arith.constant dense<0.000000e+00> : vector<128x64xf32>
    %13 = tpu.matmul %12, %10, %cst_18 {dimension_numbers = #tpu.dot_dimension_numbers<[1], [0], [0], [1], [0, 0, 1, 1], [], []>} : vector<128x8xf32>, vector<8x64xf32>, vector<128x64xf32> -> vector<128x64xf32>
    %14 = arith.addf %7, %13 : vector<128x64xf32>
    %c1 = arith.constant 1 : index
    %c0_19 = arith.constant 0 : index
    %c0_20 = arith.constant 0 : index
    %15 = vector.load %arg1[%c1, %c0_19, %c0_20] : memref<9x256x64xf32, #tpu.memory_space<vmem>>, vector<1x256x64xf32>
    %16 = vector.shape_cast %15 : vector<1x256x64xf32> to vector<256x64xf32>
    %cst_21 = arith.constant dense<0.000000e+00> : vector<8x64xf32>
    %17 = tpu.matmul %6, %16, %cst_21 {dimension_numbers = #tpu.dot_dimension_numbers<[1], [0], [0], [1], [0, 0, 1, 1], [], []>} : vector<8x256xf32>, vector<256x64xf32>, vector<8x64xf32> -> vector<8x64xf32>
    %c0_22 = arith.constant 0 : index
    %c1_23 = arith.constant 1 : index
    %c0_24 = arith.constant 0 : index
    %c0_25 = arith.constant 0 : index
    %18 = vector.load %arg6[%c0_22, %c1_23, %c0_24, %c0_25] : memref<2x9x128x8xf32, #tpu.memory_space<vmem>>, vector<1x1x128x8xf32>
    %19 = vector.shape_cast %18 : vector<1x1x128x8xf32> to vector<128x8xf32>
    %cst_26 = arith.constant dense<0.000000e+00> : vector<128x64xf32>
    %20 = tpu.matmul %19, %17, %cst_26 {dimension_numbers = #tpu.dot_dimension_numbers<[1], [0], [0], [1], [0, 0, 1, 1], [], []>} : vector<128x8xf32>, vector<8x64xf32>, vector<128x64xf32> -> vector<128x64xf32>
    %21 = arith.addf %14, %20 : vector<128x64xf32>
    %c2 = arith.constant 2 : index
    %c0_27 = arith.constant 0 : index
    %c0_28 = arith.constant 0 : index
    %22 = vector.load %arg1[%c2, %c0_27, %c0_28] : memref<9x256x64xf32, #tpu.memory_space<vmem>>, vector<1x256x64xf32>
    %23 = vector.shape_cast %22 : vector<1x256x64xf32> to vector<256x64xf32>
    %cst_29 = arith.constant dense<0.000000e+00> : vector<8x64xf32>
    %24 = tpu.matmul %6, %23, %cst_29 {dimension_numbers = #tpu.dot_dimension_numbers<[1], [0], [0], [1], [0, 0, 1, 1], [], []>} : vector<8x256xf32>, vector<256x64xf32>, vector<8x64xf32> -> vector<8x64xf32>
    %c0_30 = arith.constant 0 : index
    %c2_31 = arith.constant 2 : index
    %c0_32 = arith.constant 0 : index
    %c0_33 = arith.constant 0 : index
    %25 = vector.load %arg6[%c0_30, %c2_31, %c0_32, %c0_33] : memref<2x9x128x8xf32, #tpu.memory_space<vmem>>, vector<1x1x128x8xf32>
    %26 = vector.shape_cast %25 : vector<1x1x128x8xf32> to vector<128x8xf32>
    %cst_34 = arith.constant dense<0.000000e+00> : vector<128x64xf32>
    %27 = tpu.matmul %26, %24, %cst_34 {dimension_numbers = #tpu.dot_dimension_numbers<[1], [0], [0], [1], [0, 0, 1, 1], [], []>} : vector<128x8xf32>, vector<8x64xf32>, vector<128x64xf32> -> vector<128x64xf32>
    %28 = arith.addf %21, %27 : vector<128x64xf32>
    %c3 = arith.constant 3 : index
    %c0_35 = arith.constant 0 : index
    %c0_36 = arith.constant 0 : index
    %29 = vector.load %arg1[%c3, %c0_35, %c0_36] : memref<9x256x64xf32, #tpu.memory_space<vmem>>, vector<1x256x64xf32>
    %30 = vector.shape_cast %29 : vector<1x256x64xf32> to vector<256x64xf32>
    %cst_37 = arith.constant dense<0.000000e+00> : vector<8x64xf32>
    %31 = tpu.matmul %6, %30, %cst_37 {dimension_numbers = #tpu.dot_dimension_numbers<[1], [0], [0], [1], [0, 0, 1, 1], [], []>} : vector<8x256xf32>, vector<256x64xf32>, vector<8x64xf32> -> vector<8x64xf32>
    %c0_38 = arith.constant 0 : index
    %c3_39 = arith.constant 3 : index
    %c0_40 = arith.constant 0 : index
    %c0_41 = arith.constant 0 : index
    %32 = vector.load %arg6[%c0_38, %c3_39, %c0_40, %c0_41] : memref<2x9x128x8xf32, #tpu.memory_space<vmem>>, vector<1x1x128x8xf32>
    %33 = vector.shape_cast %32 : vector<1x1x128x8xf32> to vector<128x8xf32>
    %cst_42 = arith.constant dense<0.000000e+00> : vector<128x64xf32>
    %34 = tpu.matmul %33, %31, %cst_42 {dimension_numbers = #tpu.dot_dimension_numbers<[1], [0], [0], [1], [0, 0, 1, 1], [], []>} : vector<128x8xf32>, vector<8x64xf32>, vector<128x64xf32> -> vector<128x64xf32>
    %35 = arith.addf %28, %34 : vector<128x64xf32>
    %c4_43 = arith.constant 4 : index
    %c0_44 = arith.constant 0 : index
    %c0_45 = arith.constant 0 : index
    %36 = vector.load %arg1[%c4_43, %c0_44, %c0_45] : memref<9x256x64xf32, #tpu.memory_space<vmem>>, vector<1x256x64xf32>
    %37 = vector.shape_cast %36 : vector<1x256x64xf32> to vector<256x64xf32>
    %cst_46 = arith.constant dense<0.000000e+00> : vector<8x64xf32>
    %38 = tpu.matmul %6, %37, %cst_46 {dimension_numbers = #tpu.dot_dimension_numbers<[1], [0], [0], [1], [0, 0, 1, 1], [], []>} : vector<8x256xf32>, vector<256x64xf32>, vector<8x64xf32> -> vector<8x64xf32>
    %c0_47 = arith.constant 0 : index
    %c4_48 = arith.constant 4 : index
    %c0_49 = arith.constant 0 : index
    %c0_50 = arith.constant 0 : index
    %39 = vector.load %arg6[%c0_47, %c4_48, %c0_49, %c0_50] : memref<2x9x128x8xf32, #tpu.memory_space<vmem>>, vector<1x1x128x8xf32>
    %40 = vector.shape_cast %39 : vector<1x1x128x8xf32> to vector<128x8xf32>
    %cst_51 = arith.constant dense<0.000000e+00> : vector<128x64xf32>
    %41 = tpu.matmul %40, %38, %cst_51 {dimension_numbers = #tpu.dot_dimension_numbers<[1], [0], [0], [1], [0, 0, 1, 1], [], []>} : vector<128x8xf32>, vector<8x64xf32>, vector<128x64xf32> -> vector<128x64xf32>
    %42 = arith.addf %35, %41 : vector<128x64xf32>
    %c5 = arith.constant 5 : index
    %c0_52 = arith.constant 0 : index
    %c0_53 = arith.constant 0 : index
    %43 = vector.load %arg1[%c5, %c0_52, %c0_53] : memref<9x256x64xf32, #tpu.memory_space<vmem>>, vector<1x256x64xf32>
    %44 = vector.shape_cast %43 : vector<1x256x64xf32> to vector<256x64xf32>
    %cst_54 = arith.constant dense<0.000000e+00> : vector<8x64xf32>
    %45 = tpu.matmul %6, %44, %cst_54 {dimension_numbers = #tpu.dot_dimension_numbers<[1], [0], [0], [1], [0, 0, 1, 1], [], []>} : vector<8x256xf32>, vector<256x64xf32>, vector<8x64xf32> -> vector<8x64xf32>
    %c0_55 = arith.constant 0 : index
    %c5_56 = arith.constant 5 : index
    %c0_57 = arith.constant 0 : index
    %c0_58 = arith.constant 0 : index
    %46 = vector.load %arg6[%c0_55, %c5_56, %c0_57, %c0_58] : memref<2x9x128x8xf32, #tpu.memory_space<vmem>>, vector<1x1x128x8xf32>
    %47 = vector.shape_cast %46 : vector<1x1x128x8xf32> to vector<128x8xf32>
    %cst_59 = arith.constant dense<0.000000e+00> : vector<128x64xf32>
    %48 = tpu.matmul %47, %45, %cst_59 {dimension_numbers = #tpu.dot_dimension_numbers<[1], [0], [0], [1], [0, 0, 1, 1], [], []>} : vector<128x8xf32>, vector<8x64xf32>, vector<128x64xf32> -> vector<128x64xf32>
    %49 = arith.addf %42, %48 : vector<128x64xf32>
    %c6 = arith.constant 6 : index
    %c0_60 = arith.constant 0 : index
    %c0_61 = arith.constant 0 : index
    %50 = vector.load %arg1[%c6, %c0_60, %c0_61] : memref<9x256x64xf32, #tpu.memory_space<vmem>>, vector<1x256x64xf32>
    %51 = vector.shape_cast %50 : vector<1x256x64xf32> to vector<256x64xf32>
    %cst_62 = arith.constant dense<0.000000e+00> : vector<8x64xf32>
    %52 = tpu.matmul %6, %51, %cst_62 {dimension_numbers = #tpu.dot_dimension_numbers<[1], [0], [0], [1], [0, 0, 1, 1], [], []>} : vector<8x256xf32>, vector<256x64xf32>, vector<8x64xf32> -> vector<8x64xf32>
    %c0_63 = arith.constant 0 : index
    %c6_64 = arith.constant 6 : index
    %c0_65 = arith.constant 0 : index
    %c0_66 = arith.constant 0 : index
    %53 = vector.load %arg6[%c0_63, %c6_64, %c0_65, %c0_66] : memref<2x9x128x8xf32, #tpu.memory_space<vmem>>, vector<1x1x128x8xf32>
    %54 = vector.shape_cast %53 : vector<1x1x128x8xf32> to vector<128x8xf32>
    %cst_67 = arith.constant dense<0.000000e+00> : vector<128x64xf32>
    %55 = tpu.matmul %54, %52, %cst_67 {dimension_numbers = #tpu.dot_dimension_numbers<[1], [0], [0], [1], [0, 0, 1, 1], [], []>} : vector<128x8xf32>, vector<8x64xf32>, vector<128x64xf32> -> vector<128x64xf32>
    %56 = arith.addf %49, %55 : vector<128x64xf32>
    %c7 = arith.constant 7 : index
    %c0_68 = arith.constant 0 : index
    %c0_69 = arith.constant 0 : index
    %57 = vector.load %arg1[%c7, %c0_68, %c0_69] : memref<9x256x64xf32, #tpu.memory_space<vmem>>, vector<1x256x64xf32>
    %58 = vector.shape_cast %57 : vector<1x256x64xf32> to vector<256x64xf32>
    %cst_70 = arith.constant dense<0.000000e+00> : vector<8x64xf32>
    %59 = tpu.matmul %6, %58, %cst_70 {dimension_numbers = #tpu.dot_dimension_numbers<[1], [0], [0], [1], [0, 0, 1, 1], [], []>} : vector<8x256xf32>, vector<256x64xf32>, vector<8x64xf32> -> vector<8x64xf32>
    %c0_71 = arith.constant 0 : index
    %c7_72 = arith.constant 7 : index
    %c0_73 = arith.constant 0 : index
    %c0_74 = arith.constant 0 : index
    %60 = vector.load %arg6[%c0_71, %c7_72, %c0_73, %c0_74] : memref<2x9x128x8xf32, #tpu.memory_space<vmem>>, vector<1x1x128x8xf32>
    %61 = vector.shape_cast %60 : vector<1x1x128x8xf32> to vector<128x8xf32>
    %cst_75 = arith.constant dense<0.000000e+00> : vector<128x64xf32>
    %62 = tpu.matmul %61, %59, %cst_75 {dimension_numbers = #tpu.dot_dimension_numbers<[1], [0], [0], [1], [0, 0, 1, 1], [], []>} : vector<128x8xf32>, vector<8x64xf32>, vector<128x64xf32> -> vector<128x64xf32>
    %63 = arith.addf %56, %62 : vector<128x64xf32>
    %c8 = arith.constant 8 : index
    %c0_76 = arith.constant 0 : index
    %c0_77 = arith.constant 0 : index
    %64 = vector.load %arg1[%c8, %c0_76, %c0_77] : memref<9x256x64xf32, #tpu.memory_space<vmem>>, vector<1x256x64xf32>
    %65 = vector.shape_cast %64 : vector<1x256x64xf32> to vector<256x64xf32>
    %cst_78 = arith.constant dense<0.000000e+00> : vector<8x64xf32>
    %66 = tpu.matmul %6, %65, %cst_78 {dimension_numbers = #tpu.dot_dimension_numbers<[1], [0], [0], [1], [0, 0, 1, 1], [], []>} : vector<8x256xf32>, vector<256x64xf32>, vector<8x64xf32> -> vector<8x64xf32>
    %c0_79 = arith.constant 0 : index
    %c8_80 = arith.constant 8 : index
    %c0_81 = arith.constant 0 : index
    %c0_82 = arith.constant 0 : index
    %67 = vector.load %arg6[%c0_79, %c8_80, %c0_81, %c0_82] : memref<2x9x128x8xf32, #tpu.memory_space<vmem>>, vector<1x1x128x8xf32>
    %68 = vector.shape_cast %67 : vector<1x1x128x8xf32> to vector<128x8xf32>
    %cst_83 = arith.constant dense<0.000000e+00> : vector<128x64xf32>
    %69 = tpu.matmul %68, %66, %cst_83 {dimension_numbers = #tpu.dot_dimension_numbers<[1], [0], [0], [1], [0, 0, 1, 1], [], []>} : vector<128x8xf32>, vector<8x64xf32>, vector<128x64xf32> -> vector<128x64xf32>
    %70 = arith.addf %63, %69 : vector<128x64xf32>
    %c0_84 = arith.constant 0 : index
    %c0_85 = arith.constant 0 : index
    %c0_86 = arith.constant 0 : index
    %71 = vector.load %arg7[%c0_84, %c0_85, %c0_86] : memref<2x128x1xf32, #tpu.memory_space<vmem>>, vector<1x128x1xf32>
    %72 = vector.shape_cast %71 : vector<1x128x1xf32> to vector<128x1xf32>
    %73 = vector.broadcast %72 : vector<128x1xf32> to vector<128x64xf32>
    %74 = arith.mulf %70, %73 : vector<128x64xf32>
    %c0_87 = arith.constant 0 : index
    %c0_88 = arith.constant 0 : index
    %c0_89 = arith.constant 0 : index
    %75 = vector.load %arg8[%c0_87, %c0_88, %c0_89] : memref<2x128x1xf32, #tpu.memory_space<vmem>>, vector<1x128x1xf32>
    %76 = vector.shape_cast %75 : vector<1x128x1xf32> to vector<128x1xf32>
    %77 = vector.broadcast %76 : vector<128x1xf32> to vector<128x64xf32>
    %78 = arith.addf %74, %77 : vector<128x64xf32>
    %cst_90 = arith.constant 0.000000e+00 : f32
    %79 = vector.broadcast %cst_90 : f32 to vector<128x64xf32>
    %80 = arith.maximumf %78, %79 : vector<128x64xf32>
    %c0_91 = arith.constant 0 : index
    %c0_92 = arith.constant 0 : index
    %c0_93 = arith.constant 0 : index
    %81 = vector.load %arg2[%c0_91, %c0_92, %c0_93] : memref<9x64x16xf32, #tpu.memory_space<vmem>>, vector<1x64x16xf32>
    %82 = vector.shape_cast %81 : vector<1x64x16xf32> to vector<64x16xf32>
    %cst_94 = arith.constant dense<0.000000e+00> : vector<128x16xf32>
    %83 = tpu.matmul %80, %82, %cst_94 {dimension_numbers = #tpu.dot_dimension_numbers<[1], [0], [0], [1], [0, 0, 1, 1], [], []>} : vector<128x64xf32>, vector<64x16xf32>, vector<128x16xf32> -> vector<128x16xf32>
    %c1_95 = arith.constant 1 : index
    %c0_96 = arith.constant 0 : index
    %c0_97 = arith.constant 0 : index
    %84 = vector.load %arg2[%c1_95, %c0_96, %c0_97] : memref<9x64x16xf32, #tpu.memory_space<vmem>>, vector<1x64x16xf32>
    %85 = vector.shape_cast %84 : vector<1x64x16xf32> to vector<64x16xf32>
    %cst_98 = arith.constant dense<0.000000e+00> : vector<128x16xf32>
    %86 = tpu.matmul %80, %85, %cst_98 {dimension_numbers = #tpu.dot_dimension_numbers<[1], [0], [0], [1], [0, 0, 1, 1], [], []>} : vector<128x64xf32>, vector<64x16xf32>, vector<128x16xf32> -> vector<128x16xf32>
    %87 = arith.maximumf %83, %86 : vector<128x16xf32>
    %c2_99 = arith.constant 2 : index
    %c0_100 = arith.constant 0 : index
    %c0_101 = arith.constant 0 : index
    %88 = vector.load %arg2[%c2_99, %c0_100, %c0_101] : memref<9x64x16xf32, #tpu.memory_space<vmem>>, vector<1x64x16xf32>
    %89 = vector.shape_cast %88 : vector<1x64x16xf32> to vector<64x16xf32>
    %cst_102 = arith.constant dense<0.000000e+00> : vector<128x16xf32>
    %90 = tpu.matmul %80, %89, %cst_102 {dimension_numbers = #tpu.dot_dimension_numbers<[1], [0], [0], [1], [0, 0, 1, 1], [], []>} : vector<128x64xf32>, vector<64x16xf32>, vector<128x16xf32> -> vector<128x16xf32>
    %91 = arith.maximumf %87, %90 : vector<128x16xf32>
    %c3_103 = arith.constant 3 : index
    %c0_104 = arith.constant 0 : index
    %c0_105 = arith.constant 0 : index
    %92 = vector.load %arg2[%c3_103, %c0_104, %c0_105] : memref<9x64x16xf32, #tpu.memory_space<vmem>>, vector<1x64x16xf32>
    %93 = vector.shape_cast %92 : vector<1x64x16xf32> to vector<64x16xf32>
    %cst_106 = arith.constant dense<0.000000e+00> : vector<128x16xf32>
    %94 = tpu.matmul %80, %93, %cst_106 {dimension_numbers = #tpu.dot_dimension_numbers<[1], [0], [0], [1], [0, 0, 1, 1], [], []>} : vector<128x64xf32>, vector<64x16xf32>, vector<128x16xf32> -> vector<128x16xf32>
    %95 = arith.maximumf %91, %94 : vector<128x16xf32>
    %c4_107 = arith.constant 4 : index
    %c0_108 = arith.constant 0 : index
    %c0_109 = arith.constant 0 : index
    %96 = vector.load %arg2[%c4_107, %c0_108, %c0_109] : memref<9x64x16xf32, #tpu.memory_space<vmem>>, vector<1x64x16xf32>
    %97 = vector.shape_cast %96 : vector<1x64x16xf32> to vector<64x16xf32>
    %cst_110 = arith.constant dense<0.000000e+00> : vector<128x16xf32>
    %98 = tpu.matmul %80, %97, %cst_110 {dimension_numbers = #tpu.dot_dimension_numbers<[1], [0], [0], [1], [0, 0, 1, 1], [], []>} : vector<128x64xf32>, vector<64x16xf32>, vector<128x16xf32> -> vector<128x16xf32>
    %99 = arith.maximumf %95, %98 : vector<128x16xf32>
    %c5_111 = arith.constant 5 : index
    %c0_112 = arith.constant 0 : index
    %c0_113 = arith.constant 0 : index
    %100 = vector.load %arg2[%c5_111, %c0_112, %c0_113] : memref<9x64x16xf32, #tpu.memory_space<vmem>>, vector<1x64x16xf32>
    %101 = vector.shape_cast %100 : vector<1x64x16xf32> to vector<64x16xf32>
    %cst_114 = arith.constant dense<0.000000e+00> : vector<128x16xf32>
    %102 = tpu.matmul %80, %101, %cst_114 {dimension_numbers = #tpu.dot_dimension_numbers<[1], [0], [0], [1], [0, 0, 1, 1], [], []>} : vector<128x64xf32>, vector<64x16xf32>, vector<128x16xf32> -> vector<128x16xf32>
    %103 = arith.maximumf %99, %102 : vector<128x16xf32>
    %c6_115 = arith.constant 6 : index
    %c0_116 = arith.constant 0 : index
    %c0_117 = arith.constant 0 : index
    %104 = vector.load %arg2[%c6_115, %c0_116, %c0_117] : memref<9x64x16xf32, #tpu.memory_space<vmem>>, vector<1x64x16xf32>
    %105 = vector.shape_cast %104 : vector<1x64x16xf32> to vector<64x16xf32>
    %cst_118 = arith.constant dense<0.000000e+00> : vector<128x16xf32>
    %106 = tpu.matmul %80, %105, %cst_118 {dimension_numbers = #tpu.dot_dimension_numbers<[1], [0], [0], [1], [0, 0, 1, 1], [], []>} : vector<128x64xf32>, vector<64x16xf32>, vector<128x16xf32> -> vector<128x16xf32>
    %107 = arith.maximumf %103, %106 : vector<128x16xf32>
    %c7_119 = arith.constant 7 : index
    %c0_120 = arith.constant 0 : index
    %c0_121 = arith.constant 0 : index
    %108 = vector.load %arg2[%c7_119, %c0_120, %c0_121] : memref<9x64x16xf32, #tpu.memory_space<vmem>>, vector<1x64x16xf32>
    %109 = vector.shape_cast %108 : vector<1x64x16xf32> to vector<64x16xf32>
    %cst_122 = arith.constant dense<0.000000e+00> : vector<128x16xf32>
    %110 = tpu.matmul %80, %109, %cst_122 {dimension_numbers = #tpu.dot_dimension_numbers<[1], [0], [0], [1], [0, 0, 1, 1], [], []>} : vector<128x64xf32>, vector<64x16xf32>, vector<128x16xf32> -> vector<128x16xf32>
    %111 = arith.maximumf %107, %110 : vector<128x16xf32>
    %c8_123 = arith.constant 8 : index
    %c0_124 = arith.constant 0 : index
    %c0_125 = arith.constant 0 : index
    %112 = vector.load %arg2[%c8_123, %c0_124, %c0_125] : memref<9x64x16xf32, #tpu.memory_space<vmem>>, vector<1x64x16xf32>
    %113 = vector.shape_cast %112 : vector<1x64x16xf32> to vector<64x16xf32>
    %cst_126 = arith.constant dense<0.000000e+00> : vector<128x16xf32>
    %114 = tpu.matmul %80, %113, %cst_126 {dimension_numbers = #tpu.dot_dimension_numbers<[1], [0], [0], [1], [0, 0, 1, 1], [], []>} : vector<128x64xf32>, vector<64x16xf32>, vector<128x16xf32> -> vector<128x16xf32>
    %115 = arith.maximumf %111, %114 : vector<128x16xf32>
    %c0_127 = arith.constant 0 : index
    %c0_128 = arith.constant 0 : index
    %c0_129 = arith.constant 0 : index
    %116 = vector.load %arg9[%c0_127, %c0_128, %c0_129] : memref<2x64x128xf32, #tpu.memory_space<vmem>>, vector<1x64x128xf32>
    %117 = vector.shape_cast %116 : vector<1x64x128xf32> to vector<64x128xf32>
    %cst_130 = arith.constant dense<0.000000e+00> : vector<64x16xf32>
    %118 = tpu.matmul %117, %115, %cst_130 {dimension_numbers = #tpu.dot_dimension_numbers<[1], [0], [0], [1], [0, 0, 1, 1], [], []>} : vector<64x128xf32>, vector<128x16xf32>, vector<64x16xf32> -> vector<64x16xf32>
    %c0_131 = arith.constant 0 : index
    %c0_132 = arith.constant 0 : index
    %c0_133 = arith.constant 0 : index
    %119 = vector.load %arg10[%c0_131, %c0_132, %c0_133] : memref<2x64x1xf32, #tpu.memory_space<vmem>>, vector<1x64x1xf32>
    %120 = vector.shape_cast %119 : vector<1x64x1xf32> to vector<64x1xf32>
    %121 = vector.broadcast %120 : vector<64x1xf32> to vector<64x16xf32>
    %122 = arith.mulf %118, %121 : vector<64x16xf32>
    %c0_134 = arith.constant 0 : index
    %c0_135 = arith.constant 0 : index
    %c0_136 = arith.constant 0 : index
    %123 = vector.load %arg11[%c0_134, %c0_135, %c0_136] : memref<2x64x1xf32, #tpu.memory_space<vmem>>, vector<1x64x1xf32>
    %124 = vector.shape_cast %123 : vector<1x64x1xf32> to vector<64x1xf32>
    %125 = vector.broadcast %124 : vector<64x1xf32> to vector<64x16xf32>
    %126 = arith.addf %122, %125 : vector<64x16xf32>
    %cst_137 = arith.constant 0.000000e+00 : f32
    %127 = vector.broadcast %cst_137 : f32 to vector<64x16xf32>
    %128 = arith.maximumf %126, %127 : vector<64x16xf32>
    %c0_138 = arith.constant 0 : index
    %c0_139 = arith.constant 0 : index
    %c0_140 = arith.constant 0 : index
    %129 = vector.load %arg12[%c0_138, %c0_139, %c0_140] : memref<2x32x64xf32, #tpu.memory_space<vmem>>, vector<1x32x64xf32>
    %130 = vector.shape_cast %129 : vector<1x32x64xf32> to vector<32x64xf32>
    %cst_141 = arith.constant dense<0.000000e+00> : vector<32x16xf32>
    %131 = tpu.matmul %130, %128, %cst_141 {dimension_numbers = #tpu.dot_dimension_numbers<[1], [0], [0], [1], [0, 0, 1, 1], [], []>} : vector<32x64xf32>, vector<64x16xf32>, vector<32x16xf32> -> vector<32x16xf32>
    %c0_142 = arith.constant 0 : index
    %c0_143 = arith.constant 0 : index
    %c0_144 = arith.constant 0 : index
    %132 = vector.load %arg13[%c0_142, %c0_143, %c0_144] : memref<2x32x1xf32, #tpu.memory_space<vmem>>, vector<1x32x1xf32>
    %133 = vector.shape_cast %132 : vector<1x32x1xf32> to vector<32x1xf32>
    %134 = vector.broadcast %133 : vector<32x1xf32> to vector<32x16xf32>
    %135 = arith.mulf %131, %134 : vector<32x16xf32>
    %c0_145 = arith.constant 0 : index
    %c0_146 = arith.constant 0 : index
    %c0_147 = arith.constant 0 : index
    %136 = vector.load %arg14[%c0_145, %c0_146, %c0_147] : memref<2x32x1xf32, #tpu.memory_space<vmem>>, vector<1x32x1xf32>
    %137 = vector.shape_cast %136 : vector<1x32x1xf32> to vector<32x1xf32>
    %138 = vector.broadcast %137 : vector<32x1xf32> to vector<32x16xf32>
    %139 = arith.addf %135, %138 : vector<32x16xf32>
    %cst_148 = arith.constant 0.000000e+00 : f32
    %140 = vector.broadcast %cst_148 : f32 to vector<32x16xf32>
    %141 = arith.maximumf %139, %140 : vector<32x16xf32>
    %c0_149 = arith.constant 0 : index
    %c0_150 = arith.constant 0 : index
    %c0_151 = arith.constant 0 : index
    %142 = vector.load %arg15[%c0_149, %c0_150, %c0_151] : memref<2x4x32xf32, #tpu.memory_space<vmem>>, vector<1x4x32xf32>
    %143 = vector.shape_cast %142 : vector<1x4x32xf32> to vector<4x32xf32>
    %cst_152 = arith.constant dense<0.000000e+00> : vector<4x16xf32>
    %144 = tpu.matmul %143, %141, %cst_152 {dimension_numbers = #tpu.dot_dimension_numbers<[1], [0], [0], [1], [0, 0, 1, 1], [], []>} : vector<4x32xf32>, vector<32x16xf32>, vector<4x16xf32> -> vector<4x16xf32>
    %c0_153 = arith.constant 0 : index
    %c0_154 = arith.constant 0 : index
    %c0_155 = arith.constant 0 : index
    %145 = vector.load %arg16[%c0_153, %c0_154, %c0_155] : memref<2x4x1xf32, #tpu.memory_space<vmem>>, vector<1x4x1xf32>
    %146 = vector.shape_cast %145 : vector<1x4x1xf32> to vector<4x1xf32>
    %147 = vector.broadcast %146 : vector<4x1xf32> to vector<4x16xf32>
    %148 = arith.addf %144, %147 : vector<4x16xf32>
    %cst_156 = arith.constant 0.000000e+00 : f32
    %149 = vector.broadcast %cst_156 : f32 to vector<4x16xf32>
    %150 = arith.maximumf %148, %149 : vector<4x16xf32>
    %cst_157 = arith.constant dense<0xFF800000> : vector<16xf32>
    %151 = vector.multi_reduction <maximumf>, %150, %cst_157 [0] : vector<4x16xf32> to vector<16xf32>
    %152 = vector.shape_cast %151 : vector<16xf32> to vector<1x16xf32>
    %153 = vector.broadcast %152 : vector<1x16xf32> to vector<4x16xf32>
    %154 = arith.subf %150, %153 : vector<4x16xf32>
    %155 = math.exp %154 : vector<4x16xf32>
    %cst_158 = arith.constant dense<0.000000e+00> : vector<16xf32>
    %156 = vector.multi_reduction <add>, %155, %cst_158 [0] : vector<4x16xf32> to vector<16xf32>
    %157 = vector.shape_cast %156 : vector<16xf32> to vector<1x16xf32>
    %158 = tpu.reciprocal %157 {approx = true} : vector<1x16xf32> -> vector<1x16xf32>
    %159 = vector.broadcast %158 : vector<1x16xf32> to vector<4x16xf32>
    %160 = arith.mulf %155, %159 : vector<4x16xf32>
    %c0_159 = arith.constant 0 : index
    %c0_160 = arith.constant 0 : index
    %161 = vector.load %arg3[%c0_159, %c0_160] : memref<16x256xf32, #tpu.memory_space<vmem>>, vector<16x256xf32>
    %cst_161 = arith.constant dense<0.000000e+00> : vector<4x256xf32>
    %162 = tpu.matmul %160, %161, %cst_161 {dimension_numbers = #tpu.dot_dimension_numbers<[1], [0], [0], [1], [0, 0, 1, 1], [], []>} : vector<4x16xf32>, vector<16x256xf32>, vector<4x256xf32> -> vector<4x256xf32>
    %cst_162 = arith.constant dense<0xFF800000> : vector<4xf32>
    %163 = vector.multi_reduction <maximumf>, %1, %cst_162 [1] : vector<4x256xf32> to vector<4xf32>
    %164 = vector.shape_cast %163 : vector<4xf32> to vector<4x1xf32>
    %cst_163 = arith.constant 0.000000e+00 : f32
    %165 = vector.broadcast %cst_163 : f32 to vector<4x1xf32>
    %166 = arith.maximumf %164, %165 : vector<4x1xf32>
    %167 = math.sqrt %166 : vector<4x1xf32>
    %cst_164 = arith.constant 0.000000e+00 : f32
    %cst_165 = arith.constant 1.000000e+00 : f32
    %168 = vector.broadcast %cst_164 : f32 to vector<4x1xf32>
    %169 = arith.maximumf %168, %167 : vector<4x1xf32>
    %170 = vector.broadcast %cst_165 : f32 to vector<4x1xf32>
    %171 = arith.minimumf %170, %169 : vector<4x1xf32>
    %172 = vector.broadcast %171 : vector<4x1xf32> to vector<4x256xf32>
    %173 = arith.mulf %1, %172 : vector<4x256xf32>
    %cst_166 = arith.constant 1.000000e+00 : f32
    %174 = vector.broadcast %cst_166 : f32 to vector<4x1xf32>
    %175 = arith.subf %174, %171 : vector<4x1xf32>
    %176 = vector.broadcast %175 : vector<4x1xf32> to vector<4x256xf32>
    %177 = arith.mulf %162, %176 : vector<4x256xf32>
    %178 = arith.addf %173, %177 : vector<4x256xf32>
    %c0_167 = arith.constant 0 : index
    %c0_168 = arith.constant 0 : index
    %179 = vector.load %arg18[%c0_167, %c0_168] : memref<8x256xf32, #tpu.memory_space<vmem>>, vector<4x256xf32>
    tpu.vector_store %arg18[%c0_167, %c0_168], %178 {strides = array<i32>} : memref<8x256xf32, #tpu.memory_space<vmem>>, vector<4x256xf32>,
    %c0_169 = arith.constant 0 : index
    %c0_170 = arith.constant 0 : index
    %180 = vector.load %arg18[%c0_169, %c0_170] : memref<8x256xf32, #tpu.memory_space<vmem>>, vector<8x256xf32>
    %cst_171 = arith.constant 0.000000e+00 : f32
    %181 = vector.broadcast %cst_171 : f32 to vector<128x64xf32>
    %c0_172 = arith.constant 0 : index
    %c0_173 = arith.constant 0 : index
    %c0_174 = arith.constant 0 : index
    %182 = vector.load %arg1[%c0_172, %c0_173, %c0_174] : memref<9x256x64xf32, #tpu.memory_space<vmem>>, vector<1x256x64xf32>
    %183 = vector.shape_cast %182 : vector<1x256x64xf32> to vector<256x64xf32>
    %cst_175 = arith.constant dense<0.000000e+00> : vector<8x64xf32>
    %184 = tpu.matmul %180, %183, %cst_175 {dimension_numbers = #tpu.dot_dimension_numbers<[1], [0], [0], [1], [0, 0, 1, 1], [], []>} : vector<8x256xf32>, vector<256x64xf32>, vector<8x64xf32> -> vector<8x64xf32>
    %c1_176 = arith.constant 1 : index
    %c0_177 = arith.constant 0 : index
    %c0_178 = arith.constant 0 : index
    %c0_179 = arith.constant 0 : index
    %185 = vector.load %arg6[%c1_176, %c0_177, %c0_178, %c0_179] : memref<2x9x128x8xf32, #tpu.memory_space<vmem>>, vector<1x1x128x8xf32>
    %186 = vector.shape_cast %185 : vector<1x1x128x8xf32> to vector<128x8xf32>
    %cst_180 = arith.constant dense<0.000000e+00> : vector<128x64xf32>
    %187 = tpu.matmul %186, %184, %cst_180 {dimension_numbers = #tpu.dot_dimension_numbers<[1], [0], [0], [1], [0, 0, 1, 1], [], []>} : vector<128x8xf32>, vector<8x64xf32>, vector<128x64xf32> -> vector<128x64xf32>
    %188 = arith.addf %181, %187 : vector<128x64xf32>
    %c1_181 = arith.constant 1 : index
    %c0_182 = arith.constant 0 : index
    %c0_183 = arith.constant 0 : index
    %189 = vector.load %arg1[%c1_181, %c0_182, %c0_183] : memref<9x256x64xf32, #tpu.memory_space<vmem>>, vector<1x256x64xf32>
    %190 = vector.shape_cast %189 : vector<1x256x64xf32> to vector<256x64xf32>
    %cst_184 = arith.constant dense<0.000000e+00> : vector<8x64xf32>
    %191 = tpu.matmul %180, %190, %cst_184 {dimension_numbers = #tpu.dot_dimension_numbers<[1], [0], [0], [1], [0, 0, 1, 1], [], []>} : vector<8x256xf32>, vector<256x64xf32>, vector<8x64xf32> -> vector<8x64xf32>
    %c1_185 = arith.constant 1 : index
    %c1_186 = arith.constant 1 : index
    %c0_187 = arith.constant 0 : index
    %c0_188 = arith.constant 0 : index
    %192 = vector.load %arg6[%c1_185, %c1_186, %c0_187, %c0_188] : memref<2x9x128x8xf32, #tpu.memory_space<vmem>>, vector<1x1x128x8xf32>
    %193 = vector.shape_cast %192 : vector<1x1x128x8xf32> to vector<128x8xf32>
    %cst_189 = arith.constant dense<0.000000e+00> : vector<128x64xf32>
    %194 = tpu.matmul %193, %191, %cst_189 {dimension_numbers = #tpu.dot_dimension_numbers<[1], [0], [0], [1], [0, 0, 1, 1], [], []>} : vector<128x8xf32>, vector<8x64xf32>, vector<128x64xf32> -> vector<128x64xf32>
    %195 = arith.addf %188, %194 : vector<128x64xf32>
    %c2_190 = arith.constant 2 : index
    %c0_191 = arith.constant 0 : index
    %c0_192 = arith.constant 0 : index
    %196 = vector.load %arg1[%c2_190, %c0_191, %c0_192] : memref<9x256x64xf32, #tpu.memory_space<vmem>>, vector<1x256x64xf32>
    %197 = vector.shape_cast %196 : vector<1x256x64xf32> to vector<256x64xf32>
    %cst_193 = arith.constant dense<0.000000e+00> : vector<8x64xf32>
    %198 = tpu.matmul %180, %197, %cst_193 {dimension_numbers = #tpu.dot_dimension_numbers<[1], [0], [0], [1], [0, 0, 1, 1], [], []>} : vector<8x256xf32>, vector<256x64xf32>, vector<8x64xf32> -> vector<8x64xf32>
    %c1_194 = arith.constant 1 : index
    %c2_195 = arith.constant 2 : index
    %c0_196 = arith.constant 0 : index
    %c0_197 = arith.constant 0 : index
    %199 = vector.load %arg6[%c1_194, %c2_195, %c0_196, %c0_197] : memref<2x9x128x8xf32, #tpu.memory_space<vmem>>, vector<1x1x128x8xf32>
    %200 = vector.shape_cast %199 : vector<1x1x128x8xf32> to vector<128x8xf32>
    %cst_198 = arith.constant dense<0.000000e+00> : vector<128x64xf32>
    %201 = tpu.matmul %200, %198, %cst_198 {dimension_numbers = #tpu.dot_dimension_numbers<[1], [0], [0], [1], [0, 0, 1, 1], [], []>} : vector<128x8xf32>, vector<8x64xf32>, vector<128x64xf32> -> vector<128x64xf32>
    %202 = arith.addf %195, %201 : vector<128x64xf32>
    %c3_199 = arith.constant 3 : index
    %c0_200 = arith.constant 0 : index
    %c0_201 = arith.constant 0 : index
    %203 = vector.load %arg1[%c3_199, %c0_200, %c0_201] : memref<9x256x64xf32, #tpu.memory_space<vmem>>, vector<1x256x64xf32>
    %204 = vector.shape_cast %203 : vector<1x256x64xf32> to vector<256x64xf32>
    %cst_202 = arith.constant dense<0.000000e+00> : vector<8x64xf32>
    %205 = tpu.matmul %180, %204, %cst_202 {dimension_numbers = #tpu.dot_dimension_numbers<[1], [0], [0], [1], [0, 0, 1, 1], [], []>} : vector<8x256xf32>, vector<256x64xf32>, vector<8x64xf32> -> vector<8x64xf32>
    %c1_203 = arith.constant 1 : index
    %c3_204 = arith.constant 3 : index
    %c0_205 = arith.constant 0 : index
    %c0_206 = arith.constant 0 : index
    %206 = vector.load %arg6[%c1_203, %c3_204, %c0_205, %c0_206] : memref<2x9x128x8xf32, #tpu.memory_space<vmem>>, vector<1x1x128x8xf32>
    %207 = vector.shape_cast %206 : vector<1x1x128x8xf32> to vector<128x8xf32>
    %cst_207 = arith.constant dense<0.000000e+00> : vector<128x64xf32>
    %208 = tpu.matmul %207, %205, %cst_207 {dimension_numbers = #tpu.dot_dimension_numbers<[1], [0], [0], [1], [0, 0, 1, 1], [], []>} : vector<128x8xf32>, vector<8x64xf32>, vector<128x64xf32> -> vector<128x64xf32>
    %209 = arith.addf %202, %208 : vector<128x64xf32>
    %c4_208 = arith.constant 4 : index
    %c0_209 = arith.constant 0 : index
    %c0_210 = arith.constant 0 : index
    %210 = vector.load %arg1[%c4_208, %c0_209, %c0_210] : memref<9x256x64xf32, #tpu.memory_space<vmem>>, vector<1x256x64xf32>
    %211 = vector.shape_cast %210 : vector<1x256x64xf32> to vector<256x64xf32>
    %cst_211 = arith.constant dense<0.000000e+00> : vector<8x64xf32>
    %212 = tpu.matmul %180, %211, %cst_211 {dimension_numbers = #tpu.dot_dimension_numbers<[1], [0], [0], [1], [0, 0, 1, 1], [], []>} : vector<8x256xf32>, vector<256x64xf32>, vector<8x64xf32> -> vector<8x64xf32>
    %c1_212 = arith.constant 1 : index
    %c4_213 = arith.constant 4 : index
    %c0_214 = arith.constant 0 : index
    %c0_215 = arith.constant 0 : index
    %213 = vector.load %arg6[%c1_212, %c4_213, %c0_214, %c0_215] : memref<2x9x128x8xf32, #tpu.memory_space<vmem>>, vector<1x1x128x8xf32>
    %214 = vector.shape_cast %213 : vector<1x1x128x8xf32> to vector<128x8xf32>
    %cst_216 = arith.constant dense<0.000000e+00> : vector<128x64xf32>
    %215 = tpu.matmul %214, %212, %cst_216 {dimension_numbers = #tpu.dot_dimension_numbers<[1], [0], [0], [1], [0, 0, 1, 1], [], []>} : vector<128x8xf32>, vector<8x64xf32>, vector<128x64xf32> -> vector<128x64xf32>
    %216 = arith.addf %209, %215 : vector<128x64xf32>
    %c5_217 = arith.constant 5 : index
    %c0_218 = arith.constant 0 : index
    %c0_219 = arith.constant 0 : index
    %217 = vector.load %arg1[%c5_217, %c0_218, %c0_219] : memref<9x256x64xf32, #tpu.memory_space<vmem>>, vector<1x256x64xf32>
    %218 = vector.shape_cast %217 : vector<1x256x64xf32> to vector<256x64xf32>
    %cst_220 = arith.constant dense<0.000000e+00> : vector<8x64xf32>
    %219 = tpu.matmul %180, %218, %cst_220 {dimension_numbers = #tpu.dot_dimension_numbers<[1], [0], [0], [1], [0, 0, 1, 1], [], []>} : vector<8x256xf32>, vector<256x64xf32>, vector<8x64xf32> -> vector<8x64xf32>
    %c1_221 = arith.constant 1 : index
    %c5_222 = arith.constant 5 : index
    %c0_223 = arith.constant 0 : index
    %c0_224 = arith.constant 0 : index
    %220 = vector.load %arg6[%c1_221, %c5_222, %c0_223, %c0_224] : memref<2x9x128x8xf32, #tpu.memory_space<vmem>>, vector<1x1x128x8xf32>
    %221 = vector.shape_cast %220 : vector<1x1x128x8xf32> to vector<128x8xf32>
    %cst_225 = arith.constant dense<0.000000e+00> : vector<128x64xf32>
    %222 = tpu.matmul %221, %219, %cst_225 {dimension_numbers = #tpu.dot_dimension_numbers<[1], [0], [0], [1], [0, 0, 1, 1], [], []>} : vector<128x8xf32>, vector<8x64xf32>, vector<128x64xf32> -> vector<128x64xf32>
    %223 = arith.addf %216, %222 : vector<128x64xf32>
    %c6_226 = arith.constant 6 : index
    %c0_227 = arith.constant 0 : index
    %c0_228 = arith.constant 0 : index
    %224 = vector.load %arg1[%c6_226, %c0_227, %c0_228] : memref<9x256x64xf32, #tpu.memory_space<vmem>>, vector<1x256x64xf32>
    %225 = vector.shape_cast %224 : vector<1x256x64xf32> to vector<256x64xf32>
    %cst_229 = arith.constant dense<0.000000e+00> : vector<8x64xf32>
    %226 = tpu.matmul %180, %225, %cst_229 {dimension_numbers = #tpu.dot_dimension_numbers<[1], [0], [0], [1], [0, 0, 1, 1], [], []>} : vector<8x256xf32>, vector<256x64xf32>, vector<8x64xf32> -> vector<8x64xf32>
    %c1_230 = arith.constant 1 : index
    %c6_231 = arith.constant 6 : index
    %c0_232 = arith.constant 0 : index
    %c0_233 = arith.constant 0 : index
    %227 = vector.load %arg6[%c1_230, %c6_231, %c0_232, %c0_233] : memref<2x9x128x8xf32, #tpu.memory_space<vmem>>, vector<1x1x128x8xf32>
    %228 = vector.shape_cast %227 : vector<1x1x128x8xf32> to vector<128x8xf32>
    %cst_234 = arith.constant dense<0.000000e+00> : vector<128x64xf32>
    %229 = tpu.matmul %228, %226, %cst_234 {dimension_numbers = #tpu.dot_dimension_numbers<[1], [0], [0], [1], [0, 0, 1, 1], [], []>} : vector<128x8xf32>, vector<8x64xf32>, vector<128x64xf32> -> vector<128x64xf32>
    %230 = arith.addf %223, %229 : vector<128x64xf32>
    %c7_235 = arith.constant 7 : index
    %c0_236 = arith.constant 0 : index
    %c0_237 = arith.constant 0 : index
    %231 = vector.load %arg1[%c7_235, %c0_236, %c0_237] : memref<9x256x64xf32, #tpu.memory_space<vmem>>, vector<1x256x64xf32>
    %232 = vector.shape_cast %231 : vector<1x256x64xf32> to vector<256x64xf32>
    %cst_238 = arith.constant dense<0.000000e+00> : vector<8x64xf32>
    %233 = tpu.matmul %180, %232, %cst_238 {dimension_numbers = #tpu.dot_dimension_numbers<[1], [0], [0], [1], [0, 0, 1, 1], [], []>} : vector<8x256xf32>, vector<256x64xf32>, vector<8x64xf32> -> vector<8x64xf32>
    %c1_239 = arith.constant 1 : index
    %c7_240 = arith.constant 7 : index
    %c0_241 = arith.constant 0 : index
    %c0_242 = arith.constant 0 : index
    %234 = vector.load %arg6[%c1_239, %c7_240, %c0_241, %c0_242] : memref<2x9x128x8xf32, #tpu.memory_space<vmem>>, vector<1x1x128x8xf32>
    %235 = vector.shape_cast %234 : vector<1x1x128x8xf32> to vector<128x8xf32>
    %cst_243 = arith.constant dense<0.000000e+00> : vector<128x64xf32>
    %236 = tpu.matmul %235, %233, %cst_243 {dimension_numbers = #tpu.dot_dimension_numbers<[1], [0], [0], [1], [0, 0, 1, 1], [], []>} : vector<128x8xf32>, vector<8x64xf32>, vector<128x64xf32> -> vector<128x64xf32>
    %237 = arith.addf %230, %236 : vector<128x64xf32>
    %c8_244 = arith.constant 8 : index
    %c0_245 = arith.constant 0 : index
    %c0_246 = arith.constant 0 : index
    %238 = vector.load %arg1[%c8_244, %c0_245, %c0_246] : memref<9x256x64xf32, #tpu.memory_space<vmem>>, vector<1x256x64xf32>
    %239 = vector.shape_cast %238 : vector<1x256x64xf32> to vector<256x64xf32>
    %cst_247 = arith.constant dense<0.000000e+00> : vector<8x64xf32>
    %240 = tpu.matmul %180, %239, %cst_247 {dimension_numbers = #tpu.dot_dimension_numbers<[1], [0], [0], [1], [0, 0, 1, 1], [], []>} : vector<8x256xf32>, vector<256x64xf32>, vector<8x64xf32> -> vector<8x64xf32>
    %c1_248 = arith.constant 1 : index
    %c8_249 = arith.constant 8 : index
    %c0_250 = arith.constant 0 : index
    %c0_251 = arith.constant 0 : index
    %241 = vector.load %arg6[%c1_248, %c8_249, %c0_250, %c0_251] : memref<2x9x128x8xf32, #tpu.memory_space<vmem>>, vector<1x1x128x8xf32>
    %242 = vector.shape_cast %241 : vector<1x1x128x8xf32> to vector<128x8xf32>
    %cst_252 = arith.constant dense<0.000000e+00> : vector<128x64xf32>
    %243 = tpu.matmul %242, %240, %cst_252 {dimension_numbers = #tpu.dot_dimension_numbers<[1], [0], [0], [1], [0, 0, 1, 1], [], []>} : vector<128x8xf32>, vector<8x64xf32>, vector<128x64xf32> -> vector<128x64xf32>
    %244 = arith.addf %237, %243 : vector<128x64xf32>
    %c1_253 = arith.constant 1 : index
    %c0_254 = arith.constant 0 : index
    %c0_255 = arith.constant 0 : index
    %245 = vector.load %arg7[%c1_253, %c0_254, %c0_255] : memref<2x128x1xf32, #tpu.memory_space<vmem>>, vector<1x128x1xf32>
    %246 = vector.shape_cast %245 : vector<1x128x1xf32> to vector<128x1xf32>
    %247 = vector.broadcast %246 : vector<128x1xf32> to vector<128x64xf32>
    %248 = arith.mulf %244, %247 : vector<128x64xf32>
    %c1_256 = arith.constant 1 : index
    %c0_257 = arith.constant 0 : index
    %c0_258 = arith.constant 0 : index
    %249 = vector.load %arg8[%c1_256, %c0_257, %c0_258] : memref<2x128x1xf32, #tpu.memory_space<vmem>>, vector<1x128x1xf32>
    %250 = vector.shape_cast %249 : vector<1x128x1xf32> to vector<128x1xf32>
    %251 = vector.broadcast %250 : vector<128x1xf32> to vector<128x64xf32>
    %252 = arith.addf %248, %251 : vector<128x64xf32>
    %cst_259 = arith.constant 0.000000e+00 : f32
    %253 = vector.broadcast %cst_259 : f32 to vector<128x64xf32>
    %254 = arith.maximumf %252, %253 : vector<128x64xf32>
    %c0_260 = arith.constant 0 : index
    %c0_261 = arith.constant 0 : index
    %c0_262 = arith.constant 0 : index
    %255 = vector.load %arg2[%c0_260, %c0_261, %c0_262] : memref<9x64x16xf32, #tpu.memory_space<vmem>>, vector<1x64x16xf32>
    %256 = vector.shape_cast %255 : vector<1x64x16xf32> to vector<64x16xf32>
    %cst_263 = arith.constant dense<0.000000e+00> : vector<128x16xf32>
    %257 = tpu.matmul %254, %256, %cst_263 {dimension_numbers = #tpu.dot_dimension_numbers<[1], [0], [0], [1], [0, 0, 1, 1], [], []>} : vector<128x64xf32>, vector<64x16xf32>, vector<128x16xf32> -> vector<128x16xf32>
    %c1_264 = arith.constant 1 : index
    %c0_265 = arith.constant 0 : index
    %c0_266 = arith.constant 0 : index
    %258 = vector.load %arg2[%c1_264, %c0_265, %c0_266] : memref<9x64x16xf32, #tpu.memory_space<vmem>>, vector<1x64x16xf32>
    %259 = vector.shape_cast %258 : vector<1x64x16xf32> to vector<64x16xf32>
    %cst_267 = arith.constant dense<0.000000e+00> : vector<128x16xf32>
    %260 = tpu.matmul %254, %259, %cst_267 {dimension_numbers = #tpu.dot_dimension_numbers<[1], [0], [0], [1], [0, 0, 1, 1], [], []>} : vector<128x64xf32>, vector<64x16xf32>, vector<128x16xf32> -> vector<128x16xf32>
    %261 = arith.maximumf %257, %260 : vector<128x16xf32>
    %c2_268 = arith.constant 2 : index
    %c0_269 = arith.constant 0 : index
    %c0_270 = arith.constant 0 : index
    %262 = vector.load %arg2[%c2_268, %c0_269, %c0_270] : memref<9x64x16xf32, #tpu.memory_space<vmem>>, vector<1x64x16xf32>
    %263 = vector.shape_cast %262 : vector<1x64x16xf32> to vector<64x16xf32>
    %cst_271 = arith.constant dense<0.000000e+00> : vector<128x16xf32>
    %264 = tpu.matmul %254, %263, %cst_271 {dimension_numbers = #tpu.dot_dimension_numbers<[1], [0], [0], [1], [0, 0, 1, 1], [], []>} : vector<128x64xf32>, vector<64x16xf32>, vector<128x16xf32> -> vector<128x16xf32>
    %265 = arith.maximumf %261, %264 : vector<128x16xf32>
    %c3_272 = arith.constant 3 : index
    %c0_273 = arith.constant 0 : index
    %c0_274 = arith.constant 0 : index
    %266 = vector.load %arg2[%c3_272, %c0_273, %c0_274] : memref<9x64x16xf32, #tpu.memory_space<vmem>>, vector<1x64x16xf32>
    %267 = vector.shape_cast %266 : vector<1x64x16xf32> to vector<64x16xf32>
    %cst_275 = arith.constant dense<0.000000e+00> : vector<128x16xf32>
    %268 = tpu.matmul %254, %267, %cst_275 {dimension_numbers = #tpu.dot_dimension_numbers<[1], [0], [0], [1], [0, 0, 1, 1], [], []>} : vector<128x64xf32>, vector<64x16xf32>, vector<128x16xf32> -> vector<128x16xf32>
    %269 = arith.maximumf %265, %268 : vector<128x16xf32>
    %c4_276 = arith.constant 4 : index
    %c0_277 = arith.constant 0 : index
    %c0_278 = arith.constant 0 : index
    %270 = vector.load %arg2[%c4_276, %c0_277, %c0_278] : memref<9x64x16xf32, #tpu.memory_space<vmem>>, vector<1x64x16xf32>
    %271 = vector.shape_cast %270 : vector<1x64x16xf32> to vector<64x16xf32>
    %cst_279 = arith.constant dense<0.000000e+00> : vector<128x16xf32>
    %272 = tpu.matmul %254, %271, %cst_279 {dimension_numbers = #tpu.dot_dimension_numbers<[1], [0], [0], [1], [0, 0, 1, 1], [], []>} : vector<128x64xf32>, vector<64x16xf32>, vector<128x16xf32> -> vector<128x16xf32>
    %273 = arith.maximumf %269, %272 : vector<128x16xf32>
    %c5_280 = arith.constant 5 : index
    %c0_281 = arith.constant 0 : index
    %c0_282 = arith.constant 0 : index
    %274 = vector.load %arg2[%c5_280, %c0_281, %c0_282] : memref<9x64x16xf32, #tpu.memory_space<vmem>>, vector<1x64x16xf32>
    %275 = vector.shape_cast %274 : vector<1x64x16xf32> to vector<64x16xf32>
    %cst_283 = arith.constant dense<0.000000e+00> : vector<128x16xf32>
    %276 = tpu.matmul %254, %275, %cst_283 {dimension_numbers = #tpu.dot_dimension_numbers<[1], [0], [0], [1], [0, 0, 1, 1], [], []>} : vector<128x64xf32>, vector<64x16xf32>, vector<128x16xf32> -> vector<128x16xf32>
    %277 = arith.maximumf %273, %276 : vector<128x16xf32>
    %c6_284 = arith.constant 6 : index
    %c0_285 = arith.constant 0 : index
    %c0_286 = arith.constant 0 : index
    %278 = vector.load %arg2[%c6_284, %c0_285, %c0_286] : memref<9x64x16xf32, #tpu.memory_space<vmem>>, vector<1x64x16xf32>
    %279 = vector.shape_cast %278 : vector<1x64x16xf32> to vector<64x16xf32>
    %cst_287 = arith.constant dense<0.000000e+00> : vector<128x16xf32>
    %280 = tpu.matmul %254, %279, %cst_287 {dimension_numbers = #tpu.dot_dimension_numbers<[1], [0], [0], [1], [0, 0, 1, 1], [], []>} : vector<128x64xf32>, vector<64x16xf32>, vector<128x16xf32> -> vector<128x16xf32>
    %281 = arith.maximumf %277, %280 : vector<128x16xf32>
    %c7_288 = arith.constant 7 : index
    %c0_289 = arith.constant 0 : index
    %c0_290 = arith.constant 0 : index
    %282 = vector.load %arg2[%c7_288, %c0_289, %c0_290] : memref<9x64x16xf32, #tpu.memory_space<vmem>>, vector<1x64x16xf32>
    %283 = vector.shape_cast %282 : vector<1x64x16xf32> to vector<64x16xf32>
    %cst_291 = arith.constant dense<0.000000e+00> : vector<128x16xf32>
    %284 = tpu.matmul %254, %283, %cst_291 {dimension_numbers = #tpu.dot_dimension_numbers<[1], [0], [0], [1], [0, 0, 1, 1], [], []>} : vector<128x64xf32>, vector<64x16xf32>, vector<128x16xf32> -> vector<128x16xf32>
    %285 = arith.maximumf %281, %284 : vector<128x16xf32>
    %c8_292 = arith.constant 8 : index
    %c0_293 = arith.constant 0 : index
    %c0_294 = arith.constant 0 : index
    %286 = vector.load %arg2[%c8_292, %c0_293, %c0_294] : memref<9x64x16xf32, #tpu.memory_space<vmem>>, vector<1x64x16xf32>
    %287 = vector.shape_cast %286 : vector<1x64x16xf32> to vector<64x16xf32>
    %cst_295 = arith.constant dense<0.000000e+00> : vector<128x16xf32>
    %288 = tpu.matmul %254, %287, %cst_295 {dimension_numbers = #tpu.dot_dimension_numbers<[1], [0], [0], [1], [0, 0, 1, 1], [], []>} : vector<128x64xf32>, vector<64x16xf32>, vector<128x16xf32> -> vector<128x16xf32>
    %289 = arith.maximumf %285, %288 : vector<128x16xf32>
    %c1_296 = arith.constant 1 : index
    %c0_297 = arith.constant 0 : index
    %c0_298 = arith.constant 0 : index
    %290 = vector.load %arg9[%c1_296, %c0_297, %c0_298] : memref<2x64x128xf32, #tpu.memory_space<vmem>>, vector<1x64x128xf32>
    %291 = vector.shape_cast %290 : vector<1x64x128xf32> to vector<64x128xf32>
    %cst_299 = arith.constant dense<0.000000e+00> : vector<64x16xf32>
    %292 = tpu.matmul %291, %289, %cst_299 {dimension_numbers = #tpu.dot_dimension_numbers<[1], [0], [0], [1], [0, 0, 1, 1], [], []>} : vector<64x128xf32>, vector<128x16xf32>, vector<64x16xf32> -> vector<64x16xf32>
    %c1_300 = arith.constant 1 : index
    %c0_301 = arith.constant 0 : index
    %c0_302 = arith.constant 0 : index
    %293 = vector.load %arg10[%c1_300, %c0_301, %c0_302] : memref<2x64x1xf32, #tpu.memory_space<vmem>>, vector<1x64x1xf32>
    %294 = vector.shape_cast %293 : vector<1x64x1xf32> to vector<64x1xf32>
    %295 = vector.broadcast %294 : vector<64x1xf32> to vector<64x16xf32>
    %296 = arith.mulf %292, %295 : vector<64x16xf32>
    %c1_303 = arith.constant 1 : index
    %c0_304 = arith.constant 0 : index
    %c0_305 = arith.constant 0 : index
    %297 = vector.load %arg11[%c1_303, %c0_304, %c0_305] : memref<2x64x1xf32, #tpu.memory_space<vmem>>, vector<1x64x1xf32>
    %298 = vector.shape_cast %297 : vector<1x64x1xf32> to vector<64x1xf32>
    %299 = vector.broadcast %298 : vector<64x1xf32> to vector<64x16xf32>
    %300 = arith.addf %296, %299 : vector<64x16xf32>
    %cst_306 = arith.constant 0.000000e+00 : f32
    %301 = vector.broadcast %cst_306 : f32 to vector<64x16xf32>
    %302 = arith.maximumf %300, %301 : vector<64x16xf32>
    %c1_307 = arith.constant 1 : index
    %c0_308 = arith.constant 0 : index
    %c0_309 = arith.constant 0 : index
    %303 = vector.load %arg12[%c1_307, %c0_308, %c0_309] : memref<2x32x64xf32, #tpu.memory_space<vmem>>, vector<1x32x64xf32>
    %304 = vector.shape_cast %303 : vector<1x32x64xf32> to vector<32x64xf32>
    %cst_310 = arith.constant dense<0.000000e+00> : vector<32x16xf32>
    %305 = tpu.matmul %304, %302, %cst_310 {dimension_numbers = #tpu.dot_dimension_numbers<[1], [0], [0], [1], [0, 0, 1, 1], [], []>} : vector<32x64xf32>, vector<64x16xf32>, vector<32x16xf32> -> vector<32x16xf32>
    %c1_311 = arith.constant 1 : index
    %c0_312 = arith.constant 0 : index
    %c0_313 = arith.constant 0 : index
    %306 = vector.load %arg13[%c1_311, %c0_312, %c0_313] : memref<2x32x1xf32, #tpu.memory_space<vmem>>, vector<1x32x1xf32>
    %307 = vector.shape_cast %306 : vector<1x32x1xf32> to vector<32x1xf32>
    %308 = vector.broadcast %307 : vector<32x1xf32> to vector<32x16xf32>
    %309 = arith.mulf %305, %308 : vector<32x16xf32>
    %c1_314 = arith.constant 1 : index
    %c0_315 = arith.constant 0 : index
    %c0_316 = arith.constant 0 : index
    %310 = vector.load %arg14[%c1_314, %c0_315, %c0_316] : memref<2x32x1xf32, #tpu.memory_space<vmem>>, vector<1x32x1xf32>
    %311 = vector.shape_cast %310 : vector<1x32x1xf32> to vector<32x1xf32>
    %312 = vector.broadcast %311 : vector<32x1xf32> to vector<32x16xf32>
    %313 = arith.addf %309, %312 : vector<32x16xf32>
    %cst_317 = arith.constant 0.000000e+00 : f32
    %314 = vector.broadcast %cst_317 : f32 to vector<32x16xf32>
    %315 = arith.maximumf %313, %314 : vector<32x16xf32>
    %c1_318 = arith.constant 1 : index
    %c0_319 = arith.constant 0 : index
    %c0_320 = arith.constant 0 : index
    %316 = vector.load %arg15[%c1_318, %c0_319, %c0_320] : memref<2x4x32xf32, #tpu.memory_space<vmem>>, vector<1x4x32xf32>
    %317 = vector.shape_cast %316 : vector<1x4x32xf32> to vector<4x32xf32>
    %cst_321 = arith.constant dense<0.000000e+00> : vector<4x16xf32>
    %318 = tpu.matmul %317, %315, %cst_321 {dimension_numbers = #tpu.dot_dimension_numbers<[1], [0], [0], [1], [0, 0, 1, 1], [], []>} : vector<4x32xf32>, vector<32x16xf32>, vector<4x16xf32> -> vector<4x16xf32>
    %c1_322 = arith.constant 1 : index
    %c0_323 = arith.constant 0 : index
    %c0_324 = arith.constant 0 : index
    %319 = vector.load %arg16[%c1_322, %c0_323, %c0_324] : memref<2x4x1xf32, #tpu.memory_space<vmem>>, vector<1x4x1xf32>
    %320 = vector.shape_cast %319 : vector<1x4x1xf32> to vector<4x1xf32>
    %321 = vector.broadcast %320 : vector<4x1xf32> to vector<4x16xf32>
    %322 = arith.addf %318, %321 : vector<4x16xf32>
    %cst_325 = arith.constant 0.000000e+00 : f32
    %323 = vector.broadcast %cst_325 : f32 to vector<4x16xf32>
    %324 = arith.maximumf %322, %323 : vector<4x16xf32>
    %cst_326 = arith.constant dense<0xFF800000> : vector<16xf32>
    %325 = vector.multi_reduction <maximumf>, %324, %cst_326 [0] : vector<4x16xf32> to vector<16xf32>
    %326 = vector.shape_cast %325 : vector<16xf32> to vector<1x16xf32>
    %327 = vector.broadcast %326 : vector<1x16xf32> to vector<4x16xf32>
    %328 = arith.subf %324, %327 : vector<4x16xf32>
    %329 = math.exp %328 : vector<4x16xf32>
    %cst_327 = arith.constant dense<0.000000e+00> : vector<16xf32>
    %330 = vector.multi_reduction <add>, %329, %cst_327 [0] : vector<4x16xf32> to vector<16xf32>
    %331 = vector.shape_cast %330 : vector<16xf32> to vector<1x16xf32>
    %332 = tpu.reciprocal %331 {approx = true} : vector<1x16xf32> -> vector<1x16xf32>
    %333 = vector.broadcast %332 : vector<1x16xf32> to vector<4x16xf32>
    %334 = arith.mulf %329, %333 : vector<4x16xf32>
    %c0_328 = arith.constant 0 : index
    %c0_329 = arith.constant 0 : index
    %335 = vector.load %arg3[%c0_328, %c0_329] : memref<16x256xf32, #tpu.memory_space<vmem>>, vector<16x256xf32>
    %cst_330 = arith.constant dense<0.000000e+00> : vector<4x256xf32>
    %336 = tpu.matmul %334, %335, %cst_330 {dimension_numbers = #tpu.dot_dimension_numbers<[1], [0], [0], [1], [0, 0, 1, 1], [], []>} : vector<4x16xf32>, vector<16x256xf32>, vector<4x256xf32> -> vector<4x256xf32>
    %cst_331 = arith.constant dense<0xFF800000> : vector<4xf32>
    %337 = vector.multi_reduction <maximumf>, %178, %cst_331 [1] : vector<4x256xf32> to vector<4xf32>
    %338 = vector.shape_cast %337 : vector<4xf32> to vector<4x1xf32>
    %cst_332 = arith.constant 0.000000e+00 : f32
    %339 = vector.broadcast %cst_332 : f32 to vector<4x1xf32>
    %340 = arith.maximumf %338, %339 : vector<4x1xf32>
    %341 = math.sqrt %340 : vector<4x1xf32>
    %cst_333 = arith.constant 0.000000e+00 : f32
    %cst_334 = arith.constant 1.000000e+00 : f32
    %342 = vector.broadcast %cst_333 : f32 to vector<4x1xf32>
    %343 = arith.maximumf %342, %341 : vector<4x1xf32>
    %344 = vector.broadcast %cst_334 : f32 to vector<4x1xf32>
    %345 = arith.minimumf %344, %343 : vector<4x1xf32>
    %346 = vector.broadcast %345 : vector<4x1xf32> to vector<4x256xf32>
    %347 = arith.mulf %178, %346 : vector<4x256xf32>
    %cst_335 = arith.constant 1.000000e+00 : f32
    %348 = vector.broadcast %cst_335 : f32 to vector<4x1xf32>
    %349 = arith.subf %348, %345 : vector<4x1xf32>
    %350 = vector.broadcast %349 : vector<4x1xf32> to vector<4x256xf32>
    %351 = arith.mulf %336, %350 : vector<4x256xf32>
    %352 = arith.addf %347, %351 : vector<4x256xf32>
    %c0_336 = arith.constant 0 : index
    %c0_337 = arith.constant 0 : index
    %c0_338 = arith.constant 0 : index
    %353 = vector.load %arg17[%c0_336, %c0_337, %c0_338] : memref<1x4x256xf32, #tpu.memory_space<vmem>>, vector<1x4x256xf32>
    %354 = vector.shape_cast %353 : vector<1x4x256xf32> to vector<4x256xf32>
    %355 = vector.shape_cast %352 : vector<4x256xf32> to vector<1x4x256xf32>
    tpu.vector_store %arg17[%c0_336, %c0_337, %c0_338], %355 {strides = array<i32>} : memref<1x4x256xf32, #tpu.memory_space<vmem>>, vector<1x4x256xf32>,
    return
  }
  func.func @transform_0(%arg0: i32) -> (i32, i32, i32) {
    %c0_i32 = arith.constant 0 : i32
    %c0_i32_0 = arith.constant 0 : i32
    %c0_i32_1 = arith.constant 0 : i32
    %c0_i32_2 = arith.constant 0 : i32
    return %c0_i32, %c0_i32_0, %c0_i32_1 : i32, i32, i32
  }
  func.func @transform_1(%arg0: i32) -> (i32, i32, i32) {
    %c0_i32 = arith.constant 0 : i32
    %c0_i32_0 = arith.constant 0 : i32
    %c0_i32_1 = arith.constant 0 : i32
    %c0_i32_2 = arith.constant 0 : i32
    return %c0_i32, %c0_i32_0, %c0_i32_1 : i32, i32, i32
  }
  func.func @transform_2(%arg0: i32) -> (i32, i32) {
    %c0_i32 = arith.constant 0 : i32
    %c0_i32_0 = arith.constant 0 : i32
    %c0_i32_1 = arith.constant 0 : i32
    return %c0_i32, %c0_i32_0 : i32, i32
  }
  func.func @transform_3(%arg0: i32) -> (i32, i32, i32) {
    %c0_i32 = arith.constant 0 : i32
    %c0_i32_0 = arith.constant 0 : i32
    %c0_i32_1 = arith.constant 0 : i32
    return %arg0, %c0_i32, %c0_i32_0 : i32, i32, i32
  }
  func.func @transform_4(%arg0: i32) -> (i32, i32, i32) {
    %c0_i32 = arith.constant 0 : i32
    %c0_i32_0 = arith.constant 0 : i32
    %c0_i32_1 = arith.constant 0 : i32
    return %arg0, %c0_i32, %c0_i32_0 : i32, i32, i32
  }
  func.func @transform_5(%arg0: i32) -> (i32, i32, i32, i32) {
    %c0_i32 = arith.constant 0 : i32
    %c0_i32_0 = arith.constant 0 : i32
    %c0_i32_1 = arith.constant 0 : i32
    %c0_i32_2 = arith.constant 0 : i32
    %c0_i32_3 = arith.constant 0 : i32
    return %c0_i32, %c0_i32_0, %c0_i32_1, %c0_i32_2 : i32, i32, i32, i32
  }
  func.func @transform_6(%arg0: i32) -> (i32, i32, i32) {
    %c0_i32 = arith.constant 0 : i32
    %c0_i32_0 = arith.constant 0 : i32
    %c0_i32_1 = arith.constant 0 : i32
    %c0_i32_2 = arith.constant 0 : i32
    return %c0_i32, %c0_i32_0, %c0_i32_1 : i32, i32, i32
  }
  func.func @transform_7(%arg0: i32) -> (i32, i32, i32) {
    %c0_i32 = arith.constant 0 : i32
    %c0_i32_0 = arith.constant 0 : i32
    %c0_i32_1 = arith.constant 0 : i32
    %c0_i32_2 = arith.constant 0 : i32
    return %c0_i32, %c0_i32_0, %c0_i32_1 : i32, i32, i32
  }
  func.func @transform_8(%arg0: i32) -> (i32, i32, i32) {
    %c0_i32 = arith.constant 0 : i32
    %c0_i32_0 = arith.constant 0 : i32
    %c0_i32_1 = arith.constant 0 : i32
    %c0_i32_2 = arith.constant 0 : i32
    return %c0_i32, %c0_i32_0, %c0_i32_1 : i32, i32, i32
  }
  func.func @transform_9(%arg0: i32) -> (i32, i32, i32) {
    %c0_i32 = arith.constant 0 : i32
    %c0_i32_0 = arith.constant 0 : i32
    %c0_i32_1 = arith.constant 0 : i32
    %c0_i32_2 = arith.constant 0 : i32
    return %c0_i32, %c0_i32_0, %c0_i32_1 : i32, i32, i32
  }
  func.func @transform_10(%arg0: i32) -> (i32, i32, i32) {
    %c0_i32 = arith.constant 0 : i32
    %c0_i32_0 = arith.constant 0 : i32
    %c0_i32_1 = arith.constant 0 : i32
    %c0_i32_2 = arith.constant 0 : i32
    return %c0_i32, %c0_i32_0, %c0_i32_1 : i32, i32, i32
  }
  func.func @transform_11(%arg0: i32) -> (i32, i32, i32) {
    %c0_i32 = arith.constant 0 : i32
    %c0_i32_0 = arith.constant 0 : i32
    %c0_i32_1 = arith.constant 0 : i32
    %c0_i32_2 = arith.constant 0 : i32
    return %c0_i32, %c0_i32_0, %c0_i32_1 : i32, i32, i32
  }
  func.func @transform_12(%arg0: i32) -> (i32, i32, i32) {
    %c0_i32 = arith.constant 0 : i32
    %c0_i32_0 = arith.constant 0 : i32
    %c0_i32_1 = arith.constant 0 : i32
    %c0_i32_2 = arith.constant 0 : i32
    return %c0_i32, %c0_i32_0, %c0_i32_1 : i32, i32, i32
  }
  func.func @transform_13(%arg0: i32) -> (i32, i32, i32) {
    %c0_i32 = arith.constant 0 : i32
    %c0_i32_0 = arith.constant 0 : i32
    %c0_i32_1 = arith.constant 0 : i32
    %c0_i32_2 = arith.constant 0 : i32
    return %c0_i32, %c0_i32_0, %c0_i32_1 : i32, i32, i32
  }
  func.func @transform_14(%arg0: i32) -> (i32, i32, i32) {
    %c0_i32 = arith.constant 0 : i32
    %c0_i32_0 = arith.constant 0 : i32
    %c0_i32_1 = arith.constant 0 : i32
    %c0_i32_2 = arith.constant 0 : i32
    return %c0_i32, %c0_i32_0, %c0_i32_1 : i32, i32, i32
  }
  func.func @transform_15(%arg0: i32) -> (i32, i32, i32) {
    %c0_i32 = arith.constant 0 : i32
    %c0_i32_0 = arith.constant 0 : i32
    %c0_i32_1 = arith.constant 0 : i32
    %c0_i32_2 = arith.constant 0 : i32
    return %c0_i32, %c0_i32_0, %c0_i32_1 : i32, i32, i32
  }
  func.func @transform_16(%arg0: i32) -> (i32, i32, i32) {
    %c0_i32 = arith.constant 0 : i32
    %c0_i32_0 = arith.constant 0 : i32
    %c0_i32_1 = arith.constant 0 : i32
    return %arg0, %c0_i32, %c0_i32_0 : i32, i32, i32
  }
}

</mosaic_0001>

<llo_original>
// kernel: stack_metabooster_forward.1
$region0: #{stack_metabooster_forward.1}
  #allocation0 [shape = 'u32[]', space=smem, size = 0x4, offset = 0x4, fixed_abs, tag = 'smem constant byte address 0x4 - core index']
  #allocation1 [shape = 'u32[72,128]{1,0:T(1,128)}', space=vmem, size = 0x9000, scoped, tag = 'internal scratch']
  #allocation2 [shape = 'f32[8,256]{1,0:T(8,128)}', space=vmem, size = 0x2000, scoped, tag = 'scratch operand']
  %s0 = inlined_call_operand.vmem [shape: f32[9,256,64], index: 0, kind: input, shape index: {}]
  %s1 = inlined_call_operand.vmem [shape: f32[9,64,16], index: 1, kind: input, shape index: {}]
  %s2 = inlined_call_operand.vmem [shape: f32[16,256], index: 2, kind: input, shape index: {}]
  %s3 = inlined_call_operand.vmem [shape: f32[2,4,256], index: 3, kind: input, shape index: {}]
  %s4 = inlined_call_operand.vmem [shape: f32[2,4,256], index: 4, kind: input, shape index: {}]
  %s5 = inlined_call_operand.vmem [shape: f32[2,9,128,8], index: 5, kind: input, shape index: {}]
  %s6 = inlined_call_operand.vmem [shape: f32[2,128,1], index: 6, kind: input, shape index: {}]
  %s7 = inlined_call_operand.vmem [shape: f32[2,128,1], index: 7, kind: input, shape index: {}]
  %s8 = inlined_call_operand.vmem [shape: f32[2,64,128], index: 8, kind: input, shape index: {}]
  %s9 = inlined_call_operand.vmem [shape: f32[2,64,1], index: 9, kind: input, shape index: {}]
  %s10 = inlined_call_operand.vmem [shape: f32[2,64,1], index: 10, kind: input, shape index: {}]
  %s11 = inlined_call_operand.vmem [shape: f32[2,32,64], index: 11, kind: input, shape index: {}]
  %s12 = inlined_call_operand.vmem [shape: f32[2,32,1], index: 12, kind: input, shape index: {}]
  %s13 = inlined_call_operand.vmem [shape: f32[2,32,1], index: 13, kind: input, shape index: {}]
  %s14 = inlined_call_operand.vmem [shape: f32[2,4,32], index: 14, kind: input, shape index: {}]
  %s15 = inlined_call_operand.vmem [shape: f32[2,4,1], index: 15, kind: input, shape index: {}]
  %s16 = inlined_call_operand.vmem [shape: f32[2,4,256], index: 16, kind: output, shape index: {}]
  %s17 = sld [smem:[#allocation0]]
  $region97: #{stack_metabooster_forward.1} parent=0
    _
  %s19 = ssub.s32 1, %s17
  %s20 = scalar_select 0, %s19, %s17
  loop: start=0, step=1, limit=4
  $region2: #{stack_metabooster_forward.1} parent=0 // loop_pre_header
    _
  $region3: #{stack_metabooster_forward.1} parent=0 // loop_header
    %s22 = sphi 0, %s26
    %p23 = scmp.ge.s32.totalorder %s22, 4
    %s30 = sphi 0, %s30
    %s32 = sphi 0, %s30
    %s33 = sphi 0, %s32
    %s47 = sphi 0, %s33
    %s51 = sphi 0, %s51
    %s53 = sphi 0, %s51
    %s54 = sphi 0, %s53
    %s68 = sphi 0, %s54
    %s72 = sphi 0, %s72
    %s74 = sphi 0, %s72
    %s75 = sphi 0, %s74
    %s89 = sphi 0, %s75
    %s95 = sphi 0, %s97
    %s98 = sphi 0, %s95
    %s99 = sphi 0, %s98
    %s115 = sphi 0, %s99
    %s121 = sphi 0, %s123
    %s124 = sphi 0, %s121
    %s125 = sphi 0, %s124
    %s141 = sphi 0, %s125
    %s145 = sphi 0, %s145
    %s147 = sphi 0, %s145
    %s148 = sphi 0, %s147
    %s162 = sphi 0, %s148
    %s166 = sphi 0, %s166
    %s168 = sphi 0, %s166
    %s169 = sphi 0, %s168
    %s183 = sphi 0, %s169
    %s187 = sphi 0, %s187
    %s189 = sphi 0, %s187
    %s190 = sphi 0, %s189
    %s204 = sphi 0, %s190
    %s208 = sphi 0, %s208
    %s210 = sphi 0, %s208
    %s211 = sphi 0, %s210
    %s225 = sphi 0, %s211
    %s229 = sphi 0, %s229
    %s231 = sphi 0, %s229
    %s232 = sphi 0, %s231
    %s246 = sphi 0, %s232
    %s250 = sphi 0, %s250
    %s252 = sphi 0, %s250
    %s253 = sphi 0, %s252
    %s267 = sphi 0, %s253
    %s271 = sphi 0, %s271
    %s273 = sphi 0, %s271
    %s274 = sphi 0, %s273
    %s288 = sphi 0, %s274
    %s292 = sphi 0, %s292
    %s294 = sphi 0, %s292
    %s295 = sphi 0, %s294
    %s309 = sphi 0, %s295
    %s313 = sphi 0, %s313
    %s315 = sphi 0, %s313
    %s316 = sphi 0, %s315
    %s330 = sphi 0, %s316
    %s334 = sphi 0, %s334
    %s336 = sphi 0, %s334
    %s337 = sphi 0, %s336
    %s351 = sphi 0, %s337
    %s355 = sphi 0, %s355
    %s357 = sphi 0, %s355
    %s358 = sphi 0, %s357
    %s372 = sphi 0, %s358
    %s378 = sphi 0, %s380
    %s381 = sphi 0, %s378
    %s382 = sphi 0, %s381
    %s398 = sphi 0, %s382
  $region4: #{stack_metabooster_forward.1} parent=0 // loop_header_branch
    %25 = sbr.rel (%p23) target = $region8
  $region5: #{stack_metabooster_forward.1} parent=0 // loop_body
    %s27 = ssub.s32 %s22, 1
    %s28 = ssub.s32 %s22, 2
    %s29 = sadd.s32 %s22, 1
    %s31 = sadd.s32 %s30, 1
    %p34 = scmp.eq.s32.totalorder %s22, 1
    %p35 = scmp.ne.s32.totalorder %s30, %s32
    %p36 = scmp.eq.s32.totalorder %s22, 0
    %p37 = por %p35, %p36
    %p38 = scmp.ne.s32.totalorder %s30, %s32
    %p39 = scmp.eq.s32.totalorder %s27, 1
    %p40 = por %p38, %p39
    %p41 = scmp.ne.s32.totalorder %s32, %s33
    %p42 = scmp.eq.s32.totalorder %s27, 0
    %p43 = por %p41, %p42
    %p44 = scmp.ne.s32.totalorder %s32, %s33
    %p45 = scmp.eq.s32.totalorder %s28, 1
    %p46 = por %p44, %p45
    %p48 = scmp.ne.s32.totalorder %s33, %s47
    %p49 = scmp.eq.s32.totalorder %s28, 0
    %p50 = por %p48, %p49
    %s52 = sadd.s32 %s51, 1
    %p55 = scmp.eq.s32.totalorder %s22, 1
    %p56 = scmp.ne.s32.totalorder %s51, %s53
    %p57 = scmp.eq.s32.totalorder %s22, 0
    %p58 = por %p56, %p57
    %p59 = scmp.ne.s32.totalorder %s51, %s53
    %p60 = scmp.eq.s32.totalorder %s27, 1
    %p61 = por %p59, %p60
    %p62 = scmp.ne.s32.totalorder %s53, %s54
    %p63 = scmp.eq.s32.totalorder %s27, 0
    %p64 = por %p62, %p63
    %p65 = scmp.ne.s32.totalorder %s53, %s54
    %p66 = scmp.eq.s32.totalorder %s28, 1
    %p67 = por %p65, %p66
    %p69 = scmp.ne.s32.totalorder %s54, %s68
    %p70 = scmp.eq.s32.totalorder %s28, 0
    %p71 = por %p69, %p70
    %s73 = sadd.s32 %s72, 1
    %p76 = scmp.eq.s32.totalorder %s22, 1
    %p77 = scmp.ne.s32.totalorder %s72, %s74
    %p78 = scmp.eq.s32.totalorder %s22, 0
    %p79 = por %p77, %p78
    %p80 = scmp.ne.s32.totalorder %s72, %s74
    %p81 = scmp.eq.s32.totalorder %s27, 1
    %p82 = por %p80, %p81
    %p83 = scmp.ne.s32.totalorder %s74, %s75
    %p84 = scmp.eq.s32.totalorder %s27, 0
    %p85 = por %p83, %p84
    %p86 = scmp.ne.s32.totalorder %s74, %s75
    %p87 = scmp.eq.s32.totalorder %s28, 1
    %p88 = por %p86, %p87
    %p90 = scmp.ne.s32.totalorder %s75, %s89
    %p91 = scmp.eq.s32.totalorder %s28, 0
    %p92 = por %p90, %p91
    %s93 = ssub.s32 %s22, %s29
    %p94 = scmp.eq.s32.totalorder %s93, 0
    %s96 = sadd.s32 %s95, 1
    %s97 = scalar_select %p94, %s95, %s96
    %p100 = pneg %p94
    %p101 = scmp.eq.s32.totalorder %s22, 1
    %p102 = por %p100, %p101
    %p103 = scmp.ne.s32.totalorder %s95, %s98
    %p104 = scmp.eq.s32.totalorder %s22, 0
    %p105 = por %p103, %p104
    %p106 = scmp.ne.s32.totalorder %s95, %s98
    %p107 = scmp.eq.s32.totalorder %s27, 1
    %p108 = por %p106, %p107
    %p109 = scmp.ne.s32.totalorder %s98, %s99
    %p110 = scmp.eq.s32.totalorder %s27, 0
    %p111 = por %p109, %p110
    %p112 = scmp.ne.s32.totalorder %s98, %s99
    %p113 = scmp.eq.s32.totalorder %s28, 1
    %p114 = por %p112, %p113
    %p116 = scmp.ne.s32.totalorder %s99, %s115
    %p117 = scmp.eq.s32.totalorder %s28, 0
    %p118 = por %p116, %p117
    %s119 = ssub.s32 %s22, %s29
    %p120 = scmp.eq.s32.totalorder %s119, 0
    %s122 = sadd.s32 %s121, 1
    %s123 = scalar_select %p120, %s121, %s122
    %p126 = pneg %p120
    %p127 = scmp.eq.s32.totalorder %s22, 1
    %p128 = por %p126, %p127
    %p129 = scmp.ne.s32.totalorder %s121, %s124
    %p130 = scmp.eq.s32.totalorder %s22, 0
    %p131 = por %p129, %p130
    %p132 = scmp.ne.s32.totalorder %s121, %s124
    %p133 = scmp.eq.s32.totalorder %s27, 1
    %p134 = por %p132, %p133
    %p135 = scmp.ne.s32.totalorder %s124, %s125
    %p136 = scmp.eq.s32.totalorder %s27, 0
    %p137 = por %p135, %p136
    %p138 = scmp.ne.s32.totalorder %s124, %s125
    %p139 = scmp.eq.s32.totalorder %s28, 1
    %p140 = por %p138, %p139
    %p142 = scmp.ne.s32.totalorder %s125, %s141
    %p143 = scmp.eq.s32.totalorder %s28, 0
    %p144 = por %p142, %p143
    %s146 = sadd.s32 %s145, 1
    %p149 = scmp.eq.s32.totalorder %s22, 1
    %p150 = scmp.ne.s32.totalorder %s145, %s147
    %p151 = scmp.eq.s32.totalorder %s22, 0
    %p152 = por %p150, %p151
    %p153 = scmp.ne.s32.totalorder %s145, %s147
    %p154 = scmp.eq.s32.totalorder %s27, 1
    %p155 = por %p153, %p154
    %p156 = scmp.ne.s32.totalorder %s147, %s148
    %p157 = scmp.eq.s32.totalorder %s27, 0
    %p158 = por %p156, %p157
    %p159 = scmp.ne.s32.totalorder %s147, %s148
    %p160 = scmp.eq.s32.totalorder %s28, 1
    %p161 = por %p159, %p160
    %p163 = scmp.ne.s32.totalorder %s148, %s162
    %p164 = scmp.eq.s32.totalorder %s28, 0
    %p165 = por %p163, %p164
    %s167 = sadd.s32 %s166, 1
    %p170 = scmp.eq.s32.totalorder %s22, 1
    %p171 = scmp.ne.s32.totalorder %s166, %s168
    %p172 = scmp.eq.s32.totalorder %s22, 0
    %p173 = por %p171, %p172
    %p174 = scmp.ne.s32.totalorder %s166, %s168
    %p175 = scmp.eq.s32.totalorder %s27, 1
    %p176 = por %p174, %p175
    %p177 = scmp.ne.s32.totalorder %s168, %s169
    %p178 = scmp.eq.s32.totalorder %s27, 0
    %p179 = por %p177, %p178
    %p180 = scmp.ne.s32.totalorder %s168, %s169
    %p181 = scmp.eq.s32.totalorder %s28, 1
    %p182 = por %p180, %p181
    %p184 = scmp.ne.s32.totalorder %s169, %s183
    %p185 = scmp.eq.s32.totalorder %s28, 0
    %p186 = por %p184, %p185
    %s188 = sadd.s32 %s187, 1
    %p191 = scmp.eq.s32.totalorder %s22, 1
    %p192 = scmp.ne.s32.totalorder %s187, %s189
    %p193 = scmp.eq.s32.totalorder %s22, 0
    %p194 = por %p192, %p193
    %p195 = scmp.ne.s32.totalorder %s187, %s189
    %p196 = scmp.eq.s32.totalorder %s27, 1
    %p197 = por %p195, %p196
    %p198 = scmp.ne.s32.totalorder %s189, %s190
    %p199 = scmp.eq.s32.totalorder %s27, 0
    %p200 = por %p198, %p199
    %p201 = scmp.ne.s32.totalorder %s189, %s190
    %p202 = scmp.eq.s32.totalorder %s28, 1
    %p203 = por %p201, %p202
    %p205 = scmp.ne.s32.totalorder %s190, %s204
    %p206 = scmp.eq.s32.totalorder %s28, 0
    %p207 = por %p205, %p206
    %s209 = sadd.s32 %s208, 1
    %p212 = scmp.eq.s32.totalorder %s22, 1
    %p213 = scmp.ne.s32.totalorder %s208, %s210
    %p214 = scmp.eq.s32.totalorder %s22, 0
    %p215 = por %p213, %p214
    %p216 = scmp.ne.s32.totalorder %s208, %s210
    %p217 = scmp.eq.s32.totalorder %s27, 1
    %p218 = por %p216, %p217
    %p219 = scmp.ne.s32.totalorder %s210, %s211
    %p220 = scmp.eq.s32.totalorder %s27, 0
    %p221 = por %p219, %p220
    %p222 = scmp.ne.s32.totalorder %s210, %s211
    %p223 = scmp.eq.s32.totalorder %s28, 1
    %p224 = por %p222, %p223
    %p226 = scmp.ne.s32.totalorder %s211, %s225
    %p227 = scmp.eq.s32.totalorder %s28, 0
    %p228 = por %p226, %p227
    %s230 = sadd.s32 %s229, 1
    %p233 = scmp.eq.s32.totalorder %s22, 1
    %p234 = scmp.ne.s32.totalorder %s229, %s231
    %p235 = scmp.eq.s32.totalorder %s22, 0
    %p236 = por %p234, %p235
    %p237 = scmp.ne.s32.totalorder %s229, %s231
    %p238 = scmp.eq.s32.totalorder %s27, 1
    %p239 = por %p237, %p238
    %p240 = scmp.ne.s32.totalorder %s231, %s232
    %p241 = scmp.eq.s32.totalorder %s27, 0
    %p242 = por %p240, %p241
    %p243 = scmp.ne.s32.totalorder %s231, %s232
    %p244 = scmp.eq.s32.totalorder %s28, 1
    %p245 = por %p243, %p244
    %p247 = scmp.ne.s32.totalorder %s232, %s246
    %p248 = scmp.eq.s32.totalorder %s28, 0
    %p249 = por %p247, %p248
    %s251 = sadd.s32 %s250, 1
    %p254 = scmp.eq.s32.totalorder %s22, 1
    %p255 = scmp.ne.s32.totalorder %s250, %s252
    %p256 = scmp.eq.s32.totalorder %s22, 0
    %p257 = por %p255, %p256
    %p258 = scmp.ne.s32.totalorder %s250, %s252
    %p259 = scmp.eq.s32.totalorder %s27, 1
    %p260 = por %p258, %p259
    %p261 = scmp.ne.s32.totalorder %s252, %s253
    %p262 = scmp.eq.s32.totalorder %s27, 0
    %p263 = por %p261, %p262
    %p264 = scmp.ne.s32.totalorder %s252, %s253
    %p265 = scmp.eq.s32.totalorder %s28, 1
    %p266 = por %p264, %p265
    %p268 = scmp.ne.s32.totalorder %s253, %s267
    %p269 = scmp.eq.s32.totalorder %s28, 0
    %p270 = por %p268, %p269
    %s272 = sadd.s32 %s271, 1
    %p275 = scmp.eq.s32.totalorder %s22, 1
    %p276 = scmp.ne.s32.totalorder %s271, %s273
    %p277 = scmp.eq.s32.totalorder %s22, 0
    %p278 = por %p276, %p277
    %p279 = scmp.ne.s32.totalorder %s271, %s273
    %p280 = scmp.eq.s32.totalorder %s27, 1
    %p281 = por %p279, %p280
    %p282 = scmp.ne.s32.totalorder %s273, %s274
    %p283 = scmp.eq.s32.totalorder %s27, 0
    %p284 = por %p282, %p283
    %p285 = scmp.ne.s32.totalorder %s273, %s274
    %p286 = scmp.eq.s32.totalorder %s28, 1
    %p287 = por %p285, %p286
    %p289 = scmp.ne.s32.totalorder %s274, %s288
    %p290 = scmp.eq.s32.totalorder %s28, 0
    %p291 = por %p289, %p290
    %s293 = sadd.s32 %s292, 1
    %p296 = scmp.eq.s32.totalorder %s22, 1
    %p297 = scmp.ne.s32.totalorder %s292, %s294
    %p298 = scmp.eq.s32.totalorder %s22, 0
    %p299 = por %p297, %p298
    %p300 = scmp.ne.s32.totalorder %s292, %s294
    %p301 = scmp.eq.s32.totalorder %s27, 1
    %p302 = por %p300, %p301
    %p303 = scmp.ne.s32.totalorder %s294, %s295
    %p304 = scmp.eq.s32.totalorder %s27, 0
    %p305 = por %p303, %p304
    %p306 = scmp.ne.s32.totalorder %s294, %s295
    %p307 = scmp.eq.s32.totalorder %s28, 1
    %p308 = por %p306, %p307
    %p310 = scmp.ne.s32.totalorder %s295, %s309
    %p311 = scmp.eq.s32.totalorder %s28, 0
    %p312 = por %p310, %p311
    %s314 = sadd.s32 %s313, 1
    %p317 = scmp.eq.s32.totalorder %s22, 1
    %p318 = scmp.ne.s32.totalorder %s313, %s315
    %p319 = scmp.eq.s32.totalorder %s22, 0
    %p320 = por %p318, %p319
    %p321 = scmp.ne.s32.totalorder %s313, %s315
    %p322 = scmp.eq.s32.totalorder %s27, 1
    %p323 = por %p321, %p322
    %p324 = scmp.ne.s32.totalorder %s315, %s316
    %p325 = scmp.eq.s32.totalorder %s27, 0
    %p326 = por %p324, %p325
    %p327 = scmp.ne.s32.totalorder %s315, %s316
    %p328 = scmp.eq.s32.totalorder %s28, 1
    %p329 = por %p327, %p328
    %p331 = scmp.ne.s32.totalorder %s316, %s330
    %p332 = scmp.eq.s32.totalorder %s28, 0
    %p333 = por %p331, %p332
    %s335 = sadd.s32 %s334, 1
    %p338 = scmp.eq.s32.totalorder %s22, 1
    %p339 = scmp.ne.s32.totalorder %s334, %s336
    %p340 = scmp.eq.s32.totalorder %s22, 0
    %p341 = por %p339, %p340
    %p342 = scmp.ne.s32.totalorder %s334, %s336
    %p343 = scmp.eq.s32.totalorder %s27, 1
    %p344 = por %p342, %p343
    %p345 = scmp.ne.s32.totalorder %s336, %s337
    %p346 = scmp.eq.s32.totalorder %s27, 0
    %p347 = por %p345, %p346
    %p348 = scmp.ne.s32.totalorder %s336, %s337
    %p349 = scmp.eq.s32.totalorder %s28, 1
    %p350 = por %p348, %p349
    %p352 = scmp.ne.s32.totalorder %s337, %s351
    %p353 = scmp.eq.s32.totalorder %s28, 0
    %p354 = por %p352, %p353
    %s356 = sadd.s32 %s355, 1
    %p359 = scmp.eq.s32.totalorder %s22, 1
    %p360 = scmp.ne.s32.totalorder %s355, %s357
    %p361 = scmp.eq.s32.totalorder %s22, 0
    %p362 = por %p360, %p361
    %p363 = scmp.ne.s32.totalorder %s355, %s357
    %p364 = scmp.eq.s32.totalorder %s27, 1
    %p365 = por %p363, %p364
    %p366 = scmp.ne.s32.totalorder %s357, %s358
    %p367 = scmp.eq.s32.totalorder %s27, 0
    %p368 = por %p366, %p367
    %p369 = scmp.ne.s32.totalorder %s357, %s358
    %p370 = scmp.eq.s32.totalorder %s28, 1
    %p371 = por %p369, %p370
    %p373 = scmp.ne.s32.totalorder %s358, %s372
    %p374 = scmp.eq.s32.totalorder %s28, 0
    %p375 = por %p373, %p374
    %s376 = ssub.s32 %s22, %s29
    %p377 = scmp.eq.s32.totalorder %s376, 0
    %s379 = sadd.s32 %s378, 1
    %s380 = scalar_select %p377, %s378, %s379
    %p383 = pneg %p377
    %p384 = scmp.eq.s32.totalorder %s22, 1
    %p385 = por %p383, %p384
    %p386 = scmp.ne.s32.totalorder %s378, %s381
    %p387 = scmp.eq.s32.totalorder %s22, 0
    %p388 = por %p386, %p387
    %p389 = scmp.ne.s32.totalorder %s378, %s381
    %p390 = scmp.eq.s32.totalorder %s27, 1
    %p391 = por %p389, %p390
    %p392 = scmp.ne.s32.totalorder %s381, %s382
    %p393 = scmp.eq.s32.totalorder %s27, 0
    %p394 = por %p392, %p393
    %p395 = scmp.ne.s32.totalorder %s381, %s382
    %p396 = scmp.eq.s32.totalorder %s28, 1
    %p397 = por %p395, %p396
    %p399 = scmp.ne.s32.totalorder %s382, %s398
    %p400 = scmp.eq.s32.totalorder %s28, 0
    %p401 = por %p399, %p400
    %p402 = scmp.le.s32.totalorder 1, %s22
    %p403 = scmp.lt.s32.totalorder %s22, 3
    %p404 = pnand %p402, %p403
    %p405 = pneg %p404
    // Predicated region
    $region9: #{stack_metabooster_forward.1} parent=5 // pred_check
      _
    $region10: #{stack_metabooster_forward.1} parent=5 // pred_check_branch
      %407 = sbr.rel (%p404) target = $region12
    $region11: #{stack_metabooster_forward.1} parent=5 // pred_region
      %s408 = ssub.s32 %s22, 1
      // Predicated region
      $region13: #{stack_metabooster_forward.1} parent=11 // pred_check
        %p409 = pneg %p43
      $region14: #{stack_metabooster_forward.1} parent=11 // pred_check_branch
        %411 = sbr.rel (%p409) target = $region16
      $region15: #{stack_metabooster_forward.1} parent=11 // pred_region
        _
      $region16: #{stack_metabooster_forward.1} parent=11 // pred_fallthru
        _
      // Predicated region
      $region17: #{stack_metabooster_forward.1} parent=11 // pred_check
        %p412 = pneg %p64
      $region18: #{stack_metabooster_forward.1} parent=11 // pred_check_branch
        %414 = sbr.rel (%p412) target = $region20
      $region19: #{stack_metabooster_forward.1} parent=11 // pred_region
        _
      $region20: #{stack_metabooster_forward.1} parent=11 // pred_fallthru
        _
      // Predicated region
      $region21: #{stack_metabooster_forward.1} parent=11 // pred_check
        %p415 = pneg %p85
      $region22: #{stack_metabooster_forward.1} parent=11 // pred_check_branch
        %417 = sbr.rel (%p415) target = $region24
      $region23: #{stack_metabooster_forward.1} parent=11 // pred_region
        _
      $region24: #{stack_metabooster_forward.1} parent=11 // pred_fallthru
        _
      // Predicated region
      $region25: #{stack_metabooster_forward.1} parent=11 // pred_check
        %p418 = pneg %p158
      $region26: #{stack_metabooster_forward.1} parent=11 // pred_check_branch
        %420 = sbr.rel (%p418) target = $region28
      $region27: #{stack_metabooster_forward.1} parent=11 // pred_region
        _
      $region28: #{stack_metabooster_forward.1} parent=11 // pred_fallthru
        _
      // Predicated region
      $region29: #{stack_metabooster_forward.1} parent=11 // pred_check
        %p421 = pneg %p179
      $region30: #{stack_metabooster_forward.1} parent=11 // pred_check_branch
        %423 = sbr.rel (%p421) target = $region32
      $region31: #{stack_metabooster_forward.1} parent=11 // pred_region
        _
      $region32: #{stack_metabooster_forward.1} parent=11 // pred_fallthru
        _
      // Predicated region
      $region33: #{stack_metabooster_forward.1} parent=11 // pred_check
        %p424 = pneg %p200
      $region34: #{stack_metabooster_forward.1} parent=11 // pred_check_branch
        %426 = sbr.rel (%p424) target = $region36
      $region35: #{stack_metabooster_forward.1} parent=11 // pred_region
        _
      $region36: #{stack_metabooster_forward.1} parent=11 // pred_fallthru
        _
      // Predicated region
      $region37: #{stack_metabooster_forward.1} parent=11 // pred_check
        %p427 = pneg %p221
      $region38: #{stack_metabooster_forward.1} parent=11 // pred_check_branch
        %429 = sbr.rel (%p427) target = $region40
      $region39: #{stack_metabooster_forward.1} parent=11 // pred_region
        _
      $region40: #{stack_metabooster_forward.1} parent=11 // pred_fallthru
        _
      // Predicated region
      $region41: #{stack_metabooster_forward.1} parent=11 // pred_check
        %p430 = pneg %p242
      $region42: #{stack_metabooster_forward.1} parent=11 // pred_check_branch
        %432 = sbr.rel (%p430) target = $region44
      $region43: #{stack_metabooster_forward.1} parent=11 // pred_region
        _
      $region44: #{stack_metabooster_forward.1} parent=11 // pred_fallthru
        _
      // Predicated region
      $region45: #{stack_metabooster_forward.1} parent=11 // pred_check
        %p433 = pneg %p263
      $region46: #{stack_metabooster_forward.1} parent=11 // pred_check_branch
        %435 = sbr.rel (%p433) target = $region48
      $region47: #{stack_metabooster_forward.1} parent=11 // pred_region
        _
      $region48: #{stack_metabooster_forward.1} parent=11 // pred_fallthru
        _
      // Predicated region
      $region49: #{stack_metabooster_forward.1} parent=11 // pred_check
        %p436 = pneg %p284
      $region50: #{stack_metabooster_forward.1} parent=11 // pred_check_branch
        %438 = sbr.rel (%p436) target = $region52
      $region51: #{stack_metabooster_forward.1} parent=11 // pred_region
        _
      $region52: #{stack_metabooster_forward.1} parent=11 // pred_fallthru
        _
      // Predicated region
      $region53: #{stack_metabooster_forward.1} parent=11 // pred_check
        %p439 = pneg %p305
      $region54: #{stack_metabooster_forward.1} parent=11 // pred_check_branch
        %441 = sbr.rel (%p439) target = $region56
      $region55: #{stack_metabooster_forward.1} parent=11 // pred_region
        _
      $region56: #{stack_metabooster_forward.1} parent=11 // pred_fallthru
        _
      // Predicated region
      $region57: #{stack_metabooster_forward.1} parent=11 // pred_check
        %p442 = pneg %p326
      $region58: #{stack_metabooster_forward.1} parent=11 // pred_check_branch
        %444 = sbr.rel (%p442) target = $region60
      $region59: #{stack_metabooster_forward.1} parent=11 // pred_region
        _
      $region60: #{stack_metabooster_forward.1} parent=11 // pred_fallthru
        _
      // Predicated region
      $region61: #{stack_metabooster_forward.1} parent=11 // pred_check
        %p445 = pneg %p347
      $region62: #{stack_metabooster_forward.1} parent=11 // pred_check_branch
        %447 = sbr.rel (%p445) target = $region64
      $region63: #{stack_metabooster_forward.1} parent=11 // pred_region
        _
      $region64: #{stack_metabooster_forward.1} parent=11 // pred_fallthru
        _
      // Predicated region
      $region65: #{stack_metabooster_forward.1} parent=11 // pred_check
        %p448 = pneg %p368
      $region66: #{stack_metabooster_forward.1} parent=11 // pred_check_branch
        %450 = sbr.rel (%p448) target = $region68
      $region67: #{stack_metabooster_forward.1} parent=11 // pred_region
        _
      $region68: #{stack_metabooster_forward.1} parent=11 // pred_fallthru
        _
    $region12: #{stack_metabooster_forward.1} parent=5 // pred_fallthru
      _
    %p451 = scmp.lt.s32.totalorder %s22, 2
    // Predicated region
    $region69: #{stack_metabooster_forward.1} parent=5 // pred_check
      %p452 = pneg %p451
    $region70: #{stack_metabooster_forward.1} parent=5 // pred_check_branch
      %454 = sbr.rel (%p452) target = $region72
    $region71: #{stack_metabooster_forward.1} parent=5 // pred_region
      // Predicated region
      $region73: #{stack_metabooster_forward.1} parent=71 // pred_check
        %p455 = pneg %p105
      $region74: #{stack_metabooster_forward.1} parent=71 // pred_check_branch
        %457 = sbr.rel (%p455) target = $region76
      $region75: #{stack_metabooster_forward.1} parent=71 // pred_region
        %p458 = scmp.lt.s32.totalorder %s22, 1
        %s459 = scalar_select %p458, %s22, 1
        %s460 = smul.addr %s459, 2
        %s461 = smul.addr %s460, 4
        %s462 = scalar_lea.vmem %s3, %s461
      $region76: #{stack_metabooster_forward.1} parent=71 // pred_fallthru
        _
      // Predicated region
      $region77: #{stack_metabooster_forward.1} parent=71 // pred_check
        %p463 = pneg %p131
      $region78: #{stack_metabooster_forward.1} parent=71 // pred_check_branch
        %465 = sbr.rel (%p463) target = $region80
      $region79: #{stack_metabooster_forward.1} parent=71 // pred_region
        %p466 = scmp.lt.s32.totalorder %s22, 1
        %s467 = scalar_select %p466, %s22, 1
        %s468 = smul.addr %s467, 2
        %s469 = smul.addr %s468, 4
        %s470 = scalar_lea.vmem %s4, %s469
      $region80: #{stack_metabooster_forward.1} parent=71 // pred_fallthru
        _
    $region72: #{stack_metabooster_forward.1} parent=5 // pred_fallthru
      _
    %p471 = scmp.le.s32.totalorder 1, %s22
    %p472 = scmp.lt.s32.totalorder %s22, 3
    %p473 = pnand %p471, %p472
    %p474 = pneg %p473
    // Predicated region
    $region81: #{stack_metabooster_forward.1} parent=5 // pred_check
      _
    $region82: #{stack_metabooster_forward.1} parent=5 // pred_check_branch
      %476 = sbr.rel (%p473) target = $region84
    $region83: #{stack_metabooster_forward.1} parent=5 // pred_region
      %s477 = ssub.s32 %s22, 1
      %p478 = pneg %p43
      %p479 = pneg %p40
      %p480 = pneg %p64
      %p481 = pneg %p61
      %p482 = pneg %p85
      %p483 = pneg %p82
      %p484 = scmp.lt.s32.totalorder %s27, 1
      %s485 = scalar_select %p484, %s27, 1
      %s486 = smul.addr %s485, 2
      %s487 = smul.addr %s486, 4
      %s488 = scalar_lea.vmem %s3, %s487
      %p489 = pneg %p111
      %p490 = pneg %p108
      %p491 = scmp.lt.s32.totalorder %s27, 1
      %s492 = scalar_select %p491, %s27, 1
      %s493 = smul.addr %s492, 2
      %s494 = smul.addr %s493, 4
      %s495 = scalar_lea.vmem %s4, %s494
      %p496 = pneg %p137
      %p497 = pneg %p134
      %p498 = pneg %p158
      %p499 = pneg %p155
      %p500 = pneg %p179
      %p501 = pneg %p176
      %p502 = pneg %p200
      %p503 = pneg %p197
      %p504 = pneg %p221
      %p505 = pneg %p218
      %p506 = pneg %p242
      %p507 = pneg %p239
      %p508 = pneg %p263
      %p509 = pneg %p260
      %p510 = pneg %p284
      %p511 = pneg %p281
      %p512 = pneg %p305
      %p513 = pneg %p302
      %p514 = pneg %p326
      %p515 = pneg %p323
      %p516 = pneg %p347
      %p517 = pneg %p344
      %p518 = pneg %p368
      %p519 = pneg %p365
      %p520 = pneg %p394
      %p521 = pneg %p391
      %p522 = scmp.lt.s32.totalorder %s27, 1
      %s523 = scalar_select %p522, %s27, 1
      %s524 = smul.addr %s523, 2
      %s525 = smul.addr %s524, 4
      %s526 = scalar_lea.vmem %s16, %s525
      %p527 = scmp.lt.s32.totalorder %s27, 1
      %s528 = scalar_select %p527, %s27, 1
      %s529 = smul.addr %s528, 2
      %s530 = smul.addr %s529, 4
      %s531 = scalar_lea.vmem %s3, %s530
      %p532 = scmp.lt.s32.totalorder %s27, 1
      %s533 = scalar_select %p532, %s27, 1
      %s534 = smul.addr %s533, 2
      %s535 = smul.addr %s534, 4
      %s536 = scalar_lea.vmem %s4, %s535
      %p537 = scmp.lt.s32.totalorder %s27, 1
      %s538 = scalar_select %p537, %s27, 1
      %s539 = smul.addr %s538, 2
      %s540 = smul.addr %s539, 4
      %s541 = scalar_lea.vmem %s16, %s540
      %v542 = vld [vmem:[%s531] sm:$0xff]
      %v543 = vld [vmem:[%s536] sm:$0xff]
      %s545 = scalar_lea.vmem [#allocation1], 1
      %546 = vst [vmem:[%s545] ss:$2 sm:$0xff] %v543
      %v547 = vld.sshfl [vmem:[#allocation1] sm:$0xff pattern:$0x75316420]
      %v548 = vld.sshfl [vmem:[#allocation1 + $0x8] sm:$0xff pattern:$0x75316420]
      %551 = vst [vmem:[#allocation2] sm:$0xf0] %v547
      %552 = vst [vmem:[#allocation2 + $0x8] sm:$0xf0] %v548
      %554 = vst [vmem:[#allocation1] ss:$2 sm:$0xff] %v542
      %v555 = vld.sshfl [vmem:[#allocation1] sm:$0xff pattern:$0x75316420]
      %v556 = vld.sshfl [vmem:[#allocation1 + $0x8] sm:$0xff pattern:$0x75316420]
      %559 = vst [vmem:[#allocation2] sm:$0xf] %v555
      %560 = vst [vmem:[#allocation2 + $0x8] sm:$0xf] %v556
      %v561 = vld [vmem:[#allocation2] sm:$0xff]
      %v562 = vld [vmem:[#allocation2 + $0x8] sm:$0xff]
      %v563 = vld [vmem:[%s0] sm:$0xff]
      %v564 = vld [vmem:[%s0 + $0x8] sm:$0xff]
      %v565 = vld [vmem:[%s0 + $0x10] sm:$0xff]
      %v566 = vld [vmem:[%s0 + $0x18] sm:$0xff]
      %v567 = vld [vmem:[%s0 + $0x20] sm:$0xff]
      %v568 = vld [vmem:[%s0 + $0x28] sm:$0xff]
      %v569 = vld [vmem:[%s0 + $0x30] sm:$0xff]
      %v570 = vld [vmem:[%s0 + $0x38] sm:$0xff]
      %v571 = vld [vmem:[%s0 + $0x40] sm:$0xff]
      %v572 = vld [vmem:[%s0 + $0x48] sm:$0xff]
      %v573 = vld [vmem:[%s0 + $0x50] sm:$0xff]
      %v574 = vld [vmem:[%s0 + $0x58] sm:$0xff]
      %v575 = vld [vmem:[%s0 + $0x60] sm:$0xff]
      %v576 = vld [vmem:[%s0 + $0x68] sm:$0xff]
      %v577 = vld [vmem:[%s0 + $0x70] sm:$0xff]
      %v578 = vld [vmem:[%s0 + $0x78] sm:$0xff]
      %v579 = vld [vmem:[%s0 + $0x80] sm:$0xff]
      %v580 = vld [vmem:[%s0 + $0x88] sm:$0xff]
      %v581 = vld [vmem:[%s0 + $0x90] sm:$0xff]
      %v582 = vld [vmem:[%s0 + $0x98] sm:$0xff]
      %v583 = vld [vmem:[%s0 + $0xa0] sm:$0xff]
      %v584 = vld [vmem:[%s0 + $0xa8] sm:$0xff]
      %v585 = vld [vmem:[%s0 + $0xb0] sm:$0xff]
      %v586 = vld [vmem:[%s0 + $0xb8] sm:$0xff]
      %v587 = vld [vmem:[%s0 + $0xc0] sm:$0xff]
      %v588 = vld [vmem:[%s0 + $0xc8] sm:$0xff]
      %v589 = vld [vmem:[%s0 + $0xd0] sm:$0xff]
      %v590 = vld [vmem:[%s0 + $0xd8] sm:$0xff]
      %v591 = vld [vmem:[%s0 + $0xe0] sm:$0xff]
      %v592 = vld [vmem:[%s0 + $0xe8] sm:$0xff]
      %v593 = vld [vmem:[%s0 + $0xf0] sm:$0xff]
      %v594 = vld [vmem:[%s0 + $0xf8] sm:$0xff]
      %595 = vmatpush.msra.mxu0 %v578
      %596 = vmatpush.msra.mxu0 %v577
      %597 = vmatpush.msra.mxu0 %v576
      %598 = vmatpush.msra.mxu0 %v575
      %599 = vmatpush.msra.mxu0 %v574
      %600 = vmatpush.msra.mxu0 %v573
      %601 = vmatpush.msra.mxu0 %v572
      %602 = vmatpush.msra.mxu0 %v571
      %603 = vmatpush.msra.mxu0 %v570
      %604 = vmatpush.msra.mxu0 %v569
      %605 = vmatpush.msra.mxu0 %v568
      %606 = vmatpush.msra.mxu0 %v567
      %607 = vmatpush.msra.mxu0 %v566
      %608 = vmatpush.msra.mxu0 %v565
      %609 = vmatpush.msra.mxu0 %v564
      %610 = vmatpush.msra.mxu0 %v563
      %611 = vmatmul.f32.gmra.mxu0 %v561
      %v612 = vpop.f32.mrf.mxu0
      %v613 = vadd.f32 0.0, %v612
      %614 = vdwg.mxu0
      %615 = vmatpush.msra.mxu0 %v594
      %616 = vmatpush.msra.mxu0 %v593
      %617 = vmatpush.msra.mxu0 %v592
      %618 = vmatpush.msra.mxu0 %v591
      %619 = vmatpush.msra.mxu0 %v590
      %620 = vmatpush.msra.mxu0 %v589
      %621 = vmatpush.msra.mxu0 %v588
      %622 = vmatpush.msra.mxu0 %v587
      %623 = vmatpush.msra.mxu0 %v586
      %624 = vmatpush.msra.mxu0 %v585
      %625 = vmatpush.msra.mxu0 %v584
      %626 = vmatpush.msra.mxu0 %v583
      %627 = vmatpush.msra.mxu0 %v582
      %628 = vmatpush.msra.mxu0 %v581
      %629 = vmatpush.msra.mxu0 %v580
      %630 = vmatpush.msra.mxu0 %v579
      %631 = vmatmul.f32.gmra.mxu0 %v562
      %v632 = vpop.f32.mrf.mxu0
      %v633 = vadd.f32 %v613, %v632
      %634 = vdwg.mxu0
      %v635 = vld [vmem:[%s5] sm:$0xff]
      %v636 = vld [vmem:[%s5 + $0x8] sm:$0xff]
      %v637 = vld [vmem:[%s5 + $0x10] sm:$0xff]
      %v638 = vld [vmem:[%s5 + $0x18] sm:$0xff]
      %v639 = vld [vmem:[%s5 + $0x20] sm:$0xff]
      %v640 = vld [vmem:[%s5 + $0x28] sm:$0xff]
      %v641 = vld [vmem:[%s5 + $0x30] sm:$0xff]
      %v642 = vld [vmem:[%s5 + $0x38] sm:$0xff]
      %v643 = vld [vmem:[%s5 + $0x40] sm:$0xff]
      %v644 = vld [vmem:[%s5 + $0x48] sm:$0xff]
      %v645 = vld [vmem:[%s5 + $0x50] sm:$0xff]
      %v646 = vld [vmem:[%s5 + $0x58] sm:$0xff]
      %v647 = vld [vmem:[%s5 + $0x60] sm:$0xff]
      %v648 = vld [vmem:[%s5 + $0x68] sm:$0xff]
      %v649 = vld [vmem:[%s5 + $0x70] sm:$0xff]
      %v650 = vld [vmem:[%s5 + $0x78] sm:$0xff]
      %s651 = scalar_lea.vmem %s0, 256
      %v652 = vld [vmem:[%s651] sm:$0xff]
      %v653 = vld [vmem:[%s651 + $0x8] sm:$0xff]
      %v654 = vld [vmem:[%s651 + $0x10] sm:$0xff]
      %v655 = vld [vmem:[%s651 + $0x18] sm:$0xff]
      %v656 = vld [vmem:[%s651 + $0x20] sm:$0xff]
      %v657 = vld [vmem:[%s651 + $0x28] sm:$0xff]
      %v658 = vld [vmem:[%s651 + $0x30] sm:$0xff]
      %v659 = vld [vmem:[%s651 + $0x38] sm:$0xff]
      %v660 = vld [vmem:[%s651 + $0x40] sm:$0xff]
      %v661 = vld [vmem:[%s651 + $0x48] sm:$0xff]
      %v662 = vld [vmem:[%s651 + $0x50] sm:$0xff]
      %v663 = vld [vmem:[%s651 + $0x58] sm:$0xff]
      %v664 = vld [vmem:[%s651 + $0x60] sm:$0xff]
      %v665 = vld [vmem:[%s651 + $0x68] sm:$0xff]
      %v666 = vld [vmem:[%s651 + $0x70] sm:$0xff]
      %v667 = vld [vmem:[%s651 + $0x78] sm:$0xff]
      %v668 = vld [vmem:[%s651 + $0x80] sm:$0xff]
      %v669 = vld [vmem:[%s651 + $0x88] sm:$0xff]
      %v670 = vld [vmem:[%s651 + $0x90] sm:$0xff]
      %v671 = vld [vmem:[%s651 + $0x98] sm:$0xff]
      %v672 = vld [vmem:[%s651 + $0xa0] sm:$0xff]
      %v673 = vld [vmem:[%s651 + $0xa8] sm:$0xff]
      %v674 = vld [vmem:[%s651 + $0xb0] sm:$0xff]
      %v675 = vld [vmem:[%s651 + $0xb8] sm:$0xff]
      %v676 = vld [vmem:[%s651 + $0xc0] sm:$0xff]
      %v677 = vld [vmem:[%s651 + $0xc8] sm:$0xff]
      %v678 = vld [vmem:[%s651 + $0xd0] sm:$0xff]
      %v679 = vld [vmem:[%s651 + $0xd8] sm:$0xff]
      %v680 = vld [vmem:[%s651 + $0xe0] sm:$0xff]
      %v681 = vld [vmem:[%s651 + $0xe8] sm:$0xff]
      %v682 = vld [vmem:[%s651 + $0xf0] sm:$0xff]
      %v683 = vld [vmem:[%s651 + $0xf8] sm:$0xff]
      %684 = vmatpush.msra.mxu0 %v667
      %685 = vmatpush.msra.mxu0 %v666
      %686 = vmatpush.msra.mxu0 %v665
      %687 = vmatpush.msra.mxu0 %v664
      %688 = vmatpush.msra.mxu0 %v663
      %689 = vmatpush.msra.mxu0 %v662
      %690 = vmatpush.msra.mxu0 %v661
      %691 = vmatpush.msra.mxu0 %v660
      %692 = vmatpush.msra.mxu0 %v659
      %693 = vmatpush.msra.mxu0 %v658
      %694 = vmatpush.msra.mxu0 %v657
      %695 = vmatpush.msra.mxu0 %v656
      %696 = vmatpush.msra.mxu0 %v655
      %697 = vmatpush.msra.mxu0 %v654
      %698 = vmatpush.msra.mxu0 %v653
      %699 = vmatpush.msra.mxu0 %v652
      %700 = vmatmul.f32.gmra.mxu0 %v561
      %v701 = vpop.f32.mrf.mxu0
      %v702 = vadd.f32 0.0, %v701
      %703 = vdwg.mxu0
      %704 = vmatpush.msra.mxu0 %v683
      %705 = vmatpush.msra.mxu0 %v682
      %706 = vmatpush.msra.mxu0 %v681
      %707 = vmatpush.msra.mxu0 %v680
      %708 = vmatpush.msra.mxu0 %v679
      %709 = vmatpush.msra.mxu0 %v678
      %710 = vmatpush.msra.mxu0 %v677
      %711 = vmatpush.msra.mxu0 %v676
      %712 = vmatpush.msra.mxu0 %v675
      %713 = vmatpush.msra.mxu0 %v674
      %714 = vmatpush.msra.mxu0 %v673
      %715 = vmatpush.msra.mxu0 %v672
      %716 = vmatpush.msra.mxu0 %v671
      %717 = vmatpush.msra.mxu0 %v670
      %718 = vmatpush.msra.mxu0 %v669
      %719 = vmatpush.msra.mxu0 %v668
      %720 = vmatmul.f32.gmra.mxu0 %v562
      %v721 = vpop.f32.mrf.mxu0
      %v722 = vadd.f32 %v702, %v721
      %723 = vdwg.mxu0
      %s724 = scalar_lea.vmem %s5, 128
      %v725 = vld [vmem:[%s724] sm:$0xff]
      %v726 = vld [vmem:[%s724 + $0x8] sm:$0xff]
      %v727 = vld [vmem:[%s724 + $0x10] sm:$0xff]
      %v728 = vld [vmem:[%s724 + $0x18] sm:$0xff]
      %v729 = vld [vmem:[%s724 + $0x20] sm:$0xff]
      %v730 = vld [vmem:[%s724 + $0x28] sm:$0xff]
      %v731 = vld [vmem:[%s724 + $0x30] sm:$0xff]
      %v732 = vld [vmem:[%s724 + $0x38] sm:$0xff]
      %v733 = vld [vmem:[%s724 + $0x40] sm:$0xff]
      %v734 = vld [vmem:[%s724 + $0x48] sm:$0xff]
      %v735 = vld [vmem:[%s724 + $0x50] sm:$0xff]
      %v736 = vld [vmem:[%s724 + $0x58] sm:$0xff]
      %v737 = vld [vmem:[%s724 + $0x60] sm:$0xff]
      %v738 = vld [vmem:[%s724 + $0x68] sm:$0xff]
      %v739 = vld [vmem:[%s724 + $0x70] sm:$0xff]
      %v740 = vld [vmem:[%s724 + $0x78] sm:$0xff]
      %vm741 = vcmask 64512
      %v743 = vsel %vm741, %v725, 0
      %v746 = vsel %vm741, %v726, 0
      %v749 = vsel %vm741, %v727, 0
      %v752 = vsel %vm741, %v728, 0
      %v755 = vsel %vm741, %v729, 0
      %v758 = vsel %vm741, %v730, 0
      %v761 = vsel %vm741, %v731, 0
      %v764 = vsel %vm741, %v732, 0
      %v767 = vsel %vm741, %v733, 0
      %v770 = vsel %vm741, %v734, 0
      %v773 = vsel %vm741, %v735, 0
      %v776 = vsel %vm741, %v736, 0
      %v779 = vsel %vm741, %v737, 0
      %v782 = vsel %vm741, %v738, 0
      %v785 = vsel %vm741, %v739, 0
      %v788 = vsel %vm741, %v740, 0
      %790 = vmatpush.msra.mxu0 0.0
      %791 = vmatpush.msra.mxu0 0.0
      %792 = vmatpush.msra.mxu0 0.0
      %793 = vmatpush.msra.mxu0 0.0
      %794 = vmatpush.msra.mxu0 0.0
      %795 = vmatpush.msra.mxu0 0.0
      %796 = vmatpush.msra.mxu0 0.0
      %797 = vmatpush.msra.mxu0 0.0
      %798 = vmatpush.msra.mxu0 0.0
      %799 = vmatpush.msra.mxu0 0.0
      %800 = vmatpush.msra.mxu0 0.0
      %801 = vmatpush.msra.mxu0 0.0
      %802 = vmatpush.msra.mxu0 0.0
      %803 = vmatpush.msra.mxu0 0.0
      %804 = vmatpush.msra.mxu0 0.0
      %805 = vmatpush.msra.mxu0 %v722
      %806 = vmatmul.f32.gmra.mxu0 %v743
      %v807 = vpop.f32.mrf.mxu0
      %v808 = vadd.f32 0.0, %v807
      %809 = vmatmul.f32.gmra.mxu0 %v746
      %v810 = vpop.f32.mrf.mxu0
      %v811 = vadd.f32 0.0, %v810
      %812 = vmatmul.f32.gmra.mxu0 %v749
      %v813 = vpop.f32.mrf.mxu0
      %v814 = vadd.f32 0.0, %v813
      %815 = vmatmul.f32.gmra.mxu0 %v752
      %v816 = vpop.f32.mrf.mxu0
      %v817 = vadd.f32 0.0, %v816
      %818 = vmatmul.f32.gmra.mxu0 %v755
      %v819 = vpop.f32.mrf.mxu0
      %v820 = vadd.f32 0.0, %v819
      %821 = vmatmul.f32.gmra.mxu0 %v758
      %v822 = vpop.f32.mrf.mxu0
      %v823 = vadd.f32 0.0, %v822
      %824 = vmatmul.f32.gmra.mxu0 %v761
      %v825 = vpop.f32.mrf.mxu0
      %v826 = vadd.f32 0.0, %v825
      %827 = vmatmul.f32.gmra.mxu0 %v764
      %v828 = vpop.f32.mrf.mxu0
      %v829 = vadd.f32 0.0, %v828
      %830 = vmatmul.f32.gmra.mxu0 %v767
      %v831 = vpop.f32.mrf.mxu0
      %v832 = vadd.f32 0.0, %v831
      %833 = vmatmul.f32.gmra.mxu0 %v770
      %v834 = vpop.f32.mrf.mxu0
      %v835 = vadd.f32 0.0, %v834
      %836 = vmatmul.f32.gmra.mxu0 %v773
      %v837 = vpop.f32.mrf.mxu0
      %v838 = vadd.f32 0.0, %v837
      %839 = vmatmul.f32.gmra.mxu0 %v776
      %v840 = vpop.f32.mrf.mxu0
      %v841 = vadd.f32 0.0, %v840
      %842 = vmatmul.f32.gmra.mxu0 %v779
      %v843 = vpop.f32.mrf.mxu0
      %v844 = vadd.f32 0.0, %v843
      %845 = vmatmul.f32.gmra.mxu0 %v782
      %v846 = vpop.f32.mrf.mxu0
      %v847 = vadd.f32 0.0, %v846
      %848 = vmatmul.f32.gmra.mxu0 %v785
      %v849 = vpop.f32.mrf.mxu0
      %v850 = vadd.f32 0.0, %v849
      %851 = vmatmul.f32.gmra.mxu0 %v788
      %v852 = vpop.f32.mrf.mxu0
      %v853 = vadd.f32 0.0, %v852
      %854 = vdwg.mxu0
      %v856 = vsel %vm741, %v635, 0
      %v859 = vsel %vm741, %v636, 0
      %v862 = vsel %vm741, %v637, 0
      %v865 = vsel %vm741, %v638, 0
      %v868 = vsel %vm741, %v639, 0
      %v871 = vsel %vm741, %v640, 0
      %v874 = vsel %vm741, %v641, 0
      %v877 = vsel %vm741, %v642, 0
      %v880 = vsel %vm741, %v643, 0
      %v883 = vsel %vm741, %v644, 0
      %v886 = vsel %vm741, %v645, 0
      %v889 = vsel %vm741, %v646, 0
      %v892 = vsel %vm741, %v647, 0
      %v895 = vsel %vm741, %v648, 0
      %v898 = vsel %vm741, %v649, 0
      %v901 = vsel %vm741, %v650, 0
      %903 = vmatpush.msra.mxu0 0.0
      %904 = vmatpush.msra.mxu0 0.0
      %905 = vmatpush.msra.mxu0 0.0
      %906 = vmatpush.msra.mxu0 0.0
      %907 = vmatpush.msra.mxu0 0.0
      %908 = vmatpush.msra.mxu0 0.0
      %909 = vmatpush.msra.mxu0 0.0
      %910 = vmatpush.msra.mxu0 0.0
      %911 = vmatpush.msra.mxu0 0.0
      %912 = vmatpush.msra.mxu0 0.0
      %913 = vmatpush.msra.mxu0 0.0
      %914 = vmatpush.msra.mxu0 0.0
      %915 = vmatpush.msra.mxu0 0.0
      %916 = vmatpush.msra.mxu0 0.0
      %917 = vmatpush.msra.mxu0 0.0
      %918 = vmatpush.msra.mxu0 %v633
      %919 = vmatmul.f32.gmra.mxu0 %v856
      %v920 = vpop.f32.mrf.mxu0
      %v921 = vadd.f32 %v808, %v920
      %922 = vmatmul.f32.gmra.mxu0 %v859
      %v923 = vpop.f32.mrf.mxu0
      %v924 = vadd.f32 %v811, %v923
      %925 = vmatmul.f32.gmra.mxu0 %v862
      %v926 = vpop.f32.mrf.mxu0
      %v927 = vadd.f32 %v814, %v926
      %928 = vmatmul.f32.gmra.mxu0 %v865
      %v929 = vpop.f32.mrf.mxu0
      %v930 = vadd.f32 %v817, %v929
      %931 = vmatmul.f32.gmra.mxu0 %v868
      %v932 = vpop.f32.mrf.mxu0
      %v933 = vadd.f32 %v820, %v932
      %934 = vmatmul.f32.gmra.mxu0 %v871
      %v935 = vpop.f32.mrf.mxu0
      %v936 = vadd.f32 %v823, %v935
      %937 = vmatmul.f32.gmra.mxu0 %v874
      %v938 = vpop.f32.mrf.mxu0
      %v939 = vadd.f32 %v826, %v938
      %940 = vmatmul.f32.gmra.mxu0 %v877
      %v941 = vpop.f32.mrf.mxu0
      %v942 = vadd.f32 %v829, %v941
      %943 = vmatmul.f32.gmra.mxu0 %v880
      %v944 = vpop.f32.mrf.mxu0
      %v945 = vadd.f32 %v832, %v944
      %946 = vmatmul.f32.gmra.mxu0 %v883
      %v947 = vpop.f32.mrf.mxu0
      %v948 = vadd.f32 %v835, %v947
      %949 = vmatmul.f32.gmra.mxu0 %v886
      %v950 = vpop.f32.mrf.mxu0
      %v951 = vadd.f32 %v838, %v950
      %952 = vmatmul.f32.gmra.mxu0 %v889
      %v953 = vpop.f32.mrf.mxu0
      %v954 = vadd.f32 %v841, %v953
      %955 = vmatmul.f32.gmra.mxu0 %v892
      %v956 = vpop.f32.mrf.mxu0
      %v957 = vadd.f32 %v844, %v956
      %958 = vmatmul.f32.gmra.mxu0 %v895
      %v959 = vpop.f32.mrf.mxu0
      %v960 = vadd.f32 %v847, %v959
      %961 = vmatmul.f32.gmra.mxu0 %v898
      %v962 = vpop.f32.mrf.mxu0
      %v963 = vadd.f32 %v850, %v962
      %964 = vmatmul.f32.gmra.mxu0 %v901
      %v965 = vpop.f32.mrf.mxu0
      %v966 = vadd.f32 %v853, %v965
      %967 = vdwg.mxu0
      %s968 = scalar_lea.vmem %s0, 512
      %v969 = vld [vmem:[%s968] sm:$0xff]
      %v970 = vld [vmem:[%s968 + $0x8] sm:$0xff]
      %v971 = vld [vmem:[%s968 + $0x10] sm:$0xff]
      %v972 = vld [vmem:[%s968 + $0x18] sm:$0xff]
      %v973 = vld [vmem:[%s968 + $0x20] sm:$0xff]
      %v974 = vld [vmem:[%s968 + $0x28] sm:$0xff]
      %v975 = vld [vmem:[%s968 + $0x30] sm:$0xff]
      %v976 = vld [vmem:[%s968 + $0x38] sm:$0xff]
      %v977 = vld [vmem:[%s968 + $0x40] sm:$0xff]
      %v978 = vld [vmem:[%s968 + $0x48] sm:$0xff]
      %v979 = vld [vmem:[%s968 + $0x50] sm:$0xff]
      %v980 = vld [vmem:[%s968 + $0x58] sm:$0xff]
      %v981 = vld [vmem:[%s968 + $0x60] sm:$0xff]
      %v982 = vld [vmem:[%s968 + $0x68] sm:$0xff]
      %v983 = vld [vmem:[%s968 + $0x70] sm:$0xff]
      %v984 = vld [vmem:[%s968 + $0x78] sm:$0xff]
      %v985 = vld [vmem:[%s968 + $0x80] sm:$0xff]
      %v986 = vld [vmem:[%s968 + $0x88] sm:$0xff]
      %v987 = vld [vmem:[%s968 + $0x90] sm:$0xff]
      %v988 = vld [vmem:[%s968 + $0x98] sm:$0xff]
      %v989 = vld [vmem:[%s968 + $0xa0] sm:$0xff]
      %v990 = vld [vmem:[%s968 + $0xa8] sm:$0xff]
      %v991 = vld [vmem:[%s968 + $0xb0] sm:$0xff]
      %v992 = vld [vmem:[%s968 + $0xb8] sm:$0xff]
      %v993 = vld [vmem:[%s968 + $0xc0] sm:$0xff]
      %v994 = vld [vmem:[%s968 + $0xc8] sm:$0xff]
      %v995 = vld [vmem:[%s968 + $0xd0] sm:$0xff]
      %v996 = vld [vmem:[%s968 + $0xd8] sm:$0xff]
      %v997 = vld [vmem:[%s968 + $0xe0] sm:$0xff]
      %v998 = vld [vmem:[%s968 + $0xe8] sm:$0xff]
      %v999 = vld [vmem:[%s968 + $0xf0] sm:$0xff]
      %v1000 = vld [vmem:[%s968 + $0xf8] sm:$0xff]
      %1001 = vmatpush.msra.mxu0 %v984
      %1002 = vmatpush.msra.mxu0 %v983
      %1003 = vmatpush.msra.mxu0 %v982
      %1004 = vmatpush.msra.mxu0 %v981
      %1005 = vmatpush.msra.mxu0 %v980
      %1006 = vmatpush.msra.mxu0 %v979
      %1007 = vmatpush.msra.mxu0 %v978
      %1008 = vmatpush.msra.mxu0 %v977
      %1009 = vmatpush.msra.mxu0 %v976
      %1010 = vmatpush.msra.mxu0 %v975
      %1011 = vmatpush.msra.mxu0 %v974
      %1012 = vmatpush.msra.mxu0 %v973
      %1013 = vmatpush.msra.mxu0 %v972
      %1014 = vmatpush.msra.mxu0 %v971
      %1015 = vmatpush.msra.mxu0 %v970
      %1016 = vmatpush.msra.mxu0 %v969
      %1017 = vmatmul.f32.gmra.mxu0 %v561
      %v1018 = vpop.f32.mrf.mxu0
      %v1019 = vadd.f32 0.0, %v1018
      %1020 = vdwg.mxu0
      %1021 = vmatpush.msra.mxu0 %v1000
      %1022 = vmatpush.msra.mxu0 %v999
      %1023 = vmatpush.msra.mxu0 %v998
      %1024 = vmatpush.msra.mxu0 %v997
      %1025 = vmatpush.msra.mxu0 %v996
      %1026 = vmatpush.msra.mxu0 %v995
      %1027 = vmatpush.msra.mxu0 %v994
      %1028 = vmatpush.msra.mxu0 %v993
      %1029 = vmatpush.msra.mxu0 %v992
      %1030 = vmatpush.msra.mxu0 %v991
      %1031 = vmatpush.msra.mxu0 %v990
      %1032 = vmatpush.msra.mxu0 %v989
      %1033 = vmatpush.msra.mxu0 %v988
      %1034 = vmatpush.msra.mxu0 %v987
      %1035 = vmatpush.msra.mxu0 %v986
      %1036 = vmatpush.msra.mxu0 %v985
      %1037 = vmatmul.f32.gmra.mxu0 %v562
      %v1038 = vpop.f32.mrf.mxu0
      %v1039 = vadd.f32 %v1019, %v1038
      %1040 = vdwg.mxu0
      %s1041 = scalar_lea.vmem %s5, 256
      %v1042 = vld [vmem:[%s1041] sm:$0xff]
      %v1043 = vld [vmem:[%s1041 + $0x8] sm:$0xff]
      %v1044 = vld [vmem:[%s1041 + $0x10] sm:$0xff]
      %v1045 = vld [vmem:[%s1041 + $0x18] sm:$0xff]
      %v1046 = vld [vmem:[%s1041 + $0x20] sm:$0xff]
      %v1047 = vld [vmem:[%s1041 + $0x28] sm:$0xff]
      %v1048 = vld [vmem:[%s1041 + $0x30] sm:$0xff]
      %v1049 = vld [vmem:[%s1041 + $0x38] sm:$0xff]
      %v1050 = vld [vmem:[%s1041 + $0x40] sm:$0xff]
      %v1051 = vld [vmem:[%s1041 + $0x48] sm:$0xff]
      %v1052 = vld [vmem:[%s1041 + $0x50] sm:$0xff]
      %v1053 = vld [vmem:[%s1041 + $0x58] sm:$0xff]
      %v1054 = vld [vmem:[%s1041 + $0x60] sm:$0xff]
      %v1055 = vld [vmem:[%s1041 + $0x68] sm:$0xff]
      %v1056 = vld [vmem:[%s1041 + $0x70] sm:$0xff]
      %v1057 = vld [vmem:[%s1041 + $0x78] sm:$0xff]
      %v1059 = vsel %vm741, %v1042, 0
      %v1062 = vsel %vm741, %v1043, 0
      %v1065 = vsel %vm741, %v1044, 0
      %v1068 = vsel %vm741, %v1045, 0
      %v1071 = vsel %vm741, %v1046, 0
      %v1074 = vsel %vm741, %v1047, 0
      %v1077 = vsel %vm741, %v1048, 0
      %v1080 = vsel %vm741, %v1049, 0
      %v1083 = vsel %vm741, %v1050, 0
      %v1086 = vsel %vm741, %v1051, 0
      %v1089 = vsel %vm741, %v1052, 0
      %v1092 = vsel %vm741, %v1053, 0
      %v1095 = vsel %vm741, %v1054, 0
      %v1098 = vsel %vm741, %v1055, 0
      %v1101 = vsel %vm741, %v1056, 0
      %v1104 = vsel %vm741, %v1057, 0
      %1106 = vmatpush.msra.mxu0 0.0
      %1107 = vmatpush.msra.mxu0 0.0
      %1108 = vmatpush.msra.mxu0 0.0
      %1109 = vmatpush.msra.mxu0 0.0
      %1110 = vmatpush.msra.mxu0 0.0
      %1111 = vmatpush.msra.mxu0 0.0
      %1112 = vmatpush.msra.mxu0 0.0
      %1113 = vmatpush.msra.mxu0 0.0
      %1114 = vmatpush.msra.mxu0 0.0
      %1115 = vmatpush.msra.mxu0 0.0
      %1116 = vmatpush.msra.mxu0 0.0
      %1117 = vmatpush.msra.mxu0 0.0
      %1118 = vmatpush.msra.mxu0 0.0
      %1119 = vmatpush.msra.mxu0 0.0
      %1120 = vmatpush.msra.mxu0 0.0
      %1121 = vmatpush.msra.mxu0 %v1039
      %1122 = vmatmul.f32.gmra.mxu0 %v1059
      %v1123 = vpop.f32.mrf.mxu0
      %v1124 = vadd.f32 0.0, %v1123
      %1125 = vmatmul.f32.gmra.mxu0 %v1062
      %v1126 = vpop.f32.mrf.mxu0
      %v1127 = vadd.f32 0.0, %v1126
      %1128 = vmatmul.f32.gmra.mxu0 %v1065
      %v1129 = vpop.f32.mrf.mxu0
      %v1130 = vadd.f32 0.0, %v1129
      %1131 = vmatmul.f32.gmra.mxu0 %v1068
      %v1132 = vpop.f32.mrf.mxu0
      %v1133 = vadd.f32 0.0, %v1132
      %1134 = vmatmul.f32.gmra.mxu0 %v1071
      %v1135 = vpop.f32.mrf.mxu0
      %v1136 = vadd.f32 0.0, %v1135
      %1137 = vmatmul.f32.gmra.mxu0 %v1074
      %v1138 = vpop.f32.mrf.mxu0
      %v1139 = vadd.f32 0.0, %v1138
      %1140 = vmatmul.f32.gmra.mxu0 %v1077
      %v1141 = vpop.f32.mrf.mxu0
      %v1142 = vadd.f32 0.0, %v1141
      %1143 = vmatmul.f32.gmra.mxu0 %v1080
      %v1144 = vpop.f32.mrf.mxu0
      %v1145 = vadd.f32 0.0, %v1144
      %1146 = vmatmul.f32.gmra.mxu0 %v1083
      %v1147 = vpop.f32.mrf.mxu0
      %v1148 = vadd.f32 0.0, %v1147
      %1149 = vmatmul.f32.gmra.mxu0 %v1086
      %v1150 = vpop.f32.mrf.mxu0
      %v1151 = vadd.f32 0.0, %v1150
      %1152 = vmatmul.f32.gmra.mxu0 %v1089
      %v1153 = vpop.f32.mrf.mxu0
      %v1154 = vadd.f32 0.0, %v1153
      %1155 = vmatmul.f32.gmra.mxu0 %v1092
      %v1156 = vpop.f32.mrf.mxu0
      %v1157 = vadd.f32 0.0, %v1156
      %1158 = vmatmul.f32.gmra.mxu0 %v1095
      %v1159 = vpop.f32.mrf.mxu0
      %v1160 = vadd.f32 0.0, %v1159
      %1161 = vmatmul.f32.gmra.mxu0 %v1098
      %v1162 = vpop.f32.mrf.mxu0
      %v1163 = vadd.f32 0.0, %v1162
      %1164 = vmatmul.f32.gmra.mxu0 %v1101
      %v1165 = vpop.f32.mrf.mxu0
      %v1166 = vadd.f32 0.0, %v1165
      %1167 = vmatmul.f32.gmra.mxu0 %v1104
      %v1168 = vpop.f32.mrf.mxu0
      %v1169 = vadd.f32 0.0, %v1168
      %1170 = vdwg.mxu0
      %v1171 = vadd.f32 %v921, %v1124
      %v1172 = vadd.f32 %v924, %v1127
      %v1173 = vadd.f32 %v927, %v1130
      %v1174 = vadd.f32 %v930, %v1133
      %v1175 = vadd.f32 %v933, %v1136
      %v1176 = vadd.f32 %v936, %v1139
      %v1177 = vadd.f32 %v939, %v1142
      %v1178 = vadd.f32 %v942, %v1145
      %v1179 = vadd.f32 %v945, %v1148
      %v1180 = vadd.f32 %v948, %v1151
      %v1181 = vadd.f32 %v951, %v1154
      %v1182 = vadd.f32 %v954, %v1157
      %v1183 = vadd.f32 %v957, %v1160
      %v1184 = vadd.f32 %v960, %v1163
      %v1185 = vadd.f32 %v963, %v1166
      %v1186 = vadd.f32 %v966, %v1169
      %s1187 = scalar_lea.vmem %s0, 768
      %v1188 = vld [vmem:[%s1187] sm:$0xff]
      %v1189 = vld [vmem:[%s1187 + $0x8] sm:$0xff]
      %v1190 = vld [vmem:[%s1187 + $0x10] sm:$0xff]
      %v1191 = vld [vmem:[%s1187 + $0x18] sm:$0xff]
      %v1192 = vld [vmem:[%s1187 + $0x20] sm:$0xff]
      %v1193 = vld [vmem:[%s1187 + $0x28] sm:$0xff]
      %v1194 = vld [vmem:[%s1187 + $0x30] sm:$0xff]
      %v1195 = vld [vmem:[%s1187 + $0x38] sm:$0xff]
      %v1196 = vld [vmem:[%s1187 + $0x40] sm:$0xff]
      %v1197 = vld [vmem:[%s1187 + $0x48] sm:$0xff]
      %v1198 = vld [vmem:[%s1187 + $0x50] sm:$0xff]
      %v1199 = vld [vmem:[%s1187 + $0x58] sm:$0xff]
      %v1200 = vld [vmem:[%s1187 + $0x60] sm:$0xff]
      %v1201 = vld [vmem:[%s1187 + $0x68] sm:$0xff]
      %v1202 = vld [vmem:[%s1187 + $0x70] sm:$0xff]
      %v1203 = vld [vmem:[%s1187 + $0x78] sm:$0xff]
      %v1204 = vld [vmem:[%s1187 + $0x80] sm:$0xff]
      %v1205 = vld [vmem:[%s1187 + $0x88] sm:$0xff]
      %v1206 = vld [vmem:[%s1187 + $0x90] sm:$0xff]
      %v1207 = vld [vmem:[%s1187 + $0x98] sm:$0xff]
      %v1208 = vld [vmem:[%s1187 + $0xa0] sm:$0xff]
      %v1209 = vld [vmem:[%s1187 + $0xa8] sm:$0xff]
      %v1210 = vld [vmem:[%s1187 + $0xb0] sm:$0xff]
      %v1211 = vld [vmem:[%s1187 + $0xb8] sm:$0xff]
      %v1212 = vld [vmem:[%s1187 + $0xc0] sm:$0xff]
      %v1213 = vld [vmem:[%s1187 + $0xc8] sm:$0xff]
      %v1214 = vld [vmem:[%s1187 + $0xd0] sm:$0xff]
      %v1215 = vld [vmem:[%s1187 + $0xd8] sm:$0xff]
      %v1216 = vld [vmem:[%s1187 + $0xe0] sm:$0xff]
      %v1217 = vld [vmem:[%s1187 + $0xe8] sm:$0xff]
      %v1218 = vld [vmem:[%s1187 + $0xf0] sm:$0xff]
      %v1219 = vld [vmem:[%s1187 + $0xf8] sm:$0xff]
      %1220 = vmatpush.msra.mxu0 %v1203
      %1221 = vmatpush.msra.mxu0 %v1202
      %1222 = vmatpush.msra.mxu0 %v1201
      %1223 = vmatpush.msra.mxu0 %v1200
      %1224 = vmatpush.msra.mxu0 %v1199
      %1225 = vmatpush.msra.mxu0 %v1198
      %1226 = vmatpush.msra.mxu0 %v1197
      %1227 = vmatpush.msra.mxu0 %v1196
      %1228 = vmatpush.msra.mxu0 %v1195
      %1229 = vmatpush.msra.mxu0 %v1194
      %1230 = vmatpush.msra.mxu0 %v1193
      %1231 = vmatpush.msra.mxu0 %v1192
      %1232 = vmatpush.msra.mxu0 %v1191
      %1233 = vmatpush.msra.mxu0 %v1190
      %1234 = vmatpush.msra.mxu0 %v1189
      %1235 = vmatpush.msra.mxu0 %v1188
      %1236 = vmatmul.f32.gmra.mxu0 %v561
      %v1237 = vpop.f32.mrf.mxu0
      %v1238 = vadd.f32 0.0, %v1237
      %1239 = vdwg.mxu0
      %1240 = vmatpush.msra.mxu0 %v1219
      %1241 = vmatpush.msra.mxu0 %v1218
      %1242 = vmatpush.msra.mxu0 %v1217
      %1243 = vmatpush.msra.mxu0 %v1216
      %1244 = vmatpush.msra.mxu0 %v1215
      %1245 = vmatpush.msra.mxu0 %v1214
      %1246 = vmatpush.msra.mxu0 %v1213
      %1247 = vmatpush.msra.mxu0 %v1212
      %1248 = vmatpush.msra.mxu0 %v1211
      %1249 = vmatpush.msra.mxu0 %v1210
      %1250 = vmatpush.msra.mxu0 %v1209
      %1251 = vmatpush.msra.mxu0 %v1208
      %1252 = vmatpush.msra.mxu0 %v1207
      %1253 = vmatpush.msra.mxu0 %v1206
      %1254 = vmatpush.msra.mxu0 %v1205
      %1255 = vmatpush.msra.mxu0 %v1204
      %1256 = vmatmul.f32.gmra.mxu0 %v562
      %v1257 = vpop.f32.mrf.mxu0
      %v1258 = vadd.f32 %v1238, %v1257
      %1259 = vdwg.mxu0
      %s1260 = scalar_lea.vmem %s5, 384
      %v1261 = vld [vmem:[%s1260] sm:$0xff]
      %v1262 = vld [vmem:[%s1260 + $0x8] sm:$0xff]
      %v1263 = vld [vmem:[%s1260 + $0x10] sm:$0xff]
      %v1264 = vld [vmem:[%s1260 + $0x18] sm:$0xff]
      %v1265 = vld [vmem:[%s1260 + $0x20] sm:$0xff]
      %v1266 = vld [vmem:[%s1260 + $0x28] sm:$0xff]
      %v1267 = vld [vmem:[%s1260 + $0x30] sm:$0xff]
      %v1268 = vld [vmem:[%s1260 + $0x38] sm:$0xff]
      %v1269 = vld [vmem:[%s1260 + $0x40] sm:$0xff]
      %v1270 = vld [vmem:[%s1260 + $0x48] sm:$0xff]
      %v1271 = vld [vmem:[%s1260 + $0x50] sm:$0xff]
      %v1272 = vld [vmem:[%s1260 + $0x58] sm:$0xff]
      %v1273 = vld [vmem:[%s1260 + $0x60] sm:$0xff]
      %v1274 = vld [vmem:[%s1260 + $0x68] sm:$0xff]
      %v1275 = vld [vmem:[%s1260 + $0x70] sm:$0xff]
      %v1276 = vld [vmem:[%s1260 + $0x78] sm:$0xff]
      %v1278 = vsel %vm741, %v1261, 0
      %v1281 = vsel %vm741, %v1262, 0
      %v1284 = vsel %vm741, %v1263, 0
      %v1287 = vsel %vm741, %v1264, 0
      %v1290 = vsel %vm741, %v1265, 0
      %v1293 = vsel %vm741, %v1266, 0
      %v1296 = vsel %vm741, %v1267, 0
      %v1299 = vsel %vm741, %v1268, 0
      %v1302 = vsel %vm741, %v1269, 0
      %v1305 = vsel %vm741, %v1270, 0
      %v1308 = vsel %vm741, %v1271, 0
      %v1311 = vsel %vm741, %v1272, 0
      %v1314 = vsel %vm741, %v1273, 0
      %v1317 = vsel %vm741, %v1274, 0
      %v1320 = vsel %vm741, %v1275, 0
      %v1323 = vsel %vm741, %v1276, 0
      %1325 = vmatpush.msra.mxu0 0.0
      %1326 = vmatpush.msra.mxu0 0.0
      %1327 = vmatpush.msra.mxu0 0.0
      %1328 = vmatpush.msra.mxu0 0.0
      %1329 = vmatpush.msra.mxu0 0.0
      %1330 = vmatpush.msra.mxu0 0.0
      %1331 = vmatpush.msra.mxu0 0.0
      %1332 = vmatpush.msra.mxu0 0.0
      %1333 = vmatpush.msra.mxu0 0.0
      %1334 = vmatpush.msra.mxu0 0.0
      %1335 = vmatpush.msra.mxu0 0.0
      %1336 = vmatpush.msra.mxu0 0.0
      %1337 = vmatpush.msra.mxu0 0.0
      %1338 = vmatpush.msra.mxu0 0.0
      %1339 = vmatpush.msra.mxu0 0.0
      %1340 = vmatpush.msra.mxu0 %v1258
      %1341 = vmatmul.f32.gmra.mxu0 %v1278
      %v1342 = vpop.f32.mrf.mxu0
      %v1343 = vadd.f32 0.0, %v1342
      %1344 = vmatmul.f32.gmra.mxu0 %v1281
      %v1345 = vpop.f32.mrf.mxu0
      %v1346 = vadd.f32 0.0, %v1345
      %1347 = vmatmul.f32.gmra.mxu0 %v1284
      %v1348 = vpop.f32.mrf.mxu0
      %v1349 = vadd.f32 0.0, %v1348
      %1350 = vmatmul.f32.gmra.mxu0 %v1287
      %v1351 = vpop.f32.mrf.mxu0
      %v1352 = vadd.f32 0.0, %v1351
      %1353 = vmatmul.f32.gmra.mxu0 %v1290
      %v1354 = vpop.f32.mrf.mxu0
      %v1355 = vadd.f32 0.0, %v1354
      %1356 = vmatmul.f32.gmra.mxu0 %v1293
      %v1357 = vpop.f32.mrf.mxu0
      %v1358 = vadd.f32 0.0, %v1357
      %1359 = vmatmul.f32.gmra.mxu0 %v1296
      %v1360 = vpop.f32.mrf.mxu0
      %v1361 = vadd.f32 0.0, %v1360
      %1362 = vmatmul.f32.gmra.mxu0 %v1299
      %v1363 = vpop.f32.mrf.mxu0
      %v1364 = vadd.f32 0.0, %v1363
      %1365 = vmatmul.f32.gmra.mxu0 %v1302
      %v1366 = vpop.f32.mrf.mxu0
      %v1367 = vadd.f32 0.0, %v1366
      %1368 = vmatmul.f32.gmra.mxu0 %v1305
      %v1369 = vpop.f32.mrf.mxu0
      %v1370 = vadd.f32 0.0, %v1369
      %1371 = vmatmul.f32.gmra.mxu0 %v1308
      %v1372 = vpop.f32.mrf.mxu0
      %v1373 = vadd.f32 0.0, %v1372
      %1374 = vmatmul.f32.gmra.mxu0 %v1311
      %v1375 = vpop.f32.mrf.mxu0
      %v1376 = vadd.f32 0.0, %v1375
      %1377 = vmatmul.f32.gmra.mxu0 %v1314
      %v1378 = vpop.f32.mrf.mxu0
      %v1379 = vadd.f32 0.0, %v1378
      %1380 = vmatmul.f32.gmra.mxu0 %v1317
      %v1381 = vpop.f32.mrf.mxu0
      %v1382 = vadd.f32 0.0, %v1381
      %1383 = vmatmul.f32.gmra.mxu0 %v1320
      %v1384 = vpop.f32.mrf.mxu0
      %v1385 = vadd.f32 0.0, %v1384
      %1386 = vmatmul.f32.gmra.mxu0 %v1323
      %v1387 = vpop.f32.mrf.mxu0
      %v1388 = vadd.f32 0.0, %v1387
      %1389 = vdwg.mxu0
      %v1390 = vadd.f32 %v1171, %v1343
      %v1391 = vadd.f32 %v1172, %v1346
      %v1392 = vadd.f32 %v1173, %v1349
      %v1393 = vadd.f32 %v1174, %v1352
      %v1394 = vadd.f32 %v1175, %v1355
      %v1395 = vadd.f32 %v1176, %v1358
      %v1396 = vadd.f32 %v1177, %v1361
      %v1397 = vadd.f32 %v1178, %v1364
      %v1398 = vadd.f32 %v1179, %v1367
      %v1399 = vadd.f32 %v1180, %v1370
      %v1400 = vadd.f32 %v1181, %v1373
      %v1401 = vadd.f32 %v1182, %v1376
      %v1402 = vadd.f32 %v1183, %v1379
      %v1403 = vadd.f32 %v1184, %v1382
      %v1404 = vadd.f32 %v1185, %v1385
      %v1405 = vadd.f32 %v1186, %v1388
      %s1406 = scalar_lea.vmem %s0, 1024
      %v1407 = vld [vmem:[%s1406] sm:$0xff]
      %v1408 = vld [vmem:[%s1406 + $0x8] sm:$0xff]
      %v1409 = vld [vmem:[%s1406 + $0x10] sm:$0xff]
      %v1410 = vld [vmem:[%s1406 + $0x18] sm:$0xff]
      %v1411 = vld [vmem:[%s1406 + $0x20] sm:$0xff]
      %v1412 = vld [vmem:[%s1406 + $0x28] sm:$0xff]
      %v1413 = vld [vmem:[%s1406 + $0x30] sm:$0xff]
      %v1414 = vld [vmem:[%s1406 + $0x38] sm:$0xff]
      %v1415 = vld [vmem:[%s1406 + $0x40] sm:$0xff]
      %v1416 = vld [vmem:[%s1406 + $0x48] sm:$0xff]
      %v1417 = vld [vmem:[%s1406 + $0x50] sm:$0xff]
      %v1418 = vld [vmem:[%s1406 + $0x58] sm:$0xff]
      %v1419 = vld [vmem:[%s1406 + $0x60] sm:$0xff]
      %v1420 = vld [vmem:[%s1406 + $0x68] sm:$0xff]
      %v1421 = vld [vmem:[%s1406 + $0x70] sm:$0xff]
      %v1422 = vld [vmem:[%s1406 + $0x78] sm:$0xff]
      %v1423 = vld [vmem:[%s1406 + $0x80] sm:$0xff]
      %v1424 = vld [vmem:[%s1406 + $0x88] sm:$0xff]
      %v1425 = vld [vmem:[%s1406 + $0x90] sm:$0xff]
      %v1426 = vld [vmem:[%s1406 + $0x98] sm:$0xff]
      %v1427 = vld [vmem:[%s1406 + $0xa0] sm:$0xff]
      %v1428 = vld [vmem:[%s1406 + $0xa8] sm:$0xff]
      %v1429 = vld [vmem:[%s1406 + $0xb0] sm:$0xff]
      %v1430 = vld [vmem:[%s1406 + $0xb8] sm:$0xff]
      %v1431 = vld [vmem:[%s1406 + $0xc0] sm:$0xff]
      %v1432 = vld [vmem:[%s1406 + $0xc8] sm:$0xff]
      %v1433 = vld [vmem:[%s1406 + $0xd0] sm:$0xff]
      %v1434 = vld [vmem:[%s1406 + $0xd8] sm:$0xff]
      %v1435 = vld [vmem:[%s1406 + $0xe0] sm:$0xff]
      %v1436 = vld [vmem:[%s1406 + $0xe8] sm:$0xff]
      %v1437 = vld [vmem:[%s1406 + $0xf0] sm:$0xff]
      %v1438 = vld [vmem:[%s1406 + $0xf8] sm:$0xff]
      %1439 = vmatpush.msra.mxu0 %v1422
      %1440 = vmatpush.msra.mxu0 %v1421
      %1441 = vmatpush.msra.mxu0 %v1420
      %1442 = vmatpush.msra.mxu0 %v1419
      %1443 = vmatpush.msra.mxu0 %v1418
      %1444 = vmatpush.msra.mxu0 %v1417
      %1445 = vmatpush.msra.mxu0 %v1416
      %1446 = vmatpush.msra.mxu0 %v1415
      %1447 = vmatpush.msra.mxu0 %v1414
      %1448 = vmatpush.msra.mxu0 %v1413
      %1449 = vmatpush.msra.mxu0 %v1412
      %1450 = vmatpush.msra.mxu0 %v1411
      %1451 = vmatpush.msra.mxu0 %v1410
      %1452 = vmatpush.msra.mxu0 %v1409
      %1453 = vmatpush.msra.mxu0 %v1408
      %1454 = vmatpush.msra.mxu0 %v1407
      %1455 = vmatmul.f32.gmra.mxu0 %v561
      %v1456 = vpop.f32.mrf.mxu0
      %v1457 = vadd.f32 0.0, %v1456
      %1458 = vdwg.mxu0
      %1459 = vmatpush.msra.mxu0 %v1438
      %1460 = vmatpush.msra.mxu0 %v1437
      %1461 = vmatpush.msra.mxu0 %v1436
      %1462 = vmatpush.msra.mxu0 %v1435
      %1463 = vmatpush.msra.mxu0 %v1434
      %1464 = vmatpush.msra.mxu0 %v1433
      %1465 = vmatpush.msra.mxu0 %v1432
      %1466 = vmatpush.msra.mxu0 %v1431
      %1467 = vmatpush.msra.mxu0 %v1430
      %1468 = vmatpush.msra.mxu0 %v1429
      %1469 = vmatpush.msra.mxu0 %v1428
      %1470 = vmatpush.msra.mxu0 %v1427
      %1471 = vmatpush.msra.mxu0 %v1426
      %1472 = vmatpush.msra.mxu0 %v1425
      %1473 = vmatpush.msra.mxu0 %v1424
      %1474 = vmatpush.msra.mxu0 %v1423
      %1475 = vmatmul.f32.gmra.mxu0 %v562
      %v1476 = vpop.f32.mrf.mxu0
      %v1477 = vadd.f32 %v1457, %v1476
      %1478 = vdwg.mxu0
      %s1479 = scalar_lea.vmem %s5, 512
      %v1480 = vld [vmem:[%s1479] sm:$0xff]
      %v1481 = vld [vmem:[%s1479 + $0x8] sm:$0xff]
      %v1482 = vld [vmem:[%s1479 + $0x10] sm:$0xff]
      %v1483 = vld [vmem:[%s1479 + $0x18] sm:$0xff]
      %v1484 = vld [vmem:[%s1479 + $0x20] sm:$0xff]
      %v1485 = vld [vmem:[%s1479 + $0x28] sm:$0xff]
      %v1486 = vld [vmem:[%s1479 + $0x30] sm:$0xff]
      %v1487 = vld [vmem:[%s1479 + $0x38] sm:$0xff]
      %v1488 = vld [vmem:[%s1479 + $0x40] sm:$0xff]
      %v1489 = vld [vmem:[%s1479 + $0x48] sm:$0xff]
      %v1490 = vld [vmem:[%s1479 + $0x50] sm:$0xff]
      %v1491 = vld [vmem:[%s1479 + $0x58] sm:$0xff]
      %v1492 = vld [vmem:[%s1479 + $0x60] sm:$0xff]
      %v1493 = vld [vmem:[%s1479 + $0x68] sm:$0xff]
      %v1494 = vld [vmem:[%s1479 + $0x70] sm:$0xff]
      %v1495 = vld [vmem:[%s1479 + $0x78] sm:$0xff]
      %v1497 = vsel %vm741, %v1480, 0
      %v1500 = vsel %vm741, %v1481, 0
      %v1503 = vsel %vm741, %v1482, 0
      %v1506 = vsel %vm741, %v1483, 0
      %v1509 = vsel %vm741, %v1484, 0
      %v1512 = vsel %vm741, %v1485, 0
      %v1515 = vsel %vm741, %v1486, 0
      %v1518 = vsel %vm741, %v1487, 0
      %v1521 = vsel %vm741, %v1488, 0
      %v1524 = vsel %vm741, %v1489, 0
      %v1527 = vsel %vm741, %v1490, 0
      %v1530 = vsel %vm741, %v1491, 0
      %v1533 = vsel %vm741, %v1492, 0
      %v1536 = vsel %vm741, %v1493, 0
      %v1539 = vsel %vm741, %v1494, 0
      %v1542 = vsel %vm741, %v1495, 0
      %1544 = vmatpush.msra.mxu0 0.0
      %1545 = vmatpush.msra.mxu0 0.0
      %1546 = vmatpush.msra.mxu0 0.0
      %1547 = vmatpush.msra.mxu0 0.0
      %1548 = vmatpush.msra.mxu0 0.0
      %1549 = vmatpush.msra.mxu0 0.0
      %1550 = vmatpush.msra.mxu0 0.0
      %1551 = vmatpush.msra.mxu0 0.0
      %1552 = vmatpush.msra.mxu0 0.0
      %1553 = vmatpush.msra.mxu0 0.0
      %1554 = vmatpush.msra.mxu0 0.0
      %1555 = vmatpush.msra.mxu0 0.0
      %1556 = vmatpush.msra.mxu0 0.0
      %1557 = vmatpush.msra.mxu0 0.0
      %1558 = vmatpush.msra.mxu0 0.0
      %1559 = vmatpush.msra.mxu0 %v1477
      %1560 = vmatmul.f32.gmra.mxu0 %v1497
      %v1561 = vpop.f32.mrf.mxu0
      %v1562 = vadd.f32 0.0, %v1561
      %1563 = vmatmul.f32.gmra.mxu0 %v1500
      %v1564 = vpop.f32.mrf.mxu0
      %v1565 = vadd.f32 0.0, %v1564
      %1566 = vmatmul.f32.gmra.mxu0 %v1503
      %v1567 = vpop.f32.mrf.mxu0
      %v1568 = vadd.f32 0.0, %v1567
      %1569 = vmatmul.f32.gmra.mxu0 %v1506
      %v1570 = vpop.f32.mrf.mxu0
      %v1571 = vadd.f32 0.0, %v1570
      %1572 = vmatmul.f32.gmra.mxu0 %v1509
      %v1573 = vpop.f32.mrf.mxu0
      %v1574 = vadd.f32 0.0, %v1573
      %1575 = vmatmul.f32.gmra.mxu0 %v1512
      %v1576 = vpop.f32.mrf.mxu0
      %v1577 = vadd.f32 0.0, %v1576
      %1578 = vmatmul.f32.gmra.mxu0 %v1515
      %v1579 = vpop.f32.mrf.mxu0
      %v1580 = vadd.f32 0.0, %v1579
      %1581 = vmatmul.f32.gmra.mxu0 %v1518
      %v1582 = vpop.f32.mrf.mxu0
      %v1583 = vadd.f32 0.0, %v1582
      %1584 = vmatmul.f32.gmra.mxu0 %v1521
      %v1585 = vpop.f32.mrf.mxu0
      %v1586 = vadd.f32 0.0, %v1585
      %1587 = vmatmul.f32.gmra.mxu0 %v1524
      %v1588 = vpop.f32.mrf.mxu0
      %v1589 = vadd.f32 0.0, %v1588
      %1590 = vmatmul.f32.gmra.mxu0 %v1527
      %v1591 = vpop.f32.mrf.mxu0
      %v1592 = vadd.f32 0.0, %v1591
      %1593 = vmatmul.f32.gmra.mxu0 %v1530
      %v1594 = vpop.f32.mrf.mxu0
      %v1595 = vadd.f32 0.0, %v1594
      %1596 = vmatmul.f32.gmra.mxu0 %v1533
      %v1597 = vpop.f32.mrf.mxu0
      %v1598 = vadd.f32 0.0, %v1597
      %1599 = vmatmul.f32.gmra.mxu0 %v1536
      %v1600 = vpop.f32.mrf.mxu0
      %v1601 = vadd.f32 0.0, %v1600
      %1602 = vmatmul.f32.gmra.mxu0 %v1539
      %v1603 = vpop.f32.mrf.mxu0
      %v1604 = vadd.f32 0.0, %v1603
      %1605 = vmatmul.f32.gmra.mxu0 %v1542
      %v1606 = vpop.f32.mrf.mxu0
      %v1607 = vadd.f32 0.0, %v1606
      %1608 = vdwg.mxu0
      %v1609 = vadd.f32 %v1390, %v1562
      %v1610 = vadd.f32 %v1391, %v1565
      %v1611 = vadd.f32 %v1392, %v1568
      %v1612 = vadd.f32 %v1393, %v1571
      %v1613 = vadd.f32 %v1394, %v1574
      %v1614 = vadd.f32 %v1395, %v1577
      %v1615 = vadd.f32 %v1396, %v1580
      %v1616 = vadd.f32 %v1397, %v1583
      %v1617 = vadd.f32 %v1398, %v1586
      %v1618 = vadd.f32 %v1399, %v1589
      %v1619 = vadd.f32 %v1400, %v1592
      %v1620 = vadd.f32 %v1401, %v1595
      %v1621 = vadd.f32 %v1402, %v1598
      %v1622 = vadd.f32 %v1403, %v1601
      %v1623 = vadd.f32 %v1404, %v1604
      %v1624 = vadd.f32 %v1405, %v1607
      %s1625 = scalar_lea.vmem %s0, 1280
      %v1626 = vld [vmem:[%s1625] sm:$0xff]
      %v1627 = vld [vmem:[%s1625 + $0x8] sm:$0xff]
      %v1628 = vld [vmem:[%s1625 + $0x10] sm:$0xff]
      %v1629 = vld [vmem:[%s1625 + $0x18] sm:$0xff]
      %v1630 = vld [vmem:[%s1625 + $0x20] sm:$0xff]
      %v1631 = vld [vmem:[%s1625 + $0x28] sm:$0xff]
      %v1632 = vld [vmem:[%s1625 + $0x30] sm:$0xff]
      %v1633 = vld [vmem:[%s1625 + $0x38] sm:$0xff]
      %v1634 = vld [vmem:[%s1625 + $0x40] sm:$0xff]
      %v1635 = vld [vmem:[%s1625 + $0x48] sm:$0xff]
      %v1636 = vld [vmem:[%s1625 + $0x50] sm:$0xff]
      %v1637 = vld [vmem:[%s1625 + $0x58] sm:$0xff]
      %v1638 = vld [vmem:[%s1625 + $0x60] sm:$0xff]
      %v1639 = vld [vmem:[%s1625 + $0x68] sm:$0xff]
      %v1640 = vld [vmem:[%s1625 + $0x70] sm:$0xff]
      %v1641 = vld [vmem:[%s1625 + $0x78] sm:$0xff]
      %v1642 = vld [vmem:[%s1625 + $0x80] sm:$0xff]
      %v1643 = vld [vmem:[%s1625 + $0x88] sm:$0xff]
      %v1644 = vld [vmem:[%s1625 + $0x90] sm:$0xff]
      %v1645 = vld [vmem:[%s1625 + $0x98] sm:$0xff]
      %v1646 = vld [vmem:[%s1625 + $0xa0] sm:$0xff]
      %v1647 = vld [vmem:[%s1625 + $0xa8] sm:$0xff]
      %v1648 = vld [vmem:[%s1625 + $0xb0] sm:$0xff]
      %v1649 = vld [vmem:[%s1625 + $0xb8] sm:$0xff]
      %v1650 = vld [vmem:[%s1625 + $0xc0] sm:$0xff]
      %v1651 = vld [vmem:[%s1625 + $0xc8] sm:$0xff]
      %v1652 = vld [vmem:[%s1625 + $0xd0] sm:$0xff]
      %v1653 = vld [vmem:[%s1625 + $0xd8] sm:$0xff]
      %v1654 = vld [vmem:[%s1625 + $0xe0] sm:$0xff]
      %v1655 = vld [vmem:[%s1625 + $0xe8] sm:$0xff]
      %v1656 = vld [vmem:[%s1625 + $0xf0] sm:$0xff]
      %v1657 = vld [vmem:[%s1625 + $0xf8] sm:$0xff]
      %1658 = vmatpush.msra.mxu0 %v1641
      %1659 = vmatpush.msra.mxu0 %v1640
      %1660 = vmatpush.msra.mxu0 %v1639
      %1661 = vmatpush.msra.mxu0 %v1638
      %1662 = vmatpush.msra.mxu0 %v1637
      %1663 = vmatpush.msra.mxu0 %v1636
      %1664 = vmatpush.msra.mxu0 %v1635
      %1665 = vmatpush.msra.mxu0 %v1634
      %1666 = vmatpush.msra.mxu0 %v1633
      %1667 = vmatpush.msra.mxu0 %v1632
      %1668 = vmatpush.msra.mxu0 %v1631
      %1669 = vmatpush.msra.mxu0 %v1630
      %1670 = vmatpush.msra.mxu0 %v1629
      %1671 = vmatpush.msra.mxu0 %v1628
      %1672 = vmatpush.msra.mxu0 %v1627
      %1673 = vmatpush.msra.mxu0 %v1626
      %1674 = vmatmul.f32.gmra.mxu0 %v561
      %v1675 = vpop.f32.mrf.mxu0
      %v1676 = vadd.f32 0.0, %v1675
      %1677 = vdwg.mxu0
      %1678 = vmatpush.msra.mxu0 %v1657
      %1679 = vmatpush.msra.mxu0 %v1656
      %1680 = vmatpush.msra.mxu0 %v1655
      %1681 = vmatpush.msra.mxu0 %v1654
      %1682 = vmatpush.msra.mxu0 %v1653
      %1683 = vmatpush.msra.mxu0 %v1652
      %1684 = vmatpush.msra.mxu0 %v1651
      %1685 = vmatpush.msra.mxu0 %v1650
      %1686 = vmatpush.msra.mxu0 %v1649
      %1687 = vmatpush.msra.mxu0 %v1648
      %1688 = vmatpush.msra.mxu0 %v1647
      %1689 = vmatpush.msra.mxu0 %v1646
      %1690 = vmatpush.msra.mxu0 %v1645
      %1691 = vmatpush.msra.mxu0 %v1644
      %1692 = vmatpush.msra.mxu0 %v1643
      %1693 = vmatpush.msra.mxu0 %v1642
      %1694 = vmatmul.f32.gmra.mxu0 %v562
      %v1695 = vpop.f32.mrf.mxu0
      %v1696 = vadd.f32 %v1676, %v1695
      %1697 = vdwg.mxu0
      %s1698 = scalar_lea.vmem %s5, 640
      %v1699 = vld [vmem:[%s1698] sm:$0xff]
      %v1700 = vld [vmem:[%s1698 + $0x8] sm:$0xff]
      %v1701 = vld [vmem:[%s1698 + $0x10] sm:$0xff]
      %v1702 = vld [vmem:[%s1698 + $0x18] sm:$0xff]
      %v1703 = vld [vmem:[%s1698 + $0x20] sm:$0xff]
      %v1704 = vld [vmem:[%s1698 + $0x28] sm:$0xff]
      %v1705 = vld [vmem:[%s1698 + $0x30] sm:$0xff]
      %v1706 = vld [vmem:[%s1698 + $0x38] sm:$0xff]
      %v1707 = vld [vmem:[%s1698 + $0x40] sm:$0xff]
      %v1708 = vld [vmem:[%s1698 + $0x48] sm:$0xff]
      %v1709 = vld [vmem:[%s1698 + $0x50] sm:$0xff]
      %v1710 = vld [vmem:[%s1698 + $0x58] sm:$0xff]
      %v1711 = vld [vmem:[%s1698 + $0x60] sm:$0xff]
      %v1712 = vld [vmem:[%s1698 + $0x68] sm:$0xff]
      %v1713 = vld [vmem:[%s1698 + $0x70] sm:$0xff]
      %v1714 = vld [vmem:[%s1698 + $0x78] sm:$0xff]
      %v1716 = vsel %vm741, %v1699, 0
      %v1719 = vsel %vm741, %v1700, 0
      %v1722 = vsel %vm741, %v1701, 0
      %v1725 = vsel %vm741, %v1702, 0
      %v1728 = vsel %vm741, %v1703, 0
      %v1731 = vsel %vm741, %v1704, 0
      %v1734 = vsel %vm741, %v1705, 0
      %v1737 = vsel %vm741, %v1706, 0
      %v1740 = vsel %vm741, %v1707, 0
      %v1743 = vsel %vm741, %v1708, 0
      %v1746 = vsel %vm741, %v1709, 0
      %v1749 = vsel %vm741, %v1710, 0
      %v1752 = vsel %vm741, %v1711, 0
      %v1755 = vsel %vm741, %v1712, 0
      %v1758 = vsel %vm741, %v1713, 0
      %v1761 = vsel %vm741, %v1714, 0
      %1763 = vmatpush.msra.mxu0 0.0
      %1764 = vmatpush.msra.mxu0 0.0
      %1765 = vmatpush.msra.mxu0 0.0
      %1766 = vmatpush.msra.mxu0 0.0
      %1767 = vmatpush.msra.mxu0 0.0
      %1768 = vmatpush.msra.mxu0 0.0
      %1769 = vmatpush.msra.mxu0 0.0
      %1770 = vmatpush.msra.mxu0 0.0
      %1771 = vmatpush.msra.mxu0 0.0
      %1772 = vmatpush.msra.mxu0 0.0
      %1773 = vmatpush.msra.mxu0 0.0
      %1774 = vmatpush.msra.mxu0 0.0
      %1775 = vmatpush.msra.mxu0 0.0
      %1776 = vmatpush.msra.mxu0 0.0
      %1777 = vmatpush.msra.mxu0 0.0
      %1778 = vmatpush.msra.mxu0 %v1696
      %1779 = vmatmul.f32.gmra.mxu0 %v1716
      %v1780 = vpop.f32.mrf.mxu0
      %v1781 = vadd.f32 0.0, %v1780
      %1782 = vmatmul.f32.gmra.mxu0 %v1719
      %v1783 = vpop.f32.mrf.mxu0
      %v1784 = vadd.f32 0.0, %v1783
      %1785 = vmatmul.f32.gmra.mxu0 %v1722
      %v1786 = vpop.f32.mrf.mxu0
      %v1787 = vadd.f32 0.0, %v1786
      %1788 = vmatmul.f32.gmra.mxu0 %v1725
      %v1789 = vpop.f32.mrf.mxu0
      %v1790 = vadd.f32 0.0, %v1789
      %1791 = vmatmul.f32.gmra.mxu0 %v1728
      %v1792 = vpop.f32.mrf.mxu0
      %v1793 = vadd.f32 0.0, %v1792
      %1794 = vmatmul.f32.gmra.mxu0 %v1731
      %v1795 = vpop.f32.mrf.mxu0
      %v1796 = vadd.f32 0.0, %v1795
      %1797 = vmatmul.f32.gmra.mxu0 %v1734
      %v1798 = vpop.f32.mrf.mxu0
      %v1799 = vadd.f32 0.0, %v1798
      %1800 = vmatmul.f32.gmra.mxu0 %v1737
      %v1801 = vpop.f32.mrf.mxu0
      %v1802 = vadd.f32 0.0, %v1801
      %1803 = vmatmul.f32.gmra.mxu0 %v1740
      %v1804 = vpop.f32.mrf.mxu0
      %v1805 = vadd.f32 0.0, %v1804
      %1806 = vmatmul.f32.gmra.mxu0 %v1743
      %v1807 = vpop.f32.mrf.mxu0
      %v1808 = vadd.f32 0.0, %v1807
      %1809 = vmatmul.f32.gmra.mxu0 %v1746
      %v1810 = vpop.f32.mrf.mxu0
      %v1811 = vadd.f32 0.0, %v1810
      %1812 = vmatmul.f32.gmra.mxu0 %v1749
      %v1813 = vpop.f32.mrf.mxu0
      %v1814 = vadd.f32 0.0, %v1813
      %1815 = vmatmul.f32.gmra.mxu0 %v1752
      %v1816 = vpop.f32.mrf.mxu0
      %v1817 = vadd.f32 0.0, %v1816
      %1818 = vmatmul.f32.gmra.mxu0 %v1755
      %v1819 = vpop.f32.mrf.mxu0
      %v1820 = vadd.f32 0.0, %v1819
      %1821 = vmatmul.f32.gmra.mxu0 %v1758
      %v1822 = vpop.f32.mrf.mxu0
      %v1823 = vadd.f32 0.0, %v1822
      %1824 = vmatmul.f32.gmra.mxu0 %v1761
      %v1825 = vpop.f32.mrf.mxu0
      %v1826 = vadd.f32 0.0, %v1825
      %1827 = vdwg.mxu0
      %v1828 = vadd.f32 %v1609, %v1781
      %v1829 = vadd.f32 %v1610, %v1784
      %v1830 = vadd.f32 %v1611, %v1787
      %v1831 = vadd.f32 %v1612, %v1790
      %v1832 = vadd.f32 %v1613, %v1793
      %v1833 = vadd.f32 %v1614, %v1796
      %v1834 = vadd.f32 %v1615, %v1799
      %v1835 = vadd.f32 %v1616, %v1802
      %v1836 = vadd.f32 %v1617, %v1805
      %v1837 = vadd.f32 %v1618, %v1808
      %v1838 = vadd.f32 %v1619, %v1811
      %v1839 = vadd.f32 %v1620, %v1814
      %v1840 = vadd.f32 %v1621, %v1817
      %v1841 = vadd.f32 %v1622, %v1820
      %v1842 = vadd.f32 %v1623, %v1823
      %v1843 = vadd.f32 %v1624, %v1826
      %s1844 = scalar_lea.vmem %s0, 1536
      %v1845 = vld [vmem:[%s1844] sm:$0xff]
      %v1846 = vld [vmem:[%s1844 + $0x8] sm:$0xff]
      %v1847 = vld [vmem:[%s1844 + $0x10] sm:$0xff]
      %v1848 = vld [vmem:[%s1844 + $0x18] sm:$0xff]
      %v1849 = vld [vmem:[%s1844 + $0x20] sm:$0xff]
      %v1850 = vld [vmem:[%s1844 + $0x28] sm:$0xff]
      %v1851 = vld [vmem:[%s1844 + $0x30] sm:$0xff]
      %v1852 = vld [vmem:[%s1844 + $0x38] sm:$0xff]
      %v1853 = vld [vmem:[%s1844 + $0x40] sm:$0xff]
      %v1854 = vld [vmem:[%s1844 + $0x48] sm:$0xff]
      %v1855 = vld [vmem:[%s1844 + $0x50] sm:$0xff]
      %v1856 = vld [vmem:[%s1844 + $0x58] sm:$0xff]
      %v1857 = vld [vmem:[%s1844 + $0x60] sm:$0xff]
      %v1858 = vld [vmem:[%s1844 + $0x68] sm:$0xff]
      %v1859 = vld [vmem:[%s1844 + $0x70] sm:$0xff]
      %v1860 = vld [vmem:[%s1844 + $0x78] sm:$0xff]
      %v1861 = vld [vmem:[%s1844 + $0x80] sm:$0xff]
      %v1862 = vld [vmem:[%s1844 + $0x88] sm:$0xff]
      %v1863 = vld [vmem:[%s1844 + $0x90] sm:$0xff]
      %v1864 = vld [vmem:[%s1844 + $0x98] sm:$0xff]
      %v1865 = vld [vmem:[%s1844 + $0xa0] sm:$0xff]
      %v1866 = vld [vmem:[%s1844 + $0xa8] sm:$0xff]
      %v1867 = vld [vmem:[%s1844 + $0xb0] sm:$0xff]
      %v1868 = vld [vmem:[%s1844 + $0xb8] sm:$0xff]
      %v1869 = vld [vmem:[%s1844 + $0xc0] sm:$0xff]
      %v1870 = vld [vmem:[%s1844 + $0xc8] sm:$0xff]
      %v1871 = vld [vmem:[%s1844 + $0xd0] sm:$0xff]
      %v1872 = vld [vmem:[%s1844 + $0xd8] sm:$0xff]
      %v1873 = vld [vmem:[%s1844 + $0xe0] sm:$0xff]
      %v1874 = vld [vmem:[%s1844 + $0xe8] sm:$0xff]
      %v1875 = vld [vmem:[%s1844 + $0xf0] sm:$0xff]
      %v1876 = vld [vmem:[%s1844 + $0xf8] sm:$0xff]
      %1877 = vmatpush.msra.mxu0 %v1860
      %1878 = vmatpush.msra.mxu0 %v1859
      %1879 = vmatpush.msra.mxu0 %v1858
      %1880 = vmatpush.msra.mxu0 %v1857
      %1881 = vmatpush.msra.mxu0 %v1856
      %1882 = vmatpush.msra.mxu0 %v1855
      %1883 = vmatpush.msra.mxu0 %v1854
      %1884 = vmatpush.msra.mxu0 %v1853
      %1885 = vmatpush.msra.mxu0 %v1852
      %1886 = vmatpush.msra.mxu0 %v1851
      %1887 = vmatpush.msra.mxu0 %v1850
      %1888 = vmatpush.msra.mxu0 %v1849
      %1889 = vmatpush.msra.mxu0 %v1848
      %1890 = vmatpush.msra.mxu0 %v1847
      %1891 = vmatpush.msra.mxu0 %v1846
      %1892 = vmatpush.msra.mxu0 %v1845
      %1893 = vmatmul.f32.gmra.mxu0 %v561
      %v1894 = vpop.f32.mrf.mxu0
      %v1895 = vadd.f32 0.0, %v1894
      %1896 = vdwg.mxu0
      %1897 = vmatpush.msra.mxu0 %v1876
      %1898 = vmatpush.msra.mxu0 %v1875
      %1899 = vmatpush.msra.mxu0 %v1874
      %1900 = vmatpush.msra.mxu0 %v1873
      %1901 = vmatpush.msra.mxu0 %v1872
      %1902 = vmatpush.msra.mxu0 %v1871
      %1903 = vmatpush.msra.mxu0 %v1870
      %1904 = vmatpush.msra.mxu0 %v1869
      %1905 = vmatpush.msra.mxu0 %v1868
      %1906 = vmatpush.msra.mxu0 %v1867
      %1907 = vmatpush.msra.mxu0 %v1866
      %1908 = vmatpush.msra.mxu0 %v1865
      %1909 = vmatpush.msra.mxu0 %v1864
      %1910 = vmatpush.msra.mxu0 %v1863
      %1911 = vmatpush.msra.mxu0 %v1862
      %1912 = vmatpush.msra.mxu0 %v1861
      %1913 = vmatmul.f32.gmra.mxu0 %v562
      %v1914 = vpop.f32.mrf.mxu0
      %v1915 = vadd.f32 %v1895, %v1914
      %1916 = vdwg.mxu0
      %s1917 = scalar_lea.vmem %s5, 768
      %v1918 = vld [vmem:[%s1917] sm:$0xff]
      %v1919 = vld [vmem:[%s1917 + $0x8] sm:$0xff]
      %v1920 = vld [vmem:[%s1917 + $0x10] sm:$0xff]
      %v1921 = vld [vmem:[%s1917 + $0x18] sm:$0xff]
      %v1922 = vld [vmem:[%s1917 + $0x20] sm:$0xff]
      %v1923 = vld [vmem:[%s1917 + $0x28] sm:$0xff]
      %v1924 = vld [vmem:[%s1917 + $0x30] sm:$0xff]
      %v1925 = vld [vmem:[%s1917 + $0x38] sm:$0xff]
      %v1926 = vld [vmem:[%s1917 + $0x40] sm:$0xff]
      %v1927 = vld [vmem:[%s1917 + $0x48] sm:$0xff]
      %v1928 = vld [vmem:[%s1917 + $0x50] sm:$0xff]
      %v1929 = vld [vmem:[%s1917 + $0x58] sm:$0xff]
      %v1930 = vld [vmem:[%s1917 + $0x60] sm:$0xff]
      %v1931 = vld [vmem:[%s1917 + $0x68] sm:$0xff]
      %v1932 = vld [vmem:[%s1917 + $0x70] sm:$0xff]
      %v1933 = vld [vmem:[%s1917 + $0x78] sm:$0xff]
      %v1935 = vsel %vm741, %v1918, 0
      %v1938 = vsel %vm741, %v1919, 0
      %v1941 = vsel %vm741, %v1920, 0
      %v1944 = vsel %vm741, %v1921, 0
      %v1947 = vsel %vm741, %v1922, 0
      %v1950 = vsel %vm741, %v1923, 0
      %v1953 = vsel %vm741, %v1924, 0
      %v1956 = vsel %vm741, %v1925, 0
      %v1959 = vsel %vm741, %v1926, 0
      %v1962 = vsel %vm741, %v1927, 0
      %v1965 = vsel %vm741, %v1928, 0
      %v1968 = vsel %vm741, %v1929, 0
      %v1971 = vsel %vm741, %v1930, 0
      %v1974 = vsel %vm741, %v1931, 0
      %v1977 = vsel %vm741, %v1932, 0
      %v1980 = vsel %vm741, %v1933, 0
      %1982 = vmatpush.msra.mxu0 0.0
      %1983 = vmatpush.msra.mxu0 0.0
      %1984 = vmatpush.msra.mxu0 0.0
      %1985 = vmatpush.msra.mxu0 0.0
      %1986 = vmatpush.msra.mxu0 0.0
      %1987 = vmatpush.msra.mxu0 0.0
      %1988 = vmatpush.msra.mxu0 0.0
      %1989 = vmatpush.msra.mxu0 0.0
      %1990 = vmatpush.msra.mxu0 0.0
      %1991 = vmatpush.msra.mxu0 0.0
      %1992 = vmatpush.msra.mxu0 0.0
      %1993 = vmatpush.msra.mxu0 0.0
      %1994 = vmatpush.msra.mxu0 0.0
      %1995 = vmatpush.msra.mxu0 0.0
      %1996 = vmatpush.msra.mxu0 0.0
      %1997 = vmatpush.msra.mxu0 %v1915
      %1998 = vmatmul.f32.gmra.mxu0 %v1935
      %v1999 = vpop.f32.mrf.mxu0
      %v2000 = vadd.f32 0.0, %v1999
      %2001 = vmatmul.f32.gmra.mxu0 %v1938
      %v2002 = vpop.f32.mrf.mxu0
      %v2003 = vadd.f32 0.0, %v2002
      %2004 = vmatmul.f32.gmra.mxu0 %v1941
      %v2005 = vpop.f32.mrf.mxu0
      %v2006 = vadd.f32 0.0, %v2005
      %2007 = vmatmul.f32.gmra.mxu0 %v1944
      %v2008 = vpop.f32.mrf.mxu0
      %v2009 = vadd.f32 0.0, %v2008
      %2010 = vmatmul.f32.gmra.mxu0 %v1947
      %v2011 = vpop.f32.mrf.mxu0
      %v2012 = vadd.f32 0.0, %v2011
      %2013 = vmatmul.f32.gmra.mxu0 %v1950
      %v2014 = vpop.f32.mrf.mxu0
      %v2015 = vadd.f32 0.0, %v2014
      %2016 = vmatmul.f32.gmra.mxu0 %v1953
      %v2017 = vpop.f32.mrf.mxu0
      %v2018 = vadd.f32 0.0, %v2017
      %2019 = vmatmul.f32.gmra.mxu0 %v1956
      %v2020 = vpop.f32.mrf.mxu0
      %v2021 = vadd.f32 0.0, %v2020
      %2022 = vmatmul.f32.gmra.mxu0 %v1959
      %v2023 = vpop.f32.mrf.mxu0
      %v2024 = vadd.f32 0.0, %v2023
      %2025 = vmatmul.f32.gmra.mxu0 %v1962
      %v2026 = vpop.f32.mrf.mxu0
      %v2027 = vadd.f32 0.0, %v2026
      %2028 = vmatmul.f32.gmra.mxu0 %v1965
      %v2029 = vpop.f32.mrf.mxu0
      %v2030 = vadd.f32 0.0, %v2029
      %2031 = vmatmul.f32.gmra.mxu0 %v1968
      %v2032 = vpop.f32.mrf.mxu0
      %v2033 = vadd.f32 0.0, %v2032
      %2034 = vmatmul.f32.gmra.mxu0 %v1971
      %v2035 = vpop.f32.mrf.mxu0
      %v2036 = vadd.f32 0.0, %v2035
      %2037 = vmatmul.f32.gmra.mxu0 %v1974
      %v2038 = vpop.f32.mrf.mxu0
      %v2039 = vadd.f32 0.0, %v2038
      %2040 = vmatmul.f32.gmra.mxu0 %v1977
      %v2041 = vpop.f32.mrf.mxu0
      %v2042 = vadd.f32 0.0, %v2041
      %2043 = vmatmul.f32.gmra.mxu0 %v1980
      %v2044 = vpop.f32.mrf.mxu0
      %v2045 = vadd.f32 0.0, %v2044
      %2046 = vdwg.mxu0
      %v2047 = vadd.f32 %v1828, %v2000
      %v2048 = vadd.f32 %v1829, %v2003
      %v2049 = vadd.f32 %v1830, %v2006
      %v2050 = vadd.f32 %v1831, %v2009
      %v2051 = vadd.f32 %v1832, %v2012
      %v2052 = vadd.f32 %v1833, %v2015
      %v2053 = vadd.f32 %v1834, %v2018
      %v2054 = vadd.f32 %v1835, %v2021
      %v2055 = vadd.f32 %v1836, %v2024
      %v2056 = vadd.f32 %v1837, %v2027
      %v2057 = vadd.f32 %v1838, %v2030
      %v2058 = vadd.f32 %v1839, %v2033
      %v2059 = vadd.f32 %v1840, %v2036
      %v2060 = vadd.f32 %v1841, %v2039
      %v2061 = vadd.f32 %v1842, %v2042
      %v2062 = vadd.f32 %v1843, %v2045
      %s2063 = scalar_lea.vmem %s0, 1792
      %v2064 = vld [vmem:[%s2063] sm:$0xff]
      %v2065 = vld [vmem:[%s2063 + $0x8] sm:$0xff]
      %v2066 = vld [vmem:[%s2063 + $0x10] sm:$0xff]
      %v2067 = vld [vmem:[%s2063 + $0x18] sm:$0xff]
      %v2068 = vld [vmem:[%s2063 + $0x20] sm:$0xff]
      %v2069 = vld [vmem:[%s2063 + $0x28] sm:$0xff]
      %v2070 = vld [vmem:[%s2063 + $0x30] sm:$0xff]
      %v2071 = vld [vmem:[%s2063 + $0x38] sm:$0xff]
      %v2072 = vld [vmem:[%s2063 + $0x40] sm:$0xff]
      %v2073 = vld [vmem:[%s2063 + $0x48] sm:$0xff]
      %v2074 = vld [vmem:[%s2063 + $0x50] sm:$0xff]
      %v2075 = vld [vmem:[%s2063 + $0x58] sm:$0xff]
      %v2076 = vld [vmem:[%s2063 + $0x60] sm:$0xff]
      %v2077 = vld [vmem:[%s2063 + $0x68] sm:$0xff]
      %v2078 = vld [vmem:[%s2063 + $0x70] sm:$0xff]
      %v2079 = vld [vmem:[%s2063 + $0x78] sm:$0xff]
      %v2080 = vld [vmem:[%s2063 + $0x80] sm:$0xff]
      %v2081 = vld [vmem:[%s2063 + $0x88] sm:$0xff]
      %v2082 = vld [vmem:[%s2063 + $0x90] sm:$0xff]
      %v2083 = vld [vmem:[%s2063 + $0x98] sm:$0xff]
      %v2084 = vld [vmem:[%s2063 + $0xa0] sm:$0xff]
      %v2085 = vld [vmem:[%s2063 + $0xa8] sm:$0xff]
      %v2086 = vld [vmem:[%s2063 + $0xb0] sm:$0xff]
      %v2087 = vld [vmem:[%s2063 + $0xb8] sm:$0xff]
      %v2088 = vld [vmem:[%s2063 + $0xc0] sm:$0xff]
      %v2089 = vld [vmem:[%s2063 + $0xc8] sm:$0xff]
      %v2090 = vld [vmem:[%s2063 + $0xd0] sm:$0xff]
      %v2091 = vld [vmem:[%s2063 + $0xd8] sm:$0xff]
      %v2092 = vld [vmem:[%s2063 + $0xe0] sm:$0xff]
      %v2093 = vld [vmem:[%s2063 + $0xe8] sm:$0xff]
      %v2094 = vld [vmem:[%s2063 + $0xf0] sm:$0xff]
      %v2095 = vld [vmem:[%s2063 + $0xf8] sm:$0xff]
      %2096 = vmatpush.msra.mxu0 %v2079
      %2097 = vmatpush.msra.mxu0 %v2078
      %2098 = vmatpush.msra.mxu0 %v2077
      %2099 = vmatpush.msra.mxu0 %v2076
      %2100 = vmatpush.msra.mxu0 %v2075
      %2101 = vmatpush.msra.mxu0 %v2074
      %2102 = vmatpush.msra.mxu0 %v2073
      %2103 = vmatpush.msra.mxu0 %v2072
      %2104 = vmatpush.msra.mxu0 %v2071
      %2105 = vmatpush.msra.mxu0 %v2070
      %2106 = vmatpush.msra.mxu0 %v2069
      %2107 = vmatpush.msra.mxu0 %v2068
      %2108 = vmatpush.msra.mxu0 %v2067
      %2109 = vmatpush.msra.mxu0 %v2066
      %2110 = vmatpush.msra.mxu0 %v2065
      %2111 = vmatpush.msra.mxu0 %v2064
      %2112 = vmatmul.f32.gmra.mxu0 %v561
      %v2113 = vpop.f32.mrf.mxu0
      %v2114 = vadd.f32 0.0, %v2113
      %2115 = vdwg.mxu0
      %2116 = vmatpush.msra.mxu0 %v2095
      %2117 = vmatpush.msra.mxu0 %v2094
      %2118 = vmatpush.msra.mxu0 %v2093
      %2119 = vmatpush.msra.mxu0 %v2092
      %2120 = vmatpush.msra.mxu0 %v2091
      %2121 = vmatpush.msra.mxu0 %v2090
      %2122 = vmatpush.msra.mxu0 %v2089
      %2123 = vmatpush.msra.mxu0 %v2088
      %2124 = vmatpush.msra.mxu0 %v2087
      %2125 = vmatpush.msra.mxu0 %v2086
      %2126 = vmatpush.msra.mxu0 %v2085
      %2127 = vmatpush.msra.mxu0 %v2084
      %2128 = vmatpush.msra.mxu0 %v2083
      %2129 = vmatpush.msra.mxu0 %v2082
      %2130 = vmatpush.msra.mxu0 %v2081
      %2131 = vmatpush.msra.mxu0 %v2080
      %2132 = vmatmul.f32.gmra.mxu0 %v562
      %v2133 = vpop.f32.mrf.mxu0
      %v2134 = vadd.f32 %v2114, %v2133
      %2135 = vdwg.mxu0
      %s2136 = scalar_lea.vmem %s5, 896
      %v2137 = vld [vmem:[%s2136] sm:$0xff]
      %v2138 = vld [vmem:[%s2136 + $0x8] sm:$0xff]
      %v2139 = vld [vmem:[%s2136 + $0x10] sm:$0xff]
      %v2140 = vld [vmem:[%s2136 + $0x18] sm:$0xff]
      %v2141 = vld [vmem:[%s2136 + $0x20] sm:$0xff]
      %v2142 = vld [vmem:[%s2136 + $0x28] sm:$0xff]
      %v2143 = vld [vmem:[%s2136 + $0x30] sm:$0xff]
      %v2144 = vld [vmem:[%s2136 + $0x38] sm:$0xff]
      %v2145 = vld [vmem:[%s2136 + $0x40] sm:$0xff]
      %v2146 = vld [vmem:[%s2136 + $0x48] sm:$0xff]
      %v2147 = vld [vmem:[%s2136 + $0x50] sm:$0xff]
      %v2148 = vld [vmem:[%s2136 + $0x58] sm:$0xff]
      %v2149 = vld [vmem:[%s2136 + $0x60] sm:$0xff]
      %v2150 = vld [vmem:[%s2136 + $0x68] sm:$0xff]
      %v2151 = vld [vmem:[%s2136 + $0x70] sm:$0xff]
      %v2152 = vld [vmem:[%s2136 + $0x78] sm:$0xff]
      %v2154 = vsel %vm741, %v2137, 0
      %v2157 = vsel %vm741, %v2138, 0
      %v2160 = vsel %vm741, %v2139, 0
      %v2163 = vsel %vm741, %v2140, 0
      %v2166 = vsel %vm741, %v2141, 0
      %v2169 = vsel %vm741, %v2142, 0
      %v2172 = vsel %vm741, %v2143, 0
      %v2175 = vsel %vm741, %v2144, 0
      %v2178 = vsel %vm741, %v2145, 0
      %v2181 = vsel %vm741, %v2146, 0
      %v2184 = vsel %vm741, %v2147, 0
      %v2187 = vsel %vm741, %v2148, 0
      %v2190 = vsel %vm741, %v2149, 0
      %v2193 = vsel %vm741, %v2150, 0
      %v2196 = vsel %vm741, %v2151, 0
      %v2199 = vsel %vm741, %v2152, 0
      %2201 = vmatpush.msra.mxu0 0.0
      %2202 = vmatpush.msra.mxu0 0.0
      %2203 = vmatpush.msra.mxu0 0.0
      %2204 = vmatpush.msra.mxu0 0.0
      %2205 = vmatpush.msra.mxu0 0.0
      %2206 = vmatpush.msra.mxu0 0.0
      %2207 = vmatpush.msra.mxu0 0.0
      %2208 = vmatpush.msra.mxu0 0.0
      %2209 = vmatpush.msra.mxu0 0.0
      %2210 = vmatpush.msra.mxu0 0.0
      %2211 = vmatpush.msra.mxu0 0.0
      %2212 = vmatpush.msra.mxu0 0.0
      %2213 = vmatpush.msra.mxu0 0.0
      %2214 = vmatpush.msra.mxu0 0.0
      %2215 = vmatpush.msra.mxu0 0.0
      %2216 = vmatpush.msra.mxu0 %v2134
      %2217 = vmatmul.f32.gmra.mxu0 %v2154
      %v2218 = vpop.f32.mrf.mxu0
      %v2219 = vadd.f32 0.0, %v2218
      %2220 = vmatmul.f32.gmra.mxu0 %v2157
      %v2221 = vpop.f32.mrf.mxu0
      %v2222 = vadd.f32 0.0, %v2221
      %2223 = vmatmul.f32.gmra.mxu0 %v2160
      %v2224 = vpop.f32.mrf.mxu0
      %v2225 = vadd.f32 0.0, %v2224
      %2226 = vmatmul.f32.gmra.mxu0 %v2163
      %v2227 = vpop.f32.mrf.mxu0
      %v2228 = vadd.f32 0.0, %v2227
      %2229 = vmatmul.f32.gmra.mxu0 %v2166
      %v2230 = vpop.f32.mrf.mxu0
      %v2231 = vadd.f32 0.0, %v2230
      %2232 = vmatmul.f32.gmra.mxu0 %v2169
      %v2233 = vpop.f32.mrf.mxu0
      %v2234 = vadd.f32 0.0, %v2233
      %2235 = vmatmul.f32.gmra.mxu0 %v2172
      %v2236 = vpop.f32.mrf.mxu0
      %v2237 = vadd.f32 0.0, %v2236
      %2238 = vmatmul.f32.gmra.mxu0 %v2175
      %v2239 = vpop.f32.mrf.mxu0
      %v2240 = vadd.f32 0.0, %v2239
      %2241 = vmatmul.f32.gmra.mxu0 %v2178
      %v2242 = vpop.f32.mrf.mxu0
      %v2243 = vadd.f32 0.0, %v2242
      %2244 = vmatmul.f32.gmra.mxu0 %v2181
      %v2245 = vpop.f32.mrf.mxu0
      %v2246 = vadd.f32 0.0, %v2245
      %2247 = vmatmul.f32.gmra.mxu0 %v2184
      %v2248 = vpop.f32.mrf.mxu0
      %v2249 = vadd.f32 0.0, %v2248
      %2250 = vmatmul.f32.gmra.mxu0 %v2187
      %v2251 = vpop.f32.mrf.mxu0
      %v2252 = vadd.f32 0.0, %v2251
      %2253 = vmatmul.f32.gmra.mxu0 %v2190
      %v2254 = vpop.f32.mrf.mxu0
      %v2255 = vadd.f32 0.0, %v2254
      %2256 = vmatmul.f32.gmra.mxu0 %v2193
      %v2257 = vpop.f32.mrf.mxu0
      %v2258 = vadd.f32 0.0, %v2257
      %2259 = vmatmul.f32.gmra.mxu0 %v2196
      %v2260 = vpop.f32.mrf.mxu0
      %v2261 = vadd.f32 0.0, %v2260
      %2262 = vmatmul.f32.gmra.mxu0 %v2199
      %v2263 = vpop.f32.mrf.mxu0
      %v2264 = vadd.f32 0.0, %v2263
      %2265 = vdwg.mxu0
      %v2266 = vadd.f32 %v2047, %v2219
      %v2267 = vadd.f32 %v2048, %v2222
      %v2268 = vadd.f32 %v2049, %v2225
      %v2269 = vadd.f32 %v2050, %v2228
      %v2270 = vadd.f32 %v2051, %v2231
      %v2271 = vadd.f32 %v2052, %v2234
      %v2272 = vadd.f32 %v2053, %v2237
      %v2273 = vadd.f32 %v2054, %v2240
      %v2274 = vadd.f32 %v2055, %v2243
      %v2275 = vadd.f32 %v2056, %v2246
      %v2276 = vadd.f32 %v2057, %v2249
      %v2277 = vadd.f32 %v2058, %v2252
      %v2278 = vadd.f32 %v2059, %v2255
      %v2279 = vadd.f32 %v2060, %v2258
      %v2280 = vadd.f32 %v2061, %v2261
      %v2281 = vadd.f32 %v2062, %v2264
      %s2282 = scalar_lea.vmem %s0, 2048
      %v2283 = vld [vmem:[%s2282] sm:$0xff]
      %v2284 = vld [vmem:[%s2282 + $0x8] sm:$0xff]
      %v2285 = vld [vmem:[%s2282 + $0x10] sm:$0xff]
      %v2286 = vld [vmem:[%s2282 + $0x18] sm:$0xff]
      %v2287 = vld [vmem:[%s2282 + $0x20] sm:$0xff]
      %v2288 = vld [vmem:[%s2282 + $0x28] sm:$0xff]
      %v2289 = vld [vmem:[%s2282 + $0x30] sm:$0xff]
      %v2290 = vld [vmem:[%s2282 + $0x38] sm:$0xff]
      %v2291 = vld [vmem:[%s2282 + $0x40] sm:$0xff]
      %v2292 = vld [vmem:[%s2282 + $0x48] sm:$0xff]
      %v2293 = vld [vmem:[%s2282 + $0x50] sm:$0xff]
      %v2294 = vld [vmem:[%s2282 + $0x58] sm:$0xff]
      %v2295 = vld [vmem:[%s2282 + $0x60] sm:$0xff]
      %v2296 = vld [vmem:[%s2282 + $0x68] sm:$0xff]
      %v2297 = vld [vmem:[%s2282 + $0x70] sm:$0xff]
      %v2298 = vld [vmem:[%s2282 + $0x78] sm:$0xff]
      %v2299 = vld [vmem:[%s2282 + $0x80] sm:$0xff]
      %v2300 = vld [vmem:[%s2282 + $0x88] sm:$0xff]
      %v2301 = vld [vmem:[%s2282 + $0x90] sm:$0xff]
      %v2302 = vld [vmem:[%s2282 + $0x98] sm:$0xff]
      %v2303 = vld [vmem:[%s2282 + $0xa0] sm:$0xff]
      %v2304 = vld [vmem:[%s2282 + $0xa8] sm:$0xff]
      %v2305 = vld [vmem:[%s2282 + $0xb0] sm:$0xff]
      %v2306 = vld [vmem:[%s2282 + $0xb8] sm:$0xff]
      %v2307 = vld [vmem:[%s2282 + $0xc0] sm:$0xff]
      %v2308 = vld [vmem:[%s2282 + $0xc8] sm:$0xff]
      %v2309 = vld [vmem:[%s2282 + $0xd0] sm:$0xff]
      %v2310 = vld [vmem:[%s2282 + $0xd8] sm:$0xff]
      %v2311 = vld [vmem:[%s2282 + $0xe0] sm:$0xff]
      %v2312 = vld [vmem:[%s2282 + $0xe8] sm:$0xff]
      %v2313 = vld [vmem:[%s2282 + $0xf0] sm:$0xff]
      %v2314 = vld [vmem:[%s2282 + $0xf8] sm:$0xff]
      %2315 = vmatpush.msra.mxu0 %v2298
      %2316 = vmatpush.msra.mxu0 %v2297
      %2317 = vmatpush.msra.mxu0 %v2296
      %2318 = vmatpush.msra.mxu0 %v2295
      %2319 = vmatpush.msra.mxu0 %v2294
      %2320 = vmatpush.msra.mxu0 %v2293
      %2321 = vmatpush.msra.mxu0 %v2292
      %2322 = vmatpush.msra.mxu0 %v2291
      %2323 = vmatpush.msra.mxu0 %v2290
      %2324 = vmatpush.msra.mxu0 %v2289
      %2325 = vmatpush.msra.mxu0 %v2288
      %2326 = vmatpush.msra.mxu0 %v2287
      %2327 = vmatpush.msra.mxu0 %v2286
      %2328 = vmatpush.msra.mxu0 %v2285
      %2329 = vmatpush.msra.mxu0 %v2284
      %2330 = vmatpush.msra.mxu0 %v2283
      %2331 = vmatmul.f32.gmra.mxu0 %v561
      %v2332 = vpop.f32.mrf.mxu0
      %v2333 = vadd.f32 0.0, %v2332
      %2334 = vdwg.mxu0
      %2335 = vmatpush.msra.mxu0 %v2314
      %2336 = vmatpush.msra.mxu0 %v2313
      %2337 = vmatpush.msra.mxu0 %v2312
      %2338 = vmatpush.msra.mxu0 %v2311
      %2339 = vmatpush.msra.mxu0 %v2310
      %2340 = vmatpush.msra.mxu0 %v2309
      %2341 = vmatpush.msra.mxu0 %v2308
      %2342 = vmatpush.msra.mxu0 %v2307
      %2343 = vmatpush.msra.mxu0 %v2306
      %2344 = vmatpush.msra.mxu0 %v2305
      %2345 = vmatpush.msra.mxu0 %v2304
      %2346 = vmatpush.msra.mxu0 %v2303
      %2347 = vmatpush.msra.mxu0 %v2302
      %2348 = vmatpush.msra.mxu0 %v2301
      %2349 = vmatpush.msra.mxu0 %v2300
      %2350 = vmatpush.msra.mxu0 %v2299
      %2351 = vmatmul.f32.gmra.mxu0 %v562
      %v2352 = vpop.f32.mrf.mxu0
      %v2353 = vadd.f32 %v2333, %v2352
      %2354 = vdwg.mxu0
      %s2355 = scalar_lea.vmem %s5, 1024
      %v2356 = vld [vmem:[%s2355] sm:$0xff]
      %v2357 = vld [vmem:[%s2355 + $0x8] sm:$0xff]
      %v2358 = vld [vmem:[%s2355 + $0x10] sm:$0xff]
      %v2359 = vld [vmem:[%s2355 + $0x18] sm:$0xff]
      %v2360 = vld [vmem:[%s2355 + $0x20] sm:$0xff]
      %v2361 = vld [vmem:[%s2355 + $0x28] sm:$0xff]
      %v2362 = vld [vmem:[%s2355 + $0x30] sm:$0xff]
      %v2363 = vld [vmem:[%s2355 + $0x38] sm:$0xff]
      %v2364 = vld [vmem:[%s2355 + $0x40] sm:$0xff]
      %v2365 = vld [vmem:[%s2355 + $0x48] sm:$0xff]
      %v2366 = vld [vmem:[%s2355 + $0x50] sm:$0xff]
      %v2367 = vld [vmem:[%s2355 + $0x58] sm:$0xff]
      %v2368 = vld [vmem:[%s2355 + $0x60] sm:$0xff]
      %v2369 = vld [vmem:[%s2355 + $0x68] sm:$0xff]
      %v2370 = vld [vmem:[%s2355 + $0x70] sm:$0xff]
      %v2371 = vld [vmem:[%s2355 + $0x78] sm:$0xff]
      %v2373 = vsel %vm741, %v2356, 0
      %v2376 = vsel %vm741, %v2357, 0
      %v2379 = vsel %vm741, %v2358, 0
      %v2382 = vsel %vm741, %v2359, 0
      %v2385 = vsel %vm741, %v2360, 0
      %v2388 = vsel %vm741, %v2361, 0
      %v2391 = vsel %vm741, %v2362, 0
      %v2394 = vsel %vm741, %v2363, 0
      %v2397 = vsel %vm741, %v2364, 0
      %v2400 = vsel %vm741, %v2365, 0
      %v2403 = vsel %vm741, %v2366, 0
      %v2406 = vsel %vm741, %v2367, 0
      %v2409 = vsel %vm741, %v2368, 0
      %v2412 = vsel %vm741, %v2369, 0
      %v2415 = vsel %vm741, %v2370, 0
      %v2418 = vsel %vm741, %v2371, 0
      %2420 = vmatpush.msra.mxu0 0.0
      %2421 = vmatpush.msra.mxu0 0.0
      %2422 = vmatpush.msra.mxu0 0.0
      %2423 = vmatpush.msra.mxu0 0.0
      %2424 = vmatpush.msra.mxu0 0.0
      %2425 = vmatpush.msra.mxu0 0.0
      %2426 = vmatpush.msra.mxu0 0.0
      %2427 = vmatpush.msra.mxu0 0.0
      %2428 = vmatpush.msra.mxu0 0.0
      %2429 = vmatpush.msra.mxu0 0.0
      %2430 = vmatpush.msra.mxu0 0.0
      %2431 = vmatpush.msra.mxu0 0.0
      %2432 = vmatpush.msra.mxu0 0.0
      %2433 = vmatpush.msra.mxu0 0.0
      %2434 = vmatpush.msra.mxu0 0.0
      %2435 = vmatpush.msra.mxu0 %v2353
      %2436 = vmatmul.f32.gmra.mxu0 %v2373
      %v2437 = vpop.f32.mrf.mxu0
      %v2438 = vadd.f32 0.0, %v2437
      %2439 = vmatmul.f32.gmra.mxu0 %v2376
      %v2440 = vpop.f32.mrf.mxu0
      %v2441 = vadd.f32 0.0, %v2440
      %2442 = vmatmul.f32.gmra.mxu0 %v2379
      %v2443 = vpop.f32.mrf.mxu0
      %v2444 = vadd.f32 0.0, %v2443
      %2445 = vmatmul.f32.gmra.mxu0 %v2382
      %v2446 = vpop.f32.mrf.mxu0
      %v2447 = vadd.f32 0.0, %v2446
      %2448 = vmatmul.f32.gmra.mxu0 %v2385
      %v2449 = vpop.f32.mrf.mxu0
      %v2450 = vadd.f32 0.0, %v2449
      %2451 = vmatmul.f32.gmra.mxu0 %v2388
      %v2452 = vpop.f32.mrf.mxu0
      %v2453 = vadd.f32 0.0, %v2452
      %2454 = vmatmul.f32.gmra.mxu0 %v2391
      %v2455 = vpop.f32.mrf.mxu0
      %v2456 = vadd.f32 0.0, %v2455
      %2457 = vmatmul.f32.gmra.mxu0 %v2394
      %v2458 = vpop.f32.mrf.mxu0
      %v2459 = vadd.f32 0.0, %v2458
      %2460 = vmatmul.f32.gmra.mxu0 %v2397
      %v2461 = vpop.f32.mrf.mxu0
      %v2462 = vadd.f32 0.0, %v2461
      %2463 = vmatmul.f32.gmra.mxu0 %v2400
      %v2464 = vpop.f32.mrf.mxu0
      %v2465 = vadd.f32 0.0, %v2464
      %2466 = vmatmul.f32.gmra.mxu0 %v2403
      %v2467 = vpop.f32.mrf.mxu0
      %v2468 = vadd.f32 0.0, %v2467
      %2469 = vmatmul.f32.gmra.mxu0 %v2406
      %v2470 = vpop.f32.mrf.mxu0
      %v2471 = vadd.f32 0.0, %v2470
      %2472 = vmatmul.f32.gmra.mxu0 %v2409
      %v2473 = vpop.f32.mrf.mxu0
      %v2474 = vadd.f32 0.0, %v2473
      %2475 = vmatmul.f32.gmra.mxu0 %v2412
      %v2476 = vpop.f32.mrf.mxu0
      %v2477 = vadd.f32 0.0, %v2476
      %2478 = vmatmul.f32.gmra.mxu0 %v2415
      %v2479 = vpop.f32.mrf.mxu0
      %v2480 = vadd.f32 0.0, %v2479
      %2481 = vmatmul.f32.gmra.mxu0 %v2418
      %v2482 = vpop.f32.mrf.mxu0
      %v2483 = vadd.f32 0.0, %v2482
      %2484 = vdwg.mxu0
      %v2485 = vadd.f32 %v2266, %v2438
      %v2486 = vadd.f32 %v2267, %v2441
      %v2487 = vadd.f32 %v2268, %v2444
      %v2488 = vadd.f32 %v2269, %v2447
      %v2489 = vadd.f32 %v2270, %v2450
      %v2490 = vadd.f32 %v2271, %v2453
      %v2491 = vadd.f32 %v2272, %v2456
      %v2492 = vadd.f32 %v2273, %v2459
      %v2493 = vadd.f32 %v2274, %v2462
      %v2494 = vadd.f32 %v2275, %v2465
      %v2495 = vadd.f32 %v2276, %v2468
      %v2496 = vadd.f32 %v2277, %v2471
      %v2497 = vadd.f32 %v2278, %v2474
      %v2498 = vadd.f32 %v2279, %v2477
      %v2499 = vadd.f32 %v2280, %v2480
      %v2500 = vadd.f32 %v2281, %v2483
      %v2501 = vld [vmem:[%s6] sm:$0xff]
      %v2502 = vld [vmem:[%s6 + $0x8] sm:$0xff]
      %v2503 = vld [vmem:[%s6 + $0x10] sm:$0xff]
      %v2504 = vld [vmem:[%s6 + $0x18] sm:$0xff]
      %v2505 = vld [vmem:[%s6 + $0x20] sm:$0xff]
      %v2506 = vld [vmem:[%s6 + $0x28] sm:$0xff]
      %v2507 = vld [vmem:[%s6 + $0x30] sm:$0xff]
      %v2508 = vld [vmem:[%s6 + $0x38] sm:$0xff]
      %v2509 = vld [vmem:[%s6 + $0x40] sm:$0xff]
      %v2510 = vld [vmem:[%s6 + $0x48] sm:$0xff]
      %v2511 = vld [vmem:[%s6 + $0x50] sm:$0xff]
      %v2512 = vld [vmem:[%s6 + $0x58] sm:$0xff]
      %v2513 = vld [vmem:[%s6 + $0x60] sm:$0xff]
      %v2514 = vld [vmem:[%s6 + $0x68] sm:$0xff]
      %v2515 = vld [vmem:[%s6 + $0x70] sm:$0xff]
      %v2516 = vld [vmem:[%s6 + $0x78] sm:$0xff]
      %2518 = vset.pattern.permute.xlu0 0
      %2519 = vperm.xlu0 %2518, %v2501
      %v2520 = vpop.permute.xlu0 %2519
      %2523 = vset.pattern.permute.xlu0 0
      %2524 = vperm.xlu0 %2523, %v2502
      %v2525 = vpop.permute.xlu0 %2524
      %2528 = vset.pattern.permute.xlu0 0
      %2529 = vperm.xlu0 %2528, %v2503
      %v2530 = vpop.permute.xlu0 %2529
      %2533 = vset.pattern.permute.xlu0 0
      %2534 = vperm.xlu0 %2533, %v2504
      %v2535 = vpop.permute.xlu0 %2534
      %2538 = vset.pattern.permute.xlu0 0
      %2539 = vperm.xlu0 %2538, %v2505
      %v2540 = vpop.permute.xlu0 %2539
      %2543 = vset.pattern.permute.xlu0 0
      %2544 = vperm.xlu0 %2543, %v2506
      %v2545 = vpop.permute.xlu0 %2544
      %2548 = vset.pattern.permute.xlu0 0
      %2549 = vperm.xlu0 %2548, %v2507
      %v2550 = vpop.permute.xlu0 %2549
      %2553 = vset.pattern.permute.xlu0 0
      %2554 = vperm.xlu0 %2553, %v2508
      %v2555 = vpop.permute.xlu0 %2554
      %2558 = vset.pattern.permute.xlu0 0
      %2559 = vperm.xlu0 %2558, %v2509
      %v2560 = vpop.permute.xlu0 %2559
      %2563 = vset.pattern.permute.xlu0 0
      %2564 = vperm.xlu0 %2563, %v2510
      %v2565 = vpop.permute.xlu0 %2564
      %2568 = vset.pattern.permute.xlu0 0
      %2569 = vperm.xlu0 %2568, %v2511
      %v2570 = vpop.permute.xlu0 %2569
      %2573 = vset.pattern.permute.xlu0 0
      %2574 = vperm.xlu0 %2573, %v2512
      %v2575 = vpop.permute.xlu0 %2574
      %2578 = vset.pattern.permute.xlu0 0
      %2579 = vperm.xlu0 %2578, %v2513
      %v2580 = vpop.permute.xlu0 %2579
      %2583 = vset.pattern.permute.xlu0 0
      %2584 = vperm.xlu0 %2583, %v2514
      %v2585 = vpop.permute.xlu0 %2584
      %2588 = vset.pattern.permute.xlu0 0
      %2589 = vperm.xlu0 %2588, %v2515
      %v2590 = vpop.permute.xlu0 %2589
      %2593 = vset.pattern.permute.xlu0 0
      %2594 = vperm.xlu0 %2593, %v2516
      %v2595 = vpop.permute.xlu0 %2594
      %v2597 = vmul.f32 %v2485, %v2520
      %v2598 = vmul.f32 %v2486, %v2525
      %v2599 = vmul.f32 %v2487, %v2530
      %v2600 = vmul.f32 %v2488, %v2535
      %v2601 = vmul.f32 %v2489, %v2540
      %v2602 = vmul.f32 %v2490, %v2545
      %v2603 = vmul.f32 %v2491, %v2550
      %v2604 = vmul.f32 %v2492, %v2555
      %v2605 = vmul.f32 %v2493, %v2560
      %v2606 = vmul.f32 %v2494, %v2565
      %v2607 = vmul.f32 %v2495, %v2570
      %v2608 = vmul.f32 %v2496, %v2575
      %v2609 = vmul.f32 %v2497, %v2580
      %v2610 = vmul.f32 %v2498, %v2585
      %v2611 = vmul.f32 %v2499, %v2590
      %v2612 = vmul.f32 %v2500, %v2595
      %v2613 = vld [vmem:[%s7] sm:$0xff]
      %v2614 = vld [vmem:[%s7 + $0x8] sm:$0xff]
      %v2615 = vld [vmem:[%s7 + $0x10] sm:$0xff]
      %v2616 = vld [vmem:[%s7 + $0x18] sm:$0xff]
      %v2617 = vld [vmem:[%s7 + $0x20] sm:$0xff]
      %v2618 = vld [vmem:[%s7 + $0x28] sm:$0xff]
      %v2619 = vld [vmem:[%s7 + $0x30] sm:$0xff]
      %v2620 = vld [vmem:[%s7 + $0x38] sm:$0xff]
      %v2621 = vld [vmem:[%s7 + $0x40] sm:$0xff]
      %v2622 = vld [vmem:[%s7 + $0x48] sm:$0xff]
      %v2623 = vld [vmem:[%s7 + $0x50] sm:$0xff]
      %v2624 = vld [vmem:[%s7 + $0x58] sm:$0xff]
      %v2625 = vld [vmem:[%s7 + $0x60] sm:$0xff]
      %v2626 = vld [vmem:[%s7 + $0x68] sm:$0xff]
      %v2627 = vld [vmem:[%s7 + $0x70] sm:$0xff]
      %v2628 = vld [vmem:[%s7 + $0x78] sm:$0xff]
      %2630 = vset.pattern.permute.xlu0 0
      %2631 = vperm.xlu0 %2630, %v2613
      %v2632 = vpop.permute.xlu0 %2631
      %2635 = vset.pattern.permute.xlu0 0
      %2636 = vperm.xlu0 %2635, %v2614
      %v2637 = vpop.permute.xlu0 %2636
      %2640 = vset.pattern.permute.xlu0 0
      %2641 = vperm.xlu0 %2640, %v2615
      %v2642 = vpop.permute.xlu0 %2641
      %2645 = vset.pattern.permute.xlu0 0
      %2646 = vperm.xlu0 %2645, %v2616
      %v2647 = vpop.permute.xlu0 %2646
      %2650 = vset.pattern.permute.xlu0 0
      %2651 = vperm.xlu0 %2650, %v2617
      %v2652 = vpop.permute.xlu0 %2651
      %2655 = vset.pattern.permute.xlu0 0
      %2656 = vperm.xlu0 %2655, %v2618
      %v2657 = vpop.permute.xlu0 %2656
      %2660 = vset.pattern.permute.xlu0 0
      %2661 = vperm.xlu0 %2660, %v2619
      %v2662 = vpop.permute.xlu0 %2661
      %2665 = vset.pattern.permute.xlu0 0
      %2666 = vperm.xlu0 %2665, %v2620
      %v2667 = vpop.permute.xlu0 %2666
      %2670 = vset.pattern.permute.xlu0 0
      %2671 = vperm.xlu0 %2670, %v2621
      %v2672 = vpop.permute.xlu0 %2671
      %2675 = vset.pattern.permute.xlu0 0
      %2676 = vperm.xlu0 %2675, %v2622
      %v2677 = vpop.permute.xlu0 %2676
      %2680 = vset.pattern.permute.xlu0 0
      %2681 = vperm.xlu0 %2680, %v2623
      %v2682 = vpop.permute.xlu0 %2681
      %2685 = vset.pattern.permute.xlu0 0
      %2686 = vperm.xlu0 %2685, %v2624
      %v2687 = vpop.permute.xlu0 %2686
      %2690 = vset.pattern.permute.xlu0 0
      %2691 = vperm.xlu0 %2690, %v2625
      %v2692 = vpop.permute.xlu0 %2691
      %2695 = vset.pattern.permute.xlu0 0
      %2696 = vperm.xlu0 %2695, %v2626
      %v2697 = vpop.permute.xlu0 %2696
      %2700 = vset.pattern.permute.xlu0 0
      %2701 = vperm.xlu0 %2700, %v2627
      %v2702 = vpop.permute.xlu0 %2701
      %2705 = vset.pattern.permute.xlu0 0
      %2706 = vperm.xlu0 %2705, %v2628
      %v2707 = vpop.permute.xlu0 %2706
      %v2709 = vadd.f32 %v2597, %v2632
      %v2710 = vadd.f32 %v2598, %v2637
      %v2711 = vadd.f32 %v2599, %v2642
      %v2712 = vadd.f32 %v2600, %v2647
      %v2713 = vadd.f32 %v2601, %v2652
      %v2714 = vadd.f32 %v2602, %v2657
      %v2715 = vadd.f32 %v2603, %v2662
      %v2716 = vadd.f32 %v2604, %v2667
      %v2717 = vadd.f32 %v2605, %v2672
      %v2718 = vadd.f32 %v2606, %v2677
      %v2719 = vadd.f32 %v2607, %v2682
      %v2720 = vadd.f32 %v2608, %v2687
      %v2721 = vadd.f32 %v2609, %v2692
      %v2722 = vadd.f32 %v2610, %v2697
      %v2723 = vadd.f32 %v2611, %v2702
      %v2724 = vadd.f32 %v2612, %v2707
      %v2725 = vmax.f32 %v2709, 0.0
      %v2726 = vmax.f32 %v2710, 0.0
      %v2727 = vmax.f32 %v2711, 0.0
      %v2728 = vmax.f32 %v2712, 0.0
      %v2729 = vmax.f32 %v2713, 0.0
      %v2730 = vmax.f32 %v2714, 0.0
      %v2731 = vmax.f32 %v2715, 0.0
      %v2732 = vmax.f32 %v2716, 0.0
      %v2733 = vmax.f32 %v2717, 0.0
      %v2734 = vmax.f32 %v2718, 0.0
      %v2735 = vmax.f32 %v2719, 0.0
      %v2736 = vmax.f32 %v2720, 0.0
      %v2737 = vmax.f32 %v2721, 0.0
      %v2738 = vmax.f32 %v2722, 0.0
      %v2739 = vmax.f32 %v2723, 0.0
      %v2740 = vmax.f32 %v2724, 0.0
      %v2741 = vld [vmem:[%s1] sm:$0xff]
      %v2742 = vld [vmem:[%s1 + $0x8] sm:$0xff]
      %v2743 = vld [vmem:[%s1 + $0x10] sm:$0xff]
      %v2744 = vld [vmem:[%s1 + $0x18] sm:$0xff]
      %v2745 = vld [vmem:[%s1 + $0x20] sm:$0xff]
      %v2746 = vld [vmem:[%s1 + $0x28] sm:$0xff]
      %v2747 = vld [vmem:[%s1 + $0x30] sm:$0xff]
      %v2748 = vld [vmem:[%s1 + $0x38] sm:$0xff]
      %vm2749 = vcmask 523264
      %v2751 = vsel %vm2749, %v2725, 0
      %v2754 = vsel %vm2749, %v2726, 0
      %v2757 = vsel %vm2749, %v2727, 0
      %v2760 = vsel %vm2749, %v2728, 0
      %v2763 = vsel %vm2749, %v2729, 0
      %v2766 = vsel %vm2749, %v2730, 0
      %v2769 = vsel %vm2749, %v2731, 0
      %v2772 = vsel %vm2749, %v2732, 0
      %v2775 = vsel %vm2749, %v2733, 0
      %v2778 = vsel %vm2749, %v2734, 0
      %v2781 = vsel %vm2749, %v2735, 0
      %v2784 = vsel %vm2749, %v2736, 0
      %v2787 = vsel %vm2749, %v2737, 0
      %v2790 = vsel %vm2749, %v2738, 0
      %v2793 = vsel %vm2749, %v2739, 0
      %v2796 = vsel %vm2749, %v2740, 0
      %2798 = vmatpush.msra.mxu0 0.0
      %2799 = vmatpush.msra.mxu0 0.0
      %2800 = vmatpush.msra.mxu0 0.0
      %2801 = vmatpush.msra.mxu0 0.0
      %2802 = vmatpush.msra.mxu0 0.0
      %2803 = vmatpush.msra.mxu0 0.0
      %2804 = vmatpush.msra.mxu0 0.0
      %2805 = vmatpush.msra.mxu0 0.0
      %2806 = vmatpush.msra.mxu0 %v2748
      %2807 = vmatpush.msra.mxu0 %v2747
      %2808 = vmatpush.msra.mxu0 %v2746
      %2809 = vmatpush.msra.mxu0 %v2745
      %2810 = vmatpush.msra.mxu0 %v2744
      %2811 = vmatpush.msra.mxu0 %v2743
      %2812 = vmatpush.msra.mxu0 %v2742
      %2813 = vmatpush.msra.mxu0 %v2741
      %2814 = vmatmul.f32.gmra.mxu0 %v2751
      %v2815 = vpop.f32.mrf.mxu0
      %v2816 = vadd.f32 0.0, %v2815
      %2817 = vmatmul.f32.gmra.mxu0 %v2754
      %v2818 = vpop.f32.mrf.mxu0
      %v2819 = vadd.f32 0.0, %v2818
      %2820 = vmatmul.f32.gmra.mxu0 %v2757
      %v2821 = vpop.f32.mrf.mxu0
      %v2822 = vadd.f32 0.0, %v2821
      %2823 = vmatmul.f32.gmra.mxu0 %v2760
      %v2824 = vpop.f32.mrf.mxu0
      %v2825 = vadd.f32 0.0, %v2824
      %2826 = vmatmul.f32.gmra.mxu0 %v2763
      %v2827 = vpop.f32.mrf.mxu0
      %v2828 = vadd.f32 0.0, %v2827
      %2829 = vmatmul.f32.gmra.mxu0 %v2766
      %v2830 = vpop.f32.mrf.mxu0
      %v2831 = vadd.f32 0.0, %v2830
      %2832 = vmatmul.f32.gmra.mxu0 %v2769
      %v2833 = vpop.f32.mrf.mxu0
      %v2834 = vadd.f32 0.0, %v2833
      %2835 = vmatmul.f32.gmra.mxu0 %v2772
      %v2836 = vpop.f32.mrf.mxu0
      %v2837 = vadd.f32 0.0, %v2836
      %2838 = vmatmul.f32.gmra.mxu0 %v2775
      %v2839 = vpop.f32.mrf.mxu0
      %v2840 = vadd.f32 0.0, %v2839
      %2841 = vmatmul.f32.gmra.mxu0 %v2778
      %v2842 = vpop.f32.mrf.mxu0
      %v2843 = vadd.f32 0.0, %v2842
      %2844 = vmatmul.f32.gmra.mxu0 %v2781
      %v2845 = vpop.f32.mrf.mxu0
      %v2846 = vadd.f32 0.0, %v2845
      %2847 = vmatmul.f32.gmra.mxu0 %v2784
      %v2848 = vpop.f32.mrf.mxu0
      %v2849 = vadd.f32 0.0, %v2848
      %2850 = vmatmul.f32.gmra.mxu0 %v2787
      %v2851 = vpop.f32.mrf.mxu0
      %v2852 = vadd.f32 0.0, %v2851
      %2853 = vmatmul.f32.gmra.mxu0 %v2790
      %v2854 = vpop.f32.mrf.mxu0
      %v2855 = vadd.f32 0.0, %v2854
      %2856 = vmatmul.f32.gmra.mxu0 %v2793
      %v2857 = vpop.f32.mrf.mxu0
      %v2858 = vadd.f32 0.0, %v2857
      %2859 = vmatmul.f32.gmra.mxu0 %v2796
      %v2860 = vpop.f32.mrf.mxu0
      %v2861 = vadd.f32 0.0, %v2860
      %2862 = vdwg.mxu0
      %s2863 = scalar_lea.vmem %s1, 64
      %v2864 = vld [vmem:[%s2863] sm:$0xff]
      %v2865 = vld [vmem:[%s2863 + $0x8] sm:$0xff]
      %v2866 = vld [vmem:[%s2863 + $0x10] sm:$0xff]
      %v2867 = vld [vmem:[%s2863 + $0x18] sm:$0xff]
      %v2868 = vld [vmem:[%s2863 + $0x20] sm:$0xff]
      %v2869 = vld [vmem:[%s2863 + $0x28] sm:$0xff]
      %v2870 = vld [vmem:[%s2863 + $0x30] sm:$0xff]
      %v2871 = vld [vmem:[%s2863 + $0x38] sm:$0xff]
      %2872 = vmatpush.msra.mxu0 0.0
      %2873 = vmatpush.msra.mxu0 0.0
      %2874 = vmatpush.msra.mxu0 0.0
      %2875 = vmatpush.msra.mxu0 0.0
      %2876 = vmatpush.msra.mxu0 0.0
      %2877 = vmatpush.msra.mxu0 0.0
      %2878 = vmatpush.msra.mxu0 0.0
      %2879 = vmatpush.msra.mxu0 0.0
      %2880 = vmatpush.msra.mxu0 %v2871
      %2881 = vmatpush.msra.mxu0 %v2870
      %2882 = vmatpush.msra.mxu0 %v2869
      %2883 = vmatpush.msra.mxu0 %v2868
      %2884 = vmatpush.msra.mxu0 %v2867
      %2885 = vmatpush.msra.mxu0 %v2866
      %2886 = vmatpush.msra.mxu0 %v2865
      %2887 = vmatpush.msra.mxu0 %v2864
      %2888 = vmatmul.f32.gmra.mxu0 %v2751
      %v2889 = vpop.f32.mrf.mxu0
      %v2890 = vadd.f32 0.0, %v2889
      %2891 = vmatmul.f32.gmra.mxu0 %v2754
      %v2892 = vpop.f32.mrf.mxu0
      %v2893 = vadd.f32 0.0, %v2892
      %2894 = vmatmul.f32.gmra.mxu0 %v2757
      %v2895 = vpop.f32.mrf.mxu0
      %v2896 = vadd.f32 0.0, %v2895
      %2897 = vmatmul.f32.gmra.mxu0 %v2760
      %v2898 = vpop.f32.mrf.mxu0
      %v2899 = vadd.f32 0.0, %v2898
      %2900 = vmatmul.f32.gmra.mxu0 %v2763
      %v2901 = vpop.f32.mrf.mxu0
      %v2902 = vadd.f32 0.0, %v2901
      %2903 = vmatmul.f32.gmra.mxu0 %v2766
      %v2904 = vpop.f32.mrf.mxu0
      %v2905 = vadd.f32 0.0, %v2904
      %2906 = vmatmul.f32.gmra.mxu0 %v2769
      %v2907 = vpop.f32.mrf.mxu0
      %v2908 = vadd.f32 0.0, %v2907
      %2909 = vmatmul.f32.gmra.mxu0 %v2772
      %v2910 = vpop.f32.mrf.mxu0
      %v2911 = vadd.f32 0.0, %v2910
      %2912 = vmatmul.f32.gmra.mxu0 %v2775
      %v2913 = vpop.f32.mrf.mxu0
      %v2914 = vadd.f32 0.0, %v2913
      %2915 = vmatmul.f32.gmra.mxu0 %v2778
      %v2916 = vpop.f32.mrf.mxu0
      %v2917 = vadd.f32 0.0, %v2916
      %2918 = vmatmul.f32.gmra.mxu0 %v2781
      %v2919 = vpop.f32.mrf.mxu0
      %v2920 = vadd.f32 0.0, %v2919
      %2921 = vmatmul.f32.gmra.mxu0 %v2784
      %v2922 = vpop.f32.mrf.mxu0
      %v2923 = vadd.f32 0.0, %v2922
      %2924 = vmatmul.f32.gmra.mxu0 %v2787
      %v2925 = vpop.f32.mrf.mxu0
      %v2926 = vadd.f32 0.0, %v2925
      %2927 = vmatmul.f32.gmra.mxu0 %v2790
      %v2928 = vpop.f32.mrf.mxu0
      %v2929 = vadd.f32 0.0, %v2928
      %2930 = vmatmul.f32.gmra.mxu0 %v2793
      %v2931 = vpop.f32.mrf.mxu0
      %v2932 = vadd.f32 0.0, %v2931
      %2933 = vmatmul.f32.gmra.mxu0 %v2796
      %v2934 = vpop.f32.mrf.mxu0
      %v2935 = vadd.f32 0.0, %v2934
      %2936 = vdwg.mxu0
      %v2937 = vmax.f32 %v2816, %v2890
      %v2938 = vmax.f32 %v2819, %v2893
      %v2939 = vmax.f32 %v2822, %v2896
      %v2940 = vmax.f32 %v2825, %v2899
      %v2941 = vmax.f32 %v2828, %v2902
      %v2942 = vmax.f32 %v2831, %v2905
      %v2943 = vmax.f32 %v2834, %v2908
      %v2944 = vmax.f32 %v2837, %v2911
      %v2945 = vmax.f32 %v2840, %v2914
      %v2946 = vmax.f32 %v2843, %v2917
      %v2947 = vmax.f32 %v2846, %v2920
      %v2948 = vmax.f32 %v2849, %v2923
      %v2949 = vmax.f32 %v2852, %v2926
      %v2950 = vmax.f32 %v2855, %v2929
      %v2951 = vmax.f32 %v2858, %v2932
      %v2952 = vmax.f32 %v2861, %v2935
      %s2953 = scalar_lea.vmem %s1, 128
      %v2954 = vld [vmem:[%s2953] sm:$0xff]
      %v2955 = vld [vmem:[%s2953 + $0x8] sm:$0xff]
      %v2956 = vld [vmem:[%s2953 + $0x10] sm:$0xff]
      %v2957 = vld [vmem:[%s2953 + $0x18] sm:$0xff]
      %v2958 = vld [vmem:[%s2953 + $0x20] sm:$0xff]
      %v2959 = vld [vmem:[%s2953 + $0x28] sm:$0xff]
      %v2960 = vld [vmem:[%s2953 + $0x30] sm:$0xff]
      %v2961 = vld [vmem:[%s2953 + $0x38] sm:$0xff]
      %2962 = vmatpush.msra.mxu0 0.0
      %2963 = vmatpush.msra.mxu0 0.0
      %2964 = vmatpush.msra.mxu0 0.0
      %2965 = vmatpush.msra.mxu0 0.0
      %2966 = vmatpush.msra.mxu0 0.0
      %2967 = vmatpush.msra.mxu0 0.0
      %2968 = vmatpush.msra.mxu0 0.0
      %2969 = vmatpush.msra.mxu0 0.0
      %2970 = vmatpush.msra.mxu0 %v2961
      %2971 = vmatpush.msra.mxu0 %v2960
      %2972 = vmatpush.msra.mxu0 %v2959
      %2973 = vmatpush.msra.mxu0 %v2958
      %2974 = vmatpush.msra.mxu0 %v2957
      %2975 = vmatpush.msra.mxu0 %v2956
      %2976 = vmatpush.msra.mxu0 %v2955
      %2977 = vmatpush.msra.mxu0 %v2954
      %2978 = vmatmul.f32.gmra.mxu0 %v2751
      %v2979 = vpop.f32.mrf.mxu0
      %v2980 = vadd.f32 0.0, %v2979
      %2981 = vmatmul.f32.gmra.mxu0 %v2754
      %v2982 = vpop.f32.mrf.mxu0
      %v2983 = vadd.f32 0.0, %v2982
      %2984 = vmatmul.f32.gmra.mxu0 %v2757
      %v2985 = vpop.f32.mrf.mxu0
      %v2986 = vadd.f32 0.0, %v2985
      %2987 = vmatmul.f32.gmra.mxu0 %v2760
      %v2988 = vpop.f32.mrf.mxu0
      %v2989 = vadd.f32 0.0, %v2988
      %2990 = vmatmul.f32.gmra.mxu0 %v2763
      %v2991 = vpop.f32.mrf.mxu0
      %v2992 = vadd.f32 0.0, %v2991
      %2993 = vmatmul.f32.gmra.mxu0 %v2766
      %v2994 = vpop.f32.mrf.mxu0
      %v2995 = vadd.f32 0.0, %v2994
      %2996 = vmatmul.f32.gmra.mxu0 %v2769
      %v2997 = vpop.f32.mrf.mxu0
      %v2998 = vadd.f32 0.0, %v2997
      %2999 = vmatmul.f32.gmra.mxu0 %v2772
      %v3000 = vpop.f32.mrf.mxu0
      %v3001 = vadd.f32 0.0, %v3000
      %3002 = vmatmul.f32.gmra.mxu0 %v2775
      %v3003 = vpop.f32.mrf.mxu0
      %v3004 = vadd.f32 0.0, %v3003
      %3005 = vmatmul.f32.gmra.mxu0 %v2778
      %v3006 = vpop.f32.mrf.mxu0
      %v3007 = vadd.f32 0.0, %v3006
      %3008 = vmatmul.f32.gmra.mxu0 %v2781
      %v3009 = vpop.f32.mrf.mxu0
      %v3010 = vadd.f32 0.0, %v3009
      %3011 = vmatmul.f32.gmra.mxu0 %v2784
      %v3012 = vpop.f32.mrf.mxu0
      %v3013 = vadd.f32 0.0, %v3012
      %3014 = vmatmul.f32.gmra.mxu0 %v2787
      %v3015 = vpop.f32.mrf.mxu0
      %v3016 = vadd.f32 0.0, %v3015
      %3017 = vmatmul.f32.gmra.mxu0 %v2790
      %v3018 = vpop.f32.mrf.mxu0
      %v3019 = vadd.f32 0.0, %v3018
      %3020 = vmatmul.f32.gmra.mxu0 %v2793
      %v3021 = vpop.f32.mrf.mxu0
      %v3022 = vadd.f32 0.0, %v3021
      %3023 = vmatmul.f32.gmra.mxu0 %v2796
      %v3024 = vpop.f32.mrf.mxu0
      %v3025 = vadd.f32 0.0, %v3024
      %3026 = vdwg.mxu0
      %v3027 = vmax.f32 %v2937, %v2980
      %v3028 = vmax.f32 %v2938, %v2983
      %v3029 = vmax.f32 %v2939, %v2986
      %v3030 = vmax.f32 %v2940, %v2989
      %v3031 = vmax.f32 %v2941, %v2992
      %v3032 = vmax.f32 %v2942, %v2995
      %v3033 = vmax.f32 %v2943, %v2998
      %v3034 = vmax.f32 %v2944, %v3001
      %v3035 = vmax.f32 %v2945, %v3004
      %v3036 = vmax.f32 %v2946, %v3007
      %v3037 = vmax.f32 %v2947, %v3010
      %v3038 = vmax.f32 %v2948, %v3013
      %v3039 = vmax.f32 %v2949, %v3016
      %v3040 = vmax.f32 %v2950, %v3019
      %v3041 = vmax.f32 %v2951, %v3022
      %v3042 = vmax.f32 %v2952, %v3025
      %s3043 = scalar_lea.vmem %s1, 192
      %v3044 = vld [vmem:[%s3043] sm:$0xff]
      %v3045 = vld [vmem:[%s3043 + $0x8] sm:$0xff]
      %v3046 = vld [vmem:[%s3043 + $0x10] sm:$0xff]
      %v3047 = vld [vmem:[%s3043 + $0x18] sm:$0xff]
      %v3048 = vld [vmem:[%s3043 + $0x20] sm:$0xff]
      %v3049 = vld [vmem:[%s3043 + $0x28] sm:$0xff]
      %v3050 = vld [vmem:[%s3043 + $0x30] sm:$0xff]
      %v3051 = vld [vmem:[%s3043 + $0x38] sm:$0xff]
      %3052 = vmatpush.msra.mxu0 0.0
      %3053 = vmatpush.msra.mxu0 0.0
      %3054 = vmatpush.msra.mxu0 0.0
      %3055 = vmatpush.msra.mxu0 0.0
      %3056 = vmatpush.msra.mxu0 0.0
      %3057 = vmatpush.msra.mxu0 0.0
      %3058 = vmatpush.msra.mxu0 0.0
      %3059 = vmatpush.msra.mxu0 0.0
      %3060 = vmatpush.msra.mxu0 %v3051
      %3061 = vmatpush.msra.mxu0 %v3050
      %3062 = vmatpush.msra.mxu0 %v3049
      %3063 = vmatpush.msra.mxu0 %v3048
      %3064 = vmatpush.msra.mxu0 %v3047
      %3065 = vmatpush.msra.mxu0 %v3046
      %3066 = vmatpush.msra.mxu0 %v3045
      %3067 = vmatpush.msra.mxu0 %v3044
      %3068 = vmatmul.f32.gmra.mxu0 %v2751
      %v3069 = vpop.f32.mrf.mxu0
      %v3070 = vadd.f32 0.0, %v3069
      %3071 = vmatmul.f32.gmra.mxu0 %v2754
      %v3072 = vpop.f32.mrf.mxu0
      %v3073 = vadd.f32 0.0, %v3072
      %3074 = vmatmul.f32.gmra.mxu0 %v2757
      %v3075 = vpop.f32.mrf.mxu0
      %v3076 = vadd.f32 0.0, %v3075
      %3077 = vmatmul.f32.gmra.mxu0 %v2760
      %v3078 = vpop.f32.mrf.mxu0
      %v3079 = vadd.f32 0.0, %v3078
      %3080 = vmatmul.f32.gmra.mxu0 %v2763
      %v3081 = vpop.f32.mrf.mxu0
      %v3082 = vadd.f32 0.0, %v3081
      %3083 = vmatmul.f32.gmra.mxu0 %v2766
      %v3084 = vpop.f32.mrf.mxu0
      %v3085 = vadd.f32 0.0, %v3084
      %3086 = vmatmul.f32.gmra.mxu0 %v2769
      %v3087 = vpop.f32.mrf.mxu0
      %v3088 = vadd.f32 0.0, %v3087
      %3089 = vmatmul.f32.gmra.mxu0 %v2772
      %v3090 = vpop.f32.mrf.mxu0
      %v3091 = vadd.f32 0.0, %v3090
      %3092 = vmatmul.f32.gmra.mxu0 %v2775
      %v3093 = vpop.f32.mrf.mxu0
      %v3094 = vadd.f32 0.0, %v3093
      %3095 = vmatmul.f32.gmra.mxu0 %v2778
      %v3096 = vpop.f32.mrf.mxu0
      %v3097 = vadd.f32 0.0, %v3096
      %3098 = vmatmul.f32.gmra.mxu0 %v2781
      %v3099 = vpop.f32.mrf.mxu0
      %v3100 = vadd.f32 0.0, %v3099
      %3101 = vmatmul.f32.gmra.mxu0 %v2784
      %v3102 = vpop.f32.mrf.mxu0
      %v3103 = vadd.f32 0.0, %v3102
      %3104 = vmatmul.f32.gmra.mxu0 %v2787
      %v3105 = vpop.f32.mrf.mxu0
      %v3106 = vadd.f32 0.0, %v3105
      %3107 = vmatmul.f32.gmra.mxu0 %v2790
      %v3108 = vpop.f32.mrf.mxu0
      %v3109 = vadd.f32 0.0, %v3108
      %3110 = vmatmul.f32.gmra.mxu0 %v2793
      %v3111 = vpop.f32.mrf.mxu0
      %v3112 = vadd.f32 0.0, %v3111
      %3113 = vmatmul.f32.gmra.mxu0 %v2796
      %v3114 = vpop.f32.mrf.mxu0
      %v3115 = vadd.f32 0.0, %v3114
      %3116 = vdwg.mxu0
      %v3117 = vmax.f32 %v3027, %v3070
      %v3118 = vmax.f32 %v3028, %v3073
      %v3119 = vmax.f32 %v3029, %v3076
      %v3120 = vmax.f32 %v3030, %v3079
      %v3121 = vmax.f32 %v3031, %v3082
      %v3122 = vmax.f32 %v3032, %v3085
      %v3123 = vmax.f32 %v3033, %v3088
      %v3124 = vmax.f32 %v3034, %v3091
      %v3125 = vmax.f32 %v3035, %v3094
      %v3126 = vmax.f32 %v3036, %v3097
      %v3127 = vmax.f32 %v3037, %v3100
      %v3128 = vmax.f32 %v3038, %v3103
      %v3129 = vmax.f32 %v3039, %v3106
      %v3130 = vmax.f32 %v3040, %v3109
      %v3131 = vmax.f32 %v3041, %v3112
      %v3132 = vmax.f32 %v3042, %v3115
      %s3133 = scalar_lea.vmem %s1, 256
      %v3134 = vld [vmem:[%s3133] sm:$0xff]
      %v3135 = vld [vmem:[%s3133 + $0x8] sm:$0xff]
      %v3136 = vld [vmem:[%s3133 + $0x10] sm:$0xff]
      %v3137 = vld [vmem:[%s3133 + $0x18] sm:$0xff]
      %v3138 = vld [vmem:[%s3133 + $0x20] sm:$0xff]
      %v3139 = vld [vmem:[%s3133 + $0x28] sm:$0xff]
      %v3140 = vld [vmem:[%s3133 + $0x30] sm:$0xff]
      %v3141 = vld [vmem:[%s3133 + $0x38] sm:$0xff]
      %3142 = vmatpush.msra.mxu0 0.0
      %3143 = vmatpush.msra.mxu0 0.0
      %3144 = vmatpush.msra.mxu0 0.0
      %3145 = vmatpush.msra.mxu0 0.0
      %3146 = vmatpush.msra.mxu0 0.0
      %3147 = vmatpush.msra.mxu0 0.0
      %3148 = vmatpush.msra.mxu0 0.0
      %3149 = vmatpush.msra.mxu0 0.0
      %3150 = vmatpush.msra.mxu0 %v3141
      %3151 = vmatpush.msra.mxu0 %v3140
      %3152 = vmatpush.msra.mxu0 %v3139
      %3153 = vmatpush.msra.mxu0 %v3138
      %3154 = vmatpush.msra.mxu0 %v3137
      %3155 = vmatpush.msra.mxu0 %v3136
      %3156 = vmatpush.msra.mxu0 %v3135
      %3157 = vmatpush.msra.mxu0 %v3134
      %3158 = vmatmul.f32.gmra.mxu0 %v2751
      %v3159 = vpop.f32.mrf.mxu0
      %v3160 = vadd.f32 0.0, %v3159
      %3161 = vmatmul.f32.gmra.mxu0 %v2754
      %v3162 = vpop.f32.mrf.mxu0
      %v3163 = vadd.f32 0.0, %v3162
      %3164 = vmatmul.f32.gmra.mxu0 %v2757
      %v3165 = vpop.f32.mrf.mxu0
      %v3166 = vadd.f32 0.0, %v3165
      %3167 = vmatmul.f32.gmra.mxu0 %v2760
      %v3168 = vpop.f32.mrf.mxu0
      %v3169 = vadd.f32 0.0, %v3168
      %3170 = vmatmul.f32.gmra.mxu0 %v2763
      %v3171 = vpop.f32.mrf.mxu0
      %v3172 = vadd.f32 0.0, %v3171
      %3173 = vmatmul.f32.gmra.mxu0 %v2766
      %v3174 = vpop.f32.mrf.mxu0
      %v3175 = vadd.f32 0.0, %v3174
      %3176 = vmatmul.f32.gmra.mxu0 %v2769
      %v3177 = vpop.f32.mrf.mxu0
      %v3178 = vadd.f32 0.0, %v3177
      %3179 = vmatmul.f32.gmra.mxu0 %v2772
      %v3180 = vpop.f32.mrf.mxu0
      %v3181 = vadd.f32 0.0, %v3180
      %3182 = vmatmul.f32.gmra.mxu0 %v2775
      %v3183 = vpop.f32.mrf.mxu0
      %v3184 = vadd.f32 0.0, %v3183
      %3185 = vmatmul.f32.gmra.mxu0 %v2778
      %v3186 = vpop.f32.mrf.mxu0
      %v3187 = vadd.f32 0.0, %v3186
      %3188 = vmatmul.f32.gmra.mxu0 %v2781
      %v3189 = vpop.f32.mrf.mxu0
      %v3190 = vadd.f32 0.0, %v3189
      %3191 = vmatmul.f32.gmra.mxu0 %v2784
      %v3192 = vpop.f32.mrf.mxu0
      %v3193 = vadd.f32 0.0, %v3192
      %3194 = vmatmul.f32.gmra.mxu0 %v2787
      %v3195 = vpop.f32.mrf.mxu0
      %v3196 = vadd.f32 0.0, %v3195
      %3197 = vmatmul.f32.gmra.mxu0 %v2790
      %v3198 = vpop.f32.mrf.mxu0
      %v3199 = vadd.f32 0.0, %v3198
      %3200 = vmatmul.f32.gmra.mxu0 %v2793
      %v3201 = vpop.f32.mrf.mxu0
      %v3202 = vadd.f32 0.0, %v3201
      %3203 = vmatmul.f32.gmra.mxu0 %v2796
      %v3204 = vpop.f32.mrf.mxu0
      %v3205 = vadd.f32 0.0, %v3204
      %3206 = vdwg.mxu0
      %v3207 = vmax.f32 %v3117, %v3160
      %v3208 = vmax.f32 %v3118, %v3163
      %v3209 = vmax.f32 %v3119, %v3166
      %v3210 = vmax.f32 %v3120, %v3169
      %v3211 = vmax.f32 %v3121, %v3172
      %v3212 = vmax.f32 %v3122, %v3175
      %v3213 = vmax.f32 %v3123, %v3178
      %v3214 = vmax.f32 %v3124, %v3181
      %v3215 = vmax.f32 %v3125, %v3184
      %v3216 = vmax.f32 %v3126, %v3187
      %v3217 = vmax.f32 %v3127, %v3190
      %v3218 = vmax.f32 %v3128, %v3193
      %v3219 = vmax.f32 %v3129, %v3196
      %v3220 = vmax.f32 %v3130, %v3199
      %v3221 = vmax.f32 %v3131, %v3202
      %v3222 = vmax.f32 %v3132, %v3205
      %s3223 = scalar_lea.vmem %s1, 320
      %v3224 = vld [vmem:[%s3223] sm:$0xff]
      %v3225 = vld [vmem:[%s3223 + $0x8] sm:$0xff]
      %v3226 = vld [vmem:[%s3223 + $0x10] sm:$0xff]
      %v3227 = vld [vmem:[%s3223 + $0x18] sm:$0xff]
      %v3228 = vld [vmem:[%s3223 + $0x20] sm:$0xff]
      %v3229 = vld [vmem:[%s3223 + $0x28] sm:$0xff]
      %v3230 = vld [vmem:[%s3223 + $0x30] sm:$0xff]
      %v3231 = vld [vmem:[%s3223 + $0x38] sm:$0xff]
      %3232 = vmatpush.msra.mxu0 0.0
      %3233 = vmatpush.msra.mxu0 0.0
      %3234 = vmatpush.msra.mxu0 0.0
      %3235 = vmatpush.msra.mxu0 0.0
      %3236 = vmatpush.msra.mxu0 0.0
      %3237 = vmatpush.msra.mxu0 0.0
      %3238 = vmatpush.msra.mxu0 0.0
      %3239 = vmatpush.msra.mxu0 0.0
      %3240 = vmatpush.msra.mxu0 %v3231
      %3241 = vmatpush.msra.mxu0 %v3230
      %3242 = vmatpush.msra.mxu0 %v3229
      %3243 = vmatpush.msra.mxu0 %v3228
      %3244 = vmatpush.msra.mxu0 %v3227
      %3245 = vmatpush.msra.mxu0 %v3226
      %3246 = vmatpush.msra.mxu0 %v3225
      %3247 = vmatpush.msra.mxu0 %v3224
      %3248 = vmatmul.f32.gmra.mxu0 %v2751
      %v3249 = vpop.f32.mrf.mxu0
      %v3250 = vadd.f32 0.0, %v3249
      %3251 = vmatmul.f32.gmra.mxu0 %v2754
      %v3252 = vpop.f32.mrf.mxu0
      %v3253 = vadd.f32 0.0, %v3252
      %3254 = vmatmul.f32.gmra.mxu0 %v2757
      %v3255 = vpop.f32.mrf.mxu0
      %v3256 = vadd.f32 0.0, %v3255
      %3257 = vmatmul.f32.gmra.mxu0 %v2760
      %v3258 = vpop.f32.mrf.mxu0
      %v3259 = vadd.f32 0.0, %v3258
      %3260 = vmatmul.f32.gmra.mxu0 %v2763
      %v3261 = vpop.f32.mrf.mxu0
      %v3262 = vadd.f32 0.0, %v3261
      %3263 = vmatmul.f32.gmra.mxu0 %v2766
      %v3264 = vpop.f32.mrf.mxu0
      %v3265 = vadd.f32 0.0, %v3264
      %3266 = vmatmul.f32.gmra.mxu0 %v2769
      %v3267 = vpop.f32.mrf.mxu0
      %v3268 = vadd.f32 0.0, %v3267
      %3269 = vmatmul.f32.gmra.mxu0 %v2772
      %v3270 = vpop.f32.mrf.mxu0
      %v3271 = vadd.f32 0.0, %v3270
      %3272 = vmatmul.f32.gmra.mxu0 %v2775
      %v3273 = vpop.f32.mrf.mxu0
      %v3274 = vadd.f32 0.0, %v3273
      %3275 = vmatmul.f32.gmra.mxu0 %v2778
      %v3276 = vpop.f32.mrf.mxu0
      %v3277 = vadd.f32 0.0, %v3276
      %3278 = vmatmul.f32.gmra.mxu0 %v2781
      %v3279 = vpop.f32.mrf.mxu0
      %v3280 = vadd.f32 0.0, %v3279
      %3281 = vmatmul.f32.gmra.mxu0 %v2784
      %v3282 = vpop.f32.mrf.mxu0
      %v3283 = vadd.f32 0.0, %v3282
      %3284 = vmatmul.f32.gmra.mxu0 %v2787
      %v3285 = vpop.f32.mrf.mxu0
      %v3286 = vadd.f32 0.0, %v3285
      %3287 = vmatmul.f32.gmra.mxu0 %v2790
      %v3288 = vpop.f32.mrf.mxu0
      %v3289 = vadd.f32 0.0, %v3288
      %3290 = vmatmul.f32.gmra.mxu0 %v2793
      %v3291 = vpop.f32.mrf.mxu0
      %v3292 = vadd.f32 0.0, %v3291
      %3293 = vmatmul.f32.gmra.mxu0 %v2796
      %v3294 = vpop.f32.mrf.mxu0
      %v3295 = vadd.f32 0.0, %v3294
      %3296 = vdwg.mxu0
      %v3297 = vmax.f32 %v3207, %v3250
      %v3298 = vmax.f32 %v3208, %v3253
      %v3299 = vmax.f32 %v3209, %v3256
      %v3300 = vmax.f32 %v3210, %v3259
      %v3301 = vmax.f32 %v3211, %v3262
      %v3302 = vmax.f32 %v3212, %v3265
      %v3303 = vmax.f32 %v3213, %v3268
      %v3304 = vmax.f32 %v3214, %v3271
      %v3305 = vmax.f32 %v3215, %v3274
      %v3306 = vmax.f32 %v3216, %v3277
      %v3307 = vmax.f32 %v3217, %v3280
      %v3308 = vmax.f32 %v3218, %v3283
      %v3309 = vmax.f32 %v3219, %v3286
      %v3310 = vmax.f32 %v3220, %v3289
      %v3311 = vmax.f32 %v3221, %v3292
      %v3312 = vmax.f32 %v3222, %v3295
      %s3313 = scalar_lea.vmem %s1, 384
      %v3314 = vld [vmem:[%s3313] sm:$0xff]
      %v3315 = vld [vmem:[%s3313 + $0x8] sm:$0xff]
      %v3316 = vld [vmem:[%s3313 + $0x10] sm:$0xff]
      %v3317 = vld [vmem:[%s3313 + $0x18] sm:$0xff]
      %v3318 = vld [vmem:[%s3313 + $0x20] sm:$0xff]
      %v3319 = vld [vmem:[%s3313 + $0x28] sm:$0xff]
      %v3320 = vld [vmem:[%s3313 + $0x30] sm:$0xff]
      %v3321 = vld [vmem:[%s3313 + $0x38] sm:$0xff]
      %3322 = vmatpush.msra.mxu0 0.0
      %3323 = vmatpush.msra.mxu0 0.0
      %3324 = vmatpush.msra.mxu0 0.0
      %3325 = vmatpush.msra.mxu0 0.0
      %3326 = vmatpush.msra.mxu0 0.0
      %3327 = vmatpush.msra.mxu0 0.0
      %3328 = vmatpush.msra.mxu0 0.0
      %3329 = vmatpush.msra.mxu0 0.0
      %3330 = vmatpush.msra.mxu0 %v3321
      %3331 = vmatpush.msra.mxu0 %v3320
      %3332 = vmatpush.msra.mxu0 %v3319
      %3333 = vmatpush.msra.mxu0 %v3318
      %3334 = vmatpush.msra.mxu0 %v3317
      %3335 = vmatpush.msra.mxu0 %v3316
      %3336 = vmatpush.msra.mxu0 %v3315
      %3337 = vmatpush.msra.mxu0 %v3314
      %3338 = vmatmul.f32.gmra.mxu0 %v2751
      %v3339 = vpop.f32.mrf.mxu0
      %v3340 = vadd.f32 0.0, %v3339
      %3341 = vmatmul.f32.gmra.mxu0 %v2754
      %v3342 = vpop.f32.mrf.mxu0
      %v3343 = vadd.f32 0.0, %v3342
      %3344 = vmatmul.f32.gmra.mxu0 %v2757
      %v3345 = vpop.f32.mrf.mxu0
      %v3346 = vadd.f32 0.0, %v3345
      %3347 = vmatmul.f32.gmra.mxu0 %v2760
      %v3348 = vpop.f32.mrf.mxu0
      %v3349 = vadd.f32 0.0, %v3348
      %3350 = vmatmul.f32.gmra.mxu0 %v2763
      %v3351 = vpop.f32.mrf.mxu0
      %v3352 = vadd.f32 0.0, %v3351
      %3353 = vmatmul.f32.gmra.mxu0 %v2766
      %v3354 = vpop.f32.mrf.mxu0
      %v3355 = vadd.f32 0.0, %v3354
      %3356 = vmatmul.f32.gmra.mxu0 %v2769
      %v3357 = vpop.f32.mrf.mxu0
      %v3358 = vadd.f32 0.0, %v3357
      %3359 = vmatmul.f32.gmra.mxu0 %v2772
      %v3360 = vpop.f32.mrf.mxu0
      %v3361 = vadd.f32 0.0, %v3360
      %3362 = vmatmul.f32.gmra.mxu0 %v2775
      %v3363 = vpop.f32.mrf.mxu0
      %v3364 = vadd.f32 0.0, %v3363
      %3365 = vmatmul.f32.gmra.mxu0 %v2778
      %v3366 = vpop.f32.mrf.mxu0
      %v3367 = vadd.f32 0.0, %v3366
      %3368 = vmatmul.f32.gmra.mxu0 %v2781
      %v3369 = vpop.f32.mrf.mxu0
      %v3370 = vadd.f32 0.0, %v3369
      %3371 = vmatmul.f32.gmra.mxu0 %v2784
      %v3372 = vpop.f32.mrf.mxu0
      %v3373 = vadd.f32 0.0, %v3372
      %3374 = vmatmul.f32.gmra.mxu0 %v2787
      %v3375 = vpop.f32.mrf.mxu0
      %v3376 = vadd.f32 0.0, %v3375
      %3377 = vmatmul.f32.gmra.mxu0 %v2790
      %v3378 = vpop.f32.mrf.mxu0
      %v3379 = vadd.f32 0.0, %v3378
      %3380 = vmatmul.f32.gmra.mxu0 %v2793
      %v3381 = vpop.f32.mrf.mxu0
      %v3382 = vadd.f32 0.0, %v3381
      %3383 = vmatmul.f32.gmra.mxu0 %v2796
      %v3384 = vpop.f32.mrf.mxu0
      %v3385 = vadd.f32 0.0, %v3384
      %3386 = vdwg.mxu0
      %v3387 = vmax.f32 %v3297, %v3340
      %v3388 = vmax.f32 %v3298, %v3343
      %v3389 = vmax.f32 %v3299, %v3346
      %v3390 = vmax.f32 %v3300, %v3349
      %v3391 = vmax.f32 %v3301, %v3352
      %v3392 = vmax.f32 %v3302, %v3355
      %v3393 = vmax.f32 %v3303, %v3358
      %v3394 = vmax.f32 %v3304, %v3361
      %v3395 = vmax.f32 %v3305, %v3364
      %v3396 = vmax.f32 %v3306, %v3367
      %v3397 = vmax.f32 %v3307, %v3370
      %v3398 = vmax.f32 %v3308, %v3373
      %v3399 = vmax.f32 %v3309, %v3376
      %v3400 = vmax.f32 %v3310, %v3379
      %v3401 = vmax.f32 %v3311, %v3382
      %v3402 = vmax.f32 %v3312, %v3385
      %s3403 = scalar_lea.vmem %s1, 448
      %v3404 = vld [vmem:[%s3403] sm:$0xff]
      %v3405 = vld [vmem:[%s3403 + $0x8] sm:$0xff]
      %v3406 = vld [vmem:[%s3403 + $0x10] sm:$0xff]
      %v3407 = vld [vmem:[%s3403 + $0x18] sm:$0xff]
      %v3408 = vld [vmem:[%s3403 + $0x20] sm:$0xff]
      %v3409 = vld [vmem:[%s3403 + $0x28] sm:$0xff]
      %v3410 = vld [vmem:[%s3403 + $0x30] sm:$0xff]
      %v3411 = vld [vmem:[%s3403 + $0x38] sm:$0xff]
      %3412 = vmatpush.msra.mxu0 0.0
      %3413 = vmatpush.msra.mxu0 0.0
      %3414 = vmatpush.msra.mxu0 0.0
      %3415 = vmatpush.msra.mxu0 0.0
      %3416 = vmatpush.msra.mxu0 0.0
      %3417 = vmatpush.msra.mxu0 0.0
      %3418 = vmatpush.msra.mxu0 0.0
      %3419 = vmatpush.msra.mxu0 0.0
      %3420 = vmatpush.msra.mxu0 %v3411
      %3421 = vmatpush.msra.mxu0 %v3410
      %3422 = vmatpush.msra.mxu0 %v3409
      %3423 = vmatpush.msra.mxu0 %v3408
      %3424 = vmatpush.msra.mxu0 %v3407
      %3425 = vmatpush.msra.mxu0 %v3406
      %3426 = vmatpush.msra.mxu0 %v3405
      %3427 = vmatpush.msra.mxu0 %v3404
      %3428 = vmatmul.f32.gmra.mxu0 %v2751
      %v3429 = vpop.f32.mrf.mxu0
      %v3430 = vadd.f32 0.0, %v3429
      %3431 = vmatmul.f32.gmra.mxu0 %v2754
      %v3432 = vpop.f32.mrf.mxu0
      %v3433 = vadd.f32 0.0, %v3432
      %3434 = vmatmul.f32.gmra.mxu0 %v2757
      %v3435 = vpop.f32.mrf.mxu0
      %v3436 = vadd.f32 0.0, %v3435
      %3437 = vmatmul.f32.gmra.mxu0 %v2760
      %v3438 = vpop.f32.mrf.mxu0
      %v3439 = vadd.f32 0.0, %v3438
      %3440 = vmatmul.f32.gmra.mxu0 %v2763
      %v3441 = vpop.f32.mrf.mxu0
      %v3442 = vadd.f32 0.0, %v3441
      %3443 = vmatmul.f32.gmra.mxu0 %v2766
      %v3444 = vpop.f32.mrf.mxu0
      %v3445 = vadd.f32 0.0, %v3444
      %3446 = vmatmul.f32.gmra.mxu0 %v2769
      %v3447 = vpop.f32.mrf.mxu0
      %v3448 = vadd.f32 0.0, %v3447
      %3449 = vmatmul.f32.gmra.mxu0 %v2772
      %v3450 = vpop.f32.mrf.mxu0
      %v3451 = vadd.f32 0.0, %v3450
      %3452 = vmatmul.f32.gmra.mxu0 %v2775
      %v3453 = vpop.f32.mrf.mxu0
      %v3454 = vadd.f32 0.0, %v3453
      %3455 = vmatmul.f32.gmra.mxu0 %v2778
      %v3456 = vpop.f32.mrf.mxu0
      %v3457 = vadd.f32 0.0, %v3456
      %3458 = vmatmul.f32.gmra.mxu0 %v2781
      %v3459 = vpop.f32.mrf.mxu0
      %v3460 = vadd.f32 0.0, %v3459
      %3461 = vmatmul.f32.gmra.mxu0 %v2784
      %v3462 = vpop.f32.mrf.mxu0
      %v3463 = vadd.f32 0.0, %v3462
      %3464 = vmatmul.f32.gmra.mxu0 %v2787
      %v3465 = vpop.f32.mrf.mxu0
      %v3466 = vadd.f32 0.0, %v3465
      %3467 = vmatmul.f32.gmra.mxu0 %v2790
      %v3468 = vpop.f32.mrf.mxu0
      %v3469 = vadd.f32 0.0, %v3468
      %3470 = vmatmul.f32.gmra.mxu0 %v2793
      %v3471 = vpop.f32.mrf.mxu0
      %v3472 = vadd.f32 0.0, %v3471
      %3473 = vmatmul.f32.gmra.mxu0 %v2796
      %v3474 = vpop.f32.mrf.mxu0
      %v3475 = vadd.f32 0.0, %v3474
      %3476 = vdwg.mxu0
      %v3477 = vmax.f32 %v3387, %v3430
      %v3478 = vmax.f32 %v3388, %v3433
      %v3479 = vmax.f32 %v3389, %v3436
      %v3480 = vmax.f32 %v3390, %v3439
      %v3481 = vmax.f32 %v3391, %v3442
      %v3482 = vmax.f32 %v3392, %v3445
      %v3483 = vmax.f32 %v3393, %v3448
      %v3484 = vmax.f32 %v3394, %v3451
      %v3485 = vmax.f32 %v3395, %v3454
      %v3486 = vmax.f32 %v3396, %v3457
      %v3487 = vmax.f32 %v3397, %v3460
      %v3488 = vmax.f32 %v3398, %v3463
      %v3489 = vmax.f32 %v3399, %v3466
      %v3490 = vmax.f32 %v3400, %v3469
      %v3491 = vmax.f32 %v3401, %v3472
      %v3492 = vmax.f32 %v3402, %v3475
      %s3493 = scalar_lea.vmem %s1, 512
      %v3494 = vld [vmem:[%s3493] sm:$0xff]
      %v3495 = vld [vmem:[%s3493 + $0x8] sm:$0xff]
      %v3496 = vld [vmem:[%s3493 + $0x10] sm:$0xff]
      %v3497 = vld [vmem:[%s3493 + $0x18] sm:$0xff]
      %v3498 = vld [vmem:[%s3493 + $0x20] sm:$0xff]
      %v3499 = vld [vmem:[%s3493 + $0x28] sm:$0xff]
      %v3500 = vld [vmem:[%s3493 + $0x30] sm:$0xff]
      %v3501 = vld [vmem:[%s3493 + $0x38] sm:$0xff]
      %3502 = vmatpush.msra.mxu0 0.0
      %3503 = vmatpush.msra.mxu0 0.0
      %3504 = vmatpush.msra.mxu0 0.0
      %3505 = vmatpush.msra.mxu0 0.0
      %3506 = vmatpush.msra.mxu0 0.0
      %3507 = vmatpush.msra.mxu0 0.0
      %3508 = vmatpush.msra.mxu0 0.0
      %3509 = vmatpush.msra.mxu0 0.0
      %3510 = vmatpush.msra.mxu0 %v3501
      %3511 = vmatpush.msra.mxu0 %v3500
      %3512 = vmatpush.msra.mxu0 %v3499
      %3513 = vmatpush.msra.mxu0 %v3498
      %3514 = vmatpush.msra.mxu0 %v3497
      %3515 = vmatpush.msra.mxu0 %v3496
      %3516 = vmatpush.msra.mxu0 %v3495
      %3517 = vmatpush.msra.mxu0 %v3494
      %3518 = vmatmul.f32.gmra.mxu0 %v2751
      %v3519 = vpop.f32.mrf.mxu0
      %v3520 = vadd.f32 0.0, %v3519
      %3521 = vmatmul.f32.gmra.mxu0 %v2754
      %v3522 = vpop.f32.mrf.mxu0
      %v3523 = vadd.f32 0.0, %v3522
      %3524 = vmatmul.f32.gmra.mxu0 %v2757
      %v3525 = vpop.f32.mrf.mxu0
      %v3526 = vadd.f32 0.0, %v3525
      %3527 = vmatmul.f32.gmra.mxu0 %v2760
      %v3528 = vpop.f32.mrf.mxu0
      %v3529 = vadd.f32 0.0, %v3528
      %3530 = vmatmul.f32.gmra.mxu0 %v2763
      %v3531 = vpop.f32.mrf.mxu0
      %v3532 = vadd.f32 0.0, %v3531
      %3533 = vmatmul.f32.gmra.mxu0 %v2766
      %v3534 = vpop.f32.mrf.mxu0
      %v3535 = vadd.f32 0.0, %v3534
      %3536 = vmatmul.f32.gmra.mxu0 %v2769
      %v3537 = vpop.f32.mrf.mxu0
      %v3538 = vadd.f32 0.0, %v3537
      %3539 = vmatmul.f32.gmra.mxu0 %v2772
      %v3540 = vpop.f32.mrf.mxu0
      %v3541 = vadd.f32 0.0, %v3540
      %3542 = vmatmul.f32.gmra.mxu0 %v2775
      %v3543 = vpop.f32.mrf.mxu0
      %v3544 = vadd.f32 0.0, %v3543
      %3545 = vmatmul.f32.gmra.mxu0 %v2778
      %v3546 = vpop.f32.mrf.mxu0
      %v3547 = vadd.f32 0.0, %v3546
      %3548 = vmatmul.f32.gmra.mxu0 %v2781
      %v3549 = vpop.f32.mrf.mxu0
      %v3550 = vadd.f32 0.0, %v3549
      %3551 = vmatmul.f32.gmra.mxu0 %v2784
      %v3552 = vpop.f32.mrf.mxu0
      %v3553 = vadd.f32 0.0, %v3552
      %3554 = vmatmul.f32.gmra.mxu0 %v2787
      %v3555 = vpop.f32.mrf.mxu0
      %v3556 = vadd.f32 0.0, %v3555
      %3557 = vmatmul.f32.gmra.mxu0 %v2790
      %v3558 = vpop.f32.mrf.mxu0
      %v3559 = vadd.f32 0.0, %v3558
      %3560 = vmatmul.f32.gmra.mxu0 %v2793
      %v3561 = vpop.f32.mrf.mxu0
      %v3562 = vadd.f32 0.0, %v3561
      %3563 = vmatmul.f32.gmra.mxu0 %v2796
      %v3564 = vpop.f32.mrf.mxu0
      %v3565 = vadd.f32 0.0, %v3564
      %3566 = vdwg.mxu0
      %v3567 = vmax.f32 %v3477, %v3520
      %v3568 = vmax.f32 %v3478, %v3523
      %v3569 = vmax.f32 %v3479, %v3526
      %v3570 = vmax.f32 %v3480, %v3529
      %v3571 = vmax.f32 %v3481, %v3532
      %v3572 = vmax.f32 %v3482, %v3535
      %v3573 = vmax.f32 %v3483, %v3538
      %v3574 = vmax.f32 %v3484, %v3541
      %v3575 = vmax.f32 %v3485, %v3544
      %v3576 = vmax.f32 %v3486, %v3547
      %v3577 = vmax.f32 %v3487, %v3550
      %v3578 = vmax.f32 %v3488, %v3553
      %v3579 = vmax.f32 %v3489, %v3556
      %v3580 = vmax.f32 %v3490, %v3559
      %v3581 = vmax.f32 %v3491, %v3562
      %v3582 = vmax.f32 %v3492, %v3565
      %v3583 = vld [vmem:[%s8] sm:$0xff]
      %v3584 = vld [vmem:[%s8 + $0x8] sm:$0xff]
      %v3585 = vld [vmem:[%s8 + $0x10] sm:$0xff]
      %v3586 = vld [vmem:[%s8 + $0x18] sm:$0xff]
      %v3587 = vld [vmem:[%s8 + $0x20] sm:$0xff]
      %v3588 = vld [vmem:[%s8 + $0x28] sm:$0xff]
      %v3589 = vld [vmem:[%s8 + $0x30] sm:$0xff]
      %v3590 = vld [vmem:[%s8 + $0x38] sm:$0xff]
      %3591 = vmatpush.msra.mxu0 %v3582
      %3592 = vmatpush.msra.mxu0 %v3581
      %3593 = vmatpush.msra.mxu0 %v3580
      %3594 = vmatpush.msra.mxu0 %v3579
      %3595 = vmatpush.msra.mxu0 %v3578
      %3596 = vmatpush.msra.mxu0 %v3577
      %3597 = vmatpush.msra.mxu0 %v3576
      %3598 = vmatpush.msra.mxu0 %v3575
      %3599 = vmatpush.msra.mxu0 %v3574
      %3600 = vmatpush.msra.mxu0 %v3573
      %3601 = vmatpush.msra.mxu0 %v3572
      %3602 = vmatpush.msra.mxu0 %v3571
      %3603 = vmatpush.msra.mxu0 %v3570
      %3604 = vmatpush.msra.mxu0 %v3569
      %3605 = vmatpush.msra.mxu0 %v3568
      %3606 = vmatpush.msra.mxu0 %v3567
      %3607 = vmatmul.f32.gmra.mxu0 %v3583
      %v3608 = vpop.f32.mrf.mxu0
      %v3609 = vadd.f32 0.0, %v3608
      %3610 = vmatmul.f32.gmra.mxu0 %v3584
      %v3611 = vpop.f32.mrf.mxu0
      %v3612 = vadd.f32 0.0, %v3611
      %3613 = vmatmul.f32.gmra.mxu0 %v3585
      %v3614 = vpop.f32.mrf.mxu0
      %v3615 = vadd.f32 0.0, %v3614
      %3616 = vmatmul.f32.gmra.mxu0 %v3586
      %v3617 = vpop.f32.mrf.mxu0
      %v3618 = vadd.f32 0.0, %v3617
      %3619 = vmatmul.f32.gmra.mxu0 %v3587
      %v3620 = vpop.f32.mrf.mxu0
      %v3621 = vadd.f32 0.0, %v3620
      %3622 = vmatmul.f32.gmra.mxu0 %v3588
      %v3623 = vpop.f32.mrf.mxu0
      %v3624 = vadd.f32 0.0, %v3623
      %3625 = vmatmul.f32.gmra.mxu0 %v3589
      %v3626 = vpop.f32.mrf.mxu0
      %v3627 = vadd.f32 0.0, %v3626
      %3628 = vmatmul.f32.gmra.mxu0 %v3590
      %v3629 = vpop.f32.mrf.mxu0
      %v3630 = vadd.f32 0.0, %v3629
      %3631 = vdwg.mxu0
      %v3632 = vld [vmem:[%s9] sm:$0xff]
      %v3633 = vld [vmem:[%s9 + $0x8] sm:$0xff]
      %v3634 = vld [vmem:[%s9 + $0x10] sm:$0xff]
      %v3635 = vld [vmem:[%s9 + $0x18] sm:$0xff]
      %v3636 = vld [vmem:[%s9 + $0x20] sm:$0xff]
      %v3637 = vld [vmem:[%s9 + $0x28] sm:$0xff]
      %v3638 = vld [vmem:[%s9 + $0x30] sm:$0xff]
      %v3639 = vld [vmem:[%s9 + $0x38] sm:$0xff]
      %3641 = vset.pattern.permute.xlu0 0
      %3642 = vperm.xlu0 %3641, %v3632
      %v3643 = vpop.permute.xlu0 %3642
      %3646 = vset.pattern.permute.xlu0 0
      %3647 = vperm.xlu0 %3646, %v3633
      %v3648 = vpop.permute.xlu0 %3647
      %3651 = vset.pattern.permute.xlu0 0
      %3652 = vperm.xlu0 %3651, %v3634
      %v3653 = vpop.permute.xlu0 %3652
      %3656 = vset.pattern.permute.xlu0 0
      %3657 = vperm.xlu0 %3656, %v3635
      %v3658 = vpop.permute.xlu0 %3657
      %3661 = vset.pattern.permute.xlu0 0
      %3662 = vperm.xlu0 %3661, %v3636
      %v3663 = vpop.permute.xlu0 %3662
      %3666 = vset.pattern.permute.xlu0 0
      %3667 = vperm.xlu0 %3666, %v3637
      %v3668 = vpop.permute.xlu0 %3667
      %3671 = vset.pattern.permute.xlu0 0
      %3672 = vperm.xlu0 %3671, %v3638
      %v3673 = vpop.permute.xlu0 %3672
      %3676 = vset.pattern.permute.xlu0 0
      %3677 = vperm.xlu0 %3676, %v3639
      %v3678 = vpop.permute.xlu0 %3677
      %v3680 = vmul.f32 %v3609, %v3643
      %v3681 = vmul.f32 %v3612, %v3648
      %v3682 = vmul.f32 %v3615, %v3653
      %v3683 = vmul.f32 %v3618, %v3658
      %v3684 = vmul.f32 %v3621, %v3663
      %v3685 = vmul.f32 %v3624, %v3668
      %v3686 = vmul.f32 %v3627, %v3673
      %v3687 = vmul.f32 %v3630, %v3678
      %v3688 = vld [vmem:[%s10] sm:$0xff]
      %v3689 = vld [vmem:[%s10 + $0x8] sm:$0xff]
      %v3690 = vld [vmem:[%s10 + $0x10] sm:$0xff]
      %v3691 = vld [vmem:[%s10 + $0x18] sm:$0xff]
      %v3692 = vld [vmem:[%s10 + $0x20] sm:$0xff]
      %v3693 = vld [vmem:[%s10 + $0x28] sm:$0xff]
      %v3694 = vld [vmem:[%s10 + $0x30] sm:$0xff]
      %v3695 = vld [vmem:[%s10 + $0x38] sm:$0xff]
      %3697 = vset.pattern.permute.xlu0 0
      %3698 = vperm.xlu0 %3697, %v3688
      %v3699 = vpop.permute.xlu0 %3698
      %3702 = vset.pattern.permute.xlu0 0
      %3703 = vperm.xlu0 %3702, %v3689
      %v3704 = vpop.permute.xlu0 %3703
      %3707 = vset.pattern.permute.xlu0 0
      %3708 = vperm.xlu0 %3707, %v3690
      %v3709 = vpop.permute.xlu0 %3708
      %3712 = vset.pattern.permute.xlu0 0
      %3713 = vperm.xlu0 %3712, %v3691
      %v3714 = vpop.permute.xlu0 %3713
      %3717 = vset.pattern.permute.xlu0 0
      %3718 = vperm.xlu0 %3717, %v3692
      %v3719 = vpop.permute.xlu0 %3718
      %3722 = vset.pattern.permute.xlu0 0
      %3723 = vperm.xlu0 %3722, %v3693
      %v3724 = vpop.permute.xlu0 %3723
      %3727 = vset.pattern.permute.xlu0 0
      %3728 = vperm.xlu0 %3727, %v3694
      %v3729 = vpop.permute.xlu0 %3728
      %3732 = vset.pattern.permute.xlu0 0
      %3733 = vperm.xlu0 %3732, %v3695
      %v3734 = vpop.permute.xlu0 %3733
      %v3736 = vadd.f32 %v3680, %v3699
      %v3737 = vadd.f32 %v3681, %v3704
      %v3738 = vadd.f32 %v3682, %v3709
      %v3739 = vadd.f32 %v3683, %v3714
      %v3740 = vadd.f32 %v3684, %v3719
      %v3741 = vadd.f32 %v3685, %v3724
      %v3742 = vadd.f32 %v3686, %v3729
      %v3743 = vadd.f32 %v3687, %v3734
      %v3744 = vmax.f32 %v3736, 0.0
      %v3745 = vmax.f32 %v3737, 0.0
      %v3746 = vmax.f32 %v3738, 0.0
      %v3747 = vmax.f32 %v3739, 0.0
      %v3748 = vmax.f32 %v3740, 0.0
      %v3749 = vmax.f32 %v3741, 0.0
      %v3750 = vmax.f32 %v3742, 0.0
      %v3751 = vmax.f32 %v3743, 0.0
      %v3752 = vld [vmem:[%s11] sm:$0xff]
      %v3753 = vld [vmem:[%s11 + $0x8] sm:$0xff]
      %v3754 = vld [vmem:[%s11 + $0x10] sm:$0xff]
      %v3755 = vld [vmem:[%s11 + $0x18] sm:$0xff]
      %v3757 = vsel %vm2749, %v3752, 0
      %v3760 = vsel %vm2749, %v3753, 0
      %v3763 = vsel %vm2749, %v3754, 0
      %v3766 = vsel %vm2749, %v3755, 0
      %3768 = vmatpush.msra.mxu0 0.0
      %3769 = vmatpush.msra.mxu0 0.0
      %3770 = vmatpush.msra.mxu0 0.0
      %3771 = vmatpush.msra.mxu0 0.0
      %3772 = vmatpush.msra.mxu0 0.0
      %3773 = vmatpush.msra.mxu0 0.0
      %3774 = vmatpush.msra.mxu0 0.0
      %3775 = vmatpush.msra.mxu0 0.0
      %3776 = vmatpush.msra.mxu0 %v3751
      %3777 = vmatpush.msra.mxu0 %v3750
      %3778 = vmatpush.msra.mxu0 %v3749
      %3779 = vmatpush.msra.mxu0 %v3748
      %3780 = vmatpush.msra.mxu0 %v3747
      %3781 = vmatpush.msra.mxu0 %v3746
      %3782 = vmatpush.msra.mxu0 %v3745
      %3783 = vmatpush.msra.mxu0 %v3744
      %3784 = vmatmul.f32.gmra.mxu0 %v3757
      %v3785 = vpop.f32.mrf.mxu0
      %v3786 = vadd.f32 0.0, %v3785
      %3787 = vmatmul.f32.gmra.mxu0 %v3760
      %v3788 = vpop.f32.mrf.mxu0
      %v3789 = vadd.f32 0.0, %v3788
      %3790 = vmatmul.f32.gmra.mxu0 %v3763
      %v3791 = vpop.f32.mrf.mxu0
      %v3792 = vadd.f32 0.0, %v3791
      %3793 = vmatmul.f32.gmra.mxu0 %v3766
      %v3794 = vpop.f32.mrf.mxu0
      %v3795 = vadd.f32 0.0, %v3794
      %3796 = vdwg.mxu0
      %v3797 = vld [vmem:[%s12] sm:$0xff]
      %v3798 = vld [vmem:[%s12 + $0x8] sm:$0xff]
      %v3799 = vld [vmem:[%s12 + $0x10] sm:$0xff]
      %v3800 = vld [vmem:[%s12 + $0x18] sm:$0xff]
      %3802 = vset.pattern.permute.xlu0 0
      %3803 = vperm.xlu0 %3802, %v3797
      %v3804 = vpop.permute.xlu0 %3803
      %3807 = vset.pattern.permute.xlu0 0
      %3808 = vperm.xlu0 %3807, %v3798
      %v3809 = vpop.permute.xlu0 %3808
      %3812 = vset.pattern.permute.xlu0 0
      %3813 = vperm.xlu0 %3812, %v3799
      %v3814 = vpop.permute.xlu0 %3813
      %3817 = vset.pattern.permute.xlu0 0
      %3818 = vperm.xlu0 %3817, %v3800
      %v3819 = vpop.permute.xlu0 %3818
      %v3821 = vmul.f32 %v3786, %v3804
      %v3822 = vmul.f32 %v3789, %v3809
      %v3823 = vmul.f32 %v3792, %v3814
      %v3824 = vmul.f32 %v3795, %v3819
      %v3825 = vld [vmem:[%s13] sm:$0xff]
      %v3826 = vld [vmem:[%s13 + $0x8] sm:$0xff]
      %v3827 = vld [vmem:[%s13 + $0x10] sm:$0xff]
      %v3828 = vld [vmem:[%s13 + $0x18] sm:$0xff]
      %3830 = vset.pattern.permute.xlu0 0
      %3831 = vperm.xlu0 %3830, %v3825
      %v3832 = vpop.permute.xlu0 %3831
      %3835 = vset.pattern.permute.xlu0 0
      %3836 = vperm.xlu0 %3835, %v3826
      %v3837 = vpop.permute.xlu0 %3836
      %3840 = vset.pattern.permute.xlu0 0
      %3841 = vperm.xlu0 %3840, %v3827
      %v3842 = vpop.permute.xlu0 %3841
      %3845 = vset.pattern.permute.xlu0 0
      %3846 = vperm.xlu0 %3845, %v3828
      %v3847 = vpop.permute.xlu0 %3846
      %v3849 = vadd.f32 %v3821, %v3832
      %v3850 = vadd.f32 %v3822, %v3837
      %v3851 = vadd.f32 %v3823, %v3842
      %v3852 = vadd.f32 %v3824, %v3847
      %v3853 = vmax.f32 %v3849, 0.0
      %v3854 = vmax.f32 %v3850, 0.0
      %v3855 = vmax.f32 %v3851, 0.0
      %v3856 = vmax.f32 %v3852, 0.0
      %v3857 = vld [vmem:[%s14] sm:$0xf]
      %v3858 = vld [vmem:[%s15] sm:$0xf]
      %3860 = vset.pattern.permute.xlu0 0
      %3861 = vperm.xlu0 %3860, %v3858
      %v3862 = vpop.permute.xlu0 %3861
      %vm3864 = vcmask 261120
      %v3866 = vsel %vm3864, %v3857, 0
      %3868 = vmatpush.msra.mxu0 0.0
      %3869 = vmatpush.msra.mxu0 0.0
      %3870 = vmatpush.msra.mxu0 0.0
      %3871 = vmatpush.msra.mxu0 0.0
      %3872 = vmatpush.msra.mxu0 0.0
      %3873 = vmatpush.msra.mxu0 0.0
      %3874 = vmatpush.msra.mxu0 0.0
      %3875 = vmatpush.msra.mxu0 0.0
      %3876 = vmatpush.msra.mxu0 0.0
      %3877 = vmatpush.msra.mxu0 0.0
      %3878 = vmatpush.msra.mxu0 0.0
      %3879 = vmatpush.msra.mxu0 0.0
      %3880 = vmatpush.msra.mxu0 %v3856
      %3881 = vmatpush.msra.mxu0 %v3855
      %3882 = vmatpush.msra.mxu0 %v3854
      %3883 = vmatpush.msra.mxu0 %v3853
      %3884 = vmatmul.f32.gmra.mxu0 %v3866
      %v3885 = vpop.f32.mrf.mxu0
      %v3886 = vadd.f32 %v3862, %v3885
      %3887 = vdwg.mxu0
      %v3888 = vmax.f32 %v3886, 0.0
      %vm3889 = vcmask 125952
      %v3890 = vsel %vm3889, %v3888, -inf
      %v3891 = vrot.slane %v3890, 4
      %v3892 = vmax.f32 %v3890, %v3891
      %v3893 = vrot.slane %v3892, 2
      %v3894 = vmax.f32 %v3892, %v3893
      %v3895 = vrot.slane %v3894, 1
      %v3896 = vmax.f32 %v3894, %v3895
      %v3897 = vsub.f32 %v3888, %v3896
      %v3898 = vmul.f32 %v3897, 1.442695
      %v3899 = vpow.pop %v3898
      %v3900 = vsel %vm3889, %v3899, 0.0
      %v3901 = vrot.slane %v3900, 4
      %v3902 = vadd.f32 %v3900, %v3901
      %v3903 = vrot.slane %v3902, 2
      %v3904 = vadd.f32 %v3902, %v3903
      %v3905 = vrot.slane %v3904, 1
      %v3906 = vadd.f32 %v3904, %v3905
      %v3907 = vrcp.pop %v3906
      %v3908 = vmul.f32 %v3899, %v3907
      %v3909 = vld [vmem:[%s2] sm:$0xff]
      %v3910 = vld [vmem:[%s2 + $0x8] sm:$0xff]
      %v3911 = vld [vmem:[%s2 + $0x10] sm:$0xff]
      %v3912 = vld [vmem:[%s2 + $0x18] sm:$0xff]
      %vm3913 = vcmask 130048
      %v3915 = vsel %vm3913, %v3908, 0
      %3917 = vmatpush.msra.mxu0 0.0
      %3918 = vmatpush.msra.mxu0 0.0
      %3919 = vmatpush.msra.mxu0 0.0
      %3920 = vmatpush.msra.mxu0 0.0
      %3921 = vmatpush.msra.mxu0 0.0
      %3922 = vmatpush.msra.mxu0 0.0
      %3923 = vmatpush.msra.mxu0 0.0
      %3924 = vmatpush.msra.mxu0 0.0
      %3925 = vmatpush.msra.mxu0 0.0
      %3926 = vmatpush.msra.mxu0 0.0
      %3927 = vmatpush.msra.mxu0 0.0
      %3928 = vmatpush.msra.mxu0 0.0
      %3929 = vmatpush.msra.mxu0 0.0
      %3930 = vmatpush.msra.mxu0 0.0
      %3931 = vmatpush.msra.mxu0 %v3911
      %3932 = vmatpush.msra.mxu0 %v3909
      %3933 = vmatmul.f32.gmra.mxu0 %v3915
      %v3934 = vpop.f32.mrf.mxu0
      %v3935 = vadd.f32 0.0, %v3934
      %3936 = vdwg.mxu0
      %3937 = vmatpush.msra.mxu0 0.0
      %3938 = vmatpush.msra.mxu0 0.0
      %3939 = vmatpush.msra.mxu0 0.0
      %3940 = vmatpush.msra.mxu0 0.0
      %3941 = vmatpush.msra.mxu0 0.0
      %3942 = vmatpush.msra.mxu0 0.0
      %3943 = vmatpush.msra.mxu0 0.0
      %3944 = vmatpush.msra.mxu0 0.0
      %3945 = vmatpush.msra.mxu0 0.0
      %3946 = vmatpush.msra.mxu0 0.0
      %3947 = vmatpush.msra.mxu0 0.0
      %3948 = vmatpush.msra.mxu0 0.0
      %3949 = vmatpush.msra.mxu0 0.0
      %3950 = vmatpush.msra.mxu0 0.0
      %3951 = vmatpush.msra.mxu0 %v3912
      %3952 = vmatpush.msra.mxu0 %v3910
      %3953 = vmatmul.f32.gmra.mxu0 %v3915
      %v3954 = vpop.f32.mrf.mxu0
      %v3955 = vadd.f32 0.0, %v3954
      %3956 = vdwg.mxu0
      %3957 = vst [vmem:[#allocation1] ss:$2 sm:$0xff] %v542
      %v3958 = vld.sshfl [vmem:[#allocation1] sm:$0xff pattern:$0x75316420]
      %v3959 = vld.sshfl [vmem:[#allocation1 + $0x8] sm:$0xff pattern:$0x75316420]
      %vm3962 = vcmask 1043456
      %v3963 = vsel %vm3962, %v3958, -inf
      %v3964 = vsel %vm3962, %v3959, -inf
      %v3965 = vmax.f32 %v3963, %v3964
      %3966 = vmax.xlane.f32.xlu0 %v3965
      %v3967 = vpop.xlane.xlu0 %3966
      %v3968 = vmax.f32 %v3967, 0.0
      %v3969 = vrsqrt.pop %v3968
      %v3970 = vmul.f32 %v3969, %v3968
      %v3971 = vmul.f32 %v3970, %v3969
      %v3972 = vmul.f32 0.5, %v3971
      %v3973 = vsub.f32 1.5, %v3972
      %v3974 = vmul.f32 %v3969, %v3973
      %v3975 = vmul.f32 %v3968, %v3974
      %vm3976 = vcmp.eq.f32.partialorder %v3968, inf
      %v3977 = vsel %vm3976, %v3968, %v3975
      %vm3978 = vcmp.eq.f32.partialorder %v3968, 0.0
      %v3979 = vand.u32 %v3968, 2147483648
      %v3980 = vsel %vm3978, %v3979, %v3977
      %v3981 = vmax.f32 %v3980, 0.0
      %v3982 = vmin.f32 %v3981, 1.0
      %v3985 = vunpack.c.l.s4 839922192
      %v3986 = vunpack.c.0.s8 %v3985
      %v3987 = vperm.slane %v3982, %v3986
      %v3989 = vmul.f32 %v542, %v3987
      %v3990 = vsub.f32 1.0, %v3982
      %v3991 = vmul.f32 %v3935, %v3990
      %v3992 = vmul.f32 %v3955, %v3990
      %v3995 = vrot.slane %v3992, 4
      %v3996 = vsel %vm3962, %v3991, %v3995
      %v3998 = vadd.f32 %v3989, %v3996
      %4000 = vst [vmem:[#allocation1] ss:$2 sm:$0xff] %v3998
      %v4001 = vld.sshfl [vmem:[#allocation1] sm:$0xff pattern:$0x75316420]
      %v4002 = vld.sshfl [vmem:[#allocation1 + $0x8] sm:$0xff pattern:$0x75316420]
      %4005 = vst [vmem:[#allocation2] sm:$0xf] %v4001
      %4006 = vst [vmem:[#allocation2 + $0x8] sm:$0xf] %v4002
      %v4007 = vld [vmem:[#allocation2] sm:$0xff]
      %v4008 = vld [vmem:[#allocation2 + $0x8] sm:$0xff]
      %v4009 = vld [vmem:[%s0] sm:$0xff]
      %v4010 = vld [vmem:[%s0 + $0x8] sm:$0xff]
      %v4011 = vld [vmem:[%s0 + $0x10] sm:$0xff]
      %v4012 = vld [vmem:[%s0 + $0x18] sm:$0xff]
      %v4013 = vld [vmem:[%s0 + $0x20] sm:$0xff]
      %v4014 = vld [vmem:[%s0 + $0x28] sm:$0xff]
      %v4015 = vld [vmem:[%s0 + $0x30] sm:$0xff]
      %v4016 = vld [vmem:[%s0 + $0x38] sm:$0xff]
      %v4017 = vld [vmem:[%s0 + $0x40] sm:$0xff]
      %v4018 = vld [vmem:[%s0 + $0x48] sm:$0xff]
      %v4019 = vld [vmem:[%s0 + $0x50] sm:$0xff]
      %v4020 = vld [vmem:[%s0 + $0x58] sm:$0xff]
      %v4021 = vld [vmem:[%s0 + $0x60] sm:$0xff]
      %v4022 = vld [vmem:[%s0 + $0x68] sm:$0xff]
      %v4023 = vld [vmem:[%s0 + $0x70] sm:$0xff]
      %v4024 = vld [vmem:[%s0 + $0x78] sm:$0xff]
      %v4025 = vld [vmem:[%s0 + $0x80] sm:$0xff]
      %v4026 = vld [vmem:[%s0 + $0x88] sm:$0xff]
      %v4027 = vld [vmem:[%s0 + $0x90] sm:$0xff]
      %v4028 = vld [vmem:[%s0 + $0x98] sm:$0xff]
      %v4029 = vld [vmem:[%s0 + $0xa0] sm:$0xff]
      %v4030 = vld [vmem:[%s0 + $0xa8] sm:$0xff]
      %v4031 = vld [vmem:[%s0 + $0xb0] sm:$0xff]
      %v4032 = vld [vmem:[%s0 + $0xb8] sm:$0xff]
      %v4033 = vld [vmem:[%s0 + $0xc0] sm:$0xff]
      %v4034 = vld [vmem:[%s0 + $0xc8] sm:$0xff]
      %v4035 = vld [vmem:[%s0 + $0xd0] sm:$0xff]
      %v4036 = vld [vmem:[%s0 + $0xd8] sm:$0xff]
      %v4037 = vld [vmem:[%s0 + $0xe0] sm:$0xff]
      %v4038 = vld [vmem:[%s0 + $0xe8] sm:$0xff]
      %v4039 = vld [vmem:[%s0 + $0xf0] sm:$0xff]
      %v4040 = vld [vmem:[%s0 + $0xf8] sm:$0xff]
      %4041 = vmatpush.msra.mxu0 %v4024
      %4042 = vmatpush.msra.mxu0 %v4023
      %4043 = vmatpush.msra.mxu0 %v4022
      %4044 = vmatpush.msra.mxu0 %v4021
      %4045 = vmatpush.msra.mxu0 %v4020
      %4046 = vmatpush.msra.mxu0 %v4019
      %4047 = vmatpush.msra.mxu0 %v4018
      %4048 = vmatpush.msra.mxu0 %v4017
      %4049 = vmatpush.msra.mxu0 %v4016
      %4050 = vmatpush.msra.mxu0 %v4015
      %4051 = vmatpush.msra.mxu0 %v4014
      %4052 = vmatpush.msra.mxu0 %v4013
      %4053 = vmatpush.msra.mxu0 %v4012
      %4054 = vmatpush.msra.mxu0 %v4011
      %4055 = vmatpush.msra.mxu0 %v4010
      %4056 = vmatpush.msra.mxu0 %v4009
      %4057 = vmatmul.f32.gmra.mxu0 %v4007
      %v4058 = vpop.f32.mrf.mxu0
      %v4059 = vadd.f32 0.0, %v4058
      %4060 = vdwg.mxu0
      %4061 = vmatpush.msra.mxu0 %v4040
      %4062 = vmatpush.msra.mxu0 %v4039
      %4063 = vmatpush.msra.mxu0 %v4038
      %4064 = vmatpush.msra.mxu0 %v4037
      %4065 = vmatpush.msra.mxu0 %v4036
      %4066 = vmatpush.msra.mxu0 %v4035
      %4067 = vmatpush.msra.mxu0 %v4034
      %4068 = vmatpush.msra.mxu0 %v4033
      %4069 = vmatpush.msra.mxu0 %v4032
      %4070 = vmatpush.msra.mxu0 %v4031
      %4071 = vmatpush.msra.mxu0 %v4030
      %4072 = vmatpush.msra.mxu0 %v4029
      %4073 = vmatpush.msra.mxu0 %v4028
      %4074 = vmatpush.msra.mxu0 %v4027
      %4075 = vmatpush.msra.mxu0 %v4026
      %4076 = vmatpush.msra.mxu0 %v4025
      %4077 = vmatmul.f32.gmra.mxu0 %v4008
      %v4078 = vpop.f32.mrf.mxu0
      %v4079 = vadd.f32 %v4059, %v4078
      %4080 = vdwg.mxu0
      %s4081 = scalar_lea.vmem %s5, 1152
      %v4082 = vld [vmem:[%s4081] sm:$0xff]
      %v4083 = vld [vmem:[%s4081 + $0x8] sm:$0xff]
      %v4084 = vld [vmem:[%s4081 + $0x10] sm:$0xff]
      %v4085 = vld [vmem:[%s4081 + $0x18] sm:$0xff]
      %v4086 = vld [vmem:[%s4081 + $0x20] sm:$0xff]
      %v4087 = vld [vmem:[%s4081 + $0x28] sm:$0xff]
      %v4088 = vld [vmem:[%s4081 + $0x30] sm:$0xff]
      %v4089 = vld [vmem:[%s4081 + $0x38] sm:$0xff]
      %v4090 = vld [vmem:[%s4081 + $0x40] sm:$0xff]
      %v4091 = vld [vmem:[%s4081 + $0x48] sm:$0xff]
      %v4092 = vld [vmem:[%s4081 + $0x50] sm:$0xff]
      %v4093 = vld [vmem:[%s4081 + $0x58] sm:$0xff]
      %v4094 = vld [vmem:[%s4081 + $0x60] sm:$0xff]
      %v4095 = vld [vmem:[%s4081 + $0x68] sm:$0xff]
      %v4096 = vld [vmem:[%s4081 + $0x70] sm:$0xff]
      %v4097 = vld [vmem:[%s4081 + $0x78] sm:$0xff]
      %v4098 = vld [vmem:[%s651] sm:$0xff]
      %v4099 = vld [vmem:[%s651 + $0x8] sm:$0xff]
      %v4100 = vld [vmem:[%s651 + $0x10] sm:$0xff]
      %v4101 = vld [vmem:[%s651 + $0x18] sm:$0xff]
      %v4102 = vld [vmem:[%s651 + $0x20] sm:$0xff]
      %v4103 = vld [vmem:[%s651 + $0x28] sm:$0xff]
      %v4104 = vld [vmem:[%s651 + $0x30] sm:$0xff]
      %v4105 = vld [vmem:[%s651 + $0x38] sm:$0xff]
      %v4106 = vld [vmem:[%s651 + $0x40] sm:$0xff]
      %v4107 = vld [vmem:[%s651 + $0x48] sm:$0xff]
      %v4108 = vld [vmem:[%s651 + $0x50] sm:$0xff]
      %v4109 = vld [vmem:[%s651 + $0x58] sm:$0xff]
      %v4110 = vld [vmem:[%s651 + $0x60] sm:$0xff]
      %v4111 = vld [vmem:[%s651 + $0x68] sm:$0xff]
      %v4112 = vld [vmem:[%s651 + $0x70] sm:$0xff]
      %v4113 = vld [vmem:[%s651 + $0x78] sm:$0xff]
      %v4114 = vld [vmem:[%s651 + $0x80] sm:$0xff]
      %v4115 = vld [vmem:[%s651 + $0x88] sm:$0xff]
      %v4116 = vld [vmem:[%s651 + $0x90] sm:$0xff]
      %v4117 = vld [vmem:[%s651 + $0x98] sm:$0xff]
      %v4118 = vld [vmem:[%s651 + $0xa0] sm:$0xff]
      %v4119 = vld [vmem:[%s651 + $0xa8] sm:$0xff]
      %v4120 = vld [vmem:[%s651 + $0xb0] sm:$0xff]
      %v4121 = vld [vmem:[%s651 + $0xb8] sm:$0xff]
      %v4122 = vld [vmem:[%s651 + $0xc0] sm:$0xff]
      %v4123 = vld [vmem:[%s651 + $0xc8] sm:$0xff]
      %v4124 = vld [vmem:[%s651 + $0xd0] sm:$0xff]
      %v4125 = vld [vmem:[%s651 + $0xd8] sm:$0xff]
      %v4126 = vld [vmem:[%s651 + $0xe0] sm:$0xff]
      %v4127 = vld [vmem:[%s651 + $0xe8] sm:$0xff]
      %v4128 = vld [vmem:[%s651 + $0xf0] sm:$0xff]
      %v4129 = vld [vmem:[%s651 + $0xf8] sm:$0xff]
      %4130 = vmatpush.msra.mxu0 %v4113
      %4131 = vmatpush.msra.mxu0 %v4112
      %4132 = vmatpush.msra.mxu0 %v4111
      %4133 = vmatpush.msra.mxu0 %v4110
      %4134 = vmatpush.msra.mxu0 %v4109
      %4135 = vmatpush.msra.mxu0 %v4108
      %4136 = vmatpush.msra.mxu0 %v4107
      %4137 = vmatpush.msra.mxu0 %v4106
      %4138 = vmatpush.msra.mxu0 %v4105
      %4139 = vmatpush.msra.mxu0 %v4104
      %4140 = vmatpush.msra.mxu0 %v4103
      %4141 = vmatpush.msra.mxu0 %v4102
      %4142 = vmatpush.msra.mxu0 %v4101
      %4143 = vmatpush.msra.mxu0 %v4100
      %4144 = vmatpush.msra.mxu0 %v4099
      %4145 = vmatpush.msra.mxu0 %v4098
      %4146 = vmatmul.f32.gmra.mxu0 %v4007
      %v4147 = vpop.f32.mrf.mxu0
      %v4148 = vadd.f32 0.0, %v4147
      %4149 = vdwg.mxu0
      %4150 = vmatpush.msra.mxu0 %v4129
      %4151 = vmatpush.msra.mxu0 %v4128
      %4152 = vmatpush.msra.mxu0 %v4127
      %4153 = vmatpush.msra.mxu0 %v4126
      %4154 = vmatpush.msra.mxu0 %v4125
      %4155 = vmatpush.msra.mxu0 %v4124
      %4156 = vmatpush.msra.mxu0 %v4123
      %4157 = vmatpush.msra.mxu0 %v4122
      %4158 = vmatpush.msra.mxu0 %v4121
      %4159 = vmatpush.msra.mxu0 %v4120
      %4160 = vmatpush.msra.mxu0 %v4119
      %4161 = vmatpush.msra.mxu0 %v4118
      %4162 = vmatpush.msra.mxu0 %v4117
      %4163 = vmatpush.msra.mxu0 %v4116
      %4164 = vmatpush.msra.mxu0 %v4115
      %4165 = vmatpush.msra.mxu0 %v4114
      %4166 = vmatmul.f32.gmra.mxu0 %v4008
      %v4167 = vpop.f32.mrf.mxu0
      %v4168 = vadd.f32 %v4148, %v4167
      %4169 = vdwg.mxu0
      %s4170 = scalar_lea.vmem %s5, 1280
      %v4171 = vld [vmem:[%s4170] sm:$0xff]
      %v4172 = vld [vmem:[%s4170 + $0x8] sm:$0xff]
      %v4173 = vld [vmem:[%s4170 + $0x10] sm:$0xff]
      %v4174 = vld [vmem:[%s4170 + $0x18] sm:$0xff]
      %v4175 = vld [vmem:[%s4170 + $0x20] sm:$0xff]
      %v4176 = vld [vmem:[%s4170 + $0x28] sm:$0xff]
      %v4177 = vld [vmem:[%s4170 + $0x30] sm:$0xff]
      %v4178 = vld [vmem:[%s4170 + $0x38] sm:$0xff]
      %v4179 = vld [vmem:[%s4170 + $0x40] sm:$0xff]
      %v4180 = vld [vmem:[%s4170 + $0x48] sm:$0xff]
      %v4181 = vld [vmem:[%s4170 + $0x50] sm:$0xff]
      %v4182 = vld [vmem:[%s4170 + $0x58] sm:$0xff]
      %v4183 = vld [vmem:[%s4170 + $0x60] sm:$0xff]
      %v4184 = vld [vmem:[%s4170 + $0x68] sm:$0xff]
      %v4185 = vld [vmem:[%s4170 + $0x70] sm:$0xff]
      %v4186 = vld [vmem:[%s4170 + $0x78] sm:$0xff]
      %v4188 = vsel %vm741, %v4171, 0
      %v4191 = vsel %vm741, %v4172, 0
      %v4194 = vsel %vm741, %v4173, 0
      %v4197 = vsel %vm741, %v4174, 0
      %v4200 = vsel %vm741, %v4175, 0
      %v4203 = vsel %vm741, %v4176, 0
      %v4206 = vsel %vm741, %v4177, 0
      %v4209 = vsel %vm741, %v4178, 0
      %v4212 = vsel %vm741, %v4179, 0
      %v4215 = vsel %vm741, %v4180, 0
      %v4218 = vsel %vm741, %v4181, 0
      %v4221 = vsel %vm741, %v4182, 0
      %v4224 = vsel %vm741, %v4183, 0
      %v4227 = vsel %vm741, %v4184, 0
      %v4230 = vsel %vm741, %v4185, 0
      %v4233 = vsel %vm741, %v4186, 0
      %4235 = vmatpush.msra.mxu0 0.0
      %4236 = vmatpush.msra.mxu0 0.0
      %4237 = vmatpush.msra.mxu0 0.0
      %4238 = vmatpush.msra.mxu0 0.0
      %4239 = vmatpush.msra.mxu0 0.0
      %4240 = vmatpush.msra.mxu0 0.0
      %4241 = vmatpush.msra.mxu0 0.0
      %4242 = vmatpush.msra.mxu0 0.0
      %4243 = vmatpush.msra.mxu0 0.0
      %4244 = vmatpush.msra.mxu0 0.0
      %4245 = vmatpush.msra.mxu0 0.0
      %4246 = vmatpush.msra.mxu0 0.0
      %4247 = vmatpush.msra.mxu0 0.0
      %4248 = vmatpush.msra.mxu0 0.0
      %4249 = vmatpush.msra.mxu0 0.0
      %4250 = vmatpush.msra.mxu0 %v4168
      %4251 = vmatmul.f32.gmra.mxu0 %v4188
      %v4252 = vpop.f32.mrf.mxu0
      %v4253 = vadd.f32 0.0, %v4252
      %4254 = vmatmul.f32.gmra.mxu0 %v4191
      %v4255 = vpop.f32.mrf.mxu0
      %v4256 = vadd.f32 0.0, %v4255
      %4257 = vmatmul.f32.gmra.mxu0 %v4194
      %v4258 = vpop.f32.mrf.mxu0
      %v4259 = vadd.f32 0.0, %v4258
      %4260 = vmatmul.f32.gmra.mxu0 %v4197
      %v4261 = vpop.f32.mrf.mxu0
      %v4262 = vadd.f32 0.0, %v4261
      %4263 = vmatmul.f32.gmra.mxu0 %v4200
      %v4264 = vpop.f32.mrf.mxu0
      %v4265 = vadd.f32 0.0, %v4264
      %4266 = vmatmul.f32.gmra.mxu0 %v4203
      %v4267 = vpop.f32.mrf.mxu0
      %v4268 = vadd.f32 0.0, %v4267
      %4269 = vmatmul.f32.gmra.mxu0 %v4206
      %v4270 = vpop.f32.mrf.mxu0
      %v4271 = vadd.f32 0.0, %v4270
      %4272 = vmatmul.f32.gmra.mxu0 %v4209
      %v4273 = vpop.f32.mrf.mxu0
      %v4274 = vadd.f32 0.0, %v4273
      %4275 = vmatmul.f32.gmra.mxu0 %v4212
      %v4276 = vpop.f32.mrf.mxu0
      %v4277 = vadd.f32 0.0, %v4276
      %4278 = vmatmul.f32.gmra.mxu0 %v4215
      %v4279 = vpop.f32.mrf.mxu0
      %v4280 = vadd.f32 0.0, %v4279
      %4281 = vmatmul.f32.gmra.mxu0 %v4218
      %v4282 = vpop.f32.mrf.mxu0
      %v4283 = vadd.f32 0.0, %v4282
      %4284 = vmatmul.f32.gmra.mxu0 %v4221
      %v4285 = vpop.f32.mrf.mxu0
      %v4286 = vadd.f32 0.0, %v4285
      %4287 = vmatmul.f32.gmra.mxu0 %v4224
      %v4288 = vpop.f32.mrf.mxu0
      %v4289 = vadd.f32 0.0, %v4288
      %4290 = vmatmul.f32.gmra.mxu0 %v4227
      %v4291 = vpop.f32.mrf.mxu0
      %v4292 = vadd.f32 0.0, %v4291
      %4293 = vmatmul.f32.gmra.mxu0 %v4230
      %v4294 = vpop.f32.mrf.mxu0
      %v4295 = vadd.f32 0.0, %v4294
      %4296 = vmatmul.f32.gmra.mxu0 %v4233
      %v4297 = vpop.f32.mrf.mxu0
      %v4298 = vadd.f32 0.0, %v4297
      %4299 = vdwg.mxu0
      %v4301 = vsel %vm741, %v4082, 0
      %v4304 = vsel %vm741, %v4083, 0
      %v4307 = vsel %vm741, %v4084, 0
      %v4310 = vsel %vm741, %v4085, 0
      %v4313 = vsel %vm741, %v4086, 0
      %v4316 = vsel %vm741, %v4087, 0
      %v4319 = vsel %vm741, %v4088, 0
      %v4322 = vsel %vm741, %v4089, 0
      %v4325 = vsel %vm741, %v4090, 0
      %v4328 = vsel %vm741, %v4091, 0
      %v4331 = vsel %vm741, %v4092, 0
      %v4334 = vsel %vm741, %v4093, 0
      %v4337 = vsel %vm741, %v4094, 0
      %v4340 = vsel %vm741, %v4095, 0
      %v4343 = vsel %vm741, %v4096, 0
      %v4346 = vsel %vm741, %v4097, 0
      %4348 = vmatpush.msra.mxu0 0.0
      %4349 = vmatpush.msra.mxu0 0.0
      %4350 = vmatpush.msra.mxu0 0.0
      %4351 = vmatpush.msra.mxu0 0.0
      %4352 = vmatpush.msra.mxu0 0.0
      %4353 = vmatpush.msra.mxu0 0.0
      %4354 = vmatpush.msra.mxu0 0.0
      %4355 = vmatpush.msra.mxu0 0.0
      %4356 = vmatpush.msra.mxu0 0.0
      %4357 = vmatpush.msra.mxu0 0.0
      %4358 = vmatpush.msra.mxu0 0.0
      %4359 = vmatpush.msra.mxu0 0.0
      %4360 = vmatpush.msra.mxu0 0.0
      %4361 = vmatpush.msra.mxu0 0.0
      %4362 = vmatpush.msra.mxu0 0.0
      %4363 = vmatpush.msra.mxu0 %v4079
      %4364 = vmatmul.f32.gmra.mxu0 %v4301
      %v4365 = vpop.f32.mrf.mxu0
      %v4366 = vadd.f32 %v4253, %v4365
      %4367 = vmatmul.f32.gmra.mxu0 %v4304
      %v4368 = vpop.f32.mrf.mxu0
      %v4369 = vadd.f32 %v4256, %v4368
      %4370 = vmatmul.f32.gmra.mxu0 %v4307
      %v4371 = vpop.f32.mrf.mxu0
      %v4372 = vadd.f32 %v4259, %v4371
      %4373 = vmatmul.f32.gmra.mxu0 %v4310
      %v4374 = vpop.f32.mrf.mxu0
      %v4375 = vadd.f32 %v4262, %v4374
      %4376 = vmatmul.f32.gmra.mxu0 %v4313
      %v4377 = vpop.f32.mrf.mxu0
      %v4378 = vadd.f32 %v4265, %v4377
      %4379 = vmatmul.f32.gmra.mxu0 %v4316
      %v4380 = vpop.f32.mrf.mxu0
      %v4381 = vadd.f32 %v4268, %v4380
      %4382 = vmatmul.f32.gmra.mxu0 %v4319
      %v4383 = vpop.f32.mrf.mxu0
      %v4384 = vadd.f32 %v4271, %v4383
      %4385 = vmatmul.f32.gmra.mxu0 %v4322
      %v4386 = vpop.f32.mrf.mxu0
      %v4387 = vadd.f32 %v4274, %v4386
      %4388 = vmatmul.f32.gmra.mxu0 %v4325
      %v4389 = vpop.f32.mrf.mxu0
      %v4390 = vadd.f32 %v4277, %v4389
      %4391 = vmatmul.f32.gmra.mxu0 %v4328
      %v4392 = vpop.f32.mrf.mxu0
      %v4393 = vadd.f32 %v4280, %v4392
      %4394 = vmatmul.f32.gmra.mxu0 %v4331
      %v4395 = vpop.f32.mrf.mxu0
      %v4396 = vadd.f32 %v4283, %v4395
      %4397 = vmatmul.f32.gmra.mxu0 %v4334
      %v4398 = vpop.f32.mrf.mxu0
      %v4399 = vadd.f32 %v4286, %v4398
      %4400 = vmatmul.f32.gmra.mxu0 %v4337
      %v4401 = vpop.f32.mrf.mxu0
      %v4402 = vadd.f32 %v4289, %v4401
      %4403 = vmatmul.f32.gmra.mxu0 %v4340
      %v4404 = vpop.f32.mrf.mxu0
      %v4405 = vadd.f32 %v4292, %v4404
      %4406 = vmatmul.f32.gmra.mxu0 %v4343
      %v4407 = vpop.f32.mrf.mxu0
      %v4408 = vadd.f32 %v4295, %v4407
      %4409 = vmatmul.f32.gmra.mxu0 %v4346
      %v4410 = vpop.f32.mrf.mxu0
      %v4411 = vadd.f32 %v4298, %v4410
      %4412 = vdwg.mxu0
      %v4413 = vld [vmem:[%s968] sm:$0xff]
      %v4414 = vld [vmem:[%s968 + $0x8] sm:$0xff]
      %v4415 = vld [vmem:[%s968 + $0x10] sm:$0xff]
      %v4416 = vld [vmem:[%s968 + $0x18] sm:$0xff]
      %v4417 = vld [vmem:[%s968 + $0x20] sm:$0xff]
      %v4418 = vld [vmem:[%s968 + $0x28] sm:$0xff]
      %v4419 = vld [vmem:[%s968 + $0x30] sm:$0xff]
      %v4420 = vld [vmem:[%s968 + $0x38] sm:$0xff]
      %v4421 = vld [vmem:[%s968 + $0x40] sm:$0xff]
      %v4422 = vld [vmem:[%s968 + $0x48] sm:$0xff]
      %v4423 = vld [vmem:[%s968 + $0x50] sm:$0xff]
      %v4424 = vld [vmem:[%s968 + $0x58] sm:$0xff]
      %v4425 = vld [vmem:[%s968 + $0x60] sm:$0xff]
      %v4426 = vld [vmem:[%s968 + $0x68] sm:$0xff]
      %v4427 = vld [vmem:[%s968 + $0x70] sm:$0xff]
      %v4428 = vld [vmem:[%s968 + $0x78] sm:$0xff]
      %v4429 = vld [vmem:[%s968 + $0x80] sm:$0xff]
      %v4430 = vld [vmem:[%s968 + $0x88] sm:$0xff]
      %v4431 = vld [vmem:[%s968 + $0x90] sm:$0xff]
      %v4432 = vld [vmem:[%s968 + $0x98] sm:$0xff]
      %v4433 = vld [vmem:[%s968 + $0xa0] sm:$0xff]
      %v4434 = vld [vmem:[%s968 + $0xa8] sm:$0xff]
      %v4435 = vld [vmem:[%s968 + $0xb0] sm:$0xff]
      %v4436 = vld [vmem:[%s968 + $0xb8] sm:$0xff]
      %v4437 = vld [vmem:[%s968 + $0xc0] sm:$0xff]
      %v4438 = vld [vmem:[%s968 + $0xc8] sm:$0xff]
      %v4439 = vld [vmem:[%s968 + $0xd0] sm:$0xff]
      %v4440 = vld [vmem:[%s968 + $0xd8] sm:$0xff]
      %v4441 = vld [vmem:[%s968 + $0xe0] sm:$0xff]
      %v4442 = vld [vmem:[%s968 + $0xe8] sm:$0xff]
      %v4443 = vld [vmem:[%s968 + $0xf0] sm:$0xff]
      %v4444 = vld [vmem:[%s968 + $0xf8] sm:$0xff]
      %4445 = vmatpush.msra.mxu0 %v4428
      %4446 = vmatpush.msra.mxu0 %v4427
      %4447 = vmatpush.msra.mxu0 %v4426
      %4448 = vmatpush.msra.mxu0 %v4425
      %4449 = vmatpush.msra.mxu0 %v4424
      %4450 = vmatpush.msra.mxu0 %v4423
      %4451 = vmatpush.msra.mxu0 %v4422
      %4452 = vmatpush.msra.mxu0 %v4421
      %4453 = vmatpush.msra.mxu0 %v4420
      %4454 = vmatpush.msra.mxu0 %v4419
      %4455 = vmatpush.msra.mxu0 %v4418
      %4456 = vmatpush.msra.mxu0 %v4417
      %4457 = vmatpush.msra.mxu0 %v4416
      %4458 = vmatpush.msra.mxu0 %v4415
      %4459 = vmatpush.msra.mxu0 %v4414
      %4460 = vmatpush.msra.mxu0 %v4413
      %4461 = vmatmul.f32.gmra.mxu0 %v4007
      %v4462 = vpop.f32.mrf.mxu0
      %v4463 = vadd.f32 0.0, %v4462
      %4464 = vdwg.mxu0
      %4465 = vmatpush.msra.mxu0 %v4444
      %4466 = vmatpush.msra.mxu0 %v4443
      %4467 = vmatpush.msra.mxu0 %v4442
      %4468 = vmatpush.msra.mxu0 %v4441
      %4469 = vmatpush.msra.mxu0 %v4440
      %4470 = vmatpush.msra.mxu0 %v4439
      %4471 = vmatpush.msra.mxu0 %v4438
      %4472 = vmatpush.msra.mxu0 %v4437
      %4473 = vmatpush.msra.mxu0 %v4436
      %4474 = vmatpush.msra.mxu0 %v4435
      %4475 = vmatpush.msra.mxu0 %v4434
      %4476 = vmatpush.msra.mxu0 %v4433
      %4477 = vmatpush.msra.mxu0 %v4432
      %4478 = vmatpush.msra.mxu0 %v4431
      %4479 = vmatpush.msra.mxu0 %v4430
      %4480 = vmatpush.msra.mxu0 %v4429
      %4481 = vmatmul.f32.gmra.mxu0 %v4008
      %v4482 = vpop.f32.mrf.mxu0
      %v4483 = vadd.f32 %v4463, %v4482
      %4484 = vdwg.mxu0
      %s4485 = scalar_lea.vmem %s5, 1408
      %v4486 = vld [vmem:[%s4485] sm:$0xff]
      %v4487 = vld [vmem:[%s4485 + $0x8] sm:$0xff]
      %v4488 = vld [vmem:[%s4485 + $0x10] sm:$0xff]
      %v4489 = vld [vmem:[%s4485 + $0x18] sm:$0xff]
      %v4490 = vld [vmem:[%s4485 + $0x20] sm:$0xff]
      %v4491 = vld [vmem:[%s4485 + $0x28] sm:$0xff]
      %v4492 = vld [vmem:[%s4485 + $0x30] sm:$0xff]
      %v4493 = vld [vmem:[%s4485 + $0x38] sm:$0xff]
      %v4494 = vld [vmem:[%s4485 + $0x40] sm:$0xff]
      %v4495 = vld [vmem:[%s4485 + $0x48] sm:$0xff]
      %v4496 = vld [vmem:[%s4485 + $0x50] sm:$0xff]
      %v4497 = vld [vmem:[%s4485 + $0x58] sm:$0xff]
      %v4498 = vld [vmem:[%s4485 + $0x60] sm:$0xff]
      %v4499 = vld [vmem:[%s4485 + $0x68] sm:$0xff]
      %v4500 = vld [vmem:[%s4485 + $0x70] sm:$0xff]
      %v4501 = vld [vmem:[%s4485 + $0x78] sm:$0xff]
      %v4503 = vsel %vm741, %v4486, 0
      %v4506 = vsel %vm741, %v4487, 0
      %v4509 = vsel %vm741, %v4488, 0
      %v4512 = vsel %vm741, %v4489, 0
      %v4515 = vsel %vm741, %v4490, 0
      %v4518 = vsel %vm741, %v4491, 0
      %v4521 = vsel %vm741, %v4492, 0
      %v4524 = vsel %vm741, %v4493, 0
      %v4527 = vsel %vm741, %v4494, 0
      %v4530 = vsel %vm741, %v4495, 0
      %v4533 = vsel %vm741, %v4496, 0
      %v4536 = vsel %vm741, %v4497, 0
      %v4539 = vsel %vm741, %v4498, 0
      %v4542 = vsel %vm741, %v4499, 0
      %v4545 = vsel %vm741, %v4500, 0
      %v4548 = vsel %vm741, %v4501, 0
      %4550 = vmatpush.msra.mxu0 0.0
      %4551 = vmatpush.msra.mxu0 0.0
      %4552 = vmatpush.msra.mxu0 0.0
      %4553 = vmatpush.msra.mxu0 0.0
      %4554 = vmatpush.msra.mxu0 0.0
      %4555 = vmatpush.msra.mxu0 0.0
      %4556 = vmatpush.msra.mxu0 0.0
      %4557 = vmatpush.msra.mxu0 0.0
      %4558 = vmatpush.msra.mxu0 0.0
      %4559 = vmatpush.msra.mxu0 0.0
      %4560 = vmatpush.msra.mxu0 0.0
      %4561 = vmatpush.msra.mxu0 0.0
      %4562 = vmatpush.msra.mxu0 0.0
      %4563 = vmatpush.msra.mxu0 0.0
      %4564 = vmatpush.msra.mxu0 0.0
      %4565 = vmatpush.msra.mxu0 %v4483
      %4566 = vmatmul.f32.gmra.mxu0 %v4503
      %v4567 = vpop.f32.mrf.mxu0
      %v4568 = vadd.f32 0.0, %v4567
      %4569 = vmatmul.f32.gmra.mxu0 %v4506
      %v4570 = vpop.f32.mrf.mxu0
      %v4571 = vadd.f32 0.0, %v4570
      %4572 = vmatmul.f32.gmra.mxu0 %v4509
      %v4573 = vpop.f32.mrf.mxu0
      %v4574 = vadd.f32 0.0, %v4573
      %4575 = vmatmul.f32.gmra.mxu0 %v4512
      %v4576 = vpop.f32.mrf.mxu0
      %v4577 = vadd.f32 0.0, %v4576
      %4578 = vmatmul.f32.gmra.mxu0 %v4515
      %v4579 = vpop.f32.mrf.mxu0
      %v4580 = vadd.f32 0.0, %v4579
      %4581 = vmatmul.f32.gmra.mxu0 %v4518
      %v4582 = vpop.f32.mrf.mxu0
      %v4583 = vadd.f32 0.0, %v4582
      %4584 = vmatmul.f32.gmra.mxu0 %v4521
      %v4585 = vpop.f32.mrf.mxu0
      %v4586 = vadd.f32 0.0, %v4585
      %4587 = vmatmul.f32.gmra.mxu0 %v4524
      %v4588 = vpop.f32.mrf.mxu0
      %v4589 = vadd.f32 0.0, %v4588
      %4590 = vmatmul.f32.gmra.mxu0 %v4527
      %v4591 = vpop.f32.mrf.mxu0
      %v4592 = vadd.f32 0.0, %v4591
      %4593 = vmatmul.f32.gmra.mxu0 %v4530
      %v4594 = vpop.f32.mrf.mxu0
      %v4595 = vadd.f32 0.0, %v4594
      %4596 = vmatmul.f32.gmra.mxu0 %v4533
      %v4597 = vpop.f32.mrf.mxu0
      %v4598 = vadd.f32 0.0, %v4597
      %4599 = vmatmul.f32.gmra.mxu0 %v4536
      %v4600 = vpop.f32.mrf.mxu0
      %v4601 = vadd.f32 0.0, %v4600
      %4602 = vmatmul.f32.gmra.mxu0 %v4539
      %v4603 = vpop.f32.mrf.mxu0
      %v4604 = vadd.f32 0.0, %v4603
      %4605 = vmatmul.f32.gmra.mxu0 %v4542
      %v4606 = vpop.f32.mrf.mxu0
      %v4607 = vadd.f32 0.0, %v4606
      %4608 = vmatmul.f32.gmra.mxu0 %v4545
      %v4609 = vpop.f32.mrf.mxu0
      %v4610 = vadd.f32 0.0, %v4609
      %4611 = vmatmul.f32.gmra.mxu0 %v4548
      %v4612 = vpop.f32.mrf.mxu0
      %v4613 = vadd.f32 0.0, %v4612
      %4614 = vdwg.mxu0
      %v4615 = vadd.f32 %v4366, %v4568
      %v4616 = vadd.f32 %v4369, %v4571
      %v4617 = vadd.f32 %v4372, %v4574
      %v4618 = vadd.f32 %v4375, %v4577
      %v4619 = vadd.f32 %v4378, %v4580
      %v4620 = vadd.f32 %v4381, %v4583
      %v4621 = vadd.f32 %v4384, %v4586
      %v4622 = vadd.f32 %v4387, %v4589
      %v4623 = vadd.f32 %v4390, %v4592
      %v4624 = vadd.f32 %v4393, %v4595
      %v4625 = vadd.f32 %v4396, %v4598
      %v4626 = vadd.f32 %v4399, %v4601
      %v4627 = vadd.f32 %v4402, %v4604
      %v4628 = vadd.f32 %v4405, %v4607
      %v4629 = vadd.f32 %v4408, %v4610
      %v4630 = vadd.f32 %v4411, %v4613
      %v4631 = vld [vmem:[%s1187] sm:$0xff]
      %v4632 = vld [vmem:[%s1187 + $0x8] sm:$0xff]
      %v4633 = vld [vmem:[%s1187 + $0x10] sm:$0xff]
      %v4634 = vld [vmem:[%s1187 + $0x18] sm:$0xff]
      %v4635 = vld [vmem:[%s1187 + $0x20] sm:$0xff]
      %v4636 = vld [vmem:[%s1187 + $0x28] sm:$0xff]
      %v4637 = vld [vmem:[%s1187 + $0x30] sm:$0xff]
      %v4638 = vld [vmem:[%s1187 + $0x38] sm:$0xff]
      %v4639 = vld [vmem:[%s1187 + $0x40] sm:$0xff]
      %v4640 = vld [vmem:[%s1187 + $0x48] sm:$0xff]
      %v4641 = vld [vmem:[%s1187 + $0x50] sm:$0xff]
      %v4642 = vld [vmem:[%s1187 + $0x58] sm:$0xff]
      %v4643 = vld [vmem:[%s1187 + $0x60] sm:$0xff]
      %v4644 = vld [vmem:[%s1187 + $0x68] sm:$0xff]
      %v4645 = vld [vmem:[%s1187 + $0x70] sm:$0xff]
      %v4646 = vld [vmem:[%s1187 + $0x78] sm:$0xff]
      %v4647 = vld [vmem:[%s1187 + $0x80] sm:$0xff]
      %v4648 = vld [vmem:[%s1187 + $0x88] sm:$0xff]
      %v4649 = vld [vmem:[%s1187 + $0x90] sm:$0xff]
      %v4650 = vld [vmem:[%s1187 + $0x98] sm:$0xff]
      %v4651 = vld [vmem:[%s1187 + $0xa0] sm:$0xff]
      %v4652 = vld [vmem:[%s1187 + $0xa8] sm:$0xff]
      %v4653 = vld [vmem:[%s1187 + $0xb0] sm:$0xff]
      %v4654 = vld [vmem:[%s1187 + $0xb8] sm:$0xff]
      %v4655 = vld [vmem:[%s1187 + $0xc0] sm:$0xff]
      %v4656 = vld [vmem:[%s1187 + $0xc8] sm:$0xff]
      %v4657 = vld [vmem:[%s1187 + $0xd0] sm:$0xff]
      %v4658 = vld [vmem:[%s1187 + $0xd8] sm:$0xff]
      %v4659 = vld [vmem:[%s1187 + $0xe0] sm:$0xff]
      %v4660 = vld [vmem:[%s1187 + $0xe8] sm:$0xff]
      %v4661 = vld [vmem:[%s1187 + $0xf0] sm:$0xff]
      %v4662 = vld [vmem:[%s1187 + $0xf8] sm:$0xff]
      %4663 = vmatpush.msra.mxu0 %v4646
      %4664 = vmatpush.msra.mxu0 %v4645
      %4665 = vmatpush.msra.mxu0 %v4644
      %4666 = vmatpush.msra.mxu0 %v4643
      %4667 = vmatpush.msra.mxu0 %v4642
      %4668 = vmatpush.msra.mxu0 %v4641
      %4669 = vmatpush.msra.mxu0 %v4640
      %4670 = vmatpush.msra.mxu0 %v4639
      %4671 = vmatpush.msra.mxu0 %v4638
      %4672 = vmatpush.msra.mxu0 %v4637
      %4673 = vmatpush.msra.mxu0 %v4636
      %4674 = vmatpush.msra.mxu0 %v4635
      %4675 = vmatpush.msra.mxu0 %v4634
      %4676 = vmatpush.msra.mxu0 %v4633
      %4677 = vmatpush.msra.mxu0 %v4632
      %4678 = vmatpush.msra.mxu0 %v4631
      %4679 = vmatmul.f32.gmra.mxu0 %v4007
      %v4680 = vpop.f32.mrf.mxu0
      %v4681 = vadd.f32 0.0, %v4680
      %4682 = vdwg.mxu0
      %4683 = vmatpush.msra.mxu0 %v4662
      %4684 = vmatpush.msra.mxu0 %v4661
      %4685 = vmatpush.msra.mxu0 %v4660
      %4686 = vmatpush.msra.mxu0 %v4659
      %4687 = vmatpush.msra.mxu0 %v4658
      %4688 = vmatpush.msra.mxu0 %v4657
      %4689 = vmatpush.msra.mxu0 %v4656
      %4690 = vmatpush.msra.mxu0 %v4655
      %4691 = vmatpush.msra.mxu0 %v4654
      %4692 = vmatpush.msra.mxu0 %v4653
      %4693 = vmatpush.msra.mxu0 %v4652
      %4694 = vmatpush.msra.mxu0 %v4651
      %4695 = vmatpush.msra.mxu0 %v4650
      %4696 = vmatpush.msra.mxu0 %v4649
      %4697 = vmatpush.msra.mxu0 %v4648
      %4698 = vmatpush.msra.mxu0 %v4647
      %4699 = vmatmul.f32.gmra.mxu0 %v4008
      %v4700 = vpop.f32.mrf.mxu0
      %v4701 = vadd.f32 %v4681, %v4700
      %4702 = vdwg.mxu0
      %s4703 = scalar_lea.vmem %s5, 1536
      %v4704 = vld [vmem:[%s4703] sm:$0xff]
      %v4705 = vld [vmem:[%s4703 + $0x8] sm:$0xff]
      %v4706 = vld [vmem:[%s4703 + $0x10] sm:$0xff]
      %v4707 = vld [vmem:[%s4703 + $0x18] sm:$0xff]
      %v4708 = vld [vmem:[%s4703 + $0x20] sm:$0xff]
      %v4709 = vld [vmem:[%s4703 + $0x28] sm:$0xff]
      %v4710 = vld [vmem:[%s4703 + $0x30] sm:$0xff]
      %v4711 = vld [vmem:[%s4703 + $0x38] sm:$0xff]
      %v4712 = vld [vmem:[%s4703 + $0x40] sm:$0xff]
      %v4713 = vld [vmem:[%s4703 + $0x48] sm:$0xff]
      %v4714 = vld [vmem:[%s4703 + $0x50] sm:$0xff]
      %v4715 = vld [vmem:[%s4703 + $0x58] sm:$0xff]
      %v4716 = vld [vmem:[%s4703 + $0x60] sm:$0xff]
      %v4717 = vld [vmem:[%s4703 + $0x68] sm:$0xff]
      %v4718 = vld [vmem:[%s4703 + $0x70] sm:$0xff]
      %v4719 = vld [vmem:[%s4703 + $0x78] sm:$0xff]
      %v4721 = vsel %vm741, %v4704, 0
      %v4724 = vsel %vm741, %v4705, 0
      %v4727 = vsel %vm741, %v4706, 0
      %v4730 = vsel %vm741, %v4707, 0
      %v4733 = vsel %vm741, %v4708, 0
      %v4736 = vsel %vm741, %v4709, 0
      %v4739 = vsel %vm741, %v4710, 0
      %v4742 = vsel %vm741, %v4711, 0
      %v4745 = vsel %vm741, %v4712, 0
      %v4748 = vsel %vm741, %v4713, 0
      %v4751 = vsel %vm741, %v4714, 0
      %v4754 = vsel %vm741, %v4715, 0
      %v4757 = vsel %vm741, %v4716, 0
      %v4760 = vsel %vm741, %v4717, 0
      %v4763 = vsel %vm741, %v4718, 0
      %v4766 = vsel %vm741, %v4719, 0
      %4768 = vmatpush.msra.mxu0 0.0
      %4769 = vmatpush.msra.mxu0 0.0
      %4770 = vmatpush.msra.mxu0 0.0
      %4771 = vmatpush.msra.mxu0 0.0
      %4772 = vmatpush.msra.mxu0 0.0
      %4773 = vmatpush.msra.mxu0 0.0
      %4774 = vmatpush.msra.mxu0 0.0
      %4775 = vmatpush.msra.mxu0 0.0
      %4776 = vmatpush.msra.mxu0 0.0
      %4777 = vmatpush.msra.mxu0 0.0
      %4778 = vmatpush.msra.mxu0 0.0
      %4779 = vmatpush.msra.mxu0 0.0
      %4780 = vmatpush.msra.mxu0 0.0
      %4781 = vmatpush.msra.mxu0 0.0
      %4782 = vmatpush.msra.mxu0 0.0
      %4783 = vmatpush.msra.mxu0 %v4701
      %4784 = vmatmul.f32.gmra.mxu0 %v4721
      %v4785 = vpop.f32.mrf.mxu0
      %v4786 = vadd.f32 0.0, %v4785
      %4787 = vmatmul.f32.gmra.mxu0 %v4724
      %v4788 = vpop.f32.mrf.mxu0
      %v4789 = vadd.f32 0.0, %v4788
      %4790 = vmatmul.f32.gmra.mxu0 %v4727
      %v4791 = vpop.f32.mrf.mxu0
      %v4792 = vadd.f32 0.0, %v4791
      %4793 = vmatmul.f32.gmra.mxu0 %v4730
      %v4794 = vpop.f32.mrf.mxu0
      %v4795 = vadd.f32 0.0, %v4794
      %4796 = vmatmul.f32.gmra.mxu0 %v4733
      %v4797 = vpop.f32.mrf.mxu0
      %v4798 = vadd.f32 0.0, %v4797
      %4799 = vmatmul.f32.gmra.mxu0 %v4736
      %v4800 = vpop.f32.mrf.mxu0
      %v4801 = vadd.f32 0.0, %v4800
      %4802 = vmatmul.f32.gmra.mxu0 %v4739
      %v4803 = vpop.f32.mrf.mxu0
      %v4804 = vadd.f32 0.0, %v4803
      %4805 = vmatmul.f32.gmra.mxu0 %v4742
      %v4806 = vpop.f32.mrf.mxu0
      %v4807 = vadd.f32 0.0, %v4806
      %4808 = vmatmul.f32.gmra.mxu0 %v4745
      %v4809 = vpop.f32.mrf.mxu0
      %v4810 = vadd.f32 0.0, %v4809
      %4811 = vmatmul.f32.gmra.mxu0 %v4748
      %v4812 = vpop.f32.mrf.mxu0
      %v4813 = vadd.f32 0.0, %v4812
      %4814 = vmatmul.f32.gmra.mxu0 %v4751
      %v4815 = vpop.f32.mrf.mxu0
      %v4816 = vadd.f32 0.0, %v4815
      %4817 = vmatmul.f32.gmra.mxu0 %v4754
      %v4818 = vpop.f32.mrf.mxu0
      %v4819 = vadd.f32 0.0, %v4818
      %4820 = vmatmul.f32.gmra.mxu0 %v4757
      %v4821 = vpop.f32.mrf.mxu0
      %v4822 = vadd.f32 0.0, %v4821
      %4823 = vmatmul.f32.gmra.mxu0 %v4760
      %v4824 = vpop.f32.mrf.mxu0
      %v4825 = vadd.f32 0.0, %v4824
      %4826 = vmatmul.f32.gmra.mxu0 %v4763
      %v4827 = vpop.f32.mrf.mxu0
      %v4828 = vadd.f32 0.0, %v4827
      %4829 = vmatmul.f32.gmra.mxu0 %v4766
      %v4830 = vpop.f32.mrf.mxu0
      %v4831 = vadd.f32 0.0, %v4830
      %4832 = vdwg.mxu0
      %v4833 = vadd.f32 %v4615, %v4786
      %v4834 = vadd.f32 %v4616, %v4789
      %v4835 = vadd.f32 %v4617, %v4792
      %v4836 = vadd.f32 %v4618, %v4795
      %v4837 = vadd.f32 %v4619, %v4798
      %v4838 = vadd.f32 %v4620, %v4801
      %v4839 = vadd.f32 %v4621, %v4804
      %v4840 = vadd.f32 %v4622, %v4807
      %v4841 = vadd.f32 %v4623, %v4810
      %v4842 = vadd.f32 %v4624, %v4813
      %v4843 = vadd.f32 %v4625, %v4816
      %v4844 = vadd.f32 %v4626, %v4819
      %v4845 = vadd.f32 %v4627, %v4822
      %v4846 = vadd.f32 %v4628, %v4825
      %v4847 = vadd.f32 %v4629, %v4828
      %v4848 = vadd.f32 %v4630, %v4831
      %v4849 = vld [vmem:[%s1406] sm:$0xff]
      %v4850 = vld [vmem:[%s1406 + $0x8] sm:$0xff]
      %v4851 = vld [vmem:[%s1406 + $0x10] sm:$0xff]
      %v4852 = vld [vmem:[%s1406 + $0x18] sm:$0xff]
      %v4853 = vld [vmem:[%s1406 + $0x20] sm:$0xff]
      %v4854 = vld [vmem:[%s1406 + $0x28] sm:$0xff]
      %v4855 = vld [vmem:[%s1406 + $0x30] sm:$0xff]
      %v4856 = vld [vmem:[%s1406 + $0x38] sm:$0xff]
      %v4857 = vld [vmem:[%s1406 + $0x40] sm:$0xff]
      %v4858 = vld [vmem:[%s1406 + $0x48] sm:$0xff]
      %v4859 = vld [vmem:[%s1406 + $0x50] sm:$0xff]
      %v4860 = vld [vmem:[%s1406 + $0x58] sm:$0xff]
      %v4861 = vld [vmem:[%s1406 + $0x60] sm:$0xff]
      %v4862 = vld [vmem:[%s1406 + $0x68] sm:$0xff]
      %v4863 = vld [vmem:[%s1406 + $0x70] sm:$0xff]
      %v4864 = vld [vmem:[%s1406 + $0x78] sm:$0xff]
      %v4865 = vld [vmem:[%s1406 + $0x80] sm:$0xff]
      %v4866 = vld [vmem:[%s1406 + $0x88] sm:$0xff]
      %v4867 = vld [vmem:[%s1406 + $0x90] sm:$0xff]
      %v4868 = vld [vmem:[%s1406 + $0x98] sm:$0xff]
      %v4869 = vld [vmem:[%s1406 + $0xa0] sm:$0xff]
      %v4870 = vld [vmem:[%s1406 + $0xa8] sm:$0xff]
      %v4871 = vld [vmem:[%s1406 + $0xb0] sm:$0xff]
      %v4872 = vld [vmem:[%s1406 + $0xb8] sm:$0xff]
      %v4873 = vld [vmem:[%s1406 + $0xc0] sm:$0xff]
      %v4874 = vld [vmem:[%s1406 + $0xc8] sm:$0xff]
      %v4875 = vld [vmem:[%s1406 + $0xd0] sm:$0xff]
      %v4876 = vld [vmem:[%s1406 + $0xd8] sm:$0xff]
      %v4877 = vld [vmem:[%s1406 + $0xe0] sm:$0xff]
      %v4878 = vld [vmem:[%s1406 + $0xe8] sm:$0xff]
      %v4879 = vld [vmem:[%s1406 + $0xf0] sm:$0xff]
      %v4880 = vld [vmem:[%s1406 + $0xf8] sm:$0xff]
      %4881 = vmatpush.msra.mxu0 %v4864
      %4882 = vmatpush.msra.mxu0 %v4863
      %4883 = vmatpush.msra.mxu0 %v4862
      %4884 = vmatpush.msra.mxu0 %v4861
      %4885 = vmatpush.msra.mxu0 %v4860
      %4886 = vmatpush.msra.mxu0 %v4859
      %4887 = vmatpush.msra.mxu0 %v4858
      %4888 = vmatpush.msra.mxu0 %v4857
      %4889 = vmatpush.msra.mxu0 %v4856
      %4890 = vmatpush.msra.mxu0 %v4855
      %4891 = vmatpush.msra.mxu0 %v4854
      %4892 = vmatpush.msra.mxu0 %v4853
      %4893 = vmatpush.msra.mxu0 %v4852
      %4894 = vmatpush.msra.mxu0 %v4851
      %4895 = vmatpush.msra.mxu0 %v4850
      %4896 = vmatpush.msra.mxu0 %v4849
      %4897 = vmatmul.f32.gmra.mxu0 %v4007
      %v4898 = vpop.f32.mrf.mxu0
      %v4899 = vadd.f32 0.0, %v4898
      %4900 = vdwg.mxu0
      %4901 = vmatpush.msra.mxu0 %v4880
      %4902 = vmatpush.msra.mxu0 %v4879
      %4903 = vmatpush.msra.mxu0 %v4878
      %4904 = vmatpush.msra.mxu0 %v4877
      %4905 = vmatpush.msra.mxu0 %v4876
      %4906 = vmatpush.msra.mxu0 %v4875
      %4907 = vmatpush.msra.mxu0 %v4874
      %4908 = vmatpush.msra.mxu0 %v4873
      %4909 = vmatpush.msra.mxu0 %v4872
      %4910 = vmatpush.msra.mxu0 %v4871
      %4911 = vmatpush.msra.mxu0 %v4870
      %4912 = vmatpush.msra.mxu0 %v4869
      %4913 = vmatpush.msra.mxu0 %v4868
      %4914 = vmatpush.msra.mxu0 %v4867
      %4915 = vmatpush.msra.mxu0 %v4866
      %4916 = vmatpush.msra.mxu0 %v4865
      %4917 = vmatmul.f32.gmra.mxu0 %v4008
      %v4918 = vpop.f32.mrf.mxu0
      %v4919 = vadd.f32 %v4899, %v4918
      %4920 = vdwg.mxu0
      %s4921 = scalar_lea.vmem %s5, 1664
      %v4922 = vld [vmem:[%s4921] sm:$0xff]
      %v4923 = vld [vmem:[%s4921 + $0x8] sm:$0xff]
      %v4924 = vld [vmem:[%s4921 + $0x10] sm:$0xff]
      %v4925 = vld [vmem:[%s4921 + $0x18] sm:$0xff]
      %v4926 = vld [vmem:[%s4921 + $0x20] sm:$0xff]
      %v4927 = vld [vmem:[%s4921 + $0x28] sm:$0xff]
      %v4928 = vld [vmem:[%s4921 + $0x30] sm:$0xff]
      %v4929 = vld [vmem:[%s4921 + $0x38] sm:$0xff]
      %v4930 = vld [vmem:[%s4921 + $0x40] sm:$0xff]
      %v4931 = vld [vmem:[%s4921 + $0x48] sm:$0xff]
      %v4932 = vld [vmem:[%s4921 + $0x50] sm:$0xff]
      %v4933 = vld [vmem:[%s4921 + $0x58] sm:$0xff]
      %v4934 = vld [vmem:[%s4921 + $0x60] sm:$0xff]
      %v4935 = vld [vmem:[%s4921 + $0x68] sm:$0xff]
      %v4936 = vld [vmem:[%s4921 + $0x70] sm:$0xff]
      %v4937 = vld [vmem:[%s4921 + $0x78] sm:$0xff]
      %v4939 = vsel %vm741, %v4922, 0
      %v4942 = vsel %vm741, %v4923, 0
      %v4945 = vsel %vm741, %v4924, 0
      %v4948 = vsel %vm741, %v4925, 0
      %v4951 = vsel %vm741, %v4926, 0
      %v4954 = vsel %vm741, %v4927, 0
      %v4957 = vsel %vm741, %v4928, 0
      %v4960 = vsel %vm741, %v4929, 0
      %v4963 = vsel %vm741, %v4930, 0
      %v4966 = vsel %vm741, %v4931, 0
      %v4969 = vsel %vm741, %v4932, 0
      %v4972 = vsel %vm741, %v4933, 0
      %v4975 = vsel %vm741, %v4934, 0
      %v4978 = vsel %vm741, %v4935, 0
      %v4981 = vsel %vm741, %v4936, 0
      %v4984 = vsel %vm741, %v4937, 0
      %4986 = vmatpush.msra.mxu0 0.0
      %4987 = vmatpush.msra.mxu0 0.0
      %4988 = vmatpush.msra.mxu0 0.0
      %4989 = vmatpush.msra.mxu0 0.0
      %4990 = vmatpush.msra.mxu0 0.0
      %4991 = vmatpush.msra.mxu0 0.0
      %4992 = vmatpush.msra.mxu0 0.0
      %4993 = vmatpush.msra.mxu0 0.0
      %4994 = vmatpush.msra.mxu0 0.0
      %4995 = vmatpush.msra.mxu0 0.0
      %4996 = vmatpush.msra.mxu0 0.0
      %4997 = vmatpush.msra.mxu0 0.0
      %4998 = vmatpush.msra.mxu0 0.0
      %4999 = vmatpush.msra.mxu0 0.0
      %5000 = vmatpush.msra.mxu0 0.0
      %5001 = vmatpush.msra.mxu0 %v4919
      %5002 = vmatmul.f32.gmra.mxu0 %v4939
      %v5003 = vpop.f32.mrf.mxu0
      %v5004 = vadd.f32 0.0, %v5003
      %5005 = vmatmul.f32.gmra.mxu0 %v4942
      %v5006 = vpop.f32.mrf.mxu0
      %v5007 = vadd.f32 0.0, %v5006
      %5008 = vmatmul.f32.gmra.mxu0 %v4945
      %v5009 = vpop.f32.mrf.mxu0
      %v5010 = vadd.f32 0.0, %v5009
      %5011 = vmatmul.f32.gmra.mxu0 %v4948
      %v5012 = vpop.f32.mrf.mxu0
      %v5013 = vadd.f32 0.0, %v5012
      %5014 = vmatmul.f32.gmra.mxu0 %v4951
      %v5015 = vpop.f32.mrf.mxu0
      %v5016 = vadd.f32 0.0, %v5015
      %5017 = vmatmul.f32.gmra.mxu0 %v4954
      %v5018 = vpop.f32.mrf.mxu0
      %v5019 = vadd.f32 0.0, %v5018
      %5020 = vmatmul.f32.gmra.mxu0 %v4957
      %v5021 = vpop.f32.mrf.mxu0
      %v5022 = vadd.f32 0.0, %v5021
      %5023 = vmatmul.f32.gmra.mxu0 %v4960
      %v5024 = vpop.f32.mrf.mxu0
      %v5025 = vadd.f32 0.0, %v5024
      %5026 = vmatmul.f32.gmra.mxu0 %v4963
      %v5027 = vpop.f32.mrf.mxu0
      %v5028 = vadd.f32 0.0, %v5027
      %5029 = vmatmul.f32.gmra.mxu0 %v4966
      %v5030 = vpop.f32.mrf.mxu0
      %v5031 = vadd.f32 0.0, %v5030
      %5032 = vmatmul.f32.gmra.mxu0 %v4969
      %v5033 = vpop.f32.mrf.mxu0
      %v5034 = vadd.f32 0.0, %v5033
      %5035 = vmatmul.f32.gmra.mxu0 %v4972
      %v5036 = vpop.f32.mrf.mxu0
      %v5037 = vadd.f32 0.0, %v5036
      %5038 = vmatmul.f32.gmra.mxu0 %v4975
      %v5039 = vpop.f32.mrf.mxu0
      %v5040 = vadd.f32 0.0, %v5039
      %5041 = vmatmul.f32.gmra.mxu0 %v4978
      %v5042 = vpop.f32.mrf.mxu0
      %v5043 = vadd.f32 0.0, %v5042
      %5044 = vmatmul.f32.gmra.mxu0 %v4981
      %v5045 = vpop.f32.mrf.mxu0
      %v5046 = vadd.f32 0.0, %v5045
      %5047 = vmatmul.f32.gmra.mxu0 %v4984
      %v5048 = vpop.f32.mrf.mxu0
      %v5049 = vadd.f32 0.0, %v5048
      %5050 = vdwg.mxu0
      %v5051 = vadd.f32 %v4833, %v5004
      %v5052 = vadd.f32 %v4834, %v5007
      %v5053 = vadd.f32 %v4835, %v5010
      %v5054 = vadd.f32 %v4836, %v5013
      %v5055 = vadd.f32 %v4837, %v5016
      %v5056 = vadd.f32 %v4838, %v5019
      %v5057 = vadd.f32 %v4839, %v5022
      %v5058 = vadd.f32 %v4840, %v5025
      %v5059 = vadd.f32 %v4841, %v5028
      %v5060 = vadd.f32 %v4842, %v5031
      %v5061 = vadd.f32 %v4843, %v5034
      %v5062 = vadd.f32 %v4844, %v5037
      %v5063 = vadd.f32 %v4845, %v5040
      %v5064 = vadd.f32 %v4846, %v5043
      %v5065 = vadd.f32 %v4847, %v5046
      %v5066 = vadd.f32 %v4848, %v5049
      %v5067 = vld [vmem:[%s1625] sm:$0xff]
      %v5068 = vld [vmem:[%s1625 + $0x8] sm:$0xff]
      %v5069 = vld [vmem:[%s1625 + $0x10] sm:$0xff]
      %v5070 = vld [vmem:[%s1625 + $0x18] sm:$0xff]
      %v5071 = vld [vmem:[%s1625 + $0x20] sm:$0xff]
      %v5072 = vld [vmem:[%s1625 + $0x28] sm:$0xff]
      %v5073 = vld [vmem:[%s1625 + $0x30] sm:$0xff]
      %v5074 = vld [vmem:[%s1625 + $0x38] sm:$0xff]
      %v5075 = vld [vmem:[%s1625 + $0x40] sm:$0xff]
      %v5076 = vld [vmem:[%s1625 + $0x48] sm:$0xff]
      %v5077 = vld [vmem:[%s1625 + $0x50] sm:$0xff]
      %v5078 = vld [vmem:[%s1625 + $0x58] sm:$0xff]
      %v5079 = vld [vmem:[%s1625 + $0x60] sm:$0xff]
      %v5080 = vld [vmem:[%s1625 + $0x68] sm:$0xff]
      %v5081 = vld [vmem:[%s1625 + $0x70] sm:$0xff]
      %v5082 = vld [vmem:[%s1625 + $0x78] sm:$0xff]
      %v5083 = vld [vmem:[%s1625 + $0x80] sm:$0xff]
      %v5084 = vld [vmem:[%s1625 + $0x88] sm:$0xff]
      %v5085 = vld [vmem:[%s1625 + $0x90] sm:$0xff]
      %v5086 = vld [vmem:[%s1625 + $0x98] sm:$0xff]
      %v5087 = vld [vmem:[%s1625 + $0xa0] sm:$0xff]
      %v5088 = vld [vmem:[%s1625 + $0xa8] sm:$0xff]
      %v5089 = vld [vmem:[%s1625 + $0xb0] sm:$0xff]
      %v5090 = vld [vmem:[%s1625 + $0xb8] sm:$0xff]
      %v5091 = vld [vmem:[%s1625 + $0xc0] sm:$0xff]
      %v5092 = vld [vmem:[%s1625 + $0xc8] sm:$0xff]
      %v5093 = vld [vmem:[%s1625 + $0xd0] sm:$0xff]
      %v5094 = vld [vmem:[%s1625 + $0xd8] sm:$0xff]
      %v5095 = vld [vmem:[%s1625 + $0xe0] sm:$0xff]
      %v5096 = vld [vmem:[%s1625 + $0xe8] sm:$0xff]
      %v5097 = vld [vmem:[%s1625 + $0xf0] sm:$0xff]
      %v5098 = vld [vmem:[%s1625 + $0xf8] sm:$0xff]
      %5099 = vmatpush.msra.mxu0 %v5082
      %5100 = vmatpush.msra.mxu0 %v5081
      %5101 = vmatpush.msra.mxu0 %v5080
      %5102 = vmatpush.msra.mxu0 %v5079
      %5103 = vmatpush.msra.mxu0 %v5078
      %5104 = vmatpush.msra.mxu0 %v5077
      %5105 = vmatpush.msra.mxu0 %v5076
      %5106 = vmatpush.msra.mxu0 %v5075
      %5107 = vmatpush.msra.mxu0 %v5074
      %5108 = vmatpush.msra.mxu0 %v5073
      %5109 = vmatpush.msra.mxu0 %v5072
      %5110 = vmatpush.msra.mxu0 %v5071
      %5111 = vmatpush.msra.mxu0 %v5070
      %5112 = vmatpush.msra.mxu0 %v5069
      %5113 = vmatpush.msra.mxu0 %v5068
      %5114 = vmatpush.msra.mxu0 %v5067
      %5115 = vmatmul.f32.gmra.mxu0 %v4007
      %v5116 = vpop.f32.mrf.mxu0
      %v5117 = vadd.f32 0.0, %v5116
      %5118 = vdwg.mxu0
      %5119 = vmatpush.msra.mxu0 %v5098
      %5120 = vmatpush.msra.mxu0 %v5097
      %5121 = vmatpush.msra.mxu0 %v5096
      %5122 = vmatpush.msra.mxu0 %v5095
      %5123 = vmatpush.msra.mxu0 %v5094
      %5124 = vmatpush.msra.mxu0 %v5093
      %5125 = vmatpush.msra.mxu0 %v5092
      %5126 = vmatpush.msra.mxu0 %v5091
      %5127 = vmatpush.msra.mxu0 %v5090
      %5128 = vmatpush.msra.mxu0 %v5089
      %5129 = vmatpush.msra.mxu0 %v5088
      %5130 = vmatpush.msra.mxu0 %v5087
      %5131 = vmatpush.msra.mxu0 %v5086
      %5132 = vmatpush.msra.mxu0 %v5085
      %5133 = vmatpush.msra.mxu0 %v5084
      %5134 = vmatpush.msra.mxu0 %v5083
      %5135 = vmatmul.f32.gmra.mxu0 %v4008
      %v5136 = vpop.f32.mrf.mxu0
      %v5137 = vadd.f32 %v5117, %v5136
      %5138 = vdwg.mxu0
      %s5139 = scalar_lea.vmem %s5, 1792
      %v5140 = vld [vmem:[%s5139] sm:$0xff]
      %v5141 = vld [vmem:[%s5139 + $0x8] sm:$0xff]
      %v5142 = vld [vmem:[%s5139 + $0x10] sm:$0xff]
      %v5143 = vld [vmem:[%s5139 + $0x18] sm:$0xff]
      %v5144 = vld [vmem:[%s5139 + $0x20] sm:$0xff]
      %v5145 = vld [vmem:[%s5139 + $0x28] sm:$0xff]
      %v5146 = vld [vmem:[%s5139 + $0x30] sm:$0xff]
      %v5147 = vld [vmem:[%s5139 + $0x38] sm:$0xff]
      %v5148 = vld [vmem:[%s5139 + $0x40] sm:$0xff]
      %v5149 = vld [vmem:[%s5139 + $0x48] sm:$0xff]
      %v5150 = vld [vmem:[%s5139 + $0x50] sm:$0xff]
      %v5151 = vld [vmem:[%s5139 + $0x58] sm:$0xff]
      %v5152 = vld [vmem:[%s5139 + $0x60] sm:$0xff]
      %v5153 = vld [vmem:[%s5139 + $0x68] sm:$0xff]
      %v5154 = vld [vmem:[%s5139 + $0x70] sm:$0xff]
      %v5155 = vld [vmem:[%s5139 + $0x78] sm:$0xff]
      %v5157 = vsel %vm741, %v5140, 0
      %v5160 = vsel %vm741, %v5141, 0
      %v5163 = vsel %vm741, %v5142, 0
      %v5166 = vsel %vm741, %v5143, 0
      %v5169 = vsel %vm741, %v5144, 0
      %v5172 = vsel %vm741, %v5145, 0
      %v5175 = vsel %vm741, %v5146, 0
      %v5178 = vsel %vm741, %v5147, 0
      %v5181 = vsel %vm741, %v5148, 0
      %v5184 = vsel %vm741, %v5149, 0
      %v5187 = vsel %vm741, %v5150, 0
      %v5190 = vsel %vm741, %v5151, 0
      %v5193 = vsel %vm741, %v5152, 0
      %v5196 = vsel %vm741, %v5153, 0
      %v5199 = vsel %vm741, %v5154, 0
      %v5202 = vsel %vm741, %v5155, 0
      %5204 = vmatpush.msra.mxu0 0.0
      %5205 = vmatpush.msra.mxu0 0.0
      %5206 = vmatpush.msra.mxu0 0.0
      %5207 = vmatpush.msra.mxu0 0.0
      %5208 = vmatpush.msra.mxu0 0.0
      %5209 = vmatpush.msra.mxu0 0.0
      %5210 = vmatpush.msra.mxu0 0.0
      %5211 = vmatpush.msra.mxu0 0.0
      %5212 = vmatpush.msra.mxu0 0.0
      %5213 = vmatpush.msra.mxu0 0.0
      %5214 = vmatpush.msra.mxu0 0.0
      %5215 = vmatpush.msra.mxu0 0.0
      %5216 = vmatpush.msra.mxu0 0.0
      %5217 = vmatpush.msra.mxu0 0.0
      %5218 = vmatpush.msra.mxu0 0.0
      %5219 = vmatpush.msra.mxu0 %v5137
      %5220 = vmatmul.f32.gmra.mxu0 %v5157
      %v5221 = vpop.f32.mrf.mxu0
      %v5222 = vadd.f32 0.0, %v5221
      %5223 = vmatmul.f32.gmra.mxu0 %v5160
      %v5224 = vpop.f32.mrf.mxu0
      %v5225 = vadd.f32 0.0, %v5224
      %5226 = vmatmul.f32.gmra.mxu0 %v5163
      %v5227 = vpop.f32.mrf.mxu0
      %v5228 = vadd.f32 0.0, %v5227
      %5229 = vmatmul.f32.gmra.mxu0 %v5166
      %v5230 = vpop.f32.mrf.mxu0
      %v5231 = vadd.f32 0.0, %v5230
      %5232 = vmatmul.f32.gmra.mxu0 %v5169
      %v5233 = vpop.f32.mrf.mxu0
      %v5234 = vadd.f32 0.0, %v5233
      %5235 = vmatmul.f32.gmra.mxu0 %v5172
      %v5236 = vpop.f32.mrf.mxu0
      %v5237 = vadd.f32 0.0, %v5236
      %5238 = vmatmul.f32.gmra.mxu0 %v5175
      %v5239 = vpop.f32.mrf.mxu0
      %v5240 = vadd.f32 0.0, %v5239
      %5241 = vmatmul.f32.gmra.mxu0 %v5178
      %v5242 = vpop.f32.mrf.mxu0
      %v5243 = vadd.f32 0.0, %v5242
      %5244 = vmatmul.f32.gmra.mxu0 %v5181
      %v5245 = vpop.f32.mrf.mxu0
      %v5246 = vadd.f32 0.0, %v5245
      %5247 = vmatmul.f32.gmra.mxu0 %v5184
      %v5248 = vpop.f32.mrf.mxu0
      %v5249 = vadd.f32 0.0, %v5248
      %5250 = vmatmul.f32.gmra.mxu0 %v5187
      %v5251 = vpop.f32.mrf.mxu0
      %v5252 = vadd.f32 0.0, %v5251
      %5253 = vmatmul.f32.gmra.mxu0 %v5190
      %v5254 = vpop.f32.mrf.mxu0
      %v5255 = vadd.f32 0.0, %v5254
      %5256 = vmatmul.f32.gmra.mxu0 %v5193
      %v5257 = vpop.f32.mrf.mxu0
      %v5258 = vadd.f32 0.0, %v5257
      %5259 = vmatmul.f32.gmra.mxu0 %v5196
      %v5260 = vpop.f32.mrf.mxu0
      %v5261 = vadd.f32 0.0, %v5260
      %5262 = vmatmul.f32.gmra.mxu0 %v5199
      %v5263 = vpop.f32.mrf.mxu0
      %v5264 = vadd.f32 0.0, %v5263
      %5265 = vmatmul.f32.gmra.mxu0 %v5202
      %v5266 = vpop.f32.mrf.mxu0
      %v5267 = vadd.f32 0.0, %v5266
      %5268 = vdwg.mxu0
      %v5269 = vadd.f32 %v5051, %v5222
      %v5270 = vadd.f32 %v5052, %v5225
      %v5271 = vadd.f32 %v5053, %v5228
      %v5272 = vadd.f32 %v5054, %v5231
      %v5273 = vadd.f32 %v5055, %v5234
      %v5274 = vadd.f32 %v5056, %v5237
      %v5275 = vadd.f32 %v5057, %v5240
      %v5276 = vadd.f32 %v5058, %v5243
      %v5277 = vadd.f32 %v5059, %v5246
      %v5278 = vadd.f32 %v5060, %v5249
      %v5279 = vadd.f32 %v5061, %v5252
      %v5280 = vadd.f32 %v5062, %v5255
      %v5281 = vadd.f32 %v5063, %v5258
      %v5282 = vadd.f32 %v5064, %v5261
      %v5283 = vadd.f32 %v5065, %v5264
      %v5284 = vadd.f32 %v5066, %v5267
      %v5285 = vld [vmem:[%s1844] sm:$0xff]
      %v5286 = vld [vmem:[%s1844 + $0x8] sm:$0xff]
      %v5287 = vld [vmem:[%s1844 + $0x10] sm:$0xff]
      %v5288 = vld [vmem:[%s1844 + $0x18] sm:$0xff]
      %v5289 = vld [vmem:[%s1844 + $0x20] sm:$0xff]
      %v5290 = vld [vmem:[%s1844 + $0x28] sm:$0xff]
      %v5291 = vld [vmem:[%s1844 + $0x30] sm:$0xff]
      %v5292 = vld [vmem:[%s1844 + $0x38] sm:$0xff]
      %v5293 = vld [vmem:[%s1844 + $0x40] sm:$0xff]
      %v5294 = vld [vmem:[%s1844 + $0x48] sm:$0xff]
      %v5295 = vld [vmem:[%s1844 + $0x50] sm:$0xff]
      %v5296 = vld [vmem:[%s1844 + $0x58] sm:$0xff]
      %v5297 = vld [vmem:[%s1844 + $0x60] sm:$0xff]
      %v5298 = vld [vmem:[%s1844 + $0x68] sm:$0xff]
      %v5299 = vld [vmem:[%s1844 + $0x70] sm:$0xff]
      %v5300 = vld [vmem:[%s1844 + $0x78] sm:$0xff]
      %v5301 = vld [vmem:[%s1844 + $0x80] sm:$0xff]
      %v5302 = vld [vmem:[%s1844 + $0x88] sm:$0xff]
      %v5303 = vld [vmem:[%s1844 + $0x90] sm:$0xff]
      %v5304 = vld [vmem:[%s1844 + $0x98] sm:$0xff]
      %v5305 = vld [vmem:[%s1844 + $0xa0] sm:$0xff]
      %v5306 = vld [vmem:[%s1844 + $0xa8] sm:$0xff]
      %v5307 = vld [vmem:[%s1844 + $0xb0] sm:$0xff]
      %v5308 = vld [vmem:[%s1844 + $0xb8] sm:$0xff]
      %v5309 = vld [vmem:[%s1844 + $0xc0] sm:$0xff]
      %v5310 = vld [vmem:[%s1844 + $0xc8] sm:$0xff]
      %v5311 = vld [vmem:[%s1844 + $0xd0] sm:$0xff]
      %v5312 = vld [vmem:[%s1844 + $0xd8] sm:$0xff]
      %v5313 = vld [vmem:[%s1844 + $0xe0] sm:$0xff]
      %v5314 = vld [vmem:[%s1844 + $0xe8] sm:$0xff]
      %v5315 = vld [vmem:[%s1844 + $0xf0] sm:$0xff]
      %v5316 = vld [vmem:[%s1844 + $0xf8] sm:$0xff]
      %5317 = vmatpush.msra.mxu0 %v5300
      %5318 = vmatpush.msra.mxu0 %v5299
      %5319 = vmatpush.msra.mxu0 %v5298
      %5320 = vmatpush.msra.mxu0 %v5297
      %5321 = vmatpush.msra.mxu0 %v5296
      %5322 = vmatpush.msra.mxu0 %v5295
      %5323 = vmatpush.msra.mxu0 %v5294
      %5324 = vmatpush.msra.mxu0 %v5293
      %5325 = vmatpush.msra.mxu0 %v5292
      %5326 = vmatpush.msra.mxu0 %v5291
      %5327 = vmatpush.msra.mxu0 %v5290
      %5328 = vmatpush.msra.mxu0 %v5289
      %5329 = vmatpush.msra.mxu0 %v5288
      %5330 = vmatpush.msra.mxu0 %v5287
      %5331 = vmatpush.msra.mxu0 %v5286
      %5332 = vmatpush.msra.mxu0 %v5285
      %5333 = vmatmul.f32.gmra.mxu0 %v4007
      %v5334 = vpop.f32.mrf.mxu0
      %v5335 = vadd.f32 0.0, %v5334
      %5336 = vdwg.mxu0
      %5337 = vmatpush.msra.mxu0 %v5316
      %5338 = vmatpush.msra.mxu0 %v5315
      %5339 = vmatpush.msra.mxu0 %v5314
      %5340 = vmatpush.msra.mxu0 %v5313
      %5341 = vmatpush.msra.mxu0 %v5312
      %5342 = vmatpush.msra.mxu0 %v5311
      %5343 = vmatpush.msra.mxu0 %v5310
      %5344 = vmatpush.msra.mxu0 %v5309
      %5345 = vmatpush.msra.mxu0 %v5308
      %5346 = vmatpush.msra.mxu0 %v5307
      %5347 = vmatpush.msra.mxu0 %v5306
      %5348 = vmatpush.msra.mxu0 %v5305
      %5349 = vmatpush.msra.mxu0 %v5304
      %5350 = vmatpush.msra.mxu0 %v5303
      %5351 = vmatpush.msra.mxu0 %v5302
      %5352 = vmatpush.msra.mxu0 %v5301
      %5353 = vmatmul.f32.gmra.mxu0 %v4008
      %v5354 = vpop.f32.mrf.mxu0
      %v5355 = vadd.f32 %v5335, %v5354
      %5356 = vdwg.mxu0
      %s5357 = scalar_lea.vmem %s5, 1920
      %v5358 = vld [vmem:[%s5357] sm:$0xff]
      %v5359 = vld [vmem:[%s5357 + $0x8] sm:$0xff]
      %v5360 = vld [vmem:[%s5357 + $0x10] sm:$0xff]
      %v5361 = vld [vmem:[%s5357 + $0x18] sm:$0xff]
      %v5362 = vld [vmem:[%s5357 + $0x20] sm:$0xff]
      %v5363 = vld [vmem:[%s5357 + $0x28] sm:$0xff]
      %v5364 = vld [vmem:[%s5357 + $0x30] sm:$0xff]
      %v5365 = vld [vmem:[%s5357 + $0x38] sm:$0xff]
      %v5366 = vld [vmem:[%s5357 + $0x40] sm:$0xff]
      %v5367 = vld [vmem:[%s5357 + $0x48] sm:$0xff]
      %v5368 = vld [vmem:[%s5357 + $0x50] sm:$0xff]
      %v5369 = vld [vmem:[%s5357 + $0x58] sm:$0xff]
      %v5370 = vld [vmem:[%s5357 + $0x60] sm:$0xff]
      %v5371 = vld [vmem:[%s5357 + $0x68] sm:$0xff]
      %v5372 = vld [vmem:[%s5357 + $0x70] sm:$0xff]
      %v5373 = vld [vmem:[%s5357 + $0x78] sm:$0xff]
      %v5375 = vsel %vm741, %v5358, 0
      %v5378 = vsel %vm741, %v5359, 0
      %v5381 = vsel %vm741, %v5360, 0
      %v5384 = vsel %vm741, %v5361, 0
      %v5387 = vsel %vm741, %v5362, 0
      %v5390 = vsel %vm741, %v5363, 0
      %v5393 = vsel %vm741, %v5364, 0
      %v5396 = vsel %vm741, %v5365, 0
      %v5399 = vsel %vm741, %v5366, 0
      %v5402 = vsel %vm741, %v5367, 0
      %v5405 = vsel %vm741, %v5368, 0
      %v5408 = vsel %vm741, %v5369, 0
      %v5411 = vsel %vm741, %v5370, 0
      %v5414 = vsel %vm741, %v5371, 0
      %v5417 = vsel %vm741, %v5372, 0
      %v5420 = vsel %vm741, %v5373, 0
      %5422 = vmatpush.msra.mxu0 0.0
      %5423 = vmatpush.msra.mxu0 0.0
      %5424 = vmatpush.msra.mxu0 0.0
      %5425 = vmatpush.msra.mxu0 0.0
      %5426 = vmatpush.msra.mxu0 0.0
      %5427 = vmatpush.msra.mxu0 0.0
      %5428 = vmatpush.msra.mxu0 0.0
      %5429 = vmatpush.msra.mxu0 0.0
      %5430 = vmatpush.msra.mxu0 0.0
      %5431 = vmatpush.msra.mxu0 0.0
      %5432 = vmatpush.msra.mxu0 0.0
      %5433 = vmatpush.msra.mxu0 0.0
      %5434 = vmatpush.msra.mxu0 0.0
      %5435 = vmatpush.msra.mxu0 0.0
      %5436 = vmatpush.msra.mxu0 0.0
      %5437 = vmatpush.msra.mxu0 %v5355
      %5438 = vmatmul.f32.gmra.mxu0 %v5375
      %v5439 = vpop.f32.mrf.mxu0
      %v5440 = vadd.f32 0.0, %v5439
      %5441 = vmatmul.f32.gmra.mxu0 %v5378
      %v5442 = vpop.f32.mrf.mxu0
      %v5443 = vadd.f32 0.0, %v5442
      %5444 = vmatmul.f32.gmra.mxu0 %v5381
      %v5445 = vpop.f32.mrf.mxu0
      %v5446 = vadd.f32 0.0, %v5445
      %5447 = vmatmul.f32.gmra.mxu0 %v5384
      %v5448 = vpop.f32.mrf.mxu0
      %v5449 = vadd.f32 0.0, %v5448
      %5450 = vmatmul.f32.gmra.mxu0 %v5387
      %v5451 = vpop.f32.mrf.mxu0
      %v5452 = vadd.f32 0.0, %v5451
      %5453 = vmatmul.f32.gmra.mxu0 %v5390
      %v5454 = vpop.f32.mrf.mxu0
      %v5455 = vadd.f32 0.0, %v5454
      %5456 = vmatmul.f32.gmra.mxu0 %v5393
      %v5457 = vpop.f32.mrf.mxu0
      %v5458 = vadd.f32 0.0, %v5457
      %5459 = vmatmul.f32.gmra.mxu0 %v5396
      %v5460 = vpop.f32.mrf.mxu0
      %v5461 = vadd.f32 0.0, %v5460
      %5462 = vmatmul.f32.gmra.mxu0 %v5399
      %v5463 = vpop.f32.mrf.mxu0
      %v5464 = vadd.f32 0.0, %v5463
      %5465 = vmatmul.f32.gmra.mxu0 %v5402
      %v5466 = vpop.f32.mrf.mxu0
      %v5467 = vadd.f32 0.0, %v5466
      %5468 = vmatmul.f32.gmra.mxu0 %v5405
      %v5469 = vpop.f32.mrf.mxu0
      %v5470 = vadd.f32 0.0, %v5469
      %5471 = vmatmul.f32.gmra.mxu0 %v5408
      %v5472 = vpop.f32.mrf.mxu0
      %v5473 = vadd.f32 0.0, %v5472
      %5474 = vmatmul.f32.gmra.mxu0 %v5411
      %v5475 = vpop.f32.mrf.mxu0
      %v5476 = vadd.f32 0.0, %v5475
      %5477 = vmatmul.f32.gmra.mxu0 %v5414
      %v5478 = vpop.f32.mrf.mxu0
      %v5479 = vadd.f32 0.0, %v5478
      %5480 = vmatmul.f32.gmra.mxu0 %v5417
      %v5481 = vpop.f32.mrf.mxu0
      %v5482 = vadd.f32 0.0, %v5481
      %5483 = vmatmul.f32.gmra.mxu0 %v5420
      %v5484 = vpop.f32.mrf.mxu0
      %v5485 = vadd.f32 0.0, %v5484
      %5486 = vdwg.mxu0
      %v5487 = vadd.f32 %v5269, %v5440
      %v5488 = vadd.f32 %v5270, %v5443
      %v5489 = vadd.f32 %v5271, %v5446
      %v5490 = vadd.f32 %v5272, %v5449
      %v5491 = vadd.f32 %v5273, %v5452
      %v5492 = vadd.f32 %v5274, %v5455
      %v5493 = vadd.f32 %v5275, %v5458
      %v5494 = vadd.f32 %v5276, %v5461
      %v5495 = vadd.f32 %v5277, %v5464
      %v5496 = vadd.f32 %v5278, %v5467
      %v5497 = vadd.f32 %v5279, %v5470
      %v5498 = vadd.f32 %v5280, %v5473
      %v5499 = vadd.f32 %v5281, %v5476
      %v5500 = vadd.f32 %v5282, %v5479
      %v5501 = vadd.f32 %v5283, %v5482
      %v5502 = vadd.f32 %v5284, %v5485
      %v5503 = vld [vmem:[%s2063] sm:$0xff]
      %v5504 = vld [vmem:[%s2063 + $0x8] sm:$0xff]
      %v5505 = vld [vmem:[%s2063 + $0x10] sm:$0xff]
      %v5506 = vld [vmem:[%s2063 + $0x18] sm:$0xff]
      %v5507 = vld [vmem:[%s2063 + $0x20] sm:$0xff]
      %v5508 = vld [vmem:[%s2063 + $0x28] sm:$0xff]
      %v5509 = vld [vmem:[%s2063 + $0x30] sm:$0xff]
      %v5510 = vld [vmem:[%s2063 + $0x38] sm:$0xff]
      %v5511 = vld [vmem:[%s2063 + $0x40] sm:$0xff]
      %v5512 = vld [vmem:[%s2063 + $0x48] sm:$0xff]
      %v5513 = vld [vmem:[%s2063 + $0x50] sm:$0xff]
      %v5514 = vld [vmem:[%s2063 + $0x58] sm:$0xff]
      %v5515 = vld [vmem:[%s2063 + $0x60] sm:$0xff]
      %v5516 = vld [vmem:[%s2063 + $0x68] sm:$0xff]
      %v5517 = vld [vmem:[%s2063 + $0x70] sm:$0xff]
      %v5518 = vld [vmem:[%s2063 + $0x78] sm:$0xff]
      %v5519 = vld [vmem:[%s2063 + $0x80] sm:$0xff]
      %v5520 = vld [vmem:[%s2063 + $0x88] sm:$0xff]
      %v5521 = vld [vmem:[%s2063 + $0x90] sm:$0xff]
      %v5522 = vld [vmem:[%s2063 + $0x98] sm:$0xff]
      %v5523 = vld [vmem:[%s2063 + $0xa0] sm:$0xff]
      %v5524 = vld [vmem:[%s2063 + $0xa8] sm:$0xff]
      %v5525 = vld [vmem:[%s2063 + $0xb0] sm:$0xff]
      %v5526 = vld [vmem:[%s2063 + $0xb8] sm:$0xff]
      %v5527 = vld [vmem:[%s2063 + $0xc0] sm:$0xff]
      %v5528 = vld [vmem:[%s2063 + $0xc8] sm:$0xff]
      %v5529 = vld [vmem:[%s2063 + $0xd0] sm:$0xff]
      %v5530 = vld [vmem:[%s2063 + $0xd8] sm:$0xff]
      %v5531 = vld [vmem:[%s2063 + $0xe0] sm:$0xff]
      %v5532 = vld [vmem:[%s2063 + $0xe8] sm:$0xff]
      %v5533 = vld [vmem:[%s2063 + $0xf0] sm:$0xff]
      %v5534 = vld [vmem:[%s2063 + $0xf8] sm:$0xff]
      %5535 = vmatpush.msra.mxu0 %v5518
      %5536 = vmatpush.msra.mxu0 %v5517
      %5537 = vmatpush.msra.mxu0 %v5516
      %5538 = vmatpush.msra.mxu0 %v5515
      %5539 = vmatpush.msra.mxu0 %v5514
      %5540 = vmatpush.msra.mxu0 %v5513
      %5541 = vmatpush.msra.mxu0 %v5512
      %5542 = vmatpush.msra.mxu0 %v5511
      %5543 = vmatpush.msra.mxu0 %v5510
      %5544 = vmatpush.msra.mxu0 %v5509
      %5545 = vmatpush.msra.mxu0 %v5508
      %5546 = vmatpush.msra.mxu0 %v5507
      %5547 = vmatpush.msra.mxu0 %v5506
      %5548 = vmatpush.msra.mxu0 %v5505
      %5549 = vmatpush.msra.mxu0 %v5504
      %5550 = vmatpush.msra.mxu0 %v5503
      %5551 = vmatmul.f32.gmra.mxu0 %v4007
      %v5552 = vpop.f32.mrf.mxu0
      %v5553 = vadd.f32 0.0, %v5552
      %5554 = vdwg.mxu0
      %5555 = vmatpush.msra.mxu0 %v5534
      %5556 = vmatpush.msra.mxu0 %v5533
      %5557 = vmatpush.msra.mxu0 %v5532
      %5558 = vmatpush.msra.mxu0 %v5531
      %5559 = vmatpush.msra.mxu0 %v5530
      %5560 = vmatpush.msra.mxu0 %v5529
      %5561 = vmatpush.msra.mxu0 %v5528
      %5562 = vmatpush.msra.mxu0 %v5527
      %5563 = vmatpush.msra.mxu0 %v5526
      %5564 = vmatpush.msra.mxu0 %v5525
      %5565 = vmatpush.msra.mxu0 %v5524
      %5566 = vmatpush.msra.mxu0 %v5523
      %5567 = vmatpush.msra.mxu0 %v5522
      %5568 = vmatpush.msra.mxu0 %v5521
      %5569 = vmatpush.msra.mxu0 %v5520
      %5570 = vmatpush.msra.mxu0 %v5519
      %5571 = vmatmul.f32.gmra.mxu0 %v4008
      %v5572 = vpop.f32.mrf.mxu0
      %v5573 = vadd.f32 %v5553, %v5572
      %5574 = vdwg.mxu0
      %s5575 = scalar_lea.vmem %s5, 2048
      %v5576 = vld [vmem:[%s5575] sm:$0xff]
      %v5577 = vld [vmem:[%s5575 + $0x8] sm:$0xff]
      %v5578 = vld [vmem:[%s5575 + $0x10] sm:$0xff]
      %v5579 = vld [vmem:[%s5575 + $0x18] sm:$0xff]
      %v5580 = vld [vmem:[%s5575 + $0x20] sm:$0xff]
      %v5581 = vld [vmem:[%s5575 + $0x28] sm:$0xff]
      %v5582 = vld [vmem:[%s5575 + $0x30] sm:$0xff]
      %v5583 = vld [vmem:[%s5575 + $0x38] sm:$0xff]
      %v5584 = vld [vmem:[%s5575 + $0x40] sm:$0xff]
      %v5585 = vld [vmem:[%s5575 + $0x48] sm:$0xff]
      %v5586 = vld [vmem:[%s5575 + $0x50] sm:$0xff]
      %v5587 = vld [vmem:[%s5575 + $0x58] sm:$0xff]
      %v5588 = vld [vmem:[%s5575 + $0x60] sm:$0xff]
      %v5589 = vld [vmem:[%s5575 + $0x68] sm:$0xff]
      %v5590 = vld [vmem:[%s5575 + $0x70] sm:$0xff]
      %v5591 = vld [vmem:[%s5575 + $0x78] sm:$0xff]
      %v5593 = vsel %vm741, %v5576, 0
      %v5596 = vsel %vm741, %v5577, 0
      %v5599 = vsel %vm741, %v5578, 0
      %v5602 = vsel %vm741, %v5579, 0
      %v5605 = vsel %vm741, %v5580, 0
      %v5608 = vsel %vm741, %v5581, 0
      %v5611 = vsel %vm741, %v5582, 0
      %v5614 = vsel %vm741, %v5583, 0
      %v5617 = vsel %vm741, %v5584, 0
      %v5620 = vsel %vm741, %v5585, 0
      %v5623 = vsel %vm741, %v5586, 0
      %v5626 = vsel %vm741, %v5587, 0
      %v5629 = vsel %vm741, %v5588, 0
      %v5632 = vsel %vm741, %v5589, 0
      %v5635 = vsel %vm741, %v5590, 0
      %v5638 = vsel %vm741, %v5591, 0
      %5640 = vmatpush.msra.mxu0 0.0
      %5641 = vmatpush.msra.mxu0 0.0
      %5642 = vmatpush.msra.mxu0 0.0
      %5643 = vmatpush.msra.mxu0 0.0
      %5644 = vmatpush.msra.mxu0 0.0
      %5645 = vmatpush.msra.mxu0 0.0
      %5646 = vmatpush.msra.mxu0 0.0
      %5647 = vmatpush.msra.mxu0 0.0
      %5648 = vmatpush.msra.mxu0 0.0
      %5649 = vmatpush.msra.mxu0 0.0
      %5650 = vmatpush.msra.mxu0 0.0
      %5651 = vmatpush.msra.mxu0 0.0
      %5652 = vmatpush.msra.mxu0 0.0
      %5653 = vmatpush.msra.mxu0 0.0
      %5654 = vmatpush.msra.mxu0 0.0
      %5655 = vmatpush.msra.mxu0 %v5573
      %5656 = vmatmul.f32.gmra.mxu0 %v5593
      %v5657 = vpop.f32.mrf.mxu0
      %v5658 = vadd.f32 0.0, %v5657
      %5659 = vmatmul.f32.gmra.mxu0 %v5596
      %v5660 = vpop.f32.mrf.mxu0
      %v5661 = vadd.f32 0.0, %v5660
      %5662 = vmatmul.f32.gmra.mxu0 %v5599
      %v5663 = vpop.f32.mrf.mxu0
      %v5664 = vadd.f32 0.0, %v5663
      %5665 = vmatmul.f32.gmra.mxu0 %v5602
      %v5666 = vpop.f32.mrf.mxu0
      %v5667 = vadd.f32 0.0, %v5666
      %5668 = vmatmul.f32.gmra.mxu0 %v5605
      %v5669 = vpop.f32.mrf.mxu0
      %v5670 = vadd.f32 0.0, %v5669
      %5671 = vmatmul.f32.gmra.mxu0 %v5608
      %v5672 = vpop.f32.mrf.mxu0
      %v5673 = vadd.f32 0.0, %v5672
      %5674 = vmatmul.f32.gmra.mxu0 %v5611
      %v5675 = vpop.f32.mrf.mxu0
      %v5676 = vadd.f32 0.0, %v5675
      %5677 = vmatmul.f32.gmra.mxu0 %v5614
      %v5678 = vpop.f32.mrf.mxu0
      %v5679 = vadd.f32 0.0, %v5678
      %5680 = vmatmul.f32.gmra.mxu0 %v5617
      %v5681 = vpop.f32.mrf.mxu0
      %v5682 = vadd.f32 0.0, %v5681
      %5683 = vmatmul.f32.gmra.mxu0 %v5620
      %v5684 = vpop.f32.mrf.mxu0
      %v5685 = vadd.f32 0.0, %v5684
      %5686 = vmatmul.f32.gmra.mxu0 %v5623
      %v5687 = vpop.f32.mrf.mxu0
      %v5688 = vadd.f32 0.0, %v5687
      %5689 = vmatmul.f32.gmra.mxu0 %v5626
      %v5690 = vpop.f32.mrf.mxu0
      %v5691 = vadd.f32 0.0, %v5690
      %5692 = vmatmul.f32.gmra.mxu0 %v5629
      %v5693 = vpop.f32.mrf.mxu0
      %v5694 = vadd.f32 0.0, %v5693
      %5695 = vmatmul.f32.gmra.mxu0 %v5632
      %v5696 = vpop.f32.mrf.mxu0
      %v5697 = vadd.f32 0.0, %v5696
      %5698 = vmatmul.f32.gmra.mxu0 %v5635
      %v5699 = vpop.f32.mrf.mxu0
      %v5700 = vadd.f32 0.0, %v5699
      %5701 = vmatmul.f32.gmra.mxu0 %v5638
      %v5702 = vpop.f32.mrf.mxu0
      %v5703 = vadd.f32 0.0, %v5702
      %5704 = vdwg.mxu0
      %v5705 = vadd.f32 %v5487, %v5658
      %v5706 = vadd.f32 %v5488, %v5661
      %v5707 = vadd.f32 %v5489, %v5664
      %v5708 = vadd.f32 %v5490, %v5667
      %v5709 = vadd.f32 %v5491, %v5670
      %v5710 = vadd.f32 %v5492, %v5673
      %v5711 = vadd.f32 %v5493, %v5676
      %v5712 = vadd.f32 %v5494, %v5679
      %v5713 = vadd.f32 %v5495, %v5682
      %v5714 = vadd.f32 %v5496, %v5685
      %v5715 = vadd.f32 %v5497, %v5688
      %v5716 = vadd.f32 %v5498, %v5691
      %v5717 = vadd.f32 %v5499, %v5694
      %v5718 = vadd.f32 %v5500, %v5697
      %v5719 = vadd.f32 %v5501, %v5700
      %v5720 = vadd.f32 %v5502, %v5703
      %v5721 = vld [vmem:[%s2282] sm:$0xff]
      %v5722 = vld [vmem:[%s2282 + $0x8] sm:$0xff]
      %v5723 = vld [vmem:[%s2282 + $0x10] sm:$0xff]
      %v5724 = vld [vmem:[%s2282 + $0x18] sm:$0xff]
      %v5725 = vld [vmem:[%s2282 + $0x20] sm:$0xff]
      %v5726 = vld [vmem:[%s2282 + $0x28] sm:$0xff]
      %v5727 = vld [vmem:[%s2282 + $0x30] sm:$0xff]
      %v5728 = vld [vmem:[%s2282 + $0x38] sm:$0xff]
      %v5729 = vld [vmem:[%s2282 + $0x40] sm:$0xff]
      %v5730 = vld [vmem:[%s2282 + $0x48] sm:$0xff]
      %v5731 = vld [vmem:[%s2282 + $0x50] sm:$0xff]
      %v5732 = vld [vmem:[%s2282 + $0x58] sm:$0xff]
      %v5733 = vld [vmem:[%s2282 + $0x60] sm:$0xff]
      %v5734 = vld [vmem:[%s2282 + $0x68] sm:$0xff]
      %v5735 = vld [vmem:[%s2282 + $0x70] sm:$0xff]
      %v5736 = vld [vmem:[%s2282 + $0x78] sm:$0xff]
      %v5737 = vld [vmem:[%s2282 + $0x80] sm:$0xff]
      %v5738 = vld [vmem:[%s2282 + $0x88] sm:$0xff]
      %v5739 = vld [vmem:[%s2282 + $0x90] sm:$0xff]
      %v5740 = vld [vmem:[%s2282 + $0x98] sm:$0xff]
      %v5741 = vld [vmem:[%s2282 + $0xa0] sm:$0xff]
      %v5742 = vld [vmem:[%s2282 + $0xa8] sm:$0xff]
      %v5743 = vld [vmem:[%s2282 + $0xb0] sm:$0xff]
      %v5744 = vld [vmem:[%s2282 + $0xb8] sm:$0xff]
      %v5745 = vld [vmem:[%s2282 + $0xc0] sm:$0xff]
      %v5746 = vld [vmem:[%s2282 + $0xc8] sm:$0xff]
      %v5747 = vld [vmem:[%s2282 + $0xd0] sm:$0xff]
      %v5748 = vld [vmem:[%s2282 + $0xd8] sm:$0xff]
      %v5749 = vld [vmem:[%s2282 + $0xe0] sm:$0xff]
      %v5750 = vld [vmem:[%s2282 + $0xe8] sm:$0xff]
      %v5751 = vld [vmem:[%s2282 + $0xf0] sm:$0xff]
      %v5752 = vld [vmem:[%s2282 + $0xf8] sm:$0xff]
      %5753 = vmatpush.msra.mxu0 %v5736
      %5754 = vmatpush.msra.mxu0 %v5735
      %5755 = vmatpush.msra.mxu0 %v5734
      %5756 = vmatpush.msra.mxu0 %v5733
      %5757 = vmatpush.msra.mxu0 %v5732
      %5758 = vmatpush.msra.mxu0 %v5731
      %5759 = vmatpush.msra.mxu0 %v5730
      %5760 = vmatpush.msra.mxu0 %v5729
      %5761 = vmatpush.msra.mxu0 %v5728
      %5762 = vmatpush.msra.mxu0 %v5727
      %5763 = vmatpush.msra.mxu0 %v5726
      %5764 = vmatpush.msra.mxu0 %v5725
      %5765 = vmatpush.msra.mxu0 %v5724
      %5766 = vmatpush.msra.mxu0 %v5723
      %5767 = vmatpush.msra.mxu0 %v5722
      %5768 = vmatpush.msra.mxu0 %v5721
      %5769 = vmatmul.f32.gmra.mxu0 %v4007
      %v5770 = vpop.f32.mrf.mxu0
      %v5771 = vadd.f32 0.0, %v5770
      %5772 = vdwg.mxu0
      %5773 = vmatpush.msra.mxu0 %v5752
      %5774 = vmatpush.msra.mxu0 %v5751
      %5775 = vmatpush.msra.mxu0 %v5750
      %5776 = vmatpush.msra.mxu0 %v5749
      %5777 = vmatpush.msra.mxu0 %v5748
      %5778 = vmatpush.msra.mxu0 %v5747
      %5779 = vmatpush.msra.mxu0 %v5746
      %5780 = vmatpush.msra.mxu0 %v5745
      %5781 = vmatpush.msra.mxu0 %v5744
      %5782 = vmatpush.msra.mxu0 %v5743
      %5783 = vmatpush.msra.mxu0 %v5742
      %5784 = vmatpush.msra.mxu0 %v5741
      %5785 = vmatpush.msra.mxu0 %v5740
      %5786 = vmatpush.msra.mxu0 %v5739
      %5787 = vmatpush.msra.mxu0 %v5738
      %5788 = vmatpush.msra.mxu0 %v5737
      %5789 = vmatmul.f32.gmra.mxu0 %v4008
      %v5790 = vpop.f32.mrf.mxu0
      %v5791 = vadd.f32 %v5771, %v5790
      %5792 = vdwg.mxu0
      %s5793 = scalar_lea.vmem %s5, 2176
      %v5794 = vld [vmem:[%s5793] sm:$0xff]
      %v5795 = vld [vmem:[%s5793 + $0x8] sm:$0xff]
      %v5796 = vld [vmem:[%s5793 + $0x10] sm:$0xff]
      %v5797 = vld [vmem:[%s5793 + $0x18] sm:$0xff]
      %v5798 = vld [vmem:[%s5793 + $0x20] sm:$0xff]
      %v5799 = vld [vmem:[%s5793 + $0x28] sm:$0xff]
      %v5800 = vld [vmem:[%s5793 + $0x30] sm:$0xff]
      %v5801 = vld [vmem:[%s5793 + $0x38] sm:$0xff]
      %v5802 = vld [vmem:[%s5793 + $0x40] sm:$0xff]
      %v5803 = vld [vmem:[%s5793 + $0x48] sm:$0xff]
      %v5804 = vld [vmem:[%s5793 + $0x50] sm:$0xff]
      %v5805 = vld [vmem:[%s5793 + $0x58] sm:$0xff]
      %v5806 = vld [vmem:[%s5793 + $0x60] sm:$0xff]
      %v5807 = vld [vmem:[%s5793 + $0x68] sm:$0xff]
      %v5808 = vld [vmem:[%s5793 + $0x70] sm:$0xff]
      %v5809 = vld [vmem:[%s5793 + $0x78] sm:$0xff]
      %v5811 = vsel %vm741, %v5794, 0
      %v5814 = vsel %vm741, %v5795, 0
      %v5817 = vsel %vm741, %v5796, 0
      %v5820 = vsel %vm741, %v5797, 0
      %v5823 = vsel %vm741, %v5798, 0
      %v5826 = vsel %vm741, %v5799, 0
      %v5829 = vsel %vm741, %v5800, 0
      %v5832 = vsel %vm741, %v5801, 0
      %v5835 = vsel %vm741, %v5802, 0
      %v5838 = vsel %vm741, %v5803, 0
      %v5841 = vsel %vm741, %v5804, 0
      %v5844 = vsel %vm741, %v5805, 0
      %v5847 = vsel %vm741, %v5806, 0
      %v5850 = vsel %vm741, %v5807, 0
      %v5853 = vsel %vm741, %v5808, 0
      %v5856 = vsel %vm741, %v5809, 0
      %5858 = vmatpush.msra.mxu0 0.0
      %5859 = vmatpush.msra.mxu0 0.0
      %5860 = vmatpush.msra.mxu0 0.0
      %5861 = vmatpush.msra.mxu0 0.0
      %5862 = vmatpush.msra.mxu0 0.0
      %5863 = vmatpush.msra.mxu0 0.0
      %5864 = vmatpush.msra.mxu0 0.0
      %5865 = vmatpush.msra.mxu0 0.0
      %5866 = vmatpush.msra.mxu0 0.0
      %5867 = vmatpush.msra.mxu0 0.0
      %5868 = vmatpush.msra.mxu0 0.0
      %5869 = vmatpush.msra.mxu0 0.0
      %5870 = vmatpush.msra.mxu0 0.0
      %5871 = vmatpush.msra.mxu0 0.0
      %5872 = vmatpush.msra.mxu0 0.0
      %5873 = vmatpush.msra.mxu0 %v5791
      %5874 = vmatmul.f32.gmra.mxu0 %v5811
      %v5875 = vpop.f32.mrf.mxu0
      %v5876 = vadd.f32 0.0, %v5875
      %5877 = vmatmul.f32.gmra.mxu0 %v5814
      %v5878 = vpop.f32.mrf.mxu0
      %v5879 = vadd.f32 0.0, %v5878
      %5880 = vmatmul.f32.gmra.mxu0 %v5817
      %v5881 = vpop.f32.mrf.mxu0
      %v5882 = vadd.f32 0.0, %v5881
      %5883 = vmatmul.f32.gmra.mxu0 %v5820
      %v5884 = vpop.f32.mrf.mxu0
      %v5885 = vadd.f32 0.0, %v5884
      %5886 = vmatmul.f32.gmra.mxu0 %v5823
      %v5887 = vpop.f32.mrf.mxu0
      %v5888 = vadd.f32 0.0, %v5887
      %5889 = vmatmul.f32.gmra.mxu0 %v5826
      %v5890 = vpop.f32.mrf.mxu0
      %v5891 = vadd.f32 0.0, %v5890
      %5892 = vmatmul.f32.gmra.mxu0 %v5829
      %v5893 = vpop.f32.mrf.mxu0
      %v5894 = vadd.f32 0.0, %v5893
      %5895 = vmatmul.f32.gmra.mxu0 %v5832
      %v5896 = vpop.f32.mrf.mxu0
      %v5897 = vadd.f32 0.0, %v5896
      %5898 = vmatmul.f32.gmra.mxu0 %v5835
      %v5899 = vpop.f32.mrf.mxu0
      %v5900 = vadd.f32 0.0, %v5899
      %5901 = vmatmul.f32.gmra.mxu0 %v5838
      %v5902 = vpop.f32.mrf.mxu0
      %v5903 = vadd.f32 0.0, %v5902
      %5904 = vmatmul.f32.gmra.mxu0 %v5841
      %v5905 = vpop.f32.mrf.mxu0
      %v5906 = vadd.f32 0.0, %v5905
      %5907 = vmatmul.f32.gmra.mxu0 %v5844
      %v5908 = vpop.f32.mrf.mxu0
      %v5909 = vadd.f32 0.0, %v5908
      %5910 = vmatmul.f32.gmra.mxu0 %v5847
      %v5911 = vpop.f32.mrf.mxu0
      %v5912 = vadd.f32 0.0, %v5911
      %5913 = vmatmul.f32.gmra.mxu0 %v5850
      %v5914 = vpop.f32.mrf.mxu0
      %v5915 = vadd.f32 0.0, %v5914
      %5916 = vmatmul.f32.gmra.mxu0 %v5853
      %v5917 = vpop.f32.mrf.mxu0
      %v5918 = vadd.f32 0.0, %v5917
      %5919 = vmatmul.f32.gmra.mxu0 %v5856
      %v5920 = vpop.f32.mrf.mxu0
      %v5921 = vadd.f32 0.0, %v5920
      %5922 = vdwg.mxu0
      %v5923 = vadd.f32 %v5705, %v5876
      %v5924 = vadd.f32 %v5706, %v5879
      %v5925 = vadd.f32 %v5707, %v5882
      %v5926 = vadd.f32 %v5708, %v5885
      %v5927 = vadd.f32 %v5709, %v5888
      %v5928 = vadd.f32 %v5710, %v5891
      %v5929 = vadd.f32 %v5711, %v5894
      %v5930 = vadd.f32 %v5712, %v5897
      %v5931 = vadd.f32 %v5713, %v5900
      %v5932 = vadd.f32 %v5714, %v5903
      %v5933 = vadd.f32 %v5715, %v5906
      %v5934 = vadd.f32 %v5716, %v5909
      %v5935 = vadd.f32 %v5717, %v5912
      %v5936 = vadd.f32 %v5718, %v5915
      %v5937 = vadd.f32 %v5719, %v5918
      %v5938 = vadd.f32 %v5720, %v5921
      %s5939 = scalar_lea.vmem %s6, 128
      %v5940 = vld [vmem:[%s5939] sm:$0xff]
      %v5941 = vld [vmem:[%s5939 + $0x8] sm:$0xff]
      %v5942 = vld [vmem:[%s5939 + $0x10] sm:$0xff]
      %v5943 = vld [vmem:[%s5939 + $0x18] sm:$0xff]
      %v5944 = vld [vmem:[%s5939 + $0x20] sm:$0xff]
      %v5945 = vld [vmem:[%s5939 + $0x28] sm:$0xff]
      %v5946 = vld [vmem:[%s5939 + $0x30] sm:$0xff]
      %v5947 = vld [vmem:[%s5939 + $0x38] sm:$0xff]
      %v5948 = vld [vmem:[%s5939 + $0x40] sm:$0xff]
      %v5949 = vld [vmem:[%s5939 + $0x48] sm:$0xff]
      %v5950 = vld [vmem:[%s5939 + $0x50] sm:$0xff]
      %v5951 = vld [vmem:[%s5939 + $0x58] sm:$0xff]
      %v5952 = vld [vmem:[%s5939 + $0x60] sm:$0xff]
      %v5953 = vld [vmem:[%s5939 + $0x68] sm:$0xff]
      %v5954 = vld [vmem:[%s5939 + $0x70] sm:$0xff]
      %v5955 = vld [vmem:[%s5939 + $0x78] sm:$0xff]
      %5957 = vset.pattern.permute.xlu0 0
      %5958 = vperm.xlu0 %5957, %v5940
      %v5959 = vpop.permute.xlu0 %5958
      %5962 = vset.pattern.permute.xlu0 0
      %5963 = vperm.xlu0 %5962, %v5941
      %v5964 = vpop.permute.xlu0 %5963
      %5967 = vset.pattern.permute.xlu0 0
      %5968 = vperm.xlu0 %5967, %v5942
      %v5969 = vpop.permute.xlu0 %5968
      %5972 = vset.pattern.permute.xlu0 0
      %5973 = vperm.xlu0 %5972, %v5943
      %v5974 = vpop.permute.xlu0 %5973
      %5977 = vset.pattern.permute.xlu0 0
      %5978 = vperm.xlu0 %5977, %v5944
      %v5979 = vpop.permute.xlu0 %5978
      %5982 = vset.pattern.permute.xlu0 0
      %5983 = vperm.xlu0 %5982, %v5945
      %v5984 = vpop.permute.xlu0 %5983
      %5987 = vset.pattern.permute.xlu0 0
      %5988 = vperm.xlu0 %5987, %v5946
      %v5989 = vpop.permute.xlu0 %5988
      %5992 = vset.pattern.permute.xlu0 0
      %5993 = vperm.xlu0 %5992, %v5947
      %v5994 = vpop.permute.xlu0 %5993
      %5997 = vset.pattern.permute.xlu0 0
      %5998 = vperm.xlu0 %5997, %v5948
      %v5999 = vpop.permute.xlu0 %5998
      %6002 = vset.pattern.permute.xlu0 0
      %6003 = vperm.xlu0 %6002, %v5949
      %v6004 = vpop.permute.xlu0 %6003
      %6007 = vset.pattern.permute.xlu0 0
      %6008 = vperm.xlu0 %6007, %v5950
      %v6009 = vpop.permute.xlu0 %6008
      %6012 = vset.pattern.permute.xlu0 0
      %6013 = vperm.xlu0 %6012, %v5951
      %v6014 = vpop.permute.xlu0 %6013
      %6017 = vset.pattern.permute.xlu0 0
      %6018 = vperm.xlu0 %6017, %v5952
      %v6019 = vpop.permute.xlu0 %6018
      %6022 = vset.pattern.permute.xlu0 0
      %6023 = vperm.xlu0 %6022, %v5953
      %v6024 = vpop.permute.xlu0 %6023
      %6027 = vset.pattern.permute.xlu0 0
      %6028 = vperm.xlu0 %6027, %v5954
      %v6029 = vpop.permute.xlu0 %6028
      %6032 = vset.pattern.permute.xlu0 0
      %6033 = vperm.xlu0 %6032, %v5955
      %v6034 = vpop.permute.xlu0 %6033
      %v6036 = vmul.f32 %v5923, %v5959
      %v6037 = vmul.f32 %v5924, %v5964
      %v6038 = vmul.f32 %v5925, %v5969
      %v6039 = vmul.f32 %v5926, %v5974
      %v6040 = vmul.f32 %v5927, %v5979
      %v6041 = vmul.f32 %v5928, %v5984
      %v6042 = vmul.f32 %v5929, %v5989
      %v6043 = vmul.f32 %v5930, %v5994
      %v6044 = vmul.f32 %v5931, %v5999
      %v6045 = vmul.f32 %v5932, %v6004
      %v6046 = vmul.f32 %v5933, %v6009
      %v6047 = vmul.f32 %v5934, %v6014
      %v6048 = vmul.f32 %v5935, %v6019
      %v6049 = vmul.f32 %v5936, %v6024
      %v6050 = vmul.f32 %v5937, %v6029
      %v6051 = vmul.f32 %v5938, %v6034
      %s6052 = scalar_lea.vmem %s7, 128
      %v6053 = vld [vmem:[%s6052] sm:$0xff]
      %v6054 = vld [vmem:[%s6052 + $0x8] sm:$0xff]
      %v6055 = vld [vmem:[%s6052 + $0x10] sm:$0xff]
      %v6056 = vld [vmem:[%s6052 + $0x18] sm:$0xff]
      %v6057 = vld [vmem:[%s6052 + $0x20] sm:$0xff]
      %v6058 = vld [vmem:[%s6052 + $0x28] sm:$0xff]
      %v6059 = vld [vmem:[%s6052 + $0x30] sm:$0xff]
      %v6060 = vld [vmem:[%s6052 + $0x38] sm:$0xff]
      %v6061 = vld [vmem:[%s6052 + $0x40] sm:$0xff]
      %v6062 = vld [vmem:[%s6052 + $0x48] sm:$0xff]
      %v6063 = vld [vmem:[%s6052 + $0x50] sm:$0xff]
      %v6064 = vld [vmem:[%s6052 + $0x58] sm:$0xff]
      %v6065 = vld [vmem:[%s6052 + $0x60] sm:$0xff]
      %v6066 = vld [vmem:[%s6052 + $0x68] sm:$0xff]
      %v6067 = vld [vmem:[%s6052 + $0x70] sm:$0xff]
      %v6068 = vld [vmem:[%s6052 + $0x78] sm:$0xff]
      %6070 = vset.pattern.permute.xlu0 0
      %6071 = vperm.xlu0 %6070, %v6053
      %v6072 = vpop.permute.xlu0 %6071
      %6075 = vset.pattern.permute.xlu0 0
      %6076 = vperm.xlu0 %6075, %v6054
      %v6077 = vpop.permute.xlu0 %6076
      %6080 = vset.pattern.permute.xlu0 0
      %6081 = vperm.xlu0 %6080, %v6055
      %v6082 = vpop.permute.xlu0 %6081
      %6085 = vset.pattern.permute.xlu0 0
      %6086 = vperm.xlu0 %6085, %v6056
      %v6087 = vpop.permute.xlu0 %6086
      %6090 = vset.pattern.permute.xlu0 0
      %6091 = vperm.xlu0 %6090, %v6057
      %v6092 = vpop.permute.xlu0 %6091
      %6095 = vset.pattern.permute.xlu0 0
      %6096 = vperm.xlu0 %6095, %v6058
      %v6097 = vpop.permute.xlu0 %6096
      %6100 = vset.pattern.permute.xlu0 0
      %6101 = vperm.xlu0 %6100, %v6059
      %v6102 = vpop.permute.xlu0 %6101
      %6105 = vset.pattern.permute.xlu0 0
      %6106 = vperm.xlu0 %6105, %v6060
      %v6107 = vpop.permute.xlu0 %6106
      %6110 = vset.pattern.permute.xlu0 0
      %6111 = vperm.xlu0 %6110, %v6061
      %v6112 = vpop.permute.xlu0 %6111
      %6115 = vset.pattern.permute.xlu0 0
      %6116 = vperm.xlu0 %6115, %v6062
      %v6117 = vpop.permute.xlu0 %6116
      %6120 = vset.pattern.permute.xlu0 0
      %6121 = vperm.xlu0 %6120, %v6063
      %v6122 = vpop.permute.xlu0 %6121
      %6125 = vset.pattern.permute.xlu0 0
      %6126 = vperm.xlu0 %6125, %v6064
      %v6127 = vpop.permute.xlu0 %6126
      %6130 = vset.pattern.permute.xlu0 0
      %6131 = vperm.xlu0 %6130, %v6065
      %v6132 = vpop.permute.xlu0 %6131
      %6135 = vset.pattern.permute.xlu0 0
      %6136 = vperm.xlu0 %6135, %v6066
      %v6137 = vpop.permute.xlu0 %6136
      %6140 = vset.pattern.permute.xlu0 0
      %6141 = vperm.xlu0 %6140, %v6067
      %v6142 = vpop.permute.xlu0 %6141
      %6145 = vset.pattern.permute.xlu0 0
      %6146 = vperm.xlu0 %6145, %v6068
      %v6147 = vpop.permute.xlu0 %6146
      %v6149 = vadd.f32 %v6036, %v6072
      %v6150 = vadd.f32 %v6037, %v6077
      %v6151 = vadd.f32 %v6038, %v6082
      %v6152 = vadd.f32 %v6039, %v6087
      %v6153 = vadd.f32 %v6040, %v6092
      %v6154 = vadd.f32 %v6041, %v6097
      %v6155 = vadd.f32 %v6042, %v6102
      %v6156 = vadd.f32 %v6043, %v6107
      %v6157 = vadd.f32 %v6044, %v6112
      %v6158 = vadd.f32 %v6045, %v6117
      %v6159 = vadd.f32 %v6046, %v6122
      %v6160 = vadd.f32 %v6047, %v6127
      %v6161 = vadd.f32 %v6048, %v6132
      %v6162 = vadd.f32 %v6049, %v6137
      %v6163 = vadd.f32 %v6050, %v6142
      %v6164 = vadd.f32 %v6051, %v6147
      %v6165 = vmax.f32 %v6149, 0.0
      %v6166 = vmax.f32 %v6150, 0.0
      %v6167 = vmax.f32 %v6151, 0.0
      %v6168 = vmax.f32 %v6152, 0.0
      %v6169 = vmax.f32 %v6153, 0.0
      %v6170 = vmax.f32 %v6154, 0.0
      %v6171 = vmax.f32 %v6155, 0.0
      %v6172 = vmax.f32 %v6156, 0.0
      %v6173 = vmax.f32 %v6157, 0.0
      %v6174 = vmax.f32 %v6158, 0.0
      %v6175 = vmax.f32 %v6159, 0.0
      %v6176 = vmax.f32 %v6160, 0.0
      %v6177 = vmax.f32 %v6161, 0.0
      %v6178 = vmax.f32 %v6162, 0.0
      %v6179 = vmax.f32 %v6163, 0.0
      %v6180 = vmax.f32 %v6164, 0.0
      %v6181 = vld [vmem:[%s1] sm:$0xff]
      %v6182 = vld [vmem:[%s1 + $0x8] sm:$0xff]
      %v6183 = vld [vmem:[%s1 + $0x10] sm:$0xff]
      %v6184 = vld [vmem:[%s1 + $0x18] sm:$0xff]
      %v6185 = vld [vmem:[%s1 + $0x20] sm:$0xff]
      %v6186 = vld [vmem:[%s1 + $0x28] sm:$0xff]
      %v6187 = vld [vmem:[%s1 + $0x30] sm:$0xff]
      %v6188 = vld [vmem:[%s1 + $0x38] sm:$0xff]
      %v6190 = vsel %vm2749, %v6165, 0
      %v6193 = vsel %vm2749, %v6166, 0
      %v6196 = vsel %vm2749, %v6167, 0
      %v6199 = vsel %vm2749, %v6168, 0
      %v6202 = vsel %vm2749, %v6169, 0
      %v6205 = vsel %vm2749, %v6170, 0
      %v6208 = vsel %vm2749, %v6171, 0
      %v6211 = vsel %vm2749, %v6172, 0
      %v6214 = vsel %vm2749, %v6173, 0
      %v6217 = vsel %vm2749, %v6174, 0
      %v6220 = vsel %vm2749, %v6175, 0
      %v6223 = vsel %vm2749, %v6176, 0
      %v6226 = vsel %vm2749, %v6177, 0
      %v6229 = vsel %vm2749, %v6178, 0
      %v6232 = vsel %vm2749, %v6179, 0
      %v6235 = vsel %vm2749, %v6180, 0
      %6237 = vmatpush.msra.mxu0 0.0
      %6238 = vmatpush.msra.mxu0 0.0
      %6239 = vmatpush.msra.mxu0 0.0
      %6240 = vmatpush.msra.mxu0 0.0
      %6241 = vmatpush.msra.mxu0 0.0
      %6242 = vmatpush.msra.mxu0 0.0
      %6243 = vmatpush.msra.mxu0 0.0
      %6244 = vmatpush.msra.mxu0 0.0
      %6245 = vmatpush.msra.mxu0 %v6188
      %6246 = vmatpush.msra.mxu0 %v6187
      %6247 = vmatpush.msra.mxu0 %v6186
      %6248 = vmatpush.msra.mxu0 %v6185
      %6249 = vmatpush.msra.mxu0 %v6184
      %6250 = vmatpush.msra.mxu0 %v6183
      %6251 = vmatpush.msra.mxu0 %v6182
      %6252 = vmatpush.msra.mxu0 %v6181
      %6253 = vmatmul.f32.gmra.mxu0 %v6190
      %v6254 = vpop.f32.mrf.mxu0
      %v6255 = vadd.f32 0.0, %v6254
      %6256 = vmatmul.f32.gmra.mxu0 %v6193
      %v6257 = vpop.f32.mrf.mxu0
      %v6258 = vadd.f32 0.0, %v6257
      %6259 = vmatmul.f32.gmra.mxu0 %v6196
      %v6260 = vpop.f32.mrf.mxu0
      %v6261 = vadd.f32 0.0, %v6260
      %6262 = vmatmul.f32.gmra.mxu0 %v6199
      %v6263 = vpop.f32.mrf.mxu0
      %v6264 = vadd.f32 0.0, %v6263
      %6265 = vmatmul.f32.gmra.mxu0 %v6202
      %v6266 = vpop.f32.mrf.mxu0
      %v6267 = vadd.f32 0.0, %v6266
      %6268 = vmatmul.f32.gmra.mxu0 %v6205
      %v6269 = vpop.f32.mrf.mxu0
      %v6270 = vadd.f32 0.0, %v6269
      %6271 = vmatmul.f32.gmra.mxu0 %v6208
      %v6272 = vpop.f32.mrf.mxu0
      %v6273 = vadd.f32 0.0, %v6272
      %6274 = vmatmul.f32.gmra.mxu0 %v6211
      %v6275 = vpop.f32.mrf.mxu0
      %v6276 = vadd.f32 0.0, %v6275
      %6277 = vmatmul.f32.gmra.mxu0 %v6214
      %v6278 = vpop.f32.mrf.mxu0
      %v6279 = vadd.f32 0.0, %v6278
      %6280 = vmatmul.f32.gmra.mxu0 %v6217
      %v6281 = vpop.f32.mrf.mxu0
      %v6282 = vadd.f32 0.0, %v6281
      %6283 = vmatmul.f32.gmra.mxu0 %v6220
      %v6284 = vpop.f32.mrf.mxu0
      %v6285 = vadd.f32 0.0, %v6284
      %6286 = vmatmul.f32.gmra.mxu0 %v6223
      %v6287 = vpop.f32.mrf.mxu0
      %v6288 = vadd.f32 0.0, %v6287
      %6289 = vmatmul.f32.gmra.mxu0 %v6226
      %v6290 = vpop.f32.mrf.mxu0
      %v6291 = vadd.f32 0.0, %v6290
      %6292 = vmatmul.f32.gmra.mxu0 %v6229
      %v6293 = vpop.f32.mrf.mxu0
      %v6294 = vadd.f32 0.0, %v6293
      %6295 = vmatmul.f32.gmra.mxu0 %v6232
      %v6296 = vpop.f32.mrf.mxu0
      %v6297 = vadd.f32 0.0, %v6296
      %6298 = vmatmul.f32.gmra.mxu0 %v6235
      %v6299 = vpop.f32.mrf.mxu0
      %v6300 = vadd.f32 0.0, %v6299
      %6301 = vdwg.mxu0
      %v6302 = vld [vmem:[%s2863] sm:$0xff]
      %v6303 = vld [vmem:[%s2863 + $0x8] sm:$0xff]
      %v6304 = vld [vmem:[%s2863 + $0x10] sm:$0xff]
      %v6305 = vld [vmem:[%s2863 + $0x18] sm:$0xff]
      %v6306 = vld [vmem:[%s2863 + $0x20] sm:$0xff]
      %v6307 = vld [vmem:[%s2863 + $0x28] sm:$0xff]
      %v6308 = vld [vmem:[%s2863 + $0x30] sm:$0xff]
      %v6309 = vld [vmem:[%s2863 + $0x38] sm:$0xff]
      %6310 = vmatpush.msra.mxu0 0.0
      %6311 = vmatpush.msra.mxu0 0.0
      %6312 = vmatpush.msra.mxu0 0.0
      %6313 = vmatpush.msra.mxu0 0.0
      %6314 = vmatpush.msra.mxu0 0.0
      %6315 = vmatpush.msra.mxu0 0.0
      %6316 = vmatpush.msra.mxu0 0.0
      %6317 = vmatpush.msra.mxu0 0.0
      %6318 = vmatpush.msra.mxu0 %v6309
      %6319 = vmatpush.msra.mxu0 %v6308
      %6320 = vmatpush.msra.mxu0 %v6307
      %6321 = vmatpush.msra.mxu0 %v6306
      %6322 = vmatpush.msra.mxu0 %v6305
      %6323 = vmatpush.msra.mxu0 %v6304
      %6324 = vmatpush.msra.mxu0 %v6303
      %6325 = vmatpush.msra.mxu0 %v6302
      %6326 = vmatmul.f32.gmra.mxu0 %v6190
      %v6327 = vpop.f32.mrf.mxu0
      %v6328 = vadd.f32 0.0, %v6327
      %6329 = vmatmul.f32.gmra.mxu0 %v6193
      %v6330 = vpop.f32.mrf.mxu0
      %v6331 = vadd.f32 0.0, %v6330
      %6332 = vmatmul.f32.gmra.mxu0 %v6196
      %v6333 = vpop.f32.mrf.mxu0
      %v6334 = vadd.f32 0.0, %v6333
      %6335 = vmatmul.f32.gmra.mxu0 %v6199
      %v6336 = vpop.f32.mrf.mxu0
      %v6337 = vadd.f32 0.0, %v6336
      %6338 = vmatmul.f32.gmra.mxu0 %v6202
      %v6339 = vpop.f32.mrf.mxu0
      %v6340 = vadd.f32 0.0, %v6339
      %6341 = vmatmul.f32.gmra.mxu0 %v6205
      %v6342 = vpop.f32.mrf.mxu0
      %v6343 = vadd.f32 0.0, %v6342
      %6344 = vmatmul.f32.gmra.mxu0 %v6208
      %v6345 = vpop.f32.mrf.mxu0
      %v6346 = vadd.f32 0.0, %v6345
      %6347 = vmatmul.f32.gmra.mxu0 %v6211
      %v6348 = vpop.f32.mrf.mxu0
      %v6349 = vadd.f32 0.0, %v6348
      %6350 = vmatmul.f32.gmra.mxu0 %v6214
      %v6351 = vpop.f32.mrf.mxu0
      %v6352 = vadd.f32 0.0, %v6351
      %6353 = vmatmul.f32.gmra.mxu0 %v6217
      %v6354 = vpop.f32.mrf.mxu0
      %v6355 = vadd.f32 0.0, %v6354
      %6356 = vmatmul.f32.gmra.mxu0 %v6220
      %v6357 = vpop.f32.mrf.mxu0
      %v6358 = vadd.f32 0.0, %v6357
      %6359 = vmatmul.f32.gmra.mxu0 %v6223
      %v6360 = vpop.f32.mrf.mxu0
      %v6361 = vadd.f32 0.0, %v6360
      %6362 = vmatmul.f32.gmra.mxu0 %v6226
      %v6363 = vpop.f32.mrf.mxu0
      %v6364 = vadd.f32 0.0, %v6363
      %6365 = vmatmul.f32.gmra.mxu0 %v6229
      %v6366 = vpop.f32.mrf.mxu0
      %v6367 = vadd.f32 0.0, %v6366
      %6368 = vmatmul.f32.gmra.mxu0 %v6232
      %v6369 = vpop.f32.mrf.mxu0
      %v6370 = vadd.f32 0.0, %v6369
      %6371 = vmatmul.f32.gmra.mxu0 %v6235
      %v6372 = vpop.f32.mrf.mxu0
      %v6373 = vadd.f32 0.0, %v6372
      %6374 = vdwg.mxu0
      %v6375 = vmax.f32 %v6255, %v6328
      %v6376 = vmax.f32 %v6258, %v6331
      %v6377 = vmax.f32 %v6261, %v6334
      %v6378 = vmax.f32 %v6264, %v6337
      %v6379 = vmax.f32 %v6267, %v6340
      %v6380 = vmax.f32 %v6270, %v6343
      %v6381 = vmax.f32 %v6273, %v6346
      %v6382 = vmax.f32 %v6276, %v6349
      %v6383 = vmax.f32 %v6279, %v6352
      %v6384 = vmax.f32 %v6282, %v6355
      %v6385 = vmax.f32 %v6285, %v6358
      %v6386 = vmax.f32 %v6288, %v6361
      %v6387 = vmax.f32 %v6291, %v6364
      %v6388 = vmax.f32 %v6294, %v6367
      %v6389 = vmax.f32 %v6297, %v6370
      %v6390 = vmax.f32 %v6300, %v6373
      %v6391 = vld [vmem:[%s2953] sm:$0xff]
      %v6392 = vld [vmem:[%s2953 + $0x8] sm:$0xff]
      %v6393 = vld [vmem:[%s2953 + $0x10] sm:$0xff]
      %v6394 = vld [vmem:[%s2953 + $0x18] sm:$0xff]
      %v6395 = vld [vmem:[%s2953 + $0x20] sm:$0xff]
      %v6396 = vld [vmem:[%s2953 + $0x28] sm:$0xff]
      %v6397 = vld [vmem:[%s2953 + $0x30] sm:$0xff]
      %v6398 = vld [vmem:[%s2953 + $0x38] sm:$0xff]
      %6399 = vmatpush.msra.mxu0 0.0
      %6400 = vmatpush.msra.mxu0 0.0
      %6401 = vmatpush.msra.mxu0 0.0
      %6402 = vmatpush.msra.mxu0 0.0
      %6403 = vmatpush.msra.mxu0 0.0
      %6404 = vmatpush.msra.mxu0 0.0
      %6405 = vmatpush.msra.mxu0 0.0
      %6406 = vmatpush.msra.mxu0 0.0
      %6407 = vmatpush.msra.mxu0 %v6398
      %6408 = vmatpush.msra.mxu0 %v6397
      %6409 = vmatpush.msra.mxu0 %v6396
      %6410 = vmatpush.msra.mxu0 %v6395
      %6411 = vmatpush.msra.mxu0 %v6394
      %6412 = vmatpush.msra.mxu0 %v6393
      %6413 = vmatpush.msra.mxu0 %v6392
      %6414 = vmatpush.msra.mxu0 %v6391
      %6415 = vmatmul.f32.gmra.mxu0 %v6190
      %v6416 = vpop.f32.mrf.mxu0
      %v6417 = vadd.f32 0.0, %v6416
      %6418 = vmatmul.f32.gmra.mxu0 %v6193
      %v6419 = vpop.f32.mrf.mxu0
      %v6420 = vadd.f32 0.0, %v6419
      %6421 = vmatmul.f32.gmra.mxu0 %v6196
      %v6422 = vpop.f32.mrf.mxu0
      %v6423 = vadd.f32 0.0, %v6422
      %6424 = vmatmul.f32.gmra.mxu0 %v6199
      %v6425 = vpop.f32.mrf.mxu0
      %v6426 = vadd.f32 0.0, %v6425
      %6427 = vmatmul.f32.gmra.mxu0 %v6202
      %v6428 = vpop.f32.mrf.mxu0
      %v6429 = vadd.f32 0.0, %v6428
      %6430 = vmatmul.f32.gmra.mxu0 %v6205
      %v6431 = vpop.f32.mrf.mxu0
      %v6432 = vadd.f32 0.0, %v6431
      %6433 = vmatmul.f32.gmra.mxu0 %v6208
      %v6434 = vpop.f32.mrf.mxu0
      %v6435 = vadd.f32 0.0, %v6434
      %6436 = vmatmul.f32.gmra.mxu0 %v6211
      %v6437 = vpop.f32.mrf.mxu0
      %v6438 = vadd.f32 0.0, %v6437
      %6439 = vmatmul.f32.gmra.mxu0 %v6214
      %v6440 = vpop.f32.mrf.mxu0
      %v6441 = vadd.f32 0.0, %v6440
      %6442 = vmatmul.f32.gmra.mxu0 %v6217
      %v6443 = vpop.f32.mrf.mxu0
      %v6444 = vadd.f32 0.0, %v6443
      %6445 = vmatmul.f32.gmra.mxu0 %v6220
      %v6446 = vpop.f32.mrf.mxu0
      %v6447 = vadd.f32 0.0, %v6446
      %6448 = vmatmul.f32.gmra.mxu0 %v6223
      %v6449 = vpop.f32.mrf.mxu0
      %v6450 = vadd.f32 0.0, %v6449
      %6451 = vmatmul.f32.gmra.mxu0 %v6226
      %v6452 = vpop.f32.mrf.mxu0
      %v6453 = vadd.f32 0.0, %v6452
      %6454 = vmatmul.f32.gmra.mxu0 %v6229
      %v6455 = vpop.f32.mrf.mxu0
      %v6456 = vadd.f32 0.0, %v6455
      %6457 = vmatmul.f32.gmra.mxu0 %v6232
      %v6458 = vpop.f32.mrf.mxu0
      %v6459 = vadd.f32 0.0, %v6458
      %6460 = vmatmul.f32.gmra.mxu0 %v6235
      %v6461 = vpop.f32.mrf.mxu0
      %v6462 = vadd.f32 0.0, %v6461
      %6463 = vdwg.mxu0
      %v6464 = vmax.f32 %v6375, %v6417
      %v6465 = vmax.f32 %v6376, %v6420
      %v6466 = vmax.f32 %v6377, %v6423
      %v6467 = vmax.f32 %v6378, %v6426
      %v6468 = vmax.f32 %v6379, %v6429
      %v6469 = vmax.f32 %v6380, %v6432
      %v6470 = vmax.f32 %v6381, %v6435
      %v6471 = vmax.f32 %v6382, %v6438
      %v6472 = vmax.f32 %v6383, %v6441
      %v6473 = vmax.f32 %v6384, %v6444
      %v6474 = vmax.f32 %v6385, %v6447
      %v6475 = vmax.f32 %v6386, %v6450
      %v6476 = vmax.f32 %v6387, %v6453
      %v6477 = vmax.f32 %v6388, %v6456
      %v6478 = vmax.f32 %v6389, %v6459
      %v6479 = vmax.f32 %v6390, %v6462
      %v6480 = vld [vmem:[%s3043] sm:$0xff]
      %v6481 = vld [vmem:[%s3043 + $0x8] sm:$0xff]
      %v6482 = vld [vmem:[%s3043 + $0x10] sm:$0xff]
      %v6483 = vld [vmem:[%s3043 + $0x18] sm:$0xff]
      %v6484 = vld [vmem:[%s3043 + $0x20] sm:$0xff]
      %v6485 = vld [vmem:[%s3043 + $0x28] sm:$0xff]
      %v6486 = vld [vmem:[%s3043 + $0x30] sm:$0xff]
      %v6487 = vld [vmem:[%s3043 + $0x38] sm:$0xff]
      %6488 = vmatpush.msra.mxu0 0.0
      %6489 = vmatpush.msra.mxu0 0.0
      %6490 = vmatpush.msra.mxu0 0.0
      %6491 = vmatpush.msra.mxu0 0.0
      %6492 = vmatpush.msra.mxu0 0.0
      %6493 = vmatpush.msra.mxu0 0.0
      %6494 = vmatpush.msra.mxu0 0.0
      %6495 = vmatpush.msra.mxu0 0.0
      %6496 = vmatpush.msra.mxu0 %v6487
      %6497 = vmatpush.msra.mxu0 %v6486
      %6498 = vmatpush.msra.mxu0 %v6485
      %6499 = vmatpush.msra.mxu0 %v6484
      %6500 = vmatpush.msra.mxu0 %v6483
      %6501 = vmatpush.msra.mxu0 %v6482
      %6502 = vmatpush.msra.mxu0 %v6481
      %6503 = vmatpush.msra.mxu0 %v6480
      %6504 = vmatmul.f32.gmra.mxu0 %v6190
      %v6505 = vpop.f32.mrf.mxu0
      %v6506 = vadd.f32 0.0, %v6505
      %6507 = vmatmul.f32.gmra.mxu0 %v6193
      %v6508 = vpop.f32.mrf.mxu0
      %v6509 = vadd.f32 0.0, %v6508
      %6510 = vmatmul.f32.gmra.mxu0 %v6196
      %v6511 = vpop.f32.mrf.mxu0
      %v6512 = vadd.f32 0.0, %v6511
      %6513 = vmatmul.f32.gmra.mxu0 %v6199
      %v6514 = vpop.f32.mrf.mxu0
      %v6515 = vadd.f32 0.0, %v6514
      %6516 = vmatmul.f32.gmra.mxu0 %v6202
      %v6517 = vpop.f32.mrf.mxu0
      %v6518 = vadd.f32 0.0, %v6517
      %6519 = vmatmul.f32.gmra.mxu0 %v6205
      %v6520 = vpop.f32.mrf.mxu0
      %v6521 = vadd.f32 0.0, %v6520
      %6522 = vmatmul.f32.gmra.mxu0 %v6208
      %v6523 = vpop.f32.mrf.mxu0
      %v6524 = vadd.f32 0.0, %v6523
      %6525 = vmatmul.f32.gmra.mxu0 %v6211
      %v6526 = vpop.f32.mrf.mxu0
      %v6527 = vadd.f32 0.0, %v6526
      %6528 = vmatmul.f32.gmra.mxu0 %v6214
      %v6529 = vpop.f32.mrf.mxu0
      %v6530 = vadd.f32 0.0, %v6529
      %6531 = vmatmul.f32.gmra.mxu0 %v6217
      %v6532 = vpop.f32.mrf.mxu0
      %v6533 = vadd.f32 0.0, %v6532
      %6534 = vmatmul.f32.gmra.mxu0 %v6220
      %v6535 = vpop.f32.mrf.mxu0
      %v6536 = vadd.f32 0.0, %v6535
      %6537 = vmatmul.f32.gmra.mxu0 %v6223
      %v6538 = vpop.f32.mrf.mxu0
      %v6539 = vadd.f32 0.0, %v6538
      %6540 = vmatmul.f32.gmra.mxu0 %v6226
      %v6541 = vpop.f32.mrf.mxu0
      %v6542 = vadd.f32 0.0, %v6541
      %6543 = vmatmul.f32.gmra.mxu0 %v6229
      %v6544 = vpop.f32.mrf.mxu0
      %v6545 = vadd.f32 0.0, %v6544
      %6546 = vmatmul.f32.gmra.mxu0 %v6232
      %v6547 = vpop.f32.mrf.mxu0
      %v6548 = vadd.f32 0.0, %v6547
      %6549 = vmatmul.f32.gmra.mxu0 %v6235
      %v6550 = vpop.f32.mrf.mxu0
      %v6551 = vadd.f32 0.0, %v6550
      %6552 = vdwg.mxu0
      %v6553 = vmax.f32 %v6464, %v6506
      %v6554 = vmax.f32 %v6465, %v6509
      %v6555 = vmax.f32 %v6466, %v6512
      %v6556 = vmax.f32 %v6467, %v6515
      %v6557 = vmax.f32 %v6468, %v6518
      %v6558 = vmax.f32 %v6469, %v6521
      %v6559 = vmax.f32 %v6470, %v6524
      %v6560 = vmax.f32 %v6471, %v6527
      %v6561 = vmax.f32 %v6472, %v6530
      %v6562 = vmax.f32 %v6473, %v6533
      %v6563 = vmax.f32 %v6474, %v6536
      %v6564 = vmax.f32 %v6475, %v6539
      %v6565 = vmax.f32 %v6476, %v6542
      %v6566 = vmax.f32 %v6477, %v6545
      %v6567 = vmax.f32 %v6478, %v6548
      %v6568 = vmax.f32 %v6479, %v6551
      %v6569 = vld [vmem:[%s3133] sm:$0xff]
      %v6570 = vld [vmem:[%s3133 + $0x8] sm:$0xff]
      %v6571 = vld [vmem:[%s3133 + $0x10] sm:$0xff]
      %v6572 = vld [vmem:[%s3133 + $0x18] sm:$0xff]
      %v6573 = vld [vmem:[%s3133 + $0x20] sm:$0xff]
      %v6574 = vld [vmem:[%s3133 + $0x28] sm:$0xff]
      %v6575 = vld [vmem:[%s3133 + $0x30] sm:$0xff]
      %v6576 = vld [vmem:[%s3133 + $0x38] sm:$0xff]
      %6577 = vmatpush.msra.mxu0 0.0
      %6578 = vmatpush.msra.mxu0 0.0
      %6579 = vmatpush.msra.mxu0 0.0
      %6580 = vmatpush.msra.mxu0 0.0
      %6581 = vmatpush.msra.mxu0 0.0
      %6582 = vmatpush.msra.mxu0 0.0
      %6583 = vmatpush.msra.mxu0 0.0
      %6584 = vmatpush.msra.mxu0 0.0
      %6585 = vmatpush.msra.mxu0 %v6576
      %6586 = vmatpush.msra.mxu0 %v6575
      %6587 = vmatpush.msra.mxu0 %v6574
      %6588 = vmatpush.msra.mxu0 %v6573
      %6589 = vmatpush.msra.mxu0 %v6572
      %6590 = vmatpush.msra.mxu0 %v6571
      %6591 = vmatpush.msra.mxu0 %v6570
      %6592 = vmatpush.msra.mxu0 %v6569
      %6593 = vmatmul.f32.gmra.mxu0 %v6190
      %v6594 = vpop.f32.mrf.mxu0
      %v6595 = vadd.f32 0.0, %v6594
      %6596 = vmatmul.f32.gmra.mxu0 %v6193
      %v6597 = vpop.f32.mrf.mxu0
      %v6598 = vadd.f32 0.0, %v6597
      %6599 = vmatmul.f32.gmra.mxu0 %v6196
      %v6600 = vpop.f32.mrf.mxu0
      %v6601 = vadd.f32 0.0, %v6600
      %6602 = vmatmul.f32.gmra.mxu0 %v6199
      %v6603 = vpop.f32.mrf.mxu0
      %v6604 = vadd.f32 0.0, %v6603
      %6605 = vmatmul.f32.gmra.mxu0 %v6202
      %v6606 = vpop.f32.mrf.mxu0
      %v6607 = vadd.f32 0.0, %v6606
      %6608 = vmatmul.f32.gmra.mxu0 %v6205
      %v6609 = vpop.f32.mrf.mxu0
      %v6610 = vadd.f32 0.0, %v6609
      %6611 = vmatmul.f32.gmra.mxu0 %v6208
      %v6612 = vpop.f32.mrf.mxu0
      %v6613 = vadd.f32 0.0, %v6612
      %6614 = vmatmul.f32.gmra.mxu0 %v6211
      %v6615 = vpop.f32.mrf.mxu0
      %v6616 = vadd.f32 0.0, %v6615
      %6617 = vmatmul.f32.gmra.mxu0 %v6214
      %v6618 = vpop.f32.mrf.mxu0
      %v6619 = vadd.f32 0.0, %v6618
      %6620 = vmatmul.f32.gmra.mxu0 %v6217
      %v6621 = vpop.f32.mrf.mxu0
      %v6622 = vadd.f32 0.0, %v6621
      %6623 = vmatmul.f32.gmra.mxu0 %v6220
      %v6624 = vpop.f32.mrf.mxu0
      %v6625 = vadd.f32 0.0, %v6624
      %6626 = vmatmul.f32.gmra.mxu0 %v6223
      %v6627 = vpop.f32.mrf.mxu0
      %v6628 = vadd.f32 0.0, %v6627
      %6629 = vmatmul.f32.gmra.mxu0 %v6226
      %v6630 = vpop.f32.mrf.mxu0
      %v6631 = vadd.f32 0.0, %v6630
      %6632 = vmatmul.f32.gmra.mxu0 %v6229
      %v6633 = vpop.f32.mrf.mxu0
      %v6634 = vadd.f32 0.0, %v6633
      %6635 = vmatmul.f32.gmra.mxu0 %v6232
      %v6636 = vpop.f32.mrf.mxu0
      %v6637 = vadd.f32 0.0, %v6636
      %6638 = vmatmul.f32.gmra.mxu0 %v6235
      %v6639 = vpop.f32.mrf.mxu0
      %v6640 = vadd.f32 0.0, %v6639
      %6641 = vdwg.mxu0
      %v6642 = vmax.f32 %v6553, %v6595
      %v6643 = vmax.f32 %v6554, %v6598
      %v6644 = vmax.f32 %v6555, %v6601
      %v6645 = vmax.f32 %v6556, %v6604
      %v6646 = vmax.f32 %v6557, %v6607
      %v6647 = vmax.f32 %v6558, %v6610
      %v6648 = vmax.f32 %v6559, %v6613
      %v6649 = vmax.f32 %v6560, %v6616
      %v6650 = vmax.f32 %v6561, %v6619
      %v6651 = vmax.f32 %v6562, %v6622
      %v6652 = vmax.f32 %v6563, %v6625
      %v6653 = vmax.f32 %v6564, %v6628
      %v6654 = vmax.f32 %v6565, %v6631
      %v6655 = vmax.f32 %v6566, %v6634
      %v6656 = vmax.f32 %v6567, %v6637
      %v6657 = vmax.f32 %v6568, %v6640
      %v6658 = vld [vmem:[%s3223] sm:$0xff]
      %v6659 = vld [vmem:[%s3223 + $0x8] sm:$0xff]
      %v6660 = vld [vmem:[%s3223 + $0x10] sm:$0xff]
      %v6661 = vld [vmem:[%s3223 + $0x18] sm:$0xff]
      %v6662 = vld [vmem:[%s3223 + $0x20] sm:$0xff]
      %v6663 = vld [vmem:[%s3223 + $0x28] sm:$0xff]
      %v6664 = vld [vmem:[%s3223 + $0x30] sm:$0xff]
      %v6665 = vld [vmem:[%s3223 + $0x38] sm:$0xff]
      %6666 = vmatpush.msra.mxu0 0.0
      %6667 = vmatpush.msra.mxu0 0.0
      %6668 = vmatpush.msra.mxu0 0.0
      %6669 = vmatpush.msra.mxu0 0.0
      %6670 = vmatpush.msra.mxu0 0.0
      %6671 = vmatpush.msra.mxu0 0.0
      %6672 = vmatpush.msra.mxu0 0.0
      %6673 = vmatpush.msra.mxu0 0.0
      %6674 = vmatpush.msra.mxu0 %v6665
      %6675 = vmatpush.msra.mxu0 %v6664
      %6676 = vmatpush.msra.mxu0 %v6663
      %6677 = vmatpush.msra.mxu0 %v6662
      %6678 = vmatpush.msra.mxu0 %v6661
      %6679 = vmatpush.msra.mxu0 %v6660
      %6680 = vmatpush.msra.mxu0 %v6659
      %6681 = vmatpush.msra.mxu0 %v6658
      %6682 = vmatmul.f32.gmra.mxu0 %v6190
      %v6683 = vpop.f32.mrf.mxu0
      %v6684 = vadd.f32 0.0, %v6683
      %6685 = vmatmul.f32.gmra.mxu0 %v6193
      %v6686 = vpop.f32.mrf.mxu0
      %v6687 = vadd.f32 0.0, %v6686
      %6688 = vmatmul.f32.gmra.mxu0 %v6196
      %v6689 = vpop.f32.mrf.mxu0
      %v6690 = vadd.f32 0.0, %v6689
      %6691 = vmatmul.f32.gmra.mxu0 %v6199
      %v6692 = vpop.f32.mrf.mxu0
      %v6693 = vadd.f32 0.0, %v6692
      %6694 = vmatmul.f32.gmra.mxu0 %v6202
      %v6695 = vpop.f32.mrf.mxu0
      %v6696 = vadd.f32 0.0, %v6695
      %6697 = vmatmul.f32.gmra.mxu0 %v6205
      %v6698 = vpop.f32.mrf.mxu0
      %v6699 = vadd.f32 0.0, %v6698
      %6700 = vmatmul.f32.gmra.mxu0 %v6208
      %v6701 = vpop.f32.mrf.mxu0
      %v6702 = vadd.f32 0.0, %v6701
      %6703 = vmatmul.f32.gmra.mxu0 %v6211
      %v6704 = vpop.f32.mrf.mxu0
      %v6705 = vadd.f32 0.0, %v6704
      %6706 = vmatmul.f32.gmra.mxu0 %v6214
      %v6707 = vpop.f32.mrf.mxu0
      %v6708 = vadd.f32 0.0, %v6707
      %6709 = vmatmul.f32.gmra.mxu0 %v6217
      %v6710 = vpop.f32.mrf.mxu0
      %v6711 = vadd.f32 0.0, %v6710
      %6712 = vmatmul.f32.gmra.mxu0 %v6220
      %v6713 = vpop.f32.mrf.mxu0
      %v6714 = vadd.f32 0.0, %v6713
      %6715 = vmatmul.f32.gmra.mxu0 %v6223
      %v6716 = vpop.f32.mrf.mxu0
      %v6717 = vadd.f32 0.0, %v6716
      %6718 = vmatmul.f32.gmra.mxu0 %v6226
      %v6719 = vpop.f32.mrf.mxu0
      %v6720 = vadd.f32 0.0, %v6719
      %6721 = vmatmul.f32.gmra.mxu0 %v6229
      %v6722 = vpop.f32.mrf.mxu0
      %v6723 = vadd.f32 0.0, %v6722
      %6724 = vmatmul.f32.gmra.mxu0 %v6232
      %v6725 = vpop.f32.mrf.mxu0
      %v6726 = vadd.f32 0.0, %v6725
      %6727 = vmatmul.f32.gmra.mxu0 %v6235
      %v6728 = vpop.f32.mrf.mxu0
      %v6729 = vadd.f32 0.0, %v6728
      %6730 = vdwg.mxu0
      %v6731 = vmax.f32 %v6642, %v6684
      %v6732 = vmax.f32 %v6643, %v6687
      %v6733 = vmax.f32 %v6644, %v6690
      %v6734 = vmax.f32 %v6645, %v6693
      %v6735 = vmax.f32 %v6646, %v6696
      %v6736 = vmax.f32 %v6647, %v6699
      %v6737 = vmax.f32 %v6648, %v6702
      %v6738 = vmax.f32 %v6649, %v6705
      %v6739 = vmax.f32 %v6650, %v6708
      %v6740 = vmax.f32 %v6651, %v6711
      %v6741 = vmax.f32 %v6652, %v6714
      %v6742 = vmax.f32 %v6653, %v6717
      %v6743 = vmax.f32 %v6654, %v6720
      %v6744 = vmax.f32 %v6655, %v6723
      %v6745 = vmax.f32 %v6656, %v6726
      %v6746 = vmax.f32 %v6657, %v6729
      %v6747 = vld [vmem:[%s3313] sm:$0xff]
      %v6748 = vld [vmem:[%s3313 + $0x8] sm:$0xff]
      %v6749 = vld [vmem:[%s3313 + $0x10] sm:$0xff]
      %v6750 = vld [vmem:[%s3313 + $0x18] sm:$0xff]
      %v6751 = vld [vmem:[%s3313 + $0x20] sm:$0xff]
      %v6752 = vld [vmem:[%s3313 + $0x28] sm:$0xff]
      %v6753 = vld [vmem:[%s3313 + $0x30] sm:$0xff]
      %v6754 = vld [vmem:[%s3313 + $0x38] sm:$0xff]
      %6755 = vmatpush.msra.mxu0 0.0
      %6756 = vmatpush.msra.mxu0 0.0
      %6757 = vmatpush.msra.mxu0 0.0
      %6758 = vmatpush.msra.mxu0 0.0
      %6759 = vmatpush.msra.mxu0 0.0
      %6760 = vmatpush.msra.mxu0 0.0
      %6761 = vmatpush.msra.mxu0 0.0
      %6762 = vmatpush.msra.mxu0 0.0
      %6763 = vmatpush.msra.mxu0 %v6754
      %6764 = vmatpush.msra.mxu0 %v6753
      %6765 = vmatpush.msra.mxu0 %v6752
      %6766 = vmatpush.msra.mxu0 %v6751
      %6767 = vmatpush.msra.mxu0 %v6750
      %6768 = vmatpush.msra.mxu0 %v6749
      %6769 = vmatpush.msra.mxu0 %v6748
      %6770 = vmatpush.msra.mxu0 %v6747
      %6771 = vmatmul.f32.gmra.mxu0 %v6190
      %v6772 = vpop.f32.mrf.mxu0
      %v6773 = vadd.f32 0.0, %v6772
      %6774 = vmatmul.f32.gmra.mxu0 %v6193
      %v6775 = vpop.f32.mrf.mxu0
      %v6776 = vadd.f32 0.0, %v6775
      %6777 = vmatmul.f32.gmra.mxu0 %v6196
      %v6778 = vpop.f32.mrf.mxu0
      %v6779 = vadd.f32 0.0, %v6778
      %6780 = vmatmul.f32.gmra.mxu0 %v6199
      %v6781 = vpop.f32.mrf.mxu0
      %v6782 = vadd.f32 0.0, %v6781
      %6783 = vmatmul.f32.gmra.mxu0 %v6202
      %v6784 = vpop.f32.mrf.mxu0
      %v6785 = vadd.f32 0.0, %v6784
      %6786 = vmatmul.f32.gmra.mxu0 %v6205
      %v6787 = vpop.f32.mrf.mxu0
      %v6788 = vadd.f32 0.0, %v6787
      %6789 = vmatmul.f32.gmra.mxu0 %v6208
      %v6790 = vpop.f32.mrf.mxu0
      %v6791 = vadd.f32 0.0, %v6790
      %6792 = vmatmul.f32.gmra.mxu0 %v6211
      %v6793 = vpop.f32.mrf.mxu0
      %v6794 = vadd.f32 0.0, %v6793
      %6795 = vmatmul.f32.gmra.mxu0 %v6214
      %v6796 = vpop.f32.mrf.mxu0
      %v6797 = vadd.f32 0.0, %v6796
      %6798 = vmatmul.f32.gmra.mxu0 %v6217
      %v6799 = vpop.f32.mrf.mxu0
      %v6800 = vadd.f32 0.0, %v6799
      %6801 = vmatmul.f32.gmra.mxu0 %v6220
      %v6802 = vpop.f32.mrf.mxu0
      %v6803 = vadd.f32 0.0, %v6802
      %6804 = vmatmul.f32.gmra.mxu0 %v6223
      %v6805 = vpop.f32.mrf.mxu0
      %v6806 = vadd.f32 0.0, %v6805
      %6807 = vmatmul.f32.gmra.mxu0 %v6226
      %v6808 = vpop.f32.mrf.mxu0
      %v6809 = vadd.f32 0.0, %v6808
      %6810 = vmatmul.f32.gmra.mxu0 %v6229
      %v6811 = vpop.f32.mrf.mxu0
      %v6812 = vadd.f32 0.0, %v6811
      %6813 = vmatmul.f32.gmra.mxu0 %v6232
      %v6814 = vpop.f32.mrf.mxu0
      %v6815 = vadd.f32 0.0, %v6814
      %6816 = vmatmul.f32.gmra.mxu0 %v6235
      %v6817 = vpop.f32.mrf.mxu0
      %v6818 = vadd.f32 0.0, %v6817
      %6819 = vdwg.mxu0
      %v6820 = vmax.f32 %v6731, %v6773
      %v6821 = vmax.f32 %v6732, %v6776
      %v6822 = vmax.f32 %v6733, %v6779
      %v6823 = vmax.f32 %v6734, %v6782
      %v6824 = vmax.f32 %v6735, %v6785
      %v6825 = vmax.f32 %v6736, %v6788
      %v6826 = vmax.f32 %v6737, %v6791
      %v6827 = vmax.f32 %v6738, %v6794
      %v6828 = vmax.f32 %v6739, %v6797
      %v6829 = vmax.f32 %v6740, %v6800
      %v6830 = vmax.f32 %v6741, %v6803
      %v6831 = vmax.f32 %v6742, %v6806
      %v6832 = vmax.f32 %v6743, %v6809
      %v6833 = vmax.f32 %v6744, %v6812
      %v6834 = vmax.f32 %v6745, %v6815
      %v6835 = vmax.f32 %v6746, %v6818
      %v6836 = vld [vmem:[%s3403] sm:$0xff]
      %v6837 = vld [vmem:[%s3403 + $0x8] sm:$0xff]
      %v6838 = vld [vmem:[%s3403 + $0x10] sm:$0xff]
      %v6839 = vld [vmem:[%s3403 + $0x18] sm:$0xff]
      %v6840 = vld [vmem:[%s3403 + $0x20] sm:$0xff]
      %v6841 = vld [vmem:[%s3403 + $0x28] sm:$0xff]
      %v6842 = vld [vmem:[%s3403 + $0x30] sm:$0xff]
      %v6843 = vld [vmem:[%s3403 + $0x38] sm:$0xff]
      %6844 = vmatpush.msra.mxu0 0.0
      %6845 = vmatpush.msra.mxu0 0.0
      %6846 = vmatpush.msra.mxu0 0.0
      %6847 = vmatpush.msra.mxu0 0.0
      %6848 = vmatpush.msra.mxu0 0.0
      %6849 = vmatpush.msra.mxu0 0.0
      %6850 = vmatpush.msra.mxu0 0.0
      %6851 = vmatpush.msra.mxu0 0.0
      %6852 = vmatpush.msra.mxu0 %v6843
      %6853 = vmatpush.msra.mxu0 %v6842
      %6854 = vmatpush.msra.mxu0 %v6841
      %6855 = vmatpush.msra.mxu0 %v6840
      %6856 = vmatpush.msra.mxu0 %v6839
      %6857 = vmatpush.msra.mxu0 %v6838
      %6858 = vmatpush.msra.mxu0 %v6837
      %6859 = vmatpush.msra.mxu0 %v6836
      %6860 = vmatmul.f32.gmra.mxu0 %v6190
      %v6861 = vpop.f32.mrf.mxu0
      %v6862 = vadd.f32 0.0, %v6861
      %6863 = vmatmul.f32.gmra.mxu0 %v6193
      %v6864 = vpop.f32.mrf.mxu0
      %v6865 = vadd.f32 0.0, %v6864
      %6866 = vmatmul.f32.gmra.mxu0 %v6196
      %v6867 = vpop.f32.mrf.mxu0
      %v6868 = vadd.f32 0.0, %v6867
      %6869 = vmatmul.f32.gmra.mxu0 %v6199
      %v6870 = vpop.f32.mrf.mxu0
      %v6871 = vadd.f32 0.0, %v6870
      %6872 = vmatmul.f32.gmra.mxu0 %v6202
      %v6873 = vpop.f32.mrf.mxu0
      %v6874 = vadd.f32 0.0, %v6873
      %6875 = vmatmul.f32.gmra.mxu0 %v6205
      %v6876 = vpop.f32.mrf.mxu0
      %v6877 = vadd.f32 0.0, %v6876
      %6878 = vmatmul.f32.gmra.mxu0 %v6208
      %v6879 = vpop.f32.mrf.mxu0
      %v6880 = vadd.f32 0.0, %v6879
      %6881 = vmatmul.f32.gmra.mxu0 %v6211
      %v6882 = vpop.f32.mrf.mxu0
      %v6883 = vadd.f32 0.0, %v6882
      %6884 = vmatmul.f32.gmra.mxu0 %v6214
      %v6885 = vpop.f32.mrf.mxu0
      %v6886 = vadd.f32 0.0, %v6885
      %6887 = vmatmul.f32.gmra.mxu0 %v6217
      %v6888 = vpop.f32.mrf.mxu0
      %v6889 = vadd.f32 0.0, %v6888
      %6890 = vmatmul.f32.gmra.mxu0 %v6220
      %v6891 = vpop.f32.mrf.mxu0
      %v6892 = vadd.f32 0.0, %v6891
      %6893 = vmatmul.f32.gmra.mxu0 %v6223
      %v6894 = vpop.f32.mrf.mxu0
      %v6895 = vadd.f32 0.0, %v6894
      %6896 = vmatmul.f32.gmra.mxu0 %v6226
      %v6897 = vpop.f32.mrf.mxu0
      %v6898 = vadd.f32 0.0, %v6897
      %6899 = vmatmul.f32.gmra.mxu0 %v6229
      %v6900 = vpop.f32.mrf.mxu0
      %v6901 = vadd.f32 0.0, %v6900
      %6902 = vmatmul.f32.gmra.mxu0 %v6232
      %v6903 = vpop.f32.mrf.mxu0
      %v6904 = vadd.f32 0.0, %v6903
      %6905 = vmatmul.f32.gmra.mxu0 %v6235
      %v6906 = vpop.f32.mrf.mxu0
      %v6907 = vadd.f32 0.0, %v6906
      %6908 = vdwg.mxu0
      %v6909 = vmax.f32 %v6820, %v6862
      %v6910 = vmax.f32 %v6821, %v6865
      %v6911 = vmax.f32 %v6822, %v6868
      %v6912 = vmax.f32 %v6823, %v6871
      %v6913 = vmax.f32 %v6824, %v6874
      %v6914 = vmax.f32 %v6825, %v6877
      %v6915 = vmax.f32 %v6826, %v6880
      %v6916 = vmax.f32 %v6827, %v6883
      %v6917 = vmax.f32 %v6828, %v6886
      %v6918 = vmax.f32 %v6829, %v6889
      %v6919 = vmax.f32 %v6830, %v6892
      %v6920 = vmax.f32 %v6831, %v6895
      %v6921 = vmax.f32 %v6832, %v6898
      %v6922 = vmax.f32 %v6833, %v6901
      %v6923 = vmax.f32 %v6834, %v6904
      %v6924 = vmax.f32 %v6835, %v6907
      %v6925 = vld [vmem:[%s3493] sm:$0xff]
      %v6926 = vld [vmem:[%s3493 + $0x8] sm:$0xff]
      %v6927 = vld [vmem:[%s3493 + $0x10] sm:$0xff]
      %v6928 = vld [vmem:[%s3493 + $0x18] sm:$0xff]
      %v6929 = vld [vmem:[%s3493 + $0x20] sm:$0xff]
      %v6930 = vld [vmem:[%s3493 + $0x28] sm:$0xff]
      %v6931 = vld [vmem:[%s3493 + $0x30] sm:$0xff]
      %v6932 = vld [vmem:[%s3493 + $0x38] sm:$0xff]
      %6933 = vmatpush.msra.mxu0 0.0
      %6934 = vmatpush.msra.mxu0 0.0
      %6935 = vmatpush.msra.mxu0 0.0
      %6936 = vmatpush.msra.mxu0 0.0
      %6937 = vmatpush.msra.mxu0 0.0
      %6938 = vmatpush.msra.mxu0 0.0
      %6939 = vmatpush.msra.mxu0 0.0
      %6940 = vmatpush.msra.mxu0 0.0
      %6941 = vmatpush.msra.mxu0 %v6932
      %6942 = vmatpush.msra.mxu0 %v6931
      %6943 = vmatpush.msra.mxu0 %v6930
      %6944 = vmatpush.msra.mxu0 %v6929
      %6945 = vmatpush.msra.mxu0 %v6928
      %6946 = vmatpush.msra.mxu0 %v6927
      %6947 = vmatpush.msra.mxu0 %v6926
      %6948 = vmatpush.msra.mxu0 %v6925
      %6949 = vmatmul.f32.gmra.mxu0 %v6190
      %v6950 = vpop.f32.mrf.mxu0
      %v6951 = vadd.f32 0.0, %v6950
      %6952 = vmatmul.f32.gmra.mxu0 %v6193
      %v6953 = vpop.f32.mrf.mxu0
      %v6954 = vadd.f32 0.0, %v6953
      %6955 = vmatmul.f32.gmra.mxu0 %v6196
      %v6956 = vpop.f32.mrf.mxu0
      %v6957 = vadd.f32 0.0, %v6956
      %6958 = vmatmul.f32.gmra.mxu0 %v6199
      %v6959 = vpop.f32.mrf.mxu0
      %v6960 = vadd.f32 0.0, %v6959
      %6961 = vmatmul.f32.gmra.mxu0 %v6202
      %v6962 = vpop.f32.mrf.mxu0
      %v6963 = vadd.f32 0.0, %v6962
      %6964 = vmatmul.f32.gmra.mxu0 %v6205
      %v6965 = vpop.f32.mrf.mxu0
      %v6966 = vadd.f32 0.0, %v6965
      %6967 = vmatmul.f32.gmra.mxu0 %v6208
      %v6968 = vpop.f32.mrf.mxu0
      %v6969 = vadd.f32 0.0, %v6968
      %6970 = vmatmul.f32.gmra.mxu0 %v6211
      %v6971 = vpop.f32.mrf.mxu0
      %v6972 = vadd.f32 0.0, %v6971
      %6973 = vmatmul.f32.gmra.mxu0 %v6214
      %v6974 = vpop.f32.mrf.mxu0
      %v6975 = vadd.f32 0.0, %v6974
      %6976 = vmatmul.f32.gmra.mxu0 %v6217
      %v6977 = vpop.f32.mrf.mxu0
      %v6978 = vadd.f32 0.0, %v6977
      %6979 = vmatmul.f32.gmra.mxu0 %v6220
      %v6980 = vpop.f32.mrf.mxu0
      %v6981 = vadd.f32 0.0, %v6980
      %6982 = vmatmul.f32.gmra.mxu0 %v6223
      %v6983 = vpop.f32.mrf.mxu0
      %v6984 = vadd.f32 0.0, %v6983
      %6985 = vmatmul.f32.gmra.mxu0 %v6226
      %v6986 = vpop.f32.mrf.mxu0
      %v6987 = vadd.f32 0.0, %v6986
      %6988 = vmatmul.f32.gmra.mxu0 %v6229
      %v6989 = vpop.f32.mrf.mxu0
      %v6990 = vadd.f32 0.0, %v6989
      %6991 = vmatmul.f32.gmra.mxu0 %v6232
      %v6992 = vpop.f32.mrf.mxu0
      %v6993 = vadd.f32 0.0, %v6992
      %6994 = vmatmul.f32.gmra.mxu0 %v6235
      %v6995 = vpop.f32.mrf.mxu0
      %v6996 = vadd.f32 0.0, %v6995
      %6997 = vdwg.mxu0
      %v6998 = vmax.f32 %v6909, %v6951
      %v6999 = vmax.f32 %v6910, %v6954
      %v7000 = vmax.f32 %v6911, %v6957
      %v7001 = vmax.f32 %v6912, %v6960
      %v7002 = vmax.f32 %v6913, %v6963
      %v7003 = vmax.f32 %v6914, %v6966
      %v7004 = vmax.f32 %v6915, %v6969
      %v7005 = vmax.f32 %v6916, %v6972
      %v7006 = vmax.f32 %v6917, %v6975
      %v7007 = vmax.f32 %v6918, %v6978
      %v7008 = vmax.f32 %v6919, %v6981
      %v7009 = vmax.f32 %v6920, %v6984
      %v7010 = vmax.f32 %v6921, %v6987
      %v7011 = vmax.f32 %v6922, %v6990
      %v7012 = vmax.f32 %v6923, %v6993
      %v7013 = vmax.f32 %v6924, %v6996
      %s7014 = scalar_lea.vmem %s8, 64
      %v7015 = vld [vmem:[%s7014] sm:$0xff]
      %v7016 = vld [vmem:[%s7014 + $0x8] sm:$0xff]
      %v7017 = vld [vmem:[%s7014 + $0x10] sm:$0xff]
      %v7018 = vld [vmem:[%s7014 + $0x18] sm:$0xff]
      %v7019 = vld [vmem:[%s7014 + $0x20] sm:$0xff]
      %v7020 = vld [vmem:[%s7014 + $0x28] sm:$0xff]
      %v7021 = vld [vmem:[%s7014 + $0x30] sm:$0xff]
      %v7022 = vld [vmem:[%s7014 + $0x38] sm:$0xff]
      %7023 = vmatpush.msra.mxu0 %v7013
      %7024 = vmatpush.msra.mxu0 %v7012
      %7025 = vmatpush.msra.mxu0 %v7011
      %7026 = vmatpush.msra.mxu0 %v7010
      %7027 = vmatpush.msra.mxu0 %v7009
      %7028 = vmatpush.msra.mxu0 %v7008
      %7029 = vmatpush.msra.mxu0 %v7007
      %7030 = vmatpush.msra.mxu0 %v7006
      %7031 = vmatpush.msra.mxu0 %v7005
      %7032 = vmatpush.msra.mxu0 %v7004
      %7033 = vmatpush.msra.mxu0 %v7003
      %7034 = vmatpush.msra.mxu0 %v7002
      %7035 = vmatpush.msra.mxu0 %v7001
      %7036 = vmatpush.msra.mxu0 %v7000
      %7037 = vmatpush.msra.mxu0 %v6999
      %7038 = vmatpush.msra.mxu0 %v6998
      %7039 = vmatmul.f32.gmra.mxu0 %v7015
      %v7040 = vpop.f32.mrf.mxu0
      %v7041 = vadd.f32 0.0, %v7040
      %7042 = vmatmul.f32.gmra.mxu0 %v7016
      %v7043 = vpop.f32.mrf.mxu0
      %v7044 = vadd.f32 0.0, %v7043
      %7045 = vmatmul.f32.gmra.mxu0 %v7017
      %v7046 = vpop.f32.mrf.mxu0
      %v7047 = vadd.f32 0.0, %v7046
      %7048 = vmatmul.f32.gmra.mxu0 %v7018
      %v7049 = vpop.f32.mrf.mxu0
      %v7050 = vadd.f32 0.0, %v7049
      %7051 = vmatmul.f32.gmra.mxu0 %v7019
      %v7052 = vpop.f32.mrf.mxu0
      %v7053 = vadd.f32 0.0, %v7052
      %7054 = vmatmul.f32.gmra.mxu0 %v7020
      %v7055 = vpop.f32.mrf.mxu0
      %v7056 = vadd.f32 0.0, %v7055
      %7057 = vmatmul.f32.gmra.mxu0 %v7021
      %v7058 = vpop.f32.mrf.mxu0
      %v7059 = vadd.f32 0.0, %v7058
      %7060 = vmatmul.f32.gmra.mxu0 %v7022
      %v7061 = vpop.f32.mrf.mxu0
      %v7062 = vadd.f32 0.0, %v7061
      %7063 = vdwg.mxu0
      %s7064 = scalar_lea.vmem %s9, 64
      %v7065 = vld [vmem:[%s7064] sm:$0xff]
      %v7066 = vld [vmem:[%s7064 + $0x8] sm:$0xff]
      %v7067 = vld [vmem:[%s7064 + $0x10] sm:$0xff]
      %v7068 = vld [vmem:[%s7064 + $0x18] sm:$0xff]
      %v7069 = vld [vmem:[%s7064 + $0x20] sm:$0xff]
      %v7070 = vld [vmem:[%s7064 + $0x28] sm:$0xff]
      %v7071 = vld [vmem:[%s7064 + $0x30] sm:$0xff]
      %v7072 = vld [vmem:[%s7064 + $0x38] sm:$0xff]
      %7074 = vset.pattern.permute.xlu0 0
      %7075 = vperm.xlu0 %7074, %v7065
      %v7076 = vpop.permute.xlu0 %7075
      %7079 = vset.pattern.permute.xlu0 0
      %7080 = vperm.xlu0 %7079, %v7066
      %v7081 = vpop.permute.xlu0 %7080
      %7084 = vset.pattern.permute.xlu0 0
      %7085 = vperm.xlu0 %7084, %v7067
      %v7086 = vpop.permute.xlu0 %7085
      %7089 = vset.pattern.permute.xlu0 0
      %7090 = vperm.xlu0 %7089, %v7068
      %v7091 = vpop.permute.xlu0 %7090
      %7094 = vset.pattern.permute.xlu0 0
      %7095 = vperm.xlu0 %7094, %v7069
      %v7096 = vpop.permute.xlu0 %7095
      %7099 = vset.pattern.permute.xlu0 0
      %7100 = vperm.xlu0 %7099, %v7070
      %v7101 = vpop.permute.xlu0 %7100
      %7104 = vset.pattern.permute.xlu0 0
      %7105 = vperm.xlu0 %7104, %v7071
      %v7106 = vpop.permute.xlu0 %7105
      %7109 = vset.pattern.permute.xlu0 0
      %7110 = vperm.xlu0 %7109, %v7072
      %v7111 = vpop.permute.xlu0 %7110
      %v7113 = vmul.f32 %v7041, %v7076
      %v7114 = vmul.f32 %v7044, %v7081
      %v7115 = vmul.f32 %v7047, %v7086
      %v7116 = vmul.f32 %v7050, %v7091
      %v7117 = vmul.f32 %v7053, %v7096
      %v7118 = vmul.f32 %v7056, %v7101
      %v7119 = vmul.f32 %v7059, %v7106
      %v7120 = vmul.f32 %v7062, %v7111
      %s7121 = scalar_lea.vmem %s10, 64
      %v7122 = vld [vmem:[%s7121] sm:$0xff]
      %v7123 = vld [vmem:[%s7121 + $0x8] sm:$0xff]
      %v7124 = vld [vmem:[%s7121 + $0x10] sm:$0xff]
      %v7125 = vld [vmem:[%s7121 + $0x18] sm:$0xff]
      %v7126 = vld [vmem:[%s7121 + $0x20] sm:$0xff]
      %v7127 = vld [vmem:[%s7121 + $0x28] sm:$0xff]
      %v7128 = vld [vmem:[%s7121 + $0x30] sm:$0xff]
      %v7129 = vld [vmem:[%s7121 + $0x38] sm:$0xff]
      %7131 = vset.pattern.permute.xlu0 0
      %7132 = vperm.xlu0 %7131, %v7122
      %v7133 = vpop.permute.xlu0 %7132
      %7136 = vset.pattern.permute.xlu0 0
      %7137 = vperm.xlu0 %7136, %v7123
      %v7138 = vpop.permute.xlu0 %7137
      %7141 = vset.pattern.permute.xlu0 0
      %7142 = vperm.xlu0 %7141, %v7124
      %v7143 = vpop.permute.xlu0 %7142
      %7146 = vset.pattern.permute.xlu0 0
      %7147 = vperm.xlu0 %7146, %v7125
      %v7148 = vpop.permute.xlu0 %7147
      %7151 = vset.pattern.permute.xlu0 0
      %7152 = vperm.xlu0 %7151, %v7126
      %v7153 = vpop.permute.xlu0 %7152
      %7156 = vset.pattern.permute.xlu0 0
      %7157 = vperm.xlu0 %7156, %v7127
      %v7158 = vpop.permute.xlu0 %7157
      %7161 = vset.pattern.permute.xlu0 0
      %7162 = vperm.xlu0 %7161, %v7128
      %v7163 = vpop.permute.xlu0 %7162
      %7166 = vset.pattern.permute.xlu0 0
      %7167 = vperm.xlu0 %7166, %v7129
      %v7168 = vpop.permute.xlu0 %7167
      %v7170 = vadd.f32 %v7113, %v7133
      %v7171 = vadd.f32 %v7114, %v7138
      %v7172 = vadd.f32 %v7115, %v7143
      %v7173 = vadd.f32 %v7116, %v7148
      %v7174 = vadd.f32 %v7117, %v7153
      %v7175 = vadd.f32 %v7118, %v7158
      %v7176 = vadd.f32 %v7119, %v7163
      %v7177 = vadd.f32 %v7120, %v7168
      %v7178 = vmax.f32 %v7170, 0.0
      %v7179 = vmax.f32 %v7171, 0.0
      %v7180 = vmax.f32 %v7172, 0.0
      %v7181 = vmax.f32 %v7173, 0.0
      %v7182 = vmax.f32 %v7174, 0.0
      %v7183 = vmax.f32 %v7175, 0.0
      %v7184 = vmax.f32 %v7176, 0.0
      %v7185 = vmax.f32 %v7177, 0.0
      %s7186 = scalar_lea.vmem %s11, 32
      %v7187 = vld [vmem:[%s7186] sm:$0xff]
      %v7188 = vld [vmem:[%s7186 + $0x8] sm:$0xff]
      %v7189 = vld [vmem:[%s7186 + $0x10] sm:$0xff]
      %v7190 = vld [vmem:[%s7186 + $0x18] sm:$0xff]
      %v7192 = vsel %vm2749, %v7187, 0
      %v7195 = vsel %vm2749, %v7188, 0
      %v7198 = vsel %vm2749, %v7189, 0
      %v7201 = vsel %vm2749, %v7190, 0
      %7203 = vmatpush.msra.mxu0 0.0
      %7204 = vmatpush.msra.mxu0 0.0
      %7205 = vmatpush.msra.mxu0 0.0
      %7206 = vmatpush.msra.mxu0 0.0
      %7207 = vmatpush.msra.mxu0 0.0
      %7208 = vmatpush.msra.mxu0 0.0
      %7209 = vmatpush.msra.mxu0 0.0
      %7210 = vmatpush.msra.mxu0 0.0
      %7211 = vmatpush.msra.mxu0 %v7185
      %7212 = vmatpush.msra.mxu0 %v7184
      %7213 = vmatpush.msra.mxu0 %v7183
      %7214 = vmatpush.msra.mxu0 %v7182
      %7215 = vmatpush.msra.mxu0 %v7181
      %7216 = vmatpush.msra.mxu0 %v7180
      %7217 = vmatpush.msra.mxu0 %v7179
      %7218 = vmatpush.msra.mxu0 %v7178
      %7219 = vmatmul.f32.gmra.mxu0 %v7192
      %v7220 = vpop.f32.mrf.mxu0
      %v7221 = vadd.f32 0.0, %v7220
      %7222 = vmatmul.f32.gmra.mxu0 %v7195
      %v7223 = vpop.f32.mrf.mxu0
      %v7224 = vadd.f32 0.0, %v7223
      %7225 = vmatmul.f32.gmra.mxu0 %v7198
      %v7226 = vpop.f32.mrf.mxu0
      %v7227 = vadd.f32 0.0, %v7226
      %7228 = vmatmul.f32.gmra.mxu0 %v7201
      %v7229 = vpop.f32.mrf.mxu0
      %v7230 = vadd.f32 0.0, %v7229
      %7231 = vdwg.mxu0
      %s7232 = scalar_lea.vmem %s12, 32
      %v7233 = vld [vmem:[%s7232] sm:$0xff]
      %v7234 = vld [vmem:[%s7232 + $0x8] sm:$0xff]
      %v7235 = vld [vmem:[%s7232 + $0x10] sm:$0xff]
      %v7236 = vld [vmem:[%s7232 + $0x18] sm:$0xff]
      %7238 = vset.pattern.permute.xlu0 0
      %7239 = vperm.xlu0 %7238, %v7233
      %v7240 = vpop.permute.xlu0 %7239
      %7243 = vset.pattern.permute.xlu0 0
      %7244 = vperm.xlu0 %7243, %v7234
      %v7245 = vpop.permute.xlu0 %7244
      %7248 = vset.pattern.permute.xlu0 0
      %7249 = vperm.xlu0 %7248, %v7235
      %v7250 = vpop.permute.xlu0 %7249
      %7253 = vset.pattern.permute.xlu0 0
      %7254 = vperm.xlu0 %7253, %v7236
      %v7255 = vpop.permute.xlu0 %7254
      %v7257 = vmul.f32 %v7221, %v7240
      %v7258 = vmul.f32 %v7224, %v7245
      %v7259 = vmul.f32 %v7227, %v7250
      %v7260 = vmul.f32 %v7230, %v7255
      %s7261 = scalar_lea.vmem %s13, 32
      %v7262 = vld [vmem:[%s7261] sm:$0xff]
      %v7263 = vld [vmem:[%s7261 + $0x8] sm:$0xff]
      %v7264 = vld [vmem:[%s7261 + $0x10] sm:$0xff]
      %v7265 = vld [vmem:[%s7261 + $0x18] sm:$0xff]
      %7267 = vset.pattern.permute.xlu0 0
      %7268 = vperm.xlu0 %7267, %v7262
      %v7269 = vpop.permute.xlu0 %7268
      %7272 = vset.pattern.permute.xlu0 0
      %7273 = vperm.xlu0 %7272, %v7263
      %v7274 = vpop.permute.xlu0 %7273
      %7277 = vset.pattern.permute.xlu0 0
      %7278 = vperm.xlu0 %7277, %v7264
      %v7279 = vpop.permute.xlu0 %7278
      %7282 = vset.pattern.permute.xlu0 0
      %7283 = vperm.xlu0 %7282, %v7265
      %v7284 = vpop.permute.xlu0 %7283
      %v7286 = vadd.f32 %v7257, %v7269
      %v7287 = vadd.f32 %v7258, %v7274
      %v7288 = vadd.f32 %v7259, %v7279
      %v7289 = vadd.f32 %v7260, %v7284
      %v7290 = vmax.f32 %v7286, 0.0
      %v7291 = vmax.f32 %v7287, 0.0
      %v7292 = vmax.f32 %v7288, 0.0
      %v7293 = vmax.f32 %v7289, 0.0
      %s7294 = scalar_lea.vmem %s14, 4
      %v7295 = vld [vmem:[%s7294] sm:$0xf]
      %s7296 = scalar_lea.vmem %s15, 4
      %v7297 = vld [vmem:[%s7296] sm:$0xf]
      %7299 = vset.pattern.permute.xlu0 0
      %7300 = vperm.xlu0 %7299, %v7297
      %v7301 = vpop.permute.xlu0 %7300
      %v7304 = vsel %vm3864, %v7295, 0
      %7306 = vmatpush.msra.mxu0 0.0
      %7307 = vmatpush.msra.mxu0 0.0
      %7308 = vmatpush.msra.mxu0 0.0
      %7309 = vmatpush.msra.mxu0 0.0
      %7310 = vmatpush.msra.mxu0 0.0
      %7311 = vmatpush.msra.mxu0 0.0
      %7312 = vmatpush.msra.mxu0 0.0
      %7313 = vmatpush.msra.mxu0 0.0
      %7314 = vmatpush.msra.mxu0 0.0
      %7315 = vmatpush.msra.mxu0 0.0
      %7316 = vmatpush.msra.mxu0 0.0
      %7317 = vmatpush.msra.mxu0 0.0
      %7318 = vmatpush.msra.mxu0 %v7293
      %7319 = vmatpush.msra.mxu0 %v7292
      %7320 = vmatpush.msra.mxu0 %v7291
      %7321 = vmatpush.msra.mxu0 %v7290
      %7322 = vmatmul.f32.gmra.mxu0 %v7304
      %v7323 = vpop.f32.mrf.mxu0
      %v7324 = vadd.f32 %v7301, %v7323
      %7325 = vdwg.mxu0
      %v7326 = vmax.f32 %v7324, 0.0
      %v7327 = vsel %vm3889, %v7326, -inf
      %v7328 = vrot.slane %v7327, 4
      %v7329 = vmax.f32 %v7327, %v7328
      %v7330 = vrot.slane %v7329, 2
      %v7331 = vmax.f32 %v7329, %v7330
      %v7332 = vrot.slane %v7331, 1
      %v7333 = vmax.f32 %v7331, %v7332
      %v7334 = vsub.f32 %v7326, %v7333
      %v7335 = vmul.f32 %v7334, 1.442695
      %v7336 = vpow.pop %v7335
      %v7337 = vsel %vm3889, %v7336, 0.0
      %v7338 = vrot.slane %v7337, 4
      %v7339 = vadd.f32 %v7337, %v7338
      %v7340 = vrot.slane %v7339, 2
      %v7341 = vadd.f32 %v7339, %v7340
      %v7342 = vrot.slane %v7341, 1
      %v7343 = vadd.f32 %v7341, %v7342
      %v7344 = vrcp.pop %v7343
      %v7345 = vmul.f32 %v7336, %v7344
      %v7346 = vld [vmem:[%s2] sm:$0xff]
      %v7347 = vld [vmem:[%s2 + $0x8] sm:$0xff]
      %v7348 = vld [vmem:[%s2 + $0x10] sm:$0xff]
      %v7349 = vld [vmem:[%s2 + $0x18] sm:$0xff]
      %v7351 = vsel %vm3913, %v7345, 0
      %7353 = vmatpush.msra.mxu0 0.0
      %7354 = vmatpush.msra.mxu0 0.0
      %7355 = vmatpush.msra.mxu0 0.0
      %7356 = vmatpush.msra.mxu0 0.0
      %7357 = vmatpush.msra.mxu0 0.0
      %7358 = vmatpush.msra.mxu0 0.0
      %7359 = vmatpush.msra.mxu0 0.0
      %7360 = vmatpush.msra.mxu0 0.0
      %7361 = vmatpush.msra.mxu0 0.0
      %7362 = vmatpush.msra.mxu0 0.0
      %7363 = vmatpush.msra.mxu0 0.0
      %7364 = vmatpush.msra.mxu0 0.0
      %7365 = vmatpush.msra.mxu0 0.0
      %7366 = vmatpush.msra.mxu0 0.0
      %7367 = vmatpush.msra.mxu0 %v7348
      %7368 = vmatpush.msra.mxu0 %v7346
      %7369 = vmatmul.f32.gmra.mxu0 %v7351
      %v7370 = vpop.f32.mrf.mxu0
      %v7371 = vadd.f32 0.0, %v7370
      %7372 = vdwg.mxu0
      %7373 = vmatpush.msra.mxu0 0.0
      %7374 = vmatpush.msra.mxu0 0.0
      %7375 = vmatpush.msra.mxu0 0.0
      %7376 = vmatpush.msra.mxu0 0.0
      %7377 = vmatpush.msra.mxu0 0.0
      %7378 = vmatpush.msra.mxu0 0.0
      %7379 = vmatpush.msra.mxu0 0.0
      %7380 = vmatpush.msra.mxu0 0.0
      %7381 = vmatpush.msra.mxu0 0.0
      %7382 = vmatpush.msra.mxu0 0.0
      %7383 = vmatpush.msra.mxu0 0.0
      %7384 = vmatpush.msra.mxu0 0.0
      %7385 = vmatpush.msra.mxu0 0.0
      %7386 = vmatpush.msra.mxu0 0.0
      %7387 = vmatpush.msra.mxu0 %v7349
      %7388 = vmatpush.msra.mxu0 %v7347
      %7389 = vmatmul.f32.gmra.mxu0 %v7351
      %v7390 = vpop.f32.mrf.mxu0
      %v7391 = vadd.f32 0.0, %v7390
      %7392 = vdwg.mxu0
      %7393 = vst [vmem:[#allocation1] ss:$2 sm:$0xff] %v3998
      %v7394 = vld.sshfl [vmem:[#allocation1] sm:$0xff pattern:$0x75316420]
      %v7395 = vld.sshfl [vmem:[#allocation1 + $0x8] sm:$0xff pattern:$0x75316420]
      %v7398 = vsel %vm3962, %v7394, -inf
      %v7399 = vsel %vm3962, %v7395, -inf
      %v7400 = vmax.f32 %v7398, %v7399
      %7401 = vmax.xlane.f32.xlu0 %v7400
      %v7402 = vpop.xlane.xlu0 %7401
      %v7403 = vmax.f32 %v7402, 0.0
      %v7404 = vrsqrt.pop %v7403
      %v7405 = vmul.f32 %v7404, %v7403
      %v7406 = vmul.f32 %v7405, %v7404
      %v7407 = vmul.f32 0.5, %v7406
      %v7408 = vsub.f32 1.5, %v7407
      %v7409 = vmul.f32 %v7404, %v7408
      %v7410 = vmul.f32 %v7403, %v7409
      %vm7411 = vcmp.eq.f32.partialorder %v7403, inf
      %v7412 = vsel %vm7411, %v7403, %v7410
      %vm7413 = vcmp.eq.f32.partialorder %v7403, 0.0
      %v7414 = vand.u32 %v7403, 2147483648
      %v7415 = vsel %vm7413, %v7414, %v7412
      %v7416 = vmax.f32 %v7415, 0.0
      %v7417 = vmin.f32 %v7416, 1.0
      %v7420 = vunpack.c.l.s4 839922192
      %v7421 = vunpack.c.0.s8 %v7420
      %v7422 = vperm.slane %v7417, %v7421
      %v7424 = vmul.f32 %v3998, %v7422
      %v7425 = vsub.f32 1.0, %v7417
      %v7426 = vmul.f32 %v7371, %v7425
      %v7427 = vmul.f32 %v7391, %v7425
      %v7430 = vrot.slane %v7427, 4
      %v7431 = vsel %vm3962, %v7426, %v7430
      %v7433 = vadd.f32 %v7424, %v7431
      %7434 = vst [vmem:[%s541] sm:$0xff] %v7433
      %p7435 = scmp.lt.s32.totalorder %s27, 1
      %s7436 = scalar_select %p7435, %s27, 1
      %s7437 = smul.addr %s7436, 2
      %s7438 = smul.addr %s7437, 4
      %s7439 = scalar_lea.vmem %s16, %s7438
      // Predicated region
      $region85: #{stack_metabooster_forward.1} parent=83 // pred_check
        %p7440 = pneg %p391
      $region86: #{stack_metabooster_forward.1} parent=83 // pred_check_branch
        %7442 = sbr.rel (%p7440) target = $region88
      $region87: #{stack_metabooster_forward.1} parent=83 // pred_region
        _
      $region88: #{stack_metabooster_forward.1} parent=83 // pred_fallthru
        _
    $region84: #{stack_metabooster_forward.1} parent=5 // pred_fallthru
      _
    %p7443 = scmp.le.s32.totalorder 2, %s22
    // Predicated region
    $region89: #{stack_metabooster_forward.1} parent=5 // pred_check
      %p7444 = pneg %p7443
    $region90: #{stack_metabooster_forward.1} parent=5 // pred_check_branch
      %7446 = sbr.rel (%p7444) target = $region92
    $region91: #{stack_metabooster_forward.1} parent=5 // pred_region
      %s7447 = ssub.s32 %s22, 2
      // Predicated region
      $region93: #{stack_metabooster_forward.1} parent=91 // pred_check
        %p7448 = pneg %p397
      $region94: #{stack_metabooster_forward.1} parent=91 // pred_check_branch
        %7450 = sbr.rel (%p7448) target = $region96
      $region95: #{stack_metabooster_forward.1} parent=91 // pred_region
        %p7451 = scmp.lt.s32.totalorder %s28, 1
        %s7452 = scalar_select %p7451, %s28, 1
        %s7453 = smul.addr %s7452, 2
        %s7454 = smul.addr %s7453, 4
        %s7455 = scalar_lea.vmem %s16, %s7454
      $region96: #{stack_metabooster_forward.1} parent=91 // pred_fallthru
        _
    $region92: #{stack_metabooster_forward.1} parent=5 // pred_fallthru
      _
  $region6: #{stack_metabooster_forward.1} parent=0 // loop_footer
    %s26 = sadd.s32 1, %s22
  $region7: #{stack_metabooster_forward.1} parent=0 // loop_footer_branch
    %21 = sbr.rel target = $region3
  $region8: #{stack_metabooster_forward.1} parent=0 // loop_exit
    _

</llo_original>
